<compile_context>
chip_gen: v5e
topology: v5e:2x2
jax: 0.10.0
libtpu: 0.0.40
codegen_flags: <defaults>
</compile_context>

<pallas_src>
import functools

import numpy as np
import jax
import jax.numpy as jnp
from jax import lax
from jax.experimental import pallas as pl
from jax.experimental.pallas import tpu as pltpu

LANE = 128


# ----------------------------------------------------------------------------
# Kernel.  Grid = (batch blocks, V tiles).  Internal row layout is 2-D with
# row index = t * BB + b_local ("time-major, batch interleaved"): every tensor
# the kernel touches is a plain [rows, features] tile, no in-kernel reshapes.
# ----------------------------------------------------------------------------
def dipole_kernel(x_ref, mask_ref, rowmask_ref,
                  we_ref, be_ref, wih_ref, bih_ref, whh_ref, bhh_ref,
                  watt_ref, batt_ref, wfch_ref, wfcc_ref, bfc_ref,
                  out_ref,
                  gx_s, hs_s, ctx_s,
                  *, n_embd_pad, block_b, seq_len, mm_dtype):
    Dp = n_embd_pad
    BB = block_b
    T = seq_len

    def mm(a, b):
        # big matmuls; bf16 operands (f32 accumulation) are valid on v5e/v6e/v7x
        return jnp.dot(a.astype(mm_dtype), b.astype(mm_dtype),
                       preferred_element_type=jnp.float32)

    # ---- phase 1 (first V tile only): embedding + GRU + progressive attention
    @pl.when(pl.program_id(1) == 0)
    def _recurrence():
        # embedding + relu, and the hoisted input-gate matmul
        emb = jnp.maximum(mm(x_ref[...], we_ref[...]) + be_ref[...], 0.0)
        gx_s[...] = mm(emb, wih_ref[...]) + bih_ref[...]          # [T*BB, 3Dp]

        # recurrent weights / biases read once (reused every step)
        whh = whh_ref[...]                                        # [Dp, 3Dp]
        bhh = bhh_ref[...]                                        # [1, 3Dp]
        w_att = watt_ref[...]                                     # [1, Dp]
        b_att = batt_ref[...]                                     # [1, 1]

        def step(t, carry):
            h, m, l, acc = carry
            row = t * BB if isinstance(t, int) else pl.multiple_of(t * BB, BB)
            # GRU cell (PyTorch gate order r, z, n) - single fused matmul
            gh = jnp.dot(h, whh, preferred_element_type=jnp.float32) + bhh
            gx = gx_s[pl.ds(row, BB), :]
            r = jax.nn.sigmoid(gx[:, :Dp] + gh[:, :Dp])
            z = jax.nn.sigmoid(gx[:, Dp:2 * Dp] + gh[:, Dp:2 * Dp])
            n = jnp.tanh(gx[:, 2 * Dp:] + r * gh[:, 2 * Dp:])
            h = (1.0 - z) * n + z * h
            hs_s[pl.ds(row, BB), :] = h
            # fused progressive attention: exact online prefix softmax,
            # per-sample stabilised.  Invalid steps carry an additive -99999
            # mask so exp(.) underflows to exactly 0 (same as the reference).
            e = (jnp.sum(h * w_att, axis=1, keepdims=True) + b_att
                 + mask_ref[pl.ds(row, BB), :])                   # [BB, 1]
            m_new = jnp.maximum(m, e)
            scale = jnp.exp(m - m_new)
            p = jnp.exp(e - m_new)
            l = l * scale + p
            acc = acc * scale + p * h
            ctx_s[pl.ds(row, BB), :] = acc * pl.reciprocal(l, approx=True)
            return h, m_new, l, acc

        carry0 = (jnp.zeros((BB, Dp), jnp.float32),
                  jnp.full((BB, 1), -1e30, jnp.float32),
                  jnp.zeros((BB, 1), jnp.float32),
                  jnp.zeros((BB, Dp), jnp.float32))
        if T <= 16:
            # short sequences: full static unroll (LLO scheduler visibility)
            carry = carry0
            for t in range(T):
                carry = step(t, carry)
        else:
            # long sequences: bounded live ranges, small unroll
            lax.fori_loop(0, T, step, carry0, unroll=2)

        # zero hidden states at t >= lengths[b]  (pack/pad_packed semantics)
        valid = (mask_ref[...] > -1.0).astype(jnp.float32)        # [T*BB, 1]
        hs_s[...] = hs_s[...] * valid

    # ---- phase 2 (every V tile): final projection on this V tile ------------
    logits = ((mm(hs_s[...], wfch_ref[...]) + mm(ctx_s[...], wfcc_ref[...]))
              * rowmask_ref[...] + bfc_ref[...])                  # [T*BB, tV]
    out_ref[...] = jax.nn.sigmoid(logits).astype(out_ref.dtype)


# ----------------------------------------------------------------------------
# Wrapper: all layout plumbing (padding, (t,b)-interleaved arrangement, masks,
# per-gate lane-aligned weight layout) happens here in XLA.
# ----------------------------------------------------------------------------
def dipole_forward(x, lengths, params, *, mm_dtype=jnp.float32,
                   out_dtype=jnp.float32, block_b=None, block_v=None):
    """Dipole forward (code_probs) as a Pallas TPU kernel.

    mm_dtype=jnp.bfloat16 runs the large matmuls with bf16 MXU operands and
    f32 accumulation (recommended for throughput on v5e/v6e/v7x; note the
    input-gate pre-activations then feed the recurrence with bf16 rounding -
    validate at the target sequence length if strict f32 parity matters).
    out_dtype=jnp.bfloat16 halves the output writeback on v6e/v7x.
    """
    B, T, V = x.shape
    D = params["b_emb"].shape[-1]

    # pad feature dims to the 128-lane vreg / MXU width
    Dp = ((D + LANE - 1) // LANE) * LANE
    Vp = ((V + LANE - 1) // LANE) * LANE

    # V-tile width of the output projection (lane-dense stores; bounds the
    # per-step working set so large vocabularies also fit v7x's 64 MiB VMEM)
    if block_v is None:
        block_v = next(c for c in (512, 256, 128) if Vp % c == 0)
    block_v = min(block_v, Vp)
    NV = Vp // block_v

    # explicit VMEM budget: the default scoped limit is far below physical
    try:
        vmem_cap = int(pltpu.get_tpu_info().vmem_capacity_bytes)
    except Exception:
        vmem_cap = 64 * 1024 * 1024          # conservative (v7x-sized) fallback
    vmem_limit = min(vmem_cap - 8 * 1024 * 1024, 100 * 1024 * 1024)
    vmem_limit = max(vmem_limit, 32 * 1024 * 1024)

    # batch block: as large as possible (MXU row utilisation on the serial GRU
    # path), multiple of 8, capped by a VMEM heuristic.
    if block_b is None:
        b8 = 8 * ((B + 7) // 8)
        block_b = min(128, b8)
        per_row_bytes = 4 * (5 * Dp + 2 * Vp + 2 * block_v)   # scratch + x/out
        max_bb = max(8, ((int(0.6 * vmem_limit) // (T * per_row_bytes)) // 8) * 8)
        block_b = min(block_b, max_bb)
        # TODO(synk): on v7x prefer >= 2 batch blocks (halve block_b if needed)
        # so the "parallel" batch axis can feed both TensorCores.
    BB = block_b
    NB = -(-B // BB)
    Bp = NB * BB
    TB = T * BB

    x = x.astype(jnp.float32)
    lengths_j = jnp.asarray(lengths, jnp.int32)
    true_len = jnp.max(lengths_j)            # device scalar: no host sync

    if Bp != B:                              # pad batch to a multiple of BB
        x = jnp.concatenate([x, jnp.zeros((Bp - B, T, V), jnp.float32)], axis=0)
        lengths_j = jnp.concatenate(
            [lengths_j, jnp.ones((Bp - B,), jnp.int32)], axis=0)
    if Vp != V:                              # pad vocab to a lane multiple
        x = jnp.pad(x, ((0, 0), (0, 0), (0, Vp - V)))

    # (t, b)-interleaved rows: global row = i*T*BB + t*BB + b  (2-D tiles only)
    # TODO(synk): for realistic EHR vocab sizes, pass per-visit code indices via
    # scalar prefetch and gather embedding rows instead of this dense x stream.
    x_arr = (x.reshape(NB, BB, T, Vp).transpose(0, 2, 1, 3)
             .reshape(NB * TB, Vp))

    tr = jnp.arange(T)
    mask_bt = jnp.where(tr[None, :] < lengths_j[:, None], 0.0, -99999.0)
    mask_arr = (mask_bt.astype(jnp.float32).reshape(NB, BB, T)
                .transpose(0, 2, 1).reshape(NB * TB, 1))

    t_of_row = jnp.arange(TB) // BB
    rowmask = (t_of_row < (true_len - 1)).astype(jnp.float32)[:, None]  # [TB,1]

    # ---- parameter padding / per-gate lane-aligned layout -------------------
    f32 = jnp.float32

    def pad2(a, rows, cols):
        a = jnp.asarray(a, f32)
        return jnp.pad(a, ((0, rows - a.shape[0]), (0, cols - a.shape[1])))

    def pad_gates(a, rows):
        # [rows_in, 3*D] -> [rows, 3*Dp], gate g occupying lanes [g*Dp, g*Dp+D)
        a = jnp.asarray(a, f32)
        return jnp.concatenate(
            [pad2(a[:, g * D:(g + 1) * D], rows, Dp) for g in range(3)], axis=1)

    W_emb = pad2(params["W_emb"], Vp, Dp)
    b_emb = pad2(params["b_emb"], 1, Dp)
    W_ih = pad_gates(params["W_ih"], Dp)
    b_ih = pad_gates(params["b_ih"], 1)
    W_hh = pad_gates(params["W_hh"], Dp)
    b_hh = pad_gates(params["b_hh"], 1)
    w_att = pad2(params["w_att"], 1, Dp)
    b_att = jnp.asarray(params["b_att"], f32)
    Wfc = jnp.asarray(params["W_fc"], f32)
    W_fc_h = pad2(Wfc[:D], Dp, Vp)
    W_fc_c = pad2(Wfc[D:], Dp, Vp)
    b_fc = pad2(params["b_fc"], 1, Vp)

    kernel = functools.partial(dipole_kernel, n_embd_pad=Dp, block_b=BB,
                               seq_len=T, mm_dtype=mm_dtype)

    def build(single_buffer):
        def const_spec(shape):
            # constant-index operands: single-buffer them to halve their VMEM
            # footprint (when the installed jax supports pl.Buffered(1)).
            kw = dict(pipeline_mode=pl.Buffered(1)) if single_buffer else {}
            return pl.BlockSpec(shape, lambda i, j: (0,) * len(shape), **kw)

        in_specs = [
            pl.BlockSpec((TB, Vp), lambda i, j: (i, 0)),        # x (arranged)
            pl.BlockSpec((TB, 1), lambda i, j: (i, 0)),         # additive mask
            const_spec((TB, 1)),                                # rowmask
            const_spec((Vp, Dp)),                               # W_emb
            const_spec((1, Dp)),                                # b_emb
            const_spec((Dp, 3 * Dp)),                           # W_ih
            const_spec((1, 3 * Dp)),                            # b_ih
            const_spec((Dp, 3 * Dp)),                           # W_hh
            const_spec((1, 3 * Dp)),                            # b_hh
            const_spec((1, Dp)),                                # w_att
            const_spec((1, 1)),                                 # b_att
            pl.BlockSpec((Dp, block_v), lambda i, j: (0, j)),   # W_fc (hidden)
            pl.BlockSpec((Dp, block_v), lambda i, j: (0, j)),   # W_fc (context)
            pl.BlockSpec((1, block_v), lambda i, j: (0, j)),    # b_fc
        ]
        return pl.pallas_call(
            kernel,
            out_shape=jax.ShapeDtypeStruct((NB * TB, Vp), out_dtype),
            grid=(NB, NV),
            in_specs=in_specs,
            out_specs=pl.BlockSpec((TB, block_v), lambda i, j: (i, j)),
            scratch_shapes=[pltpu.VMEM((TB, 3 * Dp), jnp.float32),  # gx
                            pltpu.VMEM((TB, Dp), jnp.float32),      # hidden
                            pltpu.VMEM((TB, Dp), jnp.float32)],     # context
            compiler_params=pltpu.CompilerParams(
                dimension_semantics=("parallel", "arbitrary"),
                vmem_limit_bytes=int(vmem_limit)),
        )

    args = (x_arr, mask_arr, rowmask, W_emb, b_emb, W_ih, b_ih, W_hh, b_hh,
            w_att, b_att, W_fc_h, W_fc_c, b_fc)
    try:
        out_arr = jax.block_until_ready(build(True)(*args))
    except Exception:
        # pl.Buffered(1) single-buffering not available on this jax version:
        # fall back to default double-buffered constant operands.
        out_arr = jax.block_until_ready(build(False)(*args))

    out = (out_arr.reshape(NB, T, BB, Vp).transpose(0, 2, 1, 3)
           .reshape(Bp, T, Vp))
    return out[:B, :, :V]


# ----------------------------------------------------------------------------
# Pure-JAX reference (mirrors the PyTorch forward) for the correctness check.
# ----------------------------------------------------------------------------
def ref_forward(x, lengths, params):
    We, be = params["W_emb"], params["b_emb"]
    Wih, bih = params["W_ih"], params["b_ih"]
    Whh, bhh = params["W_hh"], params["b_hh"]
    watt, batt = params["w_att"], params["b_att"]
    Wfc, bfc = params["W_fc"], params["b_fc"]

    B, T, V = x.shape
    D = be.shape[-1]
    lengths_np = np.asarray(lengths, dtype=np.int32)
    lengths_j = jnp.asarray(lengths_np)

    emb = jax.nn.relu(x @ We + be)                                  # (B, T, D)

    def gru_one(xb):
        def step(h, xt):
            gx = xt @ Wih + bih[0]
            gh = h @ Whh + bhh[0]
            r = jax.nn.sigmoid(gx[:D] + gh[:D])
            z = jax.nn.sigmoid(gx[D:2 * D] + gh[D:2 * D])
            n = jnp.tanh(gx[2 * D:] + r * gh[2 * D:])
            hn = (1.0 - z) * n + z * h
            return hn, hn
        _, outs = lax.scan(step, jnp.zeros(D, jnp.float32), xb)
        return outs

    gru_out = jax.vmap(gru_one)(emb)                                # (B, T, D)
    tr = jnp.arange(T)
    valid = (tr[None, :] < lengths_j[:, None]).astype(jnp.float32)[..., None]
    h_all = gru_out * valid
    maskadd = jnp.where(tr[None, :] < lengths_j[:, None], 0.0, -99999.0)

    e = jnp.einsum("btd,d->bt", h_all, watt[0]) + batt[0, 0] + maskadd
    causal = (tr[None, :] <= tr[:, None])                           # [p, t]
    scores = jnp.where(causal[None], e[:, None, :], jnp.float32(-1e30))
    m = scores.max(-1, keepdims=True)
    a = jnp.exp(scores - m)
    alpha = a / a.sum(-1, keepdims=True)
    context = jnp.einsum("bpt,btd->bpd", alpha, h_all)

    true_len = int(lengths_np.max())
    rowmask = (tr < true_len - 1).astype(jnp.float32)[None, :, None]
    prog = jnp.concatenate([h_all, context], axis=-1) * rowmask
    return jax.nn.sigmoid(prog @ Wfc + bfc)


# ----------------------------------------------------------------------------
if __name__ == "__main__":
    B, T, V, D = 2, 8, 64, 32   # batch, visits, total_vocab_size, n_embd

    key = jax.random.PRNGKey(0)
    ks = jax.random.split(key, 11)

    params = {
        "W_emb": 0.1 * jax.random.normal(ks[0], (V, D), jnp.float32),
        "b_emb": 0.1 * jax.random.normal(ks[1], (1, D), jnp.float32),
        "W_ih":  0.1 * jax.random.normal(ks[2], (D, 3 * D), jnp.float32),
        "b_ih":  0.1 * jax.random.normal(ks[3], (1, 3 * D), jnp.float32),
        "W_hh":  0.1 * jax.random.normal(ks[4], (D, 3 * D), jnp.float32),
        "b_hh":  0.1 * jax.random.normal(ks[5], (1, 3 * D), jnp.float32),
        "w_att": 0.1 * jax.random.normal(ks[6], (1, D), jnp.float32),
        "b_att": 0.1 * jax.random.normal(ks[7], (1, 1), jnp.float32),
        "W_fc":  0.1 * jax.random.normal(ks[8], (2 * D, V), jnp.float32),
        "b_fc":  0.1 * jax.random.normal(ks[9], (1, V), jnp.float32),
    }

    # multi-hot visit codes
    input_visits = jax.random.bernoulli(ks[10], 0.2, (B, T, V)).astype(jnp.float32)
    lengths = [8, 5]

    out = jax.block_until_ready(dipole_forward(input_visits, lengths, params))
    ref = jax.block_until_ready(ref_forward(input_visits, lengths, params))
    np.testing.assert_allclose(np.asarray(out), np.asarray(ref),
                               atol=2e-3, rtol=2e-3)

    # bf16 MXU-operand path (recommended for throughput on v5e/v6e/v7x)
    out_bf16 = jax.block_until_ready(
        dipole_forward(input_visits, lengths, params, mm_dtype=jnp.bfloat16))
    np.testing.assert_allclose(np.asarray(out_bf16), np.asarray(ref),
                               atol=2e-2, rtol=2e-2)

    print("KERNEL_OK")
</pallas_src>

<mosaic_0001>
module attributes {stable_mosaic.version = 11 : i64} {
  func.func @dipole_kernel(%arg0: i32, %arg1: i32, %arg2: memref<64x128xf32, #tpu.memory_space<vmem>>, %arg3: memref<64x1xf32, #tpu.memory_space<vmem>>, %arg4: memref<64x1xf32, #tpu.memory_space<vmem>>, %arg5: memref<128x128xf32, #tpu.memory_space<vmem>>, %arg6: memref<1x128xf32, #tpu.memory_space<vmem>>, %arg7: memref<128x384xf32, #tpu.memory_space<vmem>>, %arg8: memref<1x384xf32, #tpu.memory_space<vmem>>, %arg9: memref<128x384xf32, #tpu.memory_space<vmem>>, %arg10: memref<1x384xf32, #tpu.memory_space<vmem>>, %arg11: memref<1x128xf32, #tpu.memory_space<vmem>>, %arg12: memref<1x1xf32, #tpu.memory_space<vmem>>, %arg13: memref<128x128xf32, #tpu.memory_space<vmem>>, %arg14: memref<128x128xf32, #tpu.memory_space<vmem>>, %arg15: memref<1x128xf32, #tpu.memory_space<vmem>>, %arg16: memref<64x128xf32, #tpu.memory_space<vmem>>, %arg17: memref<64x384xf32, #tpu.memory_space<vmem>>, %arg18: memref<64x128xf32, #tpu.memory_space<vmem>>, %arg19: memref<64x128xf32, #tpu.memory_space<vmem>>) attributes {dimension_semantics = [#tpu.dimension_semantics<parallel>, #tpu.dimension_semantics<arbitrary>], iteration_bounds = array<i64: 1, 1>, scalar_prefetch = 0 : i64, scratch_operands = 3 : i64, tpu.core_type = #tpu.core_type<tc>, window_params = [{transform_indices = @transform_0, window_bounds = array<i64: 64, 128>}, {transform_indices = @transform_1, window_bounds = array<i64: 64, 1>}, {pipeline_mode = #tpu.pipeline_mode<synchronous>, transform_indices = @transform_2, window_bounds = array<i64: 64, 1>}, {pipeline_mode = #tpu.pipeline_mode<synchronous>, transform_indices = @transform_3, window_bounds = array<i64: 128, 128>}, {pipeline_mode = #tpu.pipeline_mode<synchronous>, transform_indices = @transform_4, window_bounds = array<i64: 1, 128>}, {pipeline_mode = #tpu.pipeline_mode<synchronous>, transform_indices = @transform_5, window_bounds = array<i64: 128, 384>}, {pipeline_mode = #tpu.pipeline_mode<synchronous>, transform_indices = @transform_6, window_bounds = array<i64: 1, 384>}, {pipeline_mode = #tpu.pipeline_mode<synchronous>, transform_indices = @transform_7, window_bounds = array<i64: 128, 384>}, {pipeline_mode = #tpu.pipeline_mode<synchronous>, transform_indices = @transform_8, window_bounds = array<i64: 1, 384>}, {pipeline_mode = #tpu.pipeline_mode<synchronous>, transform_indices = @transform_9, window_bounds = array<i64: 1, 128>}, {pipeline_mode = #tpu.pipeline_mode<synchronous>, transform_indices = @transform_10, window_bounds = array<i64: 1, 1>}, {transform_indices = @transform_11, window_bounds = array<i64: 128, 128>}, {transform_indices = @transform_12, window_bounds = array<i64: 128, 128>}, {transform_indices = @transform_13, window_bounds = array<i64: 1, 128>}, {transform_indices = @transform_14, window_bounds = array<i64: 64, 128>}]} {
    %c0_i32 = arith.constant 0 : i32
    %0 = arith.cmpi eq, %arg1, %c0_i32 : i32
    %1 = arith.extui %0 : i1 to i32
    %c0_i32_0 = arith.constant 0 : i32
    %2 = arith.cmpi ne, %1, %c0_i32_0 : i32
    scf.if %2 {
      %c0_16 = arith.constant 0 : index
      %c0_17 = arith.constant 0 : index
      %22 = vector.load %arg2[%c0_16, %c0_17] : memref<64x128xf32, #tpu.memory_space<vmem>>, vector<64x128xf32>
      %c0_18 = arith.constant 0 : index
      %c0_19 = arith.constant 0 : index
      %23 = vector.load %arg5[%c0_18, %c0_19] : memref<128x128xf32, #tpu.memory_space<vmem>>, vector<128x128xf32>
      %cst_20 = arith.constant dense<0.000000e+00> : vector<64x128xf32>
      %24 = tpu.matmul %22, %23, %cst_20 {dimension_numbers = #tpu.dot_dimension_numbers<[1], [0], [0], [1], [0, 0, 1, 1], [], []>} : vector<64x128xf32>, vector<128x128xf32>, vector<64x128xf32> -> vector<64x128xf32>
      %c0_21 = arith.constant 0 : index
      %c0_22 = arith.constant 0 : index
      %25 = vector.load %arg6[%c0_21, %c0_22] : memref<1x128xf32, #tpu.memory_space<vmem>>, vector<1x128xf32>
      %26 = vector.broadcast %25 : vector<1x128xf32> to vector<64x128xf32>
      %27 = arith.addf %24, %26 : vector<64x128xf32>
      %cst_23 = arith.constant 0.000000e+00 : f32
      %28 = vector.broadcast %cst_23 : f32 to vector<64x128xf32>
      %29 = arith.maximumf %27, %28 : vector<64x128xf32>
      %c0_24 = arith.constant 0 : index
      %c0_25 = arith.constant 0 : index
      %30 = vector.load %arg7[%c0_24, %c0_25] : memref<128x384xf32, #tpu.memory_space<vmem>>, vector<128x384xf32>
      %cst_26 = arith.constant dense<0.000000e+00> : vector<64x384xf32>
      %31 = tpu.matmul %29, %30, %cst_26 {dimension_numbers = #tpu.dot_dimension_numbers<[1], [0], [0], [1], [0, 0, 1, 1], [], []>} : vector<64x128xf32>, vector<128x384xf32>, vector<64x384xf32> -> vector<64x384xf32>
      %c0_27 = arith.constant 0 : index
      %c0_28 = arith.constant 0 : index
      %32 = vector.load %arg8[%c0_27, %c0_28] : memref<1x384xf32, #tpu.memory_space<vmem>>, vector<1x384xf32>
      %33 = vector.broadcast %32 : vector<1x384xf32> to vector<64x384xf32>
      %34 = arith.addf %31, %33 : vector<64x384xf32>
      %c0_29 = arith.constant 0 : index
      %c0_30 = arith.constant 0 : index
      %35 = vector.load %arg17[%c0_29, %c0_30] : memref<64x384xf32, #tpu.memory_space<vmem>>, vector<64x384xf32>
      tpu.vector_store %arg17[%c0_29, %c0_30], %34 {strides = array<i32>} : memref<64x384xf32, #tpu.memory_space<vmem>>, vector<64x384xf32>,
      %c0_31 = arith.constant 0 : index
      %c0_32 = arith.constant 0 : index
      %36 = vector.load %arg9[%c0_31, %c0_32] : memref<128x384xf32, #tpu.memory_space<vmem>>, vector<128x384xf32>
      %c0_33 = arith.constant 0 : index
      %c0_34 = arith.constant 0 : index
      %37 = vector.load %arg10[%c0_33, %c0_34] : memref<1x384xf32, #tpu.memory_space<vmem>>, vector<1x384xf32>
      %c0_35 = arith.constant 0 : index
      %c0_36 = arith.constant 0 : index
      %38 = vector.load %arg11[%c0_35, %c0_36] : memref<1x128xf32, #tpu.memory_space<vmem>>, vector<1x128xf32>
      %c0_37 = arith.constant 0 : index
      %c0_38 = arith.constant 0 : index
      %39 = vector.load %arg12[%c0_37, %c0_38] : memref<1x1xf32, #tpu.memory_space<vmem>>, vector<1x1xf32>
      %cst_39 = arith.constant 0.000000e+00 : f32
      %40 = vector.broadcast %cst_39 : f32 to vector<8x128xf32>
      %cst_40 = arith.constant -1.000000e+30 : f32
      %41 = vector.broadcast %cst_40 : f32 to vector<8x1xf32>
      %cst_41 = arith.constant 0.000000e+00 : f32
      %42 = vector.broadcast %cst_41 : f32 to vector<8x1xf32>
      %cst_42 = arith.constant 0.000000e+00 : f32
      %43 = vector.broadcast %cst_42 : f32 to vector<8x128xf32>
      %cst_43 = arith.constant dense<0.000000e+00> : vector<8x384xf32>
      %44 = tpu.matmul %40, %36, %cst_43 {dimension_numbers = #tpu.dot_dimension_numbers<[1], [0], [0], [1], [0, 0, 1, 1], [], []>} : vector<8x128xf32>, vector<128x384xf32>, vector<8x384xf32> -> vector<8x384xf32>
      %45 = vector.broadcast %37 : vector<1x384xf32> to vector<8x384xf32>
      %46 = arith.addf %44, %45 : vector<8x384xf32>
      %c0_44 = arith.constant 0 : index
      %c0_45 = arith.constant 0 : index
      %47 = vector.load %arg17[%c0_44, %c0_45] : memref<64x384xf32, #tpu.memory_space<vmem>>, vector<8x384xf32>
      %48 = vector.extract_strided_slice %47 {offsets = [0, 0], sizes = [8, 128], strides = [1, 1]} : vector<8x384xf32> to vector<8x128xf32>
      %49 = vector.extract_strided_slice %46 {offsets = [0, 0], sizes = [8, 128], strides = [1, 1]} : vector<8x384xf32> to vector<8x128xf32>
      %50 = arith.addf %48, %49 : vector<8x128xf32>
      %51 = arith.negf %50 : vector<8x128xf32>
      %52 = math.exp %51 : vector<8x128xf32>
      %cst_46 = arith.constant 1.000000e+00 : f32
      %53 = vector.broadcast %cst_46 : f32 to vector<8x128xf32>
      %54 = arith.addf %53, %52 : vector<8x128xf32>
      %55 = arith.divf %53, %54 : vector<8x128xf32>
      %56 = vector.extract_strided_slice %47 {offsets = [0, 128], sizes = [8, 128], strides = [1, 1]} : vector<8x384xf32> to vector<8x128xf32>
      %57 = vector.extract_strided_slice %46 {offsets = [0, 128], sizes = [8, 128], strides = [1, 1]} : vector<8x384xf32> to vector<8x128xf32>
      %58 = arith.addf %56, %57 : vector<8x128xf32>
      %59 = arith.negf %58 : vector<8x128xf32>
      %60 = math.exp %59 : vector<8x128xf32>
      %cst_47 = arith.constant 1.000000e+00 : f32
      %61 = vector.broadcast %cst_47 : f32 to vector<8x128xf32>
      %62 = arith.addf %61, %60 : vector<8x128xf32>
      %63 = arith.divf %61, %62 : vector<8x128xf32>
      %64 = vector.extract_strided_slice %47 {offsets = [0, 256], sizes = [8, 128], strides = [1, 1]} : vector<8x384xf32> to vector<8x128xf32>
      %65 = vector.extract_strided_slice %46 {offsets = [0, 256], sizes = [8, 128], strides = [1, 1]} : vector<8x384xf32> to vector<8x128xf32>
      %66 = arith.mulf %55, %65 : vector<8x128xf32>
      %67 = arith.addf %64, %66 : vector<8x128xf32>
      %68 = math.tanh %67 : vector<8x128xf32>
      %cst_48 = arith.constant 1.000000e+00 : f32
      %69 = vector.broadcast %cst_48 : f32 to vector<8x128xf32>
      %70 = arith.subf %69, %63 : vector<8x128xf32>
      %71 = arith.mulf %70, %68 : vector<8x128xf32>
      %72 = arith.mulf %63, %40 : vector<8x128xf32>
      %73 = arith.addf %71, %72 : vector<8x128xf32>
      %c0_49 = arith.constant 0 : index
      %c0_50 = arith.constant 0 : index
      %74 = vector.load %arg18[%c0_49, %c0_50] : memref<64x128xf32, #tpu.memory_space<vmem>>, vector<8x128xf32>
      tpu.vector_store %arg18[%c0_49, %c0_50], %73 {strides = array<i32>} : memref<64x128xf32, #tpu.memory_space<vmem>>, vector<8x128xf32>,
      %75 = vector.broadcast %38 : vector<1x128xf32> to vector<8x128xf32>
      %76 = arith.mulf %73, %75 : vector<8x128xf32>
      %cst_51 = arith.constant dense<0.000000e+00> : vector<8xf32>
      %77 = vector.multi_reduction <add>, %76, %cst_51 [1] : vector<8x128xf32> to vector<8xf32>
      %78 = vector.shape_cast %77 : vector<8xf32> to vector<8x1xf32>
      %79 = vector.broadcast %39 : vector<1x1xf32> to vector<8x1xf32>
      %80 = arith.addf %78, %79 : vector<8x1xf32>
      %c0_52 = arith.constant 0 : index
      %c0_53 = arith.constant 0 : index
      %81 = vector.load %arg3[%c0_52, %c0_53] : memref<64x1xf32, #tpu.memory_space<vmem>>, vector<8x1xf32>
      %82 = arith.addf %80, %81 : vector<8x1xf32>
      %83 = arith.maximumf %41, %82 : vector<8x1xf32>
      %84 = arith.subf %41, %83 : vector<8x1xf32>
      %85 = math.exp %84 : vector<8x1xf32>
      %86 = arith.subf %82, %83 : vector<8x1xf32>
      %87 = math.exp %86 : vector<8x1xf32>
      %88 = arith.mulf %42, %85 : vector<8x1xf32>
      %89 = arith.addf %88, %87 : vector<8x1xf32>
      %90 = vector.broadcast %85 : vector<8x1xf32> to vector<8x128xf32>
      %91 = arith.mulf %43, %90 : vector<8x128xf32>
      %92 = vector.broadcast %87 : vector<8x1xf32> to vector<8x128xf32>
      %93 = arith.mulf %92, %73 : vector<8x128xf32>
      %94 = arith.addf %91, %93 : vector<8x128xf32>
      %95 = tpu.reciprocal %89 {approx = true} : vector<8x1xf32> -> vector<8x1xf32>
      %96 = vector.broadcast %95 : vector<8x1xf32> to vector<8x128xf32>
      %97 = arith.mulf %94, %96 : vector<8x128xf32>
      %c0_54 = arith.constant 0 : index
      %c0_55 = arith.constant 0 : index
      %98 = vector.load %arg19[%c0_54, %c0_55] : memref<64x128xf32, #tpu.memory_space<vmem>>, vector<8x128xf32>
      tpu.vector_store %arg19[%c0_54, %c0_55], %97 {strides = array<i32>} : memref<64x128xf32, #tpu.memory_space<vmem>>, vector<8x128xf32>,
      %cst_56 = arith.constant dense<0.000000e+00> : vector<8x384xf32>
      %99 = tpu.matmul %73, %36, %cst_56 {dimension_numbers = #tpu.dot_dimension_numbers<[1], [0], [0], [1], [0, 0, 1, 1], [], []>} : vector<8x128xf32>, vector<128x384xf32>, vector<8x384xf32> -> vector<8x384xf32>
      %100 = vector.broadcast %37 : vector<1x384xf32> to vector<8x384xf32>
      %101 = arith.addf %99, %100 : vector<8x384xf32>
      %c8 = arith.constant 8 : index
      %c0_57 = arith.constant 0 : index
      %102 = vector.load %arg17[%c8, %c0_57] : memref<64x384xf32, #tpu.memory_space<vmem>>, vector<8x384xf32>
      %103 = vector.extract_strided_slice %102 {offsets = [0, 0], sizes = [8, 128], strides = [1, 1]} : vector<8x384xf32> to vector<8x128xf32>
      %104 = vector.extract_strided_slice %101 {offsets = [0, 0], sizes = [8, 128], strides = [1, 1]} : vector<8x384xf32> to vector<8x128xf32>
      %105 = arith.addf %103, %104 : vector<8x128xf32>
      %106 = arith.negf %105 : vector<8x128xf32>
      %107 = math.exp %106 : vector<8x128xf32>
      %cst_58 = arith.constant 1.000000e+00 : f32
      %108 = vector.broadcast %cst_58 : f32 to vector<8x128xf32>
      %109 = arith.addf %108, %107 : vector<8x128xf32>
      %110 = arith.divf %108, %109 : vector<8x128xf32>
      %111 = vector.extract_strided_slice %102 {offsets = [0, 128], sizes = [8, 128], strides = [1, 1]} : vector<8x384xf32> to vector<8x128xf32>
      %112 = vector.extract_strided_slice %101 {offsets = [0, 128], sizes = [8, 128], strides = [1, 1]} : vector<8x384xf32> to vector<8x128xf32>
      %113 = arith.addf %111, %112 : vector<8x128xf32>
      %114 = arith.negf %113 : vector<8x128xf32>
      %115 = math.exp %114 : vector<8x128xf32>
      %cst_59 = arith.constant 1.000000e+00 : f32
      %116 = vector.broadcast %cst_59 : f32 to vector<8x128xf32>
      %117 = arith.addf %116, %115 : vector<8x128xf32>
      %118 = arith.divf %116, %117 : vector<8x128xf32>
      %119 = vector.extract_strided_slice %102 {offsets = [0, 256], sizes = [8, 128], strides = [1, 1]} : vector<8x384xf32> to vector<8x128xf32>
      %120 = vector.extract_strided_slice %101 {offsets = [0, 256], sizes = [8, 128], strides = [1, 1]} : vector<8x384xf32> to vector<8x128xf32>
      %121 = arith.mulf %110, %120 : vector<8x128xf32>
      %122 = arith.addf %119, %121 : vector<8x128xf32>
      %123 = math.tanh %122 : vector<8x128xf32>
      %cst_60 = arith.constant 1.000000e+00 : f32
      %124 = vector.broadcast %cst_60 : f32 to vector<8x128xf32>
      %125 = arith.subf %124, %118 : vector<8x128xf32>
      %126 = arith.mulf %125, %123 : vector<8x128xf32>
      %127 = arith.mulf %118, %73 : vector<8x128xf32>
      %128 = arith.addf %126, %127 : vector<8x128xf32>
      %c8_61 = arith.constant 8 : index
      %c0_62 = arith.constant 0 : index
      %129 = vector.load %arg18[%c8_61, %c0_62] : memref<64x128xf32, #tpu.memory_space<vmem>>, vector<8x128xf32>
      tpu.vector_store %arg18[%c8_61, %c0_62], %128 {strides = array<i32>} : memref<64x128xf32, #tpu.memory_space<vmem>>, vector<8x128xf32>,
      %130 = vector.broadcast %38 : vector<1x128xf32> to vector<8x128xf32>
      %131 = arith.mulf %128, %130 : vector<8x128xf32>
      %cst_63 = arith.constant dense<0.000000e+00> : vector<8xf32>
      %132 = vector.multi_reduction <add>, %131, %cst_63 [1] : vector<8x128xf32> to vector<8xf32>
      %133 = vector.shape_cast %132 : vector<8xf32> to vector<8x1xf32>
      %134 = vector.broadcast %39 : vector<1x1xf32> to vector<8x1xf32>
      %135 = arith.addf %133, %134 : vector<8x1xf32>
      %c8_64 = arith.constant 8 : index
      %c0_65 = arith.constant 0 : index
      %136 = vector.load %arg3[%c8_64, %c0_65] : memref<64x1xf32, #tpu.memory_space<vmem>>, vector<8x1xf32>
      %137 = arith.addf %135, %136 : vector<8x1xf32>
      %138 = arith.maximumf %83, %137 : vector<8x1xf32>
      %139 = arith.subf %83, %138 : vector<8x1xf32>
      %140 = math.exp %139 : vector<8x1xf32>
      %141 = arith.subf %137, %138 : vector<8x1xf32>
      %142 = math.exp %141 : vector<8x1xf32>
      %143 = arith.mulf %89, %140 : vector<8x1xf32>
      %144 = arith.addf %143, %142 : vector<8x1xf32>
      %145 = vector.broadcast %140 : vector<8x1xf32> to vector<8x128xf32>
      %146 = arith.mulf %94, %145 : vector<8x128xf32>
      %147 = vector.broadcast %142 : vector<8x1xf32> to vector<8x128xf32>
      %148 = arith.mulf %147, %128 : vector<8x128xf32>
      %149 = arith.addf %146, %148 : vector<8x128xf32>
      %150 = tpu.reciprocal %144 {approx = true} : vector<8x1xf32> -> vector<8x1xf32>
      %151 = vector.broadcast %150 : vector<8x1xf32> to vector<8x128xf32>
      %152 = arith.mulf %149, %151 : vector<8x128xf32>
      %c8_66 = arith.constant 8 : index
      %c0_67 = arith.constant 0 : index
      %153 = vector.load %arg19[%c8_66, %c0_67] : memref<64x128xf32, #tpu.memory_space<vmem>>, vector<8x128xf32>
      tpu.vector_store %arg19[%c8_66, %c0_67], %152 {strides = array<i32>} : memref<64x128xf32, #tpu.memory_space<vmem>>, vector<8x128xf32>,
      %cst_68 = arith.constant dense<0.000000e+00> : vector<8x384xf32>
      %154 = tpu.matmul %128, %36, %cst_68 {dimension_numbers = #tpu.dot_dimension_numbers<[1], [0], [0], [1], [0, 0, 1, 1], [], []>} : vector<8x128xf32>, vector<128x384xf32>, vector<8x384xf32> -> vector<8x384xf32>
      %155 = vector.broadcast %37 : vector<1x384xf32> to vector<8x384xf32>
      %156 = arith.addf %154, %155 : vector<8x384xf32>
      %c16 = arith.constant 16 : index
      %c0_69 = arith.constant 0 : index
      %157 = vector.load %arg17[%c16, %c0_69] : memref<64x384xf32, #tpu.memory_space<vmem>>, vector<8x384xf32>
      %158 = vector.extract_strided_slice %157 {offsets = [0, 0], sizes = [8, 128], strides = [1, 1]} : vector<8x384xf32> to vector<8x128xf32>
      %159 = vector.extract_strided_slice %156 {offsets = [0, 0], sizes = [8, 128], strides = [1, 1]} : vector<8x384xf32> to vector<8x128xf32>
      %160 = arith.addf %158, %159 : vector<8x128xf32>
      %161 = arith.negf %160 : vector<8x128xf32>
      %162 = math.exp %161 : vector<8x128xf32>
      %cst_70 = arith.constant 1.000000e+00 : f32
      %163 = vector.broadcast %cst_70 : f32 to vector<8x128xf32>
      %164 = arith.addf %163, %162 : vector<8x128xf32>
      %165 = arith.divf %163, %164 : vector<8x128xf32>
      %166 = vector.extract_strided_slice %157 {offsets = [0, 128], sizes = [8, 128], strides = [1, 1]} : vector<8x384xf32> to vector<8x128xf32>
      %167 = vector.extract_strided_slice %156 {offsets = [0, 128], sizes = [8, 128], strides = [1, 1]} : vector<8x384xf32> to vector<8x128xf32>
      %168 = arith.addf %166, %167 : vector<8x128xf32>
      %169 = arith.negf %168 : vector<8x128xf32>
      %170 = math.exp %169 : vector<8x128xf32>
      %cst_71 = arith.constant 1.000000e+00 : f32
      %171 = vector.broadcast %cst_71 : f32 to vector<8x128xf32>
      %172 = arith.addf %171, %170 : vector<8x128xf32>
      %173 = arith.divf %171, %172 : vector<8x128xf32>
      %174 = vector.extract_strided_slice %157 {offsets = [0, 256], sizes = [8, 128], strides = [1, 1]} : vector<8x384xf32> to vector<8x128xf32>
      %175 = vector.extract_strided_slice %156 {offsets = [0, 256], sizes = [8, 128], strides = [1, 1]} : vector<8x384xf32> to vector<8x128xf32>
      %176 = arith.mulf %165, %175 : vector<8x128xf32>
      %177 = arith.addf %174, %176 : vector<8x128xf32>
      %178 = math.tanh %177 : vector<8x128xf32>
      %cst_72 = arith.constant 1.000000e+00 : f32
      %179 = vector.broadcast %cst_72 : f32 to vector<8x128xf32>
      %180 = arith.subf %179, %173 : vector<8x128xf32>
      %181 = arith.mulf %180, %178 : vector<8x128xf32>
      %182 = arith.mulf %173, %128 : vector<8x128xf32>
      %183 = arith.addf %181, %182 : vector<8x128xf32>
      %c16_73 = arith.constant 16 : index
      %c0_74 = arith.constant 0 : index
      %184 = vector.load %arg18[%c16_73, %c0_74] : memref<64x128xf32, #tpu.memory_space<vmem>>, vector<8x128xf32>
      tpu.vector_store %arg18[%c16_73, %c0_74], %183 {strides = array<i32>} : memref<64x128xf32, #tpu.memory_space<vmem>>, vector<8x128xf32>,
      %185 = vector.broadcast %38 : vector<1x128xf32> to vector<8x128xf32>
      %186 = arith.mulf %183, %185 : vector<8x128xf32>
      %cst_75 = arith.constant dense<0.000000e+00> : vector<8xf32>
      %187 = vector.multi_reduction <add>, %186, %cst_75 [1] : vector<8x128xf32> to vector<8xf32>
      %188 = vector.shape_cast %187 : vector<8xf32> to vector<8x1xf32>
      %189 = vector.broadcast %39 : vector<1x1xf32> to vector<8x1xf32>
      %190 = arith.addf %188, %189 : vector<8x1xf32>
      %c16_76 = arith.constant 16 : index
      %c0_77 = arith.constant 0 : index
      %191 = vector.load %arg3[%c16_76, %c0_77] : memref<64x1xf32, #tpu.memory_space<vmem>>, vector<8x1xf32>
      %192 = arith.addf %190, %191 : vector<8x1xf32>
      %193 = arith.maximumf %138, %192 : vector<8x1xf32>
      %194 = arith.subf %138, %193 : vector<8x1xf32>
      %195 = math.exp %194 : vector<8x1xf32>
      %196 = arith.subf %192, %193 : vector<8x1xf32>
      %197 = math.exp %196 : vector<8x1xf32>
      %198 = arith.mulf %144, %195 : vector<8x1xf32>
      %199 = arith.addf %198, %197 : vector<8x1xf32>
      %200 = vector.broadcast %195 : vector<8x1xf32> to vector<8x128xf32>
      %201 = arith.mulf %149, %200 : vector<8x128xf32>
      %202 = vector.broadcast %197 : vector<8x1xf32> to vector<8x128xf32>
      %203 = arith.mulf %202, %183 : vector<8x128xf32>
      %204 = arith.addf %201, %203 : vector<8x128xf32>
      %205 = tpu.reciprocal %199 {approx = true} : vector<8x1xf32> -> vector<8x1xf32>
      %206 = vector.broadcast %205 : vector<8x1xf32> to vector<8x128xf32>
      %207 = arith.mulf %204, %206 : vector<8x128xf32>
      %c16_78 = arith.constant 16 : index
      %c0_79 = arith.constant 0 : index
      %208 = vector.load %arg19[%c16_78, %c0_79] : memref<64x128xf32, #tpu.memory_space<vmem>>, vector<8x128xf32>
      tpu.vector_store %arg19[%c16_78, %c0_79], %207 {strides = array<i32>} : memref<64x128xf32, #tpu.memory_space<vmem>>, vector<8x128xf32>,
      %cst_80 = arith.constant dense<0.000000e+00> : vector<8x384xf32>
      %209 = tpu.matmul %183, %36, %cst_80 {dimension_numbers = #tpu.dot_dimension_numbers<[1], [0], [0], [1], [0, 0, 1, 1], [], []>} : vector<8x128xf32>, vector<128x384xf32>, vector<8x384xf32> -> vector<8x384xf32>
      %210 = vector.broadcast %37 : vector<1x384xf32> to vector<8x384xf32>
      %211 = arith.addf %209, %210 : vector<8x384xf32>
      %c24 = arith.constant 24 : index
      %c0_81 = arith.constant 0 : index
      %212 = vector.load %arg17[%c24, %c0_81] : memref<64x384xf32, #tpu.memory_space<vmem>>, vector<8x384xf32>
      %213 = vector.extract_strided_slice %212 {offsets = [0, 0], sizes = [8, 128], strides = [1, 1]} : vector<8x384xf32> to vector<8x128xf32>
      %214 = vector.extract_strided_slice %211 {offsets = [0, 0], sizes = [8, 128], strides = [1, 1]} : vector<8x384xf32> to vector<8x128xf32>
      %215 = arith.addf %213, %214 : vector<8x128xf32>
      %216 = arith.negf %215 : vector<8x128xf32>
      %217 = math.exp %216 : vector<8x128xf32>
      %cst_82 = arith.constant 1.000000e+00 : f32
      %218 = vector.broadcast %cst_82 : f32 to vector<8x128xf32>
      %219 = arith.addf %218, %217 : vector<8x128xf32>
      %220 = arith.divf %218, %219 : vector<8x128xf32>
      %221 = vector.extract_strided_slice %212 {offsets = [0, 128], sizes = [8, 128], strides = [1, 1]} : vector<8x384xf32> to vector<8x128xf32>
      %222 = vector.extract_strided_slice %211 {offsets = [0, 128], sizes = [8, 128], strides = [1, 1]} : vector<8x384xf32> to vector<8x128xf32>
      %223 = arith.addf %221, %222 : vector<8x128xf32>
      %224 = arith.negf %223 : vector<8x128xf32>
      %225 = math.exp %224 : vector<8x128xf32>
      %cst_83 = arith.constant 1.000000e+00 : f32
      %226 = vector.broadcast %cst_83 : f32 to vector<8x128xf32>
      %227 = arith.addf %226, %225 : vector<8x128xf32>
      %228 = arith.divf %226, %227 : vector<8x128xf32>
      %229 = vector.extract_strided_slice %212 {offsets = [0, 256], sizes = [8, 128], strides = [1, 1]} : vector<8x384xf32> to vector<8x128xf32>
      %230 = vector.extract_strided_slice %211 {offsets = [0, 256], sizes = [8, 128], strides = [1, 1]} : vector<8x384xf32> to vector<8x128xf32>
      %231 = arith.mulf %220, %230 : vector<8x128xf32>
      %232 = arith.addf %229, %231 : vector<8x128xf32>
      %233 = math.tanh %232 : vector<8x128xf32>
      %cst_84 = arith.constant 1.000000e+00 : f32
      %234 = vector.broadcast %cst_84 : f32 to vector<8x128xf32>
      %235 = arith.subf %234, %228 : vector<8x128xf32>
      %236 = arith.mulf %235, %233 : vector<8x128xf32>
      %237 = arith.mulf %228, %183 : vector<8x128xf32>
      %238 = arith.addf %236, %237 : vector<8x128xf32>
      %c24_85 = arith.constant 24 : index
      %c0_86 = arith.constant 0 : index
      %239 = vector.load %arg18[%c24_85, %c0_86] : memref<64x128xf32, #tpu.memory_space<vmem>>, vector<8x128xf32>
      tpu.vector_store %arg18[%c24_85, %c0_86], %238 {strides = array<i32>} : memref<64x128xf32, #tpu.memory_space<vmem>>, vector<8x128xf32>,
      %240 = vector.broadcast %38 : vector<1x128xf32> to vector<8x128xf32>
      %241 = arith.mulf %238, %240 : vector<8x128xf32>
      %cst_87 = arith.constant dense<0.000000e+00> : vector<8xf32>
      %242 = vector.multi_reduction <add>, %241, %cst_87 [1] : vector<8x128xf32> to vector<8xf32>
      %243 = vector.shape_cast %242 : vector<8xf32> to vector<8x1xf32>
      %244 = vector.broadcast %39 : vector<1x1xf32> to vector<8x1xf32>
      %245 = arith.addf %243, %244 : vector<8x1xf32>
      %c24_88 = arith.constant 24 : index
      %c0_89 = arith.constant 0 : index
      %246 = vector.load %arg3[%c24_88, %c0_89] : memref<64x1xf32, #tpu.memory_space<vmem>>, vector<8x1xf32>
      %247 = arith.addf %245, %246 : vector<8x1xf32>
      %248 = arith.maximumf %193, %247 : vector<8x1xf32>
      %249 = arith.subf %193, %248 : vector<8x1xf32>
      %250 = math.exp %249 : vector<8x1xf32>
      %251 = arith.subf %247, %248 : vector<8x1xf32>
      %252 = math.exp %251 : vector<8x1xf32>
      %253 = arith.mulf %199, %250 : vector<8x1xf32>
      %254 = arith.addf %253, %252 : vector<8x1xf32>
      %255 = vector.broadcast %250 : vector<8x1xf32> to vector<8x128xf32>
      %256 = arith.mulf %204, %255 : vector<8x128xf32>
      %257 = vector.broadcast %252 : vector<8x1xf32> to vector<8x128xf32>
      %258 = arith.mulf %257, %238 : vector<8x128xf32>
      %259 = arith.addf %256, %258 : vector<8x128xf32>
      %260 = tpu.reciprocal %254 {approx = true} : vector<8x1xf32> -> vector<8x1xf32>
      %261 = vector.broadcast %260 : vector<8x1xf32> to vector<8x128xf32>
      %262 = arith.mulf %259, %261 : vector<8x128xf32>
      %c24_90 = arith.constant 24 : index
      %c0_91 = arith.constant 0 : index
      %263 = vector.load %arg19[%c24_90, %c0_91] : memref<64x128xf32, #tpu.memory_space<vmem>>, vector<8x128xf32>
      tpu.vector_store %arg19[%c24_90, %c0_91], %262 {strides = array<i32>} : memref<64x128xf32, #tpu.memory_space<vmem>>, vector<8x128xf32>,
      %cst_92 = arith.constant dense<0.000000e+00> : vector<8x384xf32>
      %264 = tpu.matmul %238, %36, %cst_92 {dimension_numbers = #tpu.dot_dimension_numbers<[1], [0], [0], [1], [0, 0, 1, 1], [], []>} : vector<8x128xf32>, vector<128x384xf32>, vector<8x384xf32> -> vector<8x384xf32>
      %265 = vector.broadcast %37 : vector<1x384xf32> to vector<8x384xf32>
      %266 = arith.addf %264, %265 : vector<8x384xf32>
      %c32 = arith.constant 32 : index
      %c0_93 = arith.constant 0 : index
      %267 = vector.load %arg17[%c32, %c0_93] : memref<64x384xf32, #tpu.memory_space<vmem>>, vector<8x384xf32>
      %268 = vector.extract_strided_slice %267 {offsets = [0, 0], sizes = [8, 128], strides = [1, 1]} : vector<8x384xf32> to vector<8x128xf32>
      %269 = vector.extract_strided_slice %266 {offsets = [0, 0], sizes = [8, 128], strides = [1, 1]} : vector<8x384xf32> to vector<8x128xf32>
      %270 = arith.addf %268, %269 : vector<8x128xf32>
      %271 = arith.negf %270 : vector<8x128xf32>
      %272 = math.exp %271 : vector<8x128xf32>
      %cst_94 = arith.constant 1.000000e+00 : f32
      %273 = vector.broadcast %cst_94 : f32 to vector<8x128xf32>
      %274 = arith.addf %273, %272 : vector<8x128xf32>
      %275 = arith.divf %273, %274 : vector<8x128xf32>
      %276 = vector.extract_strided_slice %267 {offsets = [0, 128], sizes = [8, 128], strides = [1, 1]} : vector<8x384xf32> to vector<8x128xf32>
      %277 = vector.extract_strided_slice %266 {offsets = [0, 128], sizes = [8, 128], strides = [1, 1]} : vector<8x384xf32> to vector<8x128xf32>
      %278 = arith.addf %276, %277 : vector<8x128xf32>
      %279 = arith.negf %278 : vector<8x128xf32>
      %280 = math.exp %279 : vector<8x128xf32>
      %cst_95 = arith.constant 1.000000e+00 : f32
      %281 = vector.broadcast %cst_95 : f32 to vector<8x128xf32>
      %282 = arith.addf %281, %280 : vector<8x128xf32>
      %283 = arith.divf %281, %282 : vector<8x128xf32>
      %284 = vector.extract_strided_slice %267 {offsets = [0, 256], sizes = [8, 128], strides = [1, 1]} : vector<8x384xf32> to vector<8x128xf32>
      %285 = vector.extract_strided_slice %266 {offsets = [0, 256], sizes = [8, 128], strides = [1, 1]} : vector<8x384xf32> to vector<8x128xf32>
      %286 = arith.mulf %275, %285 : vector<8x128xf32>
      %287 = arith.addf %284, %286 : vector<8x128xf32>
      %288 = math.tanh %287 : vector<8x128xf32>
      %cst_96 = arith.constant 1.000000e+00 : f32
      %289 = vector.broadcast %cst_96 : f32 to vector<8x128xf32>
      %290 = arith.subf %289, %283 : vector<8x128xf32>
      %291 = arith.mulf %290, %288 : vector<8x128xf32>
      %292 = arith.mulf %283, %238 : vector<8x128xf32>
      %293 = arith.addf %291, %292 : vector<8x128xf32>
      %c32_97 = arith.constant 32 : index
      %c0_98 = arith.constant 0 : index
      %294 = vector.load %arg18[%c32_97, %c0_98] : memref<64x128xf32, #tpu.memory_space<vmem>>, vector<8x128xf32>
      tpu.vector_store %arg18[%c32_97, %c0_98], %293 {strides = array<i32>} : memref<64x128xf32, #tpu.memory_space<vmem>>, vector<8x128xf32>,
      %295 = vector.broadcast %38 : vector<1x128xf32> to vector<8x128xf32>
      %296 = arith.mulf %293, %295 : vector<8x128xf32>
      %cst_99 = arith.constant dense<0.000000e+00> : vector<8xf32>
      %297 = vector.multi_reduction <add>, %296, %cst_99 [1] : vector<8x128xf32> to vector<8xf32>
      %298 = vector.shape_cast %297 : vector<8xf32> to vector<8x1xf32>
      %299 = vector.broadcast %39 : vector<1x1xf32> to vector<8x1xf32>
      %300 = arith.addf %298, %299 : vector<8x1xf32>
      %c32_100 = arith.constant 32 : index
      %c0_101 = arith.constant 0 : index
      %301 = vector.load %arg3[%c32_100, %c0_101] : memref<64x1xf32, #tpu.memory_space<vmem>>, vector<8x1xf32>
      %302 = arith.addf %300, %301 : vector<8x1xf32>
      %303 = arith.maximumf %248, %302 : vector<8x1xf32>
      %304 = arith.subf %248, %303 : vector<8x1xf32>
      %305 = math.exp %304 : vector<8x1xf32>
      %306 = arith.subf %302, %303 : vector<8x1xf32>
      %307 = math.exp %306 : vector<8x1xf32>
      %308 = arith.mulf %254, %305 : vector<8x1xf32>
      %309 = arith.addf %308, %307 : vector<8x1xf32>
      %310 = vector.broadcast %305 : vector<8x1xf32> to vector<8x128xf32>
      %311 = arith.mulf %259, %310 : vector<8x128xf32>
      %312 = vector.broadcast %307 : vector<8x1xf32> to vector<8x128xf32>
      %313 = arith.mulf %312, %293 : vector<8x128xf32>
      %314 = arith.addf %311, %313 : vector<8x128xf32>
      %315 = tpu.reciprocal %309 {approx = true} : vector<8x1xf32> -> vector<8x1xf32>
      %316 = vector.broadcast %315 : vector<8x1xf32> to vector<8x128xf32>
      %317 = arith.mulf %314, %316 : vector<8x128xf32>
      %c32_102 = arith.constant 32 : index
      %c0_103 = arith.constant 0 : index
      %318 = vector.load %arg19[%c32_102, %c0_103] : memref<64x128xf32, #tpu.memory_space<vmem>>, vector<8x128xf32>
      tpu.vector_store %arg19[%c32_102, %c0_103], %317 {strides = array<i32>} : memref<64x128xf32, #tpu.memory_space<vmem>>, vector<8x128xf32>,
      %cst_104 = arith.constant dense<0.000000e+00> : vector<8x384xf32>
      %319 = tpu.matmul %293, %36, %cst_104 {dimension_numbers = #tpu.dot_dimension_numbers<[1], [0], [0], [1], [0, 0, 1, 1], [], []>} : vector<8x128xf32>, vector<128x384xf32>, vector<8x384xf32> -> vector<8x384xf32>
      %320 = vector.broadcast %37 : vector<1x384xf32> to vector<8x384xf32>
      %321 = arith.addf %319, %320 : vector<8x384xf32>
      %c40 = arith.constant 40 : index
      %c0_105 = arith.constant 0 : index
      %322 = vector.load %arg17[%c40, %c0_105] : memref<64x384xf32, #tpu.memory_space<vmem>>, vector<8x384xf32>
      %323 = vector.extract_strided_slice %322 {offsets = [0, 0], sizes = [8, 128], strides = [1, 1]} : vector<8x384xf32> to vector<8x128xf32>
      %324 = vector.extract_strided_slice %321 {offsets = [0, 0], sizes = [8, 128], strides = [1, 1]} : vector<8x384xf32> to vector<8x128xf32>
      %325 = arith.addf %323, %324 : vector<8x128xf32>
      %326 = arith.negf %325 : vector<8x128xf32>
      %327 = math.exp %326 : vector<8x128xf32>
      %cst_106 = arith.constant 1.000000e+00 : f32
      %328 = vector.broadcast %cst_106 : f32 to vector<8x128xf32>
      %329 = arith.addf %328, %327 : vector<8x128xf32>
      %330 = arith.divf %328, %329 : vector<8x128xf32>
      %331 = vector.extract_strided_slice %322 {offsets = [0, 128], sizes = [8, 128], strides = [1, 1]} : vector<8x384xf32> to vector<8x128xf32>
      %332 = vector.extract_strided_slice %321 {offsets = [0, 128], sizes = [8, 128], strides = [1, 1]} : vector<8x384xf32> to vector<8x128xf32>
      %333 = arith.addf %331, %332 : vector<8x128xf32>
      %334 = arith.negf %333 : vector<8x128xf32>
      %335 = math.exp %334 : vector<8x128xf32>
      %cst_107 = arith.constant 1.000000e+00 : f32
      %336 = vector.broadcast %cst_107 : f32 to vector<8x128xf32>
      %337 = arith.addf %336, %335 : vector<8x128xf32>
      %338 = arith.divf %336, %337 : vector<8x128xf32>
      %339 = vector.extract_strided_slice %322 {offsets = [0, 256], sizes = [8, 128], strides = [1, 1]} : vector<8x384xf32> to vector<8x128xf32>
      %340 = vector.extract_strided_slice %321 {offsets = [0, 256], sizes = [8, 128], strides = [1, 1]} : vector<8x384xf32> to vector<8x128xf32>
      %341 = arith.mulf %330, %340 : vector<8x128xf32>
      %342 = arith.addf %339, %341 : vector<8x128xf32>
      %343 = math.tanh %342 : vector<8x128xf32>
      %cst_108 = arith.constant 1.000000e+00 : f32
      %344 = vector.broadcast %cst_108 : f32 to vector<8x128xf32>
      %345 = arith.subf %344, %338 : vector<8x128xf32>
      %346 = arith.mulf %345, %343 : vector<8x128xf32>
      %347 = arith.mulf %338, %293 : vector<8x128xf32>
      %348 = arith.addf %346, %347 : vector<8x128xf32>
      %c40_109 = arith.constant 40 : index
      %c0_110 = arith.constant 0 : index
      %349 = vector.load %arg18[%c40_109, %c0_110] : memref<64x128xf32, #tpu.memory_space<vmem>>, vector<8x128xf32>
      tpu.vector_store %arg18[%c40_109, %c0_110], %348 {strides = array<i32>} : memref<64x128xf32, #tpu.memory_space<vmem>>, vector<8x128xf32>,
      %350 = vector.broadcast %38 : vector<1x128xf32> to vector<8x128xf32>
      %351 = arith.mulf %348, %350 : vector<8x128xf32>
      %cst_111 = arith.constant dense<0.000000e+00> : vector<8xf32>
      %352 = vector.multi_reduction <add>, %351, %cst_111 [1] : vector<8x128xf32> to vector<8xf32>
      %353 = vector.shape_cast %352 : vector<8xf32> to vector<8x1xf32>
      %354 = vector.broadcast %39 : vector<1x1xf32> to vector<8x1xf32>
      %355 = arith.addf %353, %354 : vector<8x1xf32>
      %c40_112 = arith.constant 40 : index
      %c0_113 = arith.constant 0 : index
      %356 = vector.load %arg3[%c40_112, %c0_113] : memref<64x1xf32, #tpu.memory_space<vmem>>, vector<8x1xf32>
      %357 = arith.addf %355, %356 : vector<8x1xf32>
      %358 = arith.maximumf %303, %357 : vector<8x1xf32>
      %359 = arith.subf %303, %358 : vector<8x1xf32>
      %360 = math.exp %359 : vector<8x1xf32>
      %361 = arith.subf %357, %358 : vector<8x1xf32>
      %362 = math.exp %361 : vector<8x1xf32>
      %363 = arith.mulf %309, %360 : vector<8x1xf32>
      %364 = arith.addf %363, %362 : vector<8x1xf32>
      %365 = vector.broadcast %360 : vector<8x1xf32> to vector<8x128xf32>
      %366 = arith.mulf %314, %365 : vector<8x128xf32>
      %367 = vector.broadcast %362 : vector<8x1xf32> to vector<8x128xf32>
      %368 = arith.mulf %367, %348 : vector<8x128xf32>
      %369 = arith.addf %366, %368 : vector<8x128xf32>
      %370 = tpu.reciprocal %364 {approx = true} : vector<8x1xf32> -> vector<8x1xf32>
      %371 = vector.broadcast %370 : vector<8x1xf32> to vector<8x128xf32>
      %372 = arith.mulf %369, %371 : vector<8x128xf32>
      %c40_114 = arith.constant 40 : index
      %c0_115 = arith.constant 0 : index
      %373 = vector.load %arg19[%c40_114, %c0_115] : memref<64x128xf32, #tpu.memory_space<vmem>>, vector<8x128xf32>
      tpu.vector_store %arg19[%c40_114, %c0_115], %372 {strides = array<i32>} : memref<64x128xf32, #tpu.memory_space<vmem>>, vector<8x128xf32>,
      %cst_116 = arith.constant dense<0.000000e+00> : vector<8x384xf32>
      %374 = tpu.matmul %348, %36, %cst_116 {dimension_numbers = #tpu.dot_dimension_numbers<[1], [0], [0], [1], [0, 0, 1, 1], [], []>} : vector<8x128xf32>, vector<128x384xf32>, vector<8x384xf32> -> vector<8x384xf32>
      %375 = vector.broadcast %37 : vector<1x384xf32> to vector<8x384xf32>
      %376 = arith.addf %374, %375 : vector<8x384xf32>
      %c48 = arith.constant 48 : index
      %c0_117 = arith.constant 0 : index
      %377 = vector.load %arg17[%c48, %c0_117] : memref<64x384xf32, #tpu.memory_space<vmem>>, vector<8x384xf32>
      %378 = vector.extract_strided_slice %377 {offsets = [0, 0], sizes = [8, 128], strides = [1, 1]} : vector<8x384xf32> to vector<8x128xf32>
      %379 = vector.extract_strided_slice %376 {offsets = [0, 0], sizes = [8, 128], strides = [1, 1]} : vector<8x384xf32> to vector<8x128xf32>
      %380 = arith.addf %378, %379 : vector<8x128xf32>
      %381 = arith.negf %380 : vector<8x128xf32>
      %382 = math.exp %381 : vector<8x128xf32>
      %cst_118 = arith.constant 1.000000e+00 : f32
      %383 = vector.broadcast %cst_118 : f32 to vector<8x128xf32>
      %384 = arith.addf %383, %382 : vector<8x128xf32>
      %385 = arith.divf %383, %384 : vector<8x128xf32>
      %386 = vector.extract_strided_slice %377 {offsets = [0, 128], sizes = [8, 128], strides = [1, 1]} : vector<8x384xf32> to vector<8x128xf32>
      %387 = vector.extract_strided_slice %376 {offsets = [0, 128], sizes = [8, 128], strides = [1, 1]} : vector<8x384xf32> to vector<8x128xf32>
      %388 = arith.addf %386, %387 : vector<8x128xf32>
      %389 = arith.negf %388 : vector<8x128xf32>
      %390 = math.exp %389 : vector<8x128xf32>
      %cst_119 = arith.constant 1.000000e+00 : f32
      %391 = vector.broadcast %cst_119 : f32 to vector<8x128xf32>
      %392 = arith.addf %391, %390 : vector<8x128xf32>
      %393 = arith.divf %391, %392 : vector<8x128xf32>
      %394 = vector.extract_strided_slice %377 {offsets = [0, 256], sizes = [8, 128], strides = [1, 1]} : vector<8x384xf32> to vector<8x128xf32>
      %395 = vector.extract_strided_slice %376 {offsets = [0, 256], sizes = [8, 128], strides = [1, 1]} : vector<8x384xf32> to vector<8x128xf32>
      %396 = arith.mulf %385, %395 : vector<8x128xf32>
      %397 = arith.addf %394, %396 : vector<8x128xf32>
      %398 = math.tanh %397 : vector<8x128xf32>
      %cst_120 = arith.constant 1.000000e+00 : f32
      %399 = vector.broadcast %cst_120 : f32 to vector<8x128xf32>
      %400 = arith.subf %399, %393 : vector<8x128xf32>
      %401 = arith.mulf %400, %398 : vector<8x128xf32>
      %402 = arith.mulf %393, %348 : vector<8x128xf32>
      %403 = arith.addf %401, %402 : vector<8x128xf32>
      %c48_121 = arith.constant 48 : index
      %c0_122 = arith.constant 0 : index
      %404 = vector.load %arg18[%c48_121, %c0_122] : memref<64x128xf32, #tpu.memory_space<vmem>>, vector<8x128xf32>
      tpu.vector_store %arg18[%c48_121, %c0_122], %403 {strides = array<i32>} : memref<64x128xf32, #tpu.memory_space<vmem>>, vector<8x128xf32>,
      %405 = vector.broadcast %38 : vector<1x128xf32> to vector<8x128xf32>
      %406 = arith.mulf %403, %405 : vector<8x128xf32>
      %cst_123 = arith.constant dense<0.000000e+00> : vector<8xf32>
      %407 = vector.multi_reduction <add>, %406, %cst_123 [1] : vector<8x128xf32> to vector<8xf32>
      %408 = vector.shape_cast %407 : vector<8xf32> to vector<8x1xf32>
      %409 = vector.broadcast %39 : vector<1x1xf32> to vector<8x1xf32>
      %410 = arith.addf %408, %409 : vector<8x1xf32>
      %c48_124 = arith.constant 48 : index
      %c0_125 = arith.constant 0 : index
      %411 = vector.load %arg3[%c48_124, %c0_125] : memref<64x1xf32, #tpu.memory_space<vmem>>, vector<8x1xf32>
      %412 = arith.addf %410, %411 : vector<8x1xf32>
      %413 = arith.maximumf %358, %412 : vector<8x1xf32>
      %414 = arith.subf %358, %413 : vector<8x1xf32>
      %415 = math.exp %414 : vector<8x1xf32>
      %416 = arith.subf %412, %413 : vector<8x1xf32>
      %417 = math.exp %416 : vector<8x1xf32>
      %418 = arith.mulf %364, %415 : vector<8x1xf32>
      %419 = arith.addf %418, %417 : vector<8x1xf32>
      %420 = vector.broadcast %415 : vector<8x1xf32> to vector<8x128xf32>
      %421 = arith.mulf %369, %420 : vector<8x128xf32>
      %422 = vector.broadcast %417 : vector<8x1xf32> to vector<8x128xf32>
      %423 = arith.mulf %422, %403 : vector<8x128xf32>
      %424 = arith.addf %421, %423 : vector<8x128xf32>
      %425 = tpu.reciprocal %419 {approx = true} : vector<8x1xf32> -> vector<8x1xf32>
      %426 = vector.broadcast %425 : vector<8x1xf32> to vector<8x128xf32>
      %427 = arith.mulf %424, %426 : vector<8x128xf32>
      %c48_126 = arith.constant 48 : index
      %c0_127 = arith.constant 0 : index
      %428 = vector.load %arg19[%c48_126, %c0_127] : memref<64x128xf32, #tpu.memory_space<vmem>>, vector<8x128xf32>
      tpu.vector_store %arg19[%c48_126, %c0_127], %427 {strides = array<i32>} : memref<64x128xf32, #tpu.memory_space<vmem>>, vector<8x128xf32>,
      %cst_128 = arith.constant dense<0.000000e+00> : vector<8x384xf32>
      %429 = tpu.matmul %403, %36, %cst_128 {dimension_numbers = #tpu.dot_dimension_numbers<[1], [0], [0], [1], [0, 0, 1, 1], [], []>} : vector<8x128xf32>, vector<128x384xf32>, vector<8x384xf32> -> vector<8x384xf32>
      %430 = vector.broadcast %37 : vector<1x384xf32> to vector<8x384xf32>
      %431 = arith.addf %429, %430 : vector<8x384xf32>
      %c56 = arith.constant 56 : index
      %c0_129 = arith.constant 0 : index
      %432 = vector.load %arg17[%c56, %c0_129] : memref<64x384xf32, #tpu.memory_space<vmem>>, vector<8x384xf32>
      %433 = vector.extract_strided_slice %432 {offsets = [0, 0], sizes = [8, 128], strides = [1, 1]} : vector<8x384xf32> to vector<8x128xf32>
      %434 = vector.extract_strided_slice %431 {offsets = [0, 0], sizes = [8, 128], strides = [1, 1]} : vector<8x384xf32> to vector<8x128xf32>
      %435 = arith.addf %433, %434 : vector<8x128xf32>
      %436 = arith.negf %435 : vector<8x128xf32>
      %437 = math.exp %436 : vector<8x128xf32>
      %cst_130 = arith.constant 1.000000e+00 : f32
      %438 = vector.broadcast %cst_130 : f32 to vector<8x128xf32>
      %439 = arith.addf %438, %437 : vector<8x128xf32>
      %440 = arith.divf %438, %439 : vector<8x128xf32>
      %441 = vector.extract_strided_slice %432 {offsets = [0, 128], sizes = [8, 128], strides = [1, 1]} : vector<8x384xf32> to vector<8x128xf32>
      %442 = vector.extract_strided_slice %431 {offsets = [0, 128], sizes = [8, 128], strides = [1, 1]} : vector<8x384xf32> to vector<8x128xf32>
      %443 = arith.addf %441, %442 : vector<8x128xf32>
      %444 = arith.negf %443 : vector<8x128xf32>
      %445 = math.exp %444 : vector<8x128xf32>
      %cst_131 = arith.constant 1.000000e+00 : f32
      %446 = vector.broadcast %cst_131 : f32 to vector<8x128xf32>
      %447 = arith.addf %446, %445 : vector<8x128xf32>
      %448 = arith.divf %446, %447 : vector<8x128xf32>
      %449 = vector.extract_strided_slice %432 {offsets = [0, 256], sizes = [8, 128], strides = [1, 1]} : vector<8x384xf32> to vector<8x128xf32>
      %450 = vector.extract_strided_slice %431 {offsets = [0, 256], sizes = [8, 128], strides = [1, 1]} : vector<8x384xf32> to vector<8x128xf32>
      %451 = arith.mulf %440, %450 : vector<8x128xf32>
      %452 = arith.addf %449, %451 : vector<8x128xf32>
      %453 = math.tanh %452 : vector<8x128xf32>
      %cst_132 = arith.constant 1.000000e+00 : f32
      %454 = vector.broadcast %cst_132 : f32 to vector<8x128xf32>
      %455 = arith.subf %454, %448 : vector<8x128xf32>
      %456 = arith.mulf %455, %453 : vector<8x128xf32>
      %457 = arith.mulf %448, %403 : vector<8x128xf32>
      %458 = arith.addf %456, %457 : vector<8x128xf32>
      %c56_133 = arith.constant 56 : index
      %c0_134 = arith.constant 0 : index
      %459 = vector.load %arg18[%c56_133, %c0_134] : memref<64x128xf32, #tpu.memory_space<vmem>>, vector<8x128xf32>
      tpu.vector_store %arg18[%c56_133, %c0_134], %458 {strides = array<i32>} : memref<64x128xf32, #tpu.memory_space<vmem>>, vector<8x128xf32>,
      %460 = vector.broadcast %38 : vector<1x128xf32> to vector<8x128xf32>
      %461 = arith.mulf %458, %460 : vector<8x128xf32>
      %cst_135 = arith.constant dense<0.000000e+00> : vector<8xf32>
      %462 = vector.multi_reduction <add>, %461, %cst_135 [1] : vector<8x128xf32> to vector<8xf32>
      %463 = vector.shape_cast %462 : vector<8xf32> to vector<8x1xf32>
      %464 = vector.broadcast %39 : vector<1x1xf32> to vector<8x1xf32>
      %465 = arith.addf %463, %464 : vector<8x1xf32>
      %c56_136 = arith.constant 56 : index
      %c0_137 = arith.constant 0 : index
      %466 = vector.load %arg3[%c56_136, %c0_137] : memref<64x1xf32, #tpu.memory_space<vmem>>, vector<8x1xf32>
      %467 = arith.addf %465, %466 : vector<8x1xf32>
      %468 = arith.maximumf %413, %467 : vector<8x1xf32>
      %469 = arith.subf %413, %468 : vector<8x1xf32>
      %470 = math.exp %469 : vector<8x1xf32>
      %471 = arith.subf %467, %468 : vector<8x1xf32>
      %472 = math.exp %471 : vector<8x1xf32>
      %473 = arith.mulf %419, %470 : vector<8x1xf32>
      %474 = arith.addf %473, %472 : vector<8x1xf32>
      %475 = vector.broadcast %470 : vector<8x1xf32> to vector<8x128xf32>
      %476 = arith.mulf %424, %475 : vector<8x128xf32>
      %477 = vector.broadcast %472 : vector<8x1xf32> to vector<8x128xf32>
      %478 = arith.mulf %477, %458 : vector<8x128xf32>
      %479 = arith.addf %476, %478 : vector<8x128xf32>
      %480 = tpu.reciprocal %474 {approx = true} : vector<8x1xf32> -> vector<8x1xf32>
      %481 = vector.broadcast %480 : vector<8x1xf32> to vector<8x128xf32>
      %482 = arith.mulf %479, %481 : vector<8x128xf32>
      %c56_138 = arith.constant 56 : index
      %c0_139 = arith.constant 0 : index
      %483 = vector.load %arg19[%c56_138, %c0_139] : memref<64x128xf32, #tpu.memory_space<vmem>>, vector<8x128xf32>
      tpu.vector_store %arg19[%c56_138, %c0_139], %482 {strides = array<i32>} : memref<64x128xf32, #tpu.memory_space<vmem>>, vector<8x128xf32>,
      %c0_140 = arith.constant 0 : index
      %c0_141 = arith.constant 0 : index
      %484 = vector.load %arg3[%c0_140, %c0_141] : memref<64x1xf32, #tpu.memory_space<vmem>>, vector<64x1xf32>
      %cst_142 = arith.constant -1.000000e+00 : f32
      %485 = vector.broadcast %cst_142 : f32 to vector<64x1xf32>
      %486 = arith.cmpf ogt, %484, %485 : vector<64x1xf32>
      %487 = arith.extui %486 : vector<64x1xi1> to vector<64x1xi32>
      %488 = arith.sitofp %487 : vector<64x1xi32> to vector<64x1xf32>
      %c0_143 = arith.constant 0 : index
      %c0_144 = arith.constant 0 : index
      %489 = vector.load %arg18[%c0_143, %c0_144] : memref<64x128xf32, #tpu.memory_space<vmem>>, vector<64x128xf32>
      %490 = vector.broadcast %488 : vector<64x1xf32> to vector<64x128xf32>
      %491 = arith.mulf %489, %490 : vector<64x128xf32>
      %c0_145 = arith.constant 0 : index
      %c0_146 = arith.constant 0 : index
      %492 = vector.load %arg18[%c0_145, %c0_146] : memref<64x128xf32, #tpu.memory_space<vmem>>, vector<64x128xf32>
      tpu.vector_store %arg18[%c0_145, %c0_146], %491 {strides = array<i32>} : memref<64x128xf32, #tpu.memory_space<vmem>>, vector<64x128xf32>,
    } else {
    }
    %c0 = arith.constant 0 : index
    %c0_1 = arith.constant 0 : index
    %3 = vector.load %arg18[%c0, %c0_1] : memref<64x128xf32, #tpu.memory_space<vmem>>, vector<64x128xf32>
    %c0_2 = arith.constant 0 : index
    %c0_3 = arith.constant 0 : index
    %4 = vector.load %arg13[%c0_2, %c0_3] : memref<128x128xf32, #tpu.memory_space<vmem>>, vector<128x128xf32>
    %cst = arith.constant dense<0.000000e+00> : vector<64x128xf32>
    %5 = tpu.matmul %3, %4, %cst {dimension_numbers = #tpu.dot_dimension_numbers<[1], [0], [0], [1], [0, 0, 1, 1], [], []>} : vector<64x128xf32>, vector<128x128xf32>, vector<64x128xf32> -> vector<64x128xf32>
    %c0_4 = arith.constant 0 : index
    %c0_5 = arith.constant 0 : index
    %6 = vector.load %arg19[%c0_4, %c0_5] : memref<64x128xf32, #tpu.memory_space<vmem>>, vector<64x128xf32>
    %c0_6 = arith.constant 0 : index
    %c0_7 = arith.constant 0 : index
    %7 = vector.load %arg14[%c0_6, %c0_7] : memref<128x128xf32, #tpu.memory_space<vmem>>, vector<128x128xf32>
    %cst_8 = arith.constant dense<0.000000e+00> : vector<64x128xf32>
    %8 = tpu.matmul %6, %7, %cst_8 {dimension_numbers = #tpu.dot_dimension_numbers<[1], [0], [0], [1], [0, 0, 1, 1], [], []>} : vector<64x128xf32>, vector<128x128xf32>, vector<64x128xf32> -> vector<64x128xf32>
    %9 = arith.addf %5, %8 : vector<64x128xf32>
    %c0_9 = arith.constant 0 : index
    %c0_10 = arith.constant 0 : index
    %10 = vector.load %arg4[%c0_9, %c0_10] : memref<64x1xf32, #tpu.memory_space<vmem>>, vector<64x1xf32>
    %11 = vector.broadcast %10 : vector<64x1xf32> to vector<64x128xf32>
    %12 = arith.mulf %9, %11 : vector<64x128xf32>
    %c0_11 = arith.constant 0 : index
    %c0_12 = arith.constant 0 : index
    %13 = vector.load %arg15[%c0_11, %c0_12] : memref<1x128xf32, #tpu.memory_space<vmem>>, vector<1x128xf32>
    %14 = vector.broadcast %13 : vector<1x128xf32> to vector<64x128xf32>
    %15 = arith.addf %12, %14 : vector<64x128xf32>
    %16 = arith.negf %15 : vector<64x128xf32>
    %17 = math.exp %16 : vector<64x128xf32>
    %cst_13 = arith.constant 1.000000e+00 : f32
    %18 = vector.broadcast %cst_13 : f32 to vector<64x128xf32>
    %19 = arith.addf %18, %17 : vector<64x128xf32>
    %20 = arith.divf %18, %19 : vector<64x128xf32>
    %c0_14 = arith.constant 0 : index
    %c0_15 = arith.constant 0 : index
    %21 = vector.load %arg16[%c0_14, %c0_15] : memref<64x128xf32, #tpu.memory_space<vmem>>, vector<64x128xf32>
    tpu.vector_store %arg16[%c0_14, %c0_15], %20 {strides = array<i32>} : memref<64x128xf32, #tpu.memory_space<vmem>>, vector<64x128xf32>,
    return
  }
  func.func @transform_0(%arg0: i32, %arg1: i32) -> (i32, i32) {
    %c0_i32 = arith.constant 0 : i32
    %c0_i32_0 = arith.constant 0 : i32
    return %arg0, %c0_i32 : i32, i32
  }
  func.func @transform_1(%arg0: i32, %arg1: i32) -> (i32, i32) {
    %c0_i32 = arith.constant 0 : i32
    %c0_i32_0 = arith.constant 0 : i32
    return %arg0, %c0_i32 : i32, i32
  }
  func.func @transform_2(%arg0: i32, %arg1: i32) -> (i32, i32) {
    %c0_i32 = arith.constant 0 : i32
    %c0_i32_0 = arith.constant 0 : i32
    %c0_i32_1 = arith.constant 0 : i32
    return %c0_i32, %c0_i32_0 : i32, i32
  }
  func.func @transform_3(%arg0: i32, %arg1: i32) -> (i32, i32) {
    %c0_i32 = arith.constant 0 : i32
    %c0_i32_0 = arith.constant 0 : i32
    %c0_i32_1 = arith.constant 0 : i32
    return %c0_i32, %c0_i32_0 : i32, i32
  }
  func.func @transform_4(%arg0: i32, %arg1: i32) -> (i32, i32) {
    %c0_i32 = arith.constant 0 : i32
    %c0_i32_0 = arith.constant 0 : i32
    %c0_i32_1 = arith.constant 0 : i32
    return %c0_i32, %c0_i32_0 : i32, i32
  }
  func.func @transform_5(%arg0: i32, %arg1: i32) -> (i32, i32) {
    %c0_i32 = arith.constant 0 : i32
    %c0_i32_0 = arith.constant 0 : i32
    %c0_i32_1 = arith.constant 0 : i32
    return %c0_i32, %c0_i32_0 : i32, i32
  }
  func.func @transform_6(%arg0: i32, %arg1: i32) -> (i32, i32) {
    %c0_i32 = arith.constant 0 : i32
    %c0_i32_0 = arith.constant 0 : i32
    %c0_i32_1 = arith.constant 0 : i32
    return %c0_i32, %c0_i32_0 : i32, i32
  }
  func.func @transform_7(%arg0: i32, %arg1: i32) -> (i32, i32) {
    %c0_i32 = arith.constant 0 : i32
    %c0_i32_0 = arith.constant 0 : i32
    %c0_i32_1 = arith.constant 0 : i32
    return %c0_i32, %c0_i32_0 : i32, i32
  }
  func.func @transform_8(%arg0: i32, %arg1: i32) -> (i32, i32) {
    %c0_i32 = arith.constant 0 : i32
    %c0_i32_0 = arith.constant 0 : i32
    %c0_i32_1 = arith.constant 0 : i32
    return %c0_i32, %c0_i32_0 : i32, i32
  }
  func.func @transform_9(%arg0: i32, %arg1: i32) -> (i32, i32) {
    %c0_i32 = arith.constant 0 : i32
    %c0_i32_0 = arith.constant 0 : i32
    %c0_i32_1 = arith.constant 0 : i32
    return %c0_i32, %c0_i32_0 : i32, i32
  }
  func.func @transform_10(%arg0: i32, %arg1: i32) -> (i32, i32) {
    %c0_i32 = arith.constant 0 : i32
    %c0_i32_0 = arith.constant 0 : i32
    %c0_i32_1 = arith.constant 0 : i32
    return %c0_i32, %c0_i32_0 : i32, i32
  }
  func.func @transform_11(%arg0: i32, %arg1: i32) -> (i32, i32) {
    %c0_i32 = arith.constant 0 : i32
    %c0_i32_0 = arith.constant 0 : i32
    return %c0_i32, %arg1 : i32, i32
  }
  func.func @transform_12(%arg0: i32, %arg1: i32) -> (i32, i32) {
    %c0_i32 = arith.constant 0 : i32
    %c0_i32_0 = arith.constant 0 : i32
    return %c0_i32, %arg1 : i32, i32
  }
  func.func @transform_13(%arg0: i32, %arg1: i32) -> (i32, i32) {
    %c0_i32 = arith.constant 0 : i32
    %c0_i32_0 = arith.constant 0 : i32
    return %c0_i32, %arg1 : i32, i32
  }
  func.func @transform_14(%arg0: i32, %arg1: i32) -> (i32, i32) {
    %c0_i32 = arith.constant 0 : i32
    return %arg0, %arg1 : i32, i32
  }
}

module attributes {stable_mosaic.version = 11 : i64} {
  func.func @dipole_kernel(%arg0: i32, %arg1: i32, %arg2: memref<64x128xf32, #tpu.memory_space<vmem>>, %arg3: memref<64x1xf32, #tpu.memory_space<vmem>>, %arg4: memref<64x1xf32, #tpu.memory_space<vmem>>, %arg5: memref<128x128xf32, #tpu.memory_space<vmem>>, %arg6: memref<1x128xf32, #tpu.memory_space<vmem>>, %arg7: memref<128x384xf32, #tpu.memory_space<vmem>>, %arg8: memref<1x384xf32, #tpu.memory_space<vmem>>, %arg9: memref<128x384xf32, #tpu.memory_space<vmem>>, %arg10: memref<1x384xf32, #tpu.memory_space<vmem>>, %arg11: memref<1x128xf32, #tpu.memory_space<vmem>>, %arg12: memref<1x1xf32, #tpu.memory_space<vmem>>, %arg13: memref<128x128xf32, #tpu.memory_space<vmem>>, %arg14: memref<128x128xf32, #tpu.memory_space<vmem>>, %arg15: memref<1x128xf32, #tpu.memory_space<vmem>>, %arg16: memref<64x128xf32, #tpu.memory_space<vmem>>, %arg17: memref<64x384xf32, #tpu.memory_space<vmem>>, %arg18: memref<64x128xf32, #tpu.memory_space<vmem>>, %arg19: memref<64x128xf32, #tpu.memory_space<vmem>>) attributes {dimension_semantics = [#tpu.dimension_semantics<parallel>, #tpu.dimension_semantics<arbitrary>], iteration_bounds = array<i64: 1, 1>, scalar_prefetch = 0 : i64, scratch_operands = 3 : i64, tpu.core_type = #tpu.core_type<tc>, window_params = [{transform_indices = @transform_0, window_bounds = array<i64: 64, 128>}, {transform_indices = @transform_1, window_bounds = array<i64: 64, 1>}, {pipeline_mode = #tpu.pipeline_mode<synchronous>, transform_indices = @transform_2, window_bounds = array<i64: 64, 1>}, {pipeline_mode = #tpu.pipeline_mode<synchronous>, transform_indices = @transform_3, window_bounds = array<i64: 128, 128>}, {pipeline_mode = #tpu.pipeline_mode<synchronous>, transform_indices = @transform_4, window_bounds = array<i64: 1, 128>}, {pipeline_mode = #tpu.pipeline_mode<synchronous>, transform_indices = @transform_5, window_bounds = array<i64: 128, 384>}, {pipeline_mode = #tpu.pipeline_mode<synchronous>, transform_indices = @transform_6, window_bounds = array<i64: 1, 384>}, {pipeline_mode = #tpu.pipeline_mode<synchronous>, transform_indices = @transform_7, window_bounds = array<i64: 128, 384>}, {pipeline_mode = #tpu.pipeline_mode<synchronous>, transform_indices = @transform_8, window_bounds = array<i64: 1, 384>}, {pipeline_mode = #tpu.pipeline_mode<synchronous>, transform_indices = @transform_9, window_bounds = array<i64: 1, 128>}, {pipeline_mode = #tpu.pipeline_mode<synchronous>, transform_indices = @transform_10, window_bounds = array<i64: 1, 1>}, {transform_indices = @transform_11, window_bounds = array<i64: 128, 128>}, {transform_indices = @transform_12, window_bounds = array<i64: 128, 128>}, {transform_indices = @transform_13, window_bounds = array<i64: 1, 128>}, {transform_indices = @transform_14, window_bounds = array<i64: 64, 128>}]} {
    %c0_i32 = arith.constant 0 : i32
    %0 = arith.cmpi eq, %arg1, %c0_i32 : i32
    %1 = arith.extui %0 : i1 to i32
    %c0_i32_0 = arith.constant 0 : i32
    %2 = arith.cmpi ne, %1, %c0_i32_0 : i32
    scf.if %2 {
      %c0_16 = arith.constant 0 : index
      %c0_17 = arith.constant 0 : index
      %22 = vector.load %arg2[%c0_16, %c0_17] : memref<64x128xf32, #tpu.memory_space<vmem>>, vector<64x128xf32>
      %c0_18 = arith.constant 0 : index
      %c0_19 = arith.constant 0 : index
      %23 = vector.load %arg5[%c0_18, %c0_19] : memref<128x128xf32, #tpu.memory_space<vmem>>, vector<128x128xf32>
      %cst_20 = arith.constant dense<0.000000e+00> : vector<64x128xf32>
      %24 = tpu.matmul %22, %23, %cst_20 {dimension_numbers = #tpu.dot_dimension_numbers<[1], [0], [0], [1], [0, 0, 1, 1], [], []>} : vector<64x128xf32>, vector<128x128xf32>, vector<64x128xf32> -> vector<64x128xf32>
      %c0_21 = arith.constant 0 : index
      %c0_22 = arith.constant 0 : index
      %25 = vector.load %arg6[%c0_21, %c0_22] : memref<1x128xf32, #tpu.memory_space<vmem>>, vector<1x128xf32>
      %26 = vector.broadcast %25 : vector<1x128xf32> to vector<64x128xf32>
      %27 = arith.addf %24, %26 : vector<64x128xf32>
      %cst_23 = arith.constant 0.000000e+00 : f32
      %28 = vector.broadcast %cst_23 : f32 to vector<64x128xf32>
      %29 = arith.maximumf %27, %28 : vector<64x128xf32>
      %c0_24 = arith.constant 0 : index
      %c0_25 = arith.constant 0 : index
      %30 = vector.load %arg7[%c0_24, %c0_25] : memref<128x384xf32, #tpu.memory_space<vmem>>, vector<128x384xf32>
      %cst_26 = arith.constant dense<0.000000e+00> : vector<64x384xf32>
      %31 = tpu.matmul %29, %30, %cst_26 {dimension_numbers = #tpu.dot_dimension_numbers<[1], [0], [0], [1], [0, 0, 1, 1], [], []>} : vector<64x128xf32>, vector<128x384xf32>, vector<64x384xf32> -> vector<64x384xf32>
      %c0_27 = arith.constant 0 : index
      %c0_28 = arith.constant 0 : index
      %32 = vector.load %arg8[%c0_27, %c0_28] : memref<1x384xf32, #tpu.memory_space<vmem>>, vector<1x384xf32>
      %33 = vector.broadcast %32 : vector<1x384xf32> to vector<64x384xf32>
      %34 = arith.addf %31, %33 : vector<64x384xf32>
      %c0_29 = arith.constant 0 : index
      %c0_30 = arith.constant 0 : index
      %35 = vector.load %arg17[%c0_29, %c0_30] : memref<64x384xf32, #tpu.memory_space<vmem>>, vector<64x384xf32>
      tpu.vector_store %arg17[%c0_29, %c0_30], %34 {strides = array<i32>} : memref<64x384xf32, #tpu.memory_space<vmem>>, vector<64x384xf32>,
      %c0_31 = arith.constant 0 : index
      %c0_32 = arith.constant 0 : index
      %36 = vector.load %arg9[%c0_31, %c0_32] : memref<128x384xf32, #tpu.memory_space<vmem>>, vector<128x384xf32>
      %c0_33 = arith.constant 0 : index
      %c0_34 = arith.constant 0 : index
      %37 = vector.load %arg10[%c0_33, %c0_34] : memref<1x384xf32, #tpu.memory_space<vmem>>, vector<1x384xf32>
      %c0_35 = arith.constant 0 : index
      %c0_36 = arith.constant 0 : index
      %38 = vector.load %arg11[%c0_35, %c0_36] : memref<1x128xf32, #tpu.memory_space<vmem>>, vector<1x128xf32>
      %c0_37 = arith.constant 0 : index
      %c0_38 = arith.constant 0 : index
      %39 = vector.load %arg12[%c0_37, %c0_38] : memref<1x1xf32, #tpu.memory_space<vmem>>, vector<1x1xf32>
      %cst_39 = arith.constant 0.000000e+00 : f32
      %40 = vector.broadcast %cst_39 : f32 to vector<8x128xf32>
      %cst_40 = arith.constant -1.000000e+30 : f32
      %41 = vector.broadcast %cst_40 : f32 to vector<8x1xf32>
      %cst_41 = arith.constant 0.000000e+00 : f32
      %42 = vector.broadcast %cst_41 : f32 to vector<8x1xf32>
      %cst_42 = arith.constant 0.000000e+00 : f32
      %43 = vector.broadcast %cst_42 : f32 to vector<8x128xf32>
      %cst_43 = arith.constant dense<0.000000e+00> : vector<8x384xf32>
      %44 = tpu.matmul %40, %36, %cst_43 {dimension_numbers = #tpu.dot_dimension_numbers<[1], [0], [0], [1], [0, 0, 1, 1], [], []>} : vector<8x128xf32>, vector<128x384xf32>, vector<8x384xf32> -> vector<8x384xf32>
      %45 = vector.broadcast %37 : vector<1x384xf32> to vector<8x384xf32>
      %46 = arith.addf %44, %45 : vector<8x384xf32>
      %c0_44 = arith.constant 0 : index
      %c0_45 = arith.constant 0 : index
      %47 = vector.load %arg17[%c0_44, %c0_45] : memref<64x384xf32, #tpu.memory_space<vmem>>, vector<8x384xf32>
      %48 = vector.extract_strided_slice %47 {offsets = [0, 0], sizes = [8, 128], strides = [1, 1]} : vector<8x384xf32> to vector<8x128xf32>
      %49 = vector.extract_strided_slice %46 {offsets = [0, 0], sizes = [8, 128], strides = [1, 1]} : vector<8x384xf32> to vector<8x128xf32>
      %50 = arith.addf %48, %49 : vector<8x128xf32>
      %51 = arith.negf %50 : vector<8x128xf32>
      %52 = math.exp %51 : vector<8x128xf32>
      %cst_46 = arith.constant 1.000000e+00 : f32
      %53 = vector.broadcast %cst_46 : f32 to vector<8x128xf32>
      %54 = arith.addf %53, %52 : vector<8x128xf32>
      %55 = arith.divf %53, %54 : vector<8x128xf32>
      %56 = vector.extract_strided_slice %47 {offsets = [0, 128], sizes = [8, 128], strides = [1, 1]} : vector<8x384xf32> to vector<8x128xf32>
      %57 = vector.extract_strided_slice %46 {offsets = [0, 128], sizes = [8, 128], strides = [1, 1]} : vector<8x384xf32> to vector<8x128xf32>
      %58 = arith.addf %56, %57 : vector<8x128xf32>
      %59 = arith.negf %58 : vector<8x128xf32>
      %60 = math.exp %59 : vector<8x128xf32>
      %cst_47 = arith.constant 1.000000e+00 : f32
      %61 = vector.broadcast %cst_47 : f32 to vector<8x128xf32>
      %62 = arith.addf %61, %60 : vector<8x128xf32>
      %63 = arith.divf %61, %62 : vector<8x128xf32>
      %64 = vector.extract_strided_slice %47 {offsets = [0, 256], sizes = [8, 128], strides = [1, 1]} : vector<8x384xf32> to vector<8x128xf32>
      %65 = vector.extract_strided_slice %46 {offsets = [0, 256], sizes = [8, 128], strides = [1, 1]} : vector<8x384xf32> to vector<8x128xf32>
      %66 = arith.mulf %55, %65 : vector<8x128xf32>
      %67 = arith.addf %64, %66 : vector<8x128xf32>
      %68 = math.tanh %67 : vector<8x128xf32>
      %cst_48 = arith.constant 1.000000e+00 : f32
      %69 = vector.broadcast %cst_48 : f32 to vector<8x128xf32>
      %70 = arith.subf %69, %63 : vector<8x128xf32>
      %71 = arith.mulf %70, %68 : vector<8x128xf32>
      %72 = arith.mulf %63, %40 : vector<8x128xf32>
      %73 = arith.addf %71, %72 : vector<8x128xf32>
      %c0_49 = arith.constant 0 : index
      %c0_50 = arith.constant 0 : index
      %74 = vector.load %arg18[%c0_49, %c0_50] : memref<64x128xf32, #tpu.memory_space<vmem>>, vector<8x128xf32>
      tpu.vector_store %arg18[%c0_49, %c0_50], %73 {strides = array<i32>} : memref<64x128xf32, #tpu.memory_space<vmem>>, vector<8x128xf32>,
      %75 = vector.broadcast %38 : vector<1x128xf32> to vector<8x128xf32>
      %76 = arith.mulf %73, %75 : vector<8x128xf32>
      %cst_51 = arith.constant dense<0.000000e+00> : vector<8xf32>
      %77 = vector.multi_reduction <add>, %76, %cst_51 [1] : vector<8x128xf32> to vector<8xf32>
      %78 = vector.shape_cast %77 : vector<8xf32> to vector<8x1xf32>
      %79 = vector.broadcast %39 : vector<1x1xf32> to vector<8x1xf32>
      %80 = arith.addf %78, %79 : vector<8x1xf32>
      %c0_52 = arith.constant 0 : index
      %c0_53 = arith.constant 0 : index
      %81 = vector.load %arg3[%c0_52, %c0_53] : memref<64x1xf32, #tpu.memory_space<vmem>>, vector<8x1xf32>
      %82 = arith.addf %80, %81 : vector<8x1xf32>
      %83 = arith.maximumf %41, %82 : vector<8x1xf32>
      %84 = arith.subf %41, %83 : vector<8x1xf32>
      %85 = math.exp %84 : vector<8x1xf32>
      %86 = arith.subf %82, %83 : vector<8x1xf32>
      %87 = math.exp %86 : vector<8x1xf32>
      %88 = arith.mulf %42, %85 : vector<8x1xf32>
      %89 = arith.addf %88, %87 : vector<8x1xf32>
      %90 = vector.broadcast %85 : vector<8x1xf32> to vector<8x128xf32>
      %91 = arith.mulf %43, %90 : vector<8x128xf32>
      %92 = vector.broadcast %87 : vector<8x1xf32> to vector<8x128xf32>
      %93 = arith.mulf %92, %73 : vector<8x128xf32>
      %94 = arith.addf %91, %93 : vector<8x128xf32>
      %95 = tpu.reciprocal %89 {approx = true} : vector<8x1xf32> -> vector<8x1xf32>
      %96 = vector.broadcast %95 : vector<8x1xf32> to vector<8x128xf32>
      %97 = arith.mulf %94, %96 : vector<8x128xf32>
      %c0_54 = arith.constant 0 : index
      %c0_55 = arith.constant 0 : index
      %98 = vector.load %arg19[%c0_54, %c0_55] : memref<64x128xf32, #tpu.memory_space<vmem>>, vector<8x128xf32>
      tpu.vector_store %arg19[%c0_54, %c0_55], %97 {strides = array<i32>} : memref<64x128xf32, #tpu.memory_space<vmem>>, vector<8x128xf32>,
      %cst_56 = arith.constant dense<0.000000e+00> : vector<8x384xf32>
      %99 = tpu.matmul %73, %36, %cst_56 {dimension_numbers = #tpu.dot_dimension_numbers<[1], [0], [0], [1], [0, 0, 1, 1], [], []>} : vector<8x128xf32>, vector<128x384xf32>, vector<8x384xf32> -> vector<8x384xf32>
      %100 = vector.broadcast %37 : vector<1x384xf32> to vector<8x384xf32>
      %101 = arith.addf %99, %100 : vector<8x384xf32>
      %c8 = arith.constant 8 : index
      %c0_57 = arith.constant 0 : index
      %102 = vector.load %arg17[%c8, %c0_57] : memref<64x384xf32, #tpu.memory_space<vmem>>, vector<8x384xf32>
      %103 = vector.extract_strided_slice %102 {offsets = [0, 0], sizes = [8, 128], strides = [1, 1]} : vector<8x384xf32> to vector<8x128xf32>
      %104 = vector.extract_strided_slice %101 {offsets = [0, 0], sizes = [8, 128], strides = [1, 1]} : vector<8x384xf32> to vector<8x128xf32>
      %105 = arith.addf %103, %104 : vector<8x128xf32>
      %106 = arith.negf %105 : vector<8x128xf32>
      %107 = math.exp %106 : vector<8x128xf32>
      %cst_58 = arith.constant 1.000000e+00 : f32
      %108 = vector.broadcast %cst_58 : f32 to vector<8x128xf32>
      %109 = arith.addf %108, %107 : vector<8x128xf32>
      %110 = arith.divf %108, %109 : vector<8x128xf32>
      %111 = vector.extract_strided_slice %102 {offsets = [0, 128], sizes = [8, 128], strides = [1, 1]} : vector<8x384xf32> to vector<8x128xf32>
      %112 = vector.extract_strided_slice %101 {offsets = [0, 128], sizes = [8, 128], strides = [1, 1]} : vector<8x384xf32> to vector<8x128xf32>
      %113 = arith.addf %111, %112 : vector<8x128xf32>
      %114 = arith.negf %113 : vector<8x128xf32>
      %115 = math.exp %114 : vector<8x128xf32>
      %cst_59 = arith.constant 1.000000e+00 : f32
      %116 = vector.broadcast %cst_59 : f32 to vector<8x128xf32>
      %117 = arith.addf %116, %115 : vector<8x128xf32>
      %118 = arith.divf %116, %117 : vector<8x128xf32>
      %119 = vector.extract_strided_slice %102 {offsets = [0, 256], sizes = [8, 128], strides = [1, 1]} : vector<8x384xf32> to vector<8x128xf32>
      %120 = vector.extract_strided_slice %101 {offsets = [0, 256], sizes = [8, 128], strides = [1, 1]} : vector<8x384xf32> to vector<8x128xf32>
      %121 = arith.mulf %110, %120 : vector<8x128xf32>
      %122 = arith.addf %119, %121 : vector<8x128xf32>
      %123 = math.tanh %122 : vector<8x128xf32>
      %cst_60 = arith.constant 1.000000e+00 : f32
      %124 = vector.broadcast %cst_60 : f32 to vector<8x128xf32>
      %125 = arith.subf %124, %118 : vector<8x128xf32>
      %126 = arith.mulf %125, %123 : vector<8x128xf32>
      %127 = arith.mulf %118, %73 : vector<8x128xf32>
      %128 = arith.addf %126, %127 : vector<8x128xf32>
      %c8_61 = arith.constant 8 : index
      %c0_62 = arith.constant 0 : index
      %129 = vector.load %arg18[%c8_61, %c0_62] : memref<64x128xf32, #tpu.memory_space<vmem>>, vector<8x128xf32>
      tpu.vector_store %arg18[%c8_61, %c0_62], %128 {strides = array<i32>} : memref<64x128xf32, #tpu.memory_space<vmem>>, vector<8x128xf32>,
      %130 = vector.broadcast %38 : vector<1x128xf32> to vector<8x128xf32>
      %131 = arith.mulf %128, %130 : vector<8x128xf32>
      %cst_63 = arith.constant dense<0.000000e+00> : vector<8xf32>
      %132 = vector.multi_reduction <add>, %131, %cst_63 [1] : vector<8x128xf32> to vector<8xf32>
      %133 = vector.shape_cast %132 : vector<8xf32> to vector<8x1xf32>
      %134 = vector.broadcast %39 : vector<1x1xf32> to vector<8x1xf32>
      %135 = arith.addf %133, %134 : vector<8x1xf32>
      %c8_64 = arith.constant 8 : index
      %c0_65 = arith.constant 0 : index
      %136 = vector.load %arg3[%c8_64, %c0_65] : memref<64x1xf32, #tpu.memory_space<vmem>>, vector<8x1xf32>
      %137 = arith.addf %135, %136 : vector<8x1xf32>
      %138 = arith.maximumf %83, %137 : vector<8x1xf32>
      %139 = arith.subf %83, %138 : vector<8x1xf32>
      %140 = math.exp %139 : vector<8x1xf32>
      %141 = arith.subf %137, %138 : vector<8x1xf32>
      %142 = math.exp %141 : vector<8x1xf32>
      %143 = arith.mulf %89, %140 : vector<8x1xf32>
      %144 = arith.addf %143, %142 : vector<8x1xf32>
      %145 = vector.broadcast %140 : vector<8x1xf32> to vector<8x128xf32>
      %146 = arith.mulf %94, %145 : vector<8x128xf32>
      %147 = vector.broadcast %142 : vector<8x1xf32> to vector<8x128xf32>
      %148 = arith.mulf %147, %128 : vector<8x128xf32>
      %149 = arith.addf %146, %148 : vector<8x128xf32>
      %150 = tpu.reciprocal %144 {approx = true} : vector<8x1xf32> -> vector<8x1xf32>
      %151 = vector.broadcast %150 : vector<8x1xf32> to vector<8x128xf32>
      %152 = arith.mulf %149, %151 : vector<8x128xf32>
      %c8_66 = arith.constant 8 : index
      %c0_67 = arith.constant 0 : index
      %153 = vector.load %arg19[%c8_66, %c0_67] : memref<64x128xf32, #tpu.memory_space<vmem>>, vector<8x128xf32>
      tpu.vector_store %arg19[%c8_66, %c0_67], %152 {strides = array<i32>} : memref<64x128xf32, #tpu.memory_space<vmem>>, vector<8x128xf32>,
      %cst_68 = arith.constant dense<0.000000e+00> : vector<8x384xf32>
      %154 = tpu.matmul %128, %36, %cst_68 {dimension_numbers = #tpu.dot_dimension_numbers<[1], [0], [0], [1], [0, 0, 1, 1], [], []>} : vector<8x128xf32>, vector<128x384xf32>, vector<8x384xf32> -> vector<8x384xf32>
      %155 = vector.broadcast %37 : vector<1x384xf32> to vector<8x384xf32>
      %156 = arith.addf %154, %155 : vector<8x384xf32>
      %c16 = arith.constant 16 : index
      %c0_69 = arith.constant 0 : index
      %157 = vector.load %arg17[%c16, %c0_69] : memref<64x384xf32, #tpu.memory_space<vmem>>, vector<8x384xf32>
      %158 = vector.extract_strided_slice %157 {offsets = [0, 0], sizes = [8, 128], strides = [1, 1]} : vector<8x384xf32> to vector<8x128xf32>
      %159 = vector.extract_strided_slice %156 {offsets = [0, 0], sizes = [8, 128], strides = [1, 1]} : vector<8x384xf32> to vector<8x128xf32>
      %160 = arith.addf %158, %159 : vector<8x128xf32>
      %161 = arith.negf %160 : vector<8x128xf32>
      %162 = math.exp %161 : vector<8x128xf32>
      %cst_70 = arith.constant 1.000000e+00 : f32
      %163 = vector.broadcast %cst_70 : f32 to vector<8x128xf32>
      %164 = arith.addf %163, %162 : vector<8x128xf32>
      %165 = arith.divf %163, %164 : vector<8x128xf32>
      %166 = vector.extract_strided_slice %157 {offsets = [0, 128], sizes = [8, 128], strides = [1, 1]} : vector<8x384xf32> to vector<8x128xf32>
      %167 = vector.extract_strided_slice %156 {offsets = [0, 128], sizes = [8, 128], strides = [1, 1]} : vector<8x384xf32> to vector<8x128xf32>
      %168 = arith.addf %166, %167 : vector<8x128xf32>
      %169 = arith.negf %168 : vector<8x128xf32>
      %170 = math.exp %169 : vector<8x128xf32>
      %cst_71 = arith.constant 1.000000e+00 : f32
      %171 = vector.broadcast %cst_71 : f32 to vector<8x128xf32>
      %172 = arith.addf %171, %170 : vector<8x128xf32>
      %173 = arith.divf %171, %172 : vector<8x128xf32>
      %174 = vector.extract_strided_slice %157 {offsets = [0, 256], sizes = [8, 128], strides = [1, 1]} : vector<8x384xf32> to vector<8x128xf32>
      %175 = vector.extract_strided_slice %156 {offsets = [0, 256], sizes = [8, 128], strides = [1, 1]} : vector<8x384xf32> to vector<8x128xf32>
      %176 = arith.mulf %165, %175 : vector<8x128xf32>
      %177 = arith.addf %174, %176 : vector<8x128xf32>
      %178 = math.tanh %177 : vector<8x128xf32>
      %cst_72 = arith.constant 1.000000e+00 : f32
      %179 = vector.broadcast %cst_72 : f32 to vector<8x128xf32>
      %180 = arith.subf %179, %173 : vector<8x128xf32>
      %181 = arith.mulf %180, %178 : vector<8x128xf32>
      %182 = arith.mulf %173, %128 : vector<8x128xf32>
      %183 = arith.addf %181, %182 : vector<8x128xf32>
      %c16_73 = arith.constant 16 : index
      %c0_74 = arith.constant 0 : index
      %184 = vector.load %arg18[%c16_73, %c0_74] : memref<64x128xf32, #tpu.memory_space<vmem>>, vector<8x128xf32>
      tpu.vector_store %arg18[%c16_73, %c0_74], %183 {strides = array<i32>} : memref<64x128xf32, #tpu.memory_space<vmem>>, vector<8x128xf32>,
      %185 = vector.broadcast %38 : vector<1x128xf32> to vector<8x128xf32>
      %186 = arith.mulf %183, %185 : vector<8x128xf32>
      %cst_75 = arith.constant dense<0.000000e+00> : vector<8xf32>
      %187 = vector.multi_reduction <add>, %186, %cst_75 [1] : vector<8x128xf32> to vector<8xf32>
      %188 = vector.shape_cast %187 : vector<8xf32> to vector<8x1xf32>
      %189 = vector.broadcast %39 : vector<1x1xf32> to vector<8x1xf32>
      %190 = arith.addf %188, %189 : vector<8x1xf32>
      %c16_76 = arith.constant 16 : index
      %c0_77 = arith.constant 0 : index
      %191 = vector.load %arg3[%c16_76, %c0_77] : memref<64x1xf32, #tpu.memory_space<vmem>>, vector<8x1xf32>
      %192 = arith.addf %190, %191 : vector<8x1xf32>
      %193 = arith.maximumf %138, %192 : vector<8x1xf32>
      %194 = arith.subf %138, %193 : vector<8x1xf32>
      %195 = math.exp %194 : vector<8x1xf32>
      %196 = arith.subf %192, %193 : vector<8x1xf32>
      %197 = math.exp %196 : vector<8x1xf32>
      %198 = arith.mulf %144, %195 : vector<8x1xf32>
      %199 = arith.addf %198, %197 : vector<8x1xf32>
      %200 = vector.broadcast %195 : vector<8x1xf32> to vector<8x128xf32>
      %201 = arith.mulf %149, %200 : vector<8x128xf32>
      %202 = vector.broadcast %197 : vector<8x1xf32> to vector<8x128xf32>
      %203 = arith.mulf %202, %183 : vector<8x128xf32>
      %204 = arith.addf %201, %203 : vector<8x128xf32>
      %205 = tpu.reciprocal %199 {approx = true} : vector<8x1xf32> -> vector<8x1xf32>
      %206 = vector.broadcast %205 : vector<8x1xf32> to vector<8x128xf32>
      %207 = arith.mulf %204, %206 : vector<8x128xf32>
      %c16_78 = arith.constant 16 : index
      %c0_79 = arith.constant 0 : index
      %208 = vector.load %arg19[%c16_78, %c0_79] : memref<64x128xf32, #tpu.memory_space<vmem>>, vector<8x128xf32>
      tpu.vector_store %arg19[%c16_78, %c0_79], %207 {strides = array<i32>} : memref<64x128xf32, #tpu.memory_space<vmem>>, vector<8x128xf32>,
      %cst_80 = arith.constant dense<0.000000e+00> : vector<8x384xf32>
      %209 = tpu.matmul %183, %36, %cst_80 {dimension_numbers = #tpu.dot_dimension_numbers<[1], [0], [0], [1], [0, 0, 1, 1], [], []>} : vector<8x128xf32>, vector<128x384xf32>, vector<8x384xf32> -> vector<8x384xf32>
      %210 = vector.broadcast %37 : vector<1x384xf32> to vector<8x384xf32>
      %211 = arith.addf %209, %210 : vector<8x384xf32>
      %c24 = arith.constant 24 : index
      %c0_81 = arith.constant 0 : index
      %212 = vector.load %arg17[%c24, %c0_81] : memref<64x384xf32, #tpu.memory_space<vmem>>, vector<8x384xf32>
      %213 = vector.extract_strided_slice %212 {offsets = [0, 0], sizes = [8, 128], strides = [1, 1]} : vector<8x384xf32> to vector<8x128xf32>
      %214 = vector.extract_strided_slice %211 {offsets = [0, 0], sizes = [8, 128], strides = [1, 1]} : vector<8x384xf32> to vector<8x128xf32>
      %215 = arith.addf %213, %214 : vector<8x128xf32>
      %216 = arith.negf %215 : vector<8x128xf32>
      %217 = math.exp %216 : vector<8x128xf32>
      %cst_82 = arith.constant 1.000000e+00 : f32
      %218 = vector.broadcast %cst_82 : f32 to vector<8x128xf32>
      %219 = arith.addf %218, %217 : vector<8x128xf32>
      %220 = arith.divf %218, %219 : vector<8x128xf32>
      %221 = vector.extract_strided_slice %212 {offsets = [0, 128], sizes = [8, 128], strides = [1, 1]} : vector<8x384xf32> to vector<8x128xf32>
      %222 = vector.extract_strided_slice %211 {offsets = [0, 128], sizes = [8, 128], strides = [1, 1]} : vector<8x384xf32> to vector<8x128xf32>
      %223 = arith.addf %221, %222 : vector<8x128xf32>
      %224 = arith.negf %223 : vector<8x128xf32>
      %225 = math.exp %224 : vector<8x128xf32>
      %cst_83 = arith.constant 1.000000e+00 : f32
      %226 = vector.broadcast %cst_83 : f32 to vector<8x128xf32>
      %227 = arith.addf %226, %225 : vector<8x128xf32>
      %228 = arith.divf %226, %227 : vector<8x128xf32>
      %229 = vector.extract_strided_slice %212 {offsets = [0, 256], sizes = [8, 128], strides = [1, 1]} : vector<8x384xf32> to vector<8x128xf32>
      %230 = vector.extract_strided_slice %211 {offsets = [0, 256], sizes = [8, 128], strides = [1, 1]} : vector<8x384xf32> to vector<8x128xf32>
      %231 = arith.mulf %220, %230 : vector<8x128xf32>
      %232 = arith.addf %229, %231 : vector<8x128xf32>
      %233 = math.tanh %232 : vector<8x128xf32>
      %cst_84 = arith.constant 1.000000e+00 : f32
      %234 = vector.broadcast %cst_84 : f32 to vector<8x128xf32>
      %235 = arith.subf %234, %228 : vector<8x128xf32>
      %236 = arith.mulf %235, %233 : vector<8x128xf32>
      %237 = arith.mulf %228, %183 : vector<8x128xf32>
      %238 = arith.addf %236, %237 : vector<8x128xf32>
      %c24_85 = arith.constant 24 : index
      %c0_86 = arith.constant 0 : index
      %239 = vector.load %arg18[%c24_85, %c0_86] : memref<64x128xf32, #tpu.memory_space<vmem>>, vector<8x128xf32>
      tpu.vector_store %arg18[%c24_85, %c0_86], %238 {strides = array<i32>} : memref<64x128xf32, #tpu.memory_space<vmem>>, vector<8x128xf32>,
      %240 = vector.broadcast %38 : vector<1x128xf32> to vector<8x128xf32>
      %241 = arith.mulf %238, %240 : vector<8x128xf32>
      %cst_87 = arith.constant dense<0.000000e+00> : vector<8xf32>
      %242 = vector.multi_reduction <add>, %241, %cst_87 [1] : vector<8x128xf32> to vector<8xf32>
      %243 = vector.shape_cast %242 : vector<8xf32> to vector<8x1xf32>
      %244 = vector.broadcast %39 : vector<1x1xf32> to vector<8x1xf32>
      %245 = arith.addf %243, %244 : vector<8x1xf32>
      %c24_88 = arith.constant 24 : index
      %c0_89 = arith.constant 0 : index
      %246 = vector.load %arg3[%c24_88, %c0_89] : memref<64x1xf32, #tpu.memory_space<vmem>>, vector<8x1xf32>
      %247 = arith.addf %245, %246 : vector<8x1xf32>
      %248 = arith.maximumf %193, %247 : vector<8x1xf32>
      %249 = arith.subf %193, %248 : vector<8x1xf32>
      %250 = math.exp %249 : vector<8x1xf32>
      %251 = arith.subf %247, %248 : vector<8x1xf32>
      %252 = math.exp %251 : vector<8x1xf32>
      %253 = arith.mulf %199, %250 : vector<8x1xf32>
      %254 = arith.addf %253, %252 : vector<8x1xf32>
      %255 = vector.broadcast %250 : vector<8x1xf32> to vector<8x128xf32>
      %256 = arith.mulf %204, %255 : vector<8x128xf32>
      %257 = vector.broadcast %252 : vector<8x1xf32> to vector<8x128xf32>
      %258 = arith.mulf %257, %238 : vector<8x128xf32>
      %259 = arith.addf %256, %258 : vector<8x128xf32>
      %260 = tpu.reciprocal %254 {approx = true} : vector<8x1xf32> -> vector<8x1xf32>
      %261 = vector.broadcast %260 : vector<8x1xf32> to vector<8x128xf32>
      %262 = arith.mulf %259, %261 : vector<8x128xf32>
      %c24_90 = arith.constant 24 : index
      %c0_91 = arith.constant 0 : index
      %263 = vector.load %arg19[%c24_90, %c0_91] : memref<64x128xf32, #tpu.memory_space<vmem>>, vector<8x128xf32>
      tpu.vector_store %arg19[%c24_90, %c0_91], %262 {strides = array<i32>} : memref<64x128xf32, #tpu.memory_space<vmem>>, vector<8x128xf32>,
      %cst_92 = arith.constant dense<0.000000e+00> : vector<8x384xf32>
      %264 = tpu.matmul %238, %36, %cst_92 {dimension_numbers = #tpu.dot_dimension_numbers<[1], [0], [0], [1], [0, 0, 1, 1], [], []>} : vector<8x128xf32>, vector<128x384xf32>, vector<8x384xf32> -> vector<8x384xf32>
      %265 = vector.broadcast %37 : vector<1x384xf32> to vector<8x384xf32>
      %266 = arith.addf %264, %265 : vector<8x384xf32>
      %c32 = arith.constant 32 : index
      %c0_93 = arith.constant 0 : index
      %267 = vector.load %arg17[%c32, %c0_93] : memref<64x384xf32, #tpu.memory_space<vmem>>, vector<8x384xf32>
      %268 = vector.extract_strided_slice %267 {offsets = [0, 0], sizes = [8, 128], strides = [1, 1]} : vector<8x384xf32> to vector<8x128xf32>
      %269 = vector.extract_strided_slice %266 {offsets = [0, 0], sizes = [8, 128], strides = [1, 1]} : vector<8x384xf32> to vector<8x128xf32>
      %270 = arith.addf %268, %269 : vector<8x128xf32>
      %271 = arith.negf %270 : vector<8x128xf32>
      %272 = math.exp %271 : vector<8x128xf32>
      %cst_94 = arith.constant 1.000000e+00 : f32
      %273 = vector.broadcast %cst_94 : f32 to vector<8x128xf32>
      %274 = arith.addf %273, %272 : vector<8x128xf32>
      %275 = arith.divf %273, %274 : vector<8x128xf32>
      %276 = vector.extract_strided_slice %267 {offsets = [0, 128], sizes = [8, 128], strides = [1, 1]} : vector<8x384xf32> to vector<8x128xf32>
      %277 = vector.extract_strided_slice %266 {offsets = [0, 128], sizes = [8, 128], strides = [1, 1]} : vector<8x384xf32> to vector<8x128xf32>
      %278 = arith.addf %276, %277 : vector<8x128xf32>
      %279 = arith.negf %278 : vector<8x128xf32>
      %280 = math.exp %279 : vector<8x128xf32>
      %cst_95 = arith.constant 1.000000e+00 : f32
      %281 = vector.broadcast %cst_95 : f32 to vector<8x128xf32>
      %282 = arith.addf %281, %280 : vector<8x128xf32>
      %283 = arith.divf %281, %282 : vector<8x128xf32>
      %284 = vector.extract_strided_slice %267 {offsets = [0, 256], sizes = [8, 128], strides = [1, 1]} : vector<8x384xf32> to vector<8x128xf32>
      %285 = vector.extract_strided_slice %266 {offsets = [0, 256], sizes = [8, 128], strides = [1, 1]} : vector<8x384xf32> to vector<8x128xf32>
      %286 = arith.mulf %275, %285 : vector<8x128xf32>
      %287 = arith.addf %284, %286 : vector<8x128xf32>
      %288 = math.tanh %287 : vector<8x128xf32>
      %cst_96 = arith.constant 1.000000e+00 : f32
      %289 = vector.broadcast %cst_96 : f32 to vector<8x128xf32>
      %290 = arith.subf %289, %283 : vector<8x128xf32>
      %291 = arith.mulf %290, %288 : vector<8x128xf32>
      %292 = arith.mulf %283, %238 : vector<8x128xf32>
      %293 = arith.addf %291, %292 : vector<8x128xf32>
      %c32_97 = arith.constant 32 : index
      %c0_98 = arith.constant 0 : index
      %294 = vector.load %arg18[%c32_97, %c0_98] : memref<64x128xf32, #tpu.memory_space<vmem>>, vector<8x128xf32>
      tpu.vector_store %arg18[%c32_97, %c0_98], %293 {strides = array<i32>} : memref<64x128xf32, #tpu.memory_space<vmem>>, vector<8x128xf32>,
      %295 = vector.broadcast %38 : vector<1x128xf32> to vector<8x128xf32>
      %296 = arith.mulf %293, %295 : vector<8x128xf32>
      %cst_99 = arith.constant dense<0.000000e+00> : vector<8xf32>
      %297 = vector.multi_reduction <add>, %296, %cst_99 [1] : vector<8x128xf32> to vector<8xf32>
      %298 = vector.shape_cast %297 : vector<8xf32> to vector<8x1xf32>
      %299 = vector.broadcast %39 : vector<1x1xf32> to vector<8x1xf32>
      %300 = arith.addf %298, %299 : vector<8x1xf32>
      %c32_100 = arith.constant 32 : index
      %c0_101 = arith.constant 0 : index
      %301 = vector.load %arg3[%c32_100, %c0_101] : memref<64x1xf32, #tpu.memory_space<vmem>>, vector<8x1xf32>
      %302 = arith.addf %300, %301 : vector<8x1xf32>
      %303 = arith.maximumf %248, %302 : vector<8x1xf32>
      %304 = arith.subf %248, %303 : vector<8x1xf32>
      %305 = math.exp %304 : vector<8x1xf32>
      %306 = arith.subf %302, %303 : vector<8x1xf32>
      %307 = math.exp %306 : vector<8x1xf32>
      %308 = arith.mulf %254, %305 : vector<8x1xf32>
      %309 = arith.addf %308, %307 : vector<8x1xf32>
      %310 = vector.broadcast %305 : vector<8x1xf32> to vector<8x128xf32>
      %311 = arith.mulf %259, %310 : vector<8x128xf32>
      %312 = vector.broadcast %307 : vector<8x1xf32> to vector<8x128xf32>
      %313 = arith.mulf %312, %293 : vector<8x128xf32>
      %314 = arith.addf %311, %313 : vector<8x128xf32>
      %315 = tpu.reciprocal %309 {approx = true} : vector<8x1xf32> -> vector<8x1xf32>
      %316 = vector.broadcast %315 : vector<8x1xf32> to vector<8x128xf32>
      %317 = arith.mulf %314, %316 : vector<8x128xf32>
      %c32_102 = arith.constant 32 : index
      %c0_103 = arith.constant 0 : index
      %318 = vector.load %arg19[%c32_102, %c0_103] : memref<64x128xf32, #tpu.memory_space<vmem>>, vector<8x128xf32>
      tpu.vector_store %arg19[%c32_102, %c0_103], %317 {strides = array<i32>} : memref<64x128xf32, #tpu.memory_space<vmem>>, vector<8x128xf32>,
      %cst_104 = arith.constant dense<0.000000e+00> : vector<8x384xf32>
      %319 = tpu.matmul %293, %36, %cst_104 {dimension_numbers = #tpu.dot_dimension_numbers<[1], [0], [0], [1], [0, 0, 1, 1], [], []>} : vector<8x128xf32>, vector<128x384xf32>, vector<8x384xf32> -> vector<8x384xf32>
      %320 = vector.broadcast %37 : vector<1x384xf32> to vector<8x384xf32>
      %321 = arith.addf %319, %320 : vector<8x384xf32>
      %c40 = arith.constant 40 : index
      %c0_105 = arith.constant 0 : index
      %322 = vector.load %arg17[%c40, %c0_105] : memref<64x384xf32, #tpu.memory_space<vmem>>, vector<8x384xf32>
      %323 = vector.extract_strided_slice %322 {offsets = [0, 0], sizes = [8, 128], strides = [1, 1]} : vector<8x384xf32> to vector<8x128xf32>
      %324 = vector.extract_strided_slice %321 {offsets = [0, 0], sizes = [8, 128], strides = [1, 1]} : vector<8x384xf32> to vector<8x128xf32>
      %325 = arith.addf %323, %324 : vector<8x128xf32>
      %326 = arith.negf %325 : vector<8x128xf32>
      %327 = math.exp %326 : vector<8x128xf32>
      %cst_106 = arith.constant 1.000000e+00 : f32
      %328 = vector.broadcast %cst_106 : f32 to vector<8x128xf32>
      %329 = arith.addf %328, %327 : vector<8x128xf32>
      %330 = arith.divf %328, %329 : vector<8x128xf32>
      %331 = vector.extract_strided_slice %322 {offsets = [0, 128], sizes = [8, 128], strides = [1, 1]} : vector<8x384xf32> to vector<8x128xf32>
      %332 = vector.extract_strided_slice %321 {offsets = [0, 128], sizes = [8, 128], strides = [1, 1]} : vector<8x384xf32> to vector<8x128xf32>
      %333 = arith.addf %331, %332 : vector<8x128xf32>
      %334 = arith.negf %333 : vector<8x128xf32>
      %335 = math.exp %334 : vector<8x128xf32>
      %cst_107 = arith.constant 1.000000e+00 : f32
      %336 = vector.broadcast %cst_107 : f32 to vector<8x128xf32>
      %337 = arith.addf %336, %335 : vector<8x128xf32>
      %338 = arith.divf %336, %337 : vector<8x128xf32>
      %339 = vector.extract_strided_slice %322 {offsets = [0, 256], sizes = [8, 128], strides = [1, 1]} : vector<8x384xf32> to vector<8x128xf32>
      %340 = vector.extract_strided_slice %321 {offsets = [0, 256], sizes = [8, 128], strides = [1, 1]} : vector<8x384xf32> to vector<8x128xf32>
      %341 = arith.mulf %330, %340 : vector<8x128xf32>
      %342 = arith.addf %339, %341 : vector<8x128xf32>
      %343 = math.tanh %342 : vector<8x128xf32>
      %cst_108 = arith.constant 1.000000e+00 : f32
      %344 = vector.broadcast %cst_108 : f32 to vector<8x128xf32>
      %345 = arith.subf %344, %338 : vector<8x128xf32>
      %346 = arith.mulf %345, %343 : vector<8x128xf32>
      %347 = arith.mulf %338, %293 : vector<8x128xf32>
      %348 = arith.addf %346, %347 : vector<8x128xf32>
      %c40_109 = arith.constant 40 : index
      %c0_110 = arith.constant 0 : index
      %349 = vector.load %arg18[%c40_109, %c0_110] : memref<64x128xf32, #tpu.memory_space<vmem>>, vector<8x128xf32>
      tpu.vector_store %arg18[%c40_109, %c0_110], %348 {strides = array<i32>} : memref<64x128xf32, #tpu.memory_space<vmem>>, vector<8x128xf32>,
      %350 = vector.broadcast %38 : vector<1x128xf32> to vector<8x128xf32>
      %351 = arith.mulf %348, %350 : vector<8x128xf32>
      %cst_111 = arith.constant dense<0.000000e+00> : vector<8xf32>
      %352 = vector.multi_reduction <add>, %351, %cst_111 [1] : vector<8x128xf32> to vector<8xf32>
      %353 = vector.shape_cast %352 : vector<8xf32> to vector<8x1xf32>
      %354 = vector.broadcast %39 : vector<1x1xf32> to vector<8x1xf32>
      %355 = arith.addf %353, %354 : vector<8x1xf32>
      %c40_112 = arith.constant 40 : index
      %c0_113 = arith.constant 0 : index
      %356 = vector.load %arg3[%c40_112, %c0_113] : memref<64x1xf32, #tpu.memory_space<vmem>>, vector<8x1xf32>
      %357 = arith.addf %355, %356 : vector<8x1xf32>
      %358 = arith.maximumf %303, %357 : vector<8x1xf32>
      %359 = arith.subf %303, %358 : vector<8x1xf32>
      %360 = math.exp %359 : vector<8x1xf32>
      %361 = arith.subf %357, %358 : vector<8x1xf32>
      %362 = math.exp %361 : vector<8x1xf32>
      %363 = arith.mulf %309, %360 : vector<8x1xf32>
      %364 = arith.addf %363, %362 : vector<8x1xf32>
      %365 = vector.broadcast %360 : vector<8x1xf32> to vector<8x128xf32>
      %366 = arith.mulf %314, %365 : vector<8x128xf32>
      %367 = vector.broadcast %362 : vector<8x1xf32> to vector<8x128xf32>
      %368 = arith.mulf %367, %348 : vector<8x128xf32>
      %369 = arith.addf %366, %368 : vector<8x128xf32>
      %370 = tpu.reciprocal %364 {approx = true} : vector<8x1xf32> -> vector<8x1xf32>
      %371 = vector.broadcast %370 : vector<8x1xf32> to vector<8x128xf32>
      %372 = arith.mulf %369, %371 : vector<8x128xf32>
      %c40_114 = arith.constant 40 : index
      %c0_115 = arith.constant 0 : index
      %373 = vector.load %arg19[%c40_114, %c0_115] : memref<64x128xf32, #tpu.memory_space<vmem>>, vector<8x128xf32>
      tpu.vector_store %arg19[%c40_114, %c0_115], %372 {strides = array<i32>} : memref<64x128xf32, #tpu.memory_space<vmem>>, vector<8x128xf32>,
      %cst_116 = arith.constant dense<0.000000e+00> : vector<8x384xf32>
      %374 = tpu.matmul %348, %36, %cst_116 {dimension_numbers = #tpu.dot_dimension_numbers<[1], [0], [0], [1], [0, 0, 1, 1], [], []>} : vector<8x128xf32>, vector<128x384xf32>, vector<8x384xf32> -> vector<8x384xf32>
      %375 = vector.broadcast %37 : vector<1x384xf32> to vector<8x384xf32>
      %376 = arith.addf %374, %375 : vector<8x384xf32>
      %c48 = arith.constant 48 : index
      %c0_117 = arith.constant 0 : index
      %377 = vector.load %arg17[%c48, %c0_117] : memref<64x384xf32, #tpu.memory_space<vmem>>, vector<8x384xf32>
      %378 = vector.extract_strided_slice %377 {offsets = [0, 0], sizes = [8, 128], strides = [1, 1]} : vector<8x384xf32> to vector<8x128xf32>
      %379 = vector.extract_strided_slice %376 {offsets = [0, 0], sizes = [8, 128], strides = [1, 1]} : vector<8x384xf32> to vector<8x128xf32>
      %380 = arith.addf %378, %379 : vector<8x128xf32>
      %381 = arith.negf %380 : vector<8x128xf32>
      %382 = math.exp %381 : vector<8x128xf32>
      %cst_118 = arith.constant 1.000000e+00 : f32
      %383 = vector.broadcast %cst_118 : f32 to vector<8x128xf32>
      %384 = arith.addf %383, %382 : vector<8x128xf32>
      %385 = arith.divf %383, %384 : vector<8x128xf32>
      %386 = vector.extract_strided_slice %377 {offsets = [0, 128], sizes = [8, 128], strides = [1, 1]} : vector<8x384xf32> to vector<8x128xf32>
      %387 = vector.extract_strided_slice %376 {offsets = [0, 128], sizes = [8, 128], strides = [1, 1]} : vector<8x384xf32> to vector<8x128xf32>
      %388 = arith.addf %386, %387 : vector<8x128xf32>
      %389 = arith.negf %388 : vector<8x128xf32>
      %390 = math.exp %389 : vector<8x128xf32>
      %cst_119 = arith.constant 1.000000e+00 : f32
      %391 = vector.broadcast %cst_119 : f32 to vector<8x128xf32>
      %392 = arith.addf %391, %390 : vector<8x128xf32>
      %393 = arith.divf %391, %392 : vector<8x128xf32>
      %394 = vector.extract_strided_slice %377 {offsets = [0, 256], sizes = [8, 128], strides = [1, 1]} : vector<8x384xf32> to vector<8x128xf32>
      %395 = vector.extract_strided_slice %376 {offsets = [0, 256], sizes = [8, 128], strides = [1, 1]} : vector<8x384xf32> to vector<8x128xf32>
      %396 = arith.mulf %385, %395 : vector<8x128xf32>
      %397 = arith.addf %394, %396 : vector<8x128xf32>
      %398 = math.tanh %397 : vector<8x128xf32>
      %cst_120 = arith.constant 1.000000e+00 : f32
      %399 = vector.broadcast %cst_120 : f32 to vector<8x128xf32>
      %400 = arith.subf %399, %393 : vector<8x128xf32>
      %401 = arith.mulf %400, %398 : vector<8x128xf32>
      %402 = arith.mulf %393, %348 : vector<8x128xf32>
      %403 = arith.addf %401, %402 : vector<8x128xf32>
      %c48_121 = arith.constant 48 : index
      %c0_122 = arith.constant 0 : index
      %404 = vector.load %arg18[%c48_121, %c0_122] : memref<64x128xf32, #tpu.memory_space<vmem>>, vector<8x128xf32>
      tpu.vector_store %arg18[%c48_121, %c0_122], %403 {strides = array<i32>} : memref<64x128xf32, #tpu.memory_space<vmem>>, vector<8x128xf32>,
      %405 = vector.broadcast %38 : vector<1x128xf32> to vector<8x128xf32>
      %406 = arith.mulf %403, %405 : vector<8x128xf32>
      %cst_123 = arith.constant dense<0.000000e+00> : vector<8xf32>
      %407 = vector.multi_reduction <add>, %406, %cst_123 [1] : vector<8x128xf32> to vector<8xf32>
      %408 = vector.shape_cast %407 : vector<8xf32> to vector<8x1xf32>
      %409 = vector.broadcast %39 : vector<1x1xf32> to vector<8x1xf32>
      %410 = arith.addf %408, %409 : vector<8x1xf32>
      %c48_124 = arith.constant 48 : index
      %c0_125 = arith.constant 0 : index
      %411 = vector.load %arg3[%c48_124, %c0_125] : memref<64x1xf32, #tpu.memory_space<vmem>>, vector<8x1xf32>
      %412 = arith.addf %410, %411 : vector<8x1xf32>
      %413 = arith.maximumf %358, %412 : vector<8x1xf32>
      %414 = arith.subf %358, %413 : vector<8x1xf32>
      %415 = math.exp %414 : vector<8x1xf32>
      %416 = arith.subf %412, %413 : vector<8x1xf32>
      %417 = math.exp %416 : vector<8x1xf32>
      %418 = arith.mulf %364, %415 : vector<8x1xf32>
      %419 = arith.addf %418, %417 : vector<8x1xf32>
      %420 = vector.broadcast %415 : vector<8x1xf32> to vector<8x128xf32>
      %421 = arith.mulf %369, %420 : vector<8x128xf32>
      %422 = vector.broadcast %417 : vector<8x1xf32> to vector<8x128xf32>
      %423 = arith.mulf %422, %403 : vector<8x128xf32>
      %424 = arith.addf %421, %423 : vector<8x128xf32>
      %425 = tpu.reciprocal %419 {approx = true} : vector<8x1xf32> -> vector<8x1xf32>
      %426 = vector.broadcast %425 : vector<8x1xf32> to vector<8x128xf32>
      %427 = arith.mulf %424, %426 : vector<8x128xf32>
      %c48_126 = arith.constant 48 : index
      %c0_127 = arith.constant 0 : index
      %428 = vector.load %arg19[%c48_126, %c0_127] : memref<64x128xf32, #tpu.memory_space<vmem>>, vector<8x128xf32>
      tpu.vector_store %arg19[%c48_126, %c0_127], %427 {strides = array<i32>} : memref<64x128xf32, #tpu.memory_space<vmem>>, vector<8x128xf32>,
      %cst_128 = arith.constant dense<0.000000e+00> : vector<8x384xf32>
      %429 = tpu.matmul %403, %36, %cst_128 {dimension_numbers = #tpu.dot_dimension_numbers<[1], [0], [0], [1], [0, 0, 1, 1], [], []>} : vector<8x128xf32>, vector<128x384xf32>, vector<8x384xf32> -> vector<8x384xf32>
      %430 = vector.broadcast %37 : vector<1x384xf32> to vector<8x384xf32>
      %431 = arith.addf %429, %430 : vector<8x384xf32>
      %c56 = arith.constant 56 : index
      %c0_129 = arith.constant 0 : index
      %432 = vector.load %arg17[%c56, %c0_129] : memref<64x384xf32, #tpu.memory_space<vmem>>, vector<8x384xf32>
      %433 = vector.extract_strided_slice %432 {offsets = [0, 0], sizes = [8, 128], strides = [1, 1]} : vector<8x384xf32> to vector<8x128xf32>
      %434 = vector.extract_strided_slice %431 {offsets = [0, 0], sizes = [8, 128], strides = [1, 1]} : vector<8x384xf32> to vector<8x128xf32>
      %435 = arith.addf %433, %434 : vector<8x128xf32>
      %436 = arith.negf %435 : vector<8x128xf32>
      %437 = math.exp %436 : vector<8x128xf32>
      %cst_130 = arith.constant 1.000000e+00 : f32
      %438 = vector.broadcast %cst_130 : f32 to vector<8x128xf32>
      %439 = arith.addf %438, %437 : vector<8x128xf32>
      %440 = arith.divf %438, %439 : vector<8x128xf32>
      %441 = vector.extract_strided_slice %432 {offsets = [0, 128], sizes = [8, 128], strides = [1, 1]} : vector<8x384xf32> to vector<8x128xf32>
      %442 = vector.extract_strided_slice %431 {offsets = [0, 128], sizes = [8, 128], strides = [1, 1]} : vector<8x384xf32> to vector<8x128xf32>
      %443 = arith.addf %441, %442 : vector<8x128xf32>
      %444 = arith.negf %443 : vector<8x128xf32>
      %445 = math.exp %444 : vector<8x128xf32>
      %cst_131 = arith.constant 1.000000e+00 : f32
      %446 = vector.broadcast %cst_131 : f32 to vector<8x128xf32>
      %447 = arith.addf %446, %445 : vector<8x128xf32>
      %448 = arith.divf %446, %447 : vector<8x128xf32>
      %449 = vector.extract_strided_slice %432 {offsets = [0, 256], sizes = [8, 128], strides = [1, 1]} : vector<8x384xf32> to vector<8x128xf32>
      %450 = vector.extract_strided_slice %431 {offsets = [0, 256], sizes = [8, 128], strides = [1, 1]} : vector<8x384xf32> to vector<8x128xf32>
      %451 = arith.mulf %440, %450 : vector<8x128xf32>
      %452 = arith.addf %449, %451 : vector<8x128xf32>
      %453 = math.tanh %452 : vector<8x128xf32>
      %cst_132 = arith.constant 1.000000e+00 : f32
      %454 = vector.broadcast %cst_132 : f32 to vector<8x128xf32>
      %455 = arith.subf %454, %448 : vector<8x128xf32>
      %456 = arith.mulf %455, %453 : vector<8x128xf32>
      %457 = arith.mulf %448, %403 : vector<8x128xf32>
      %458 = arith.addf %456, %457 : vector<8x128xf32>
      %c56_133 = arith.constant 56 : index
      %c0_134 = arith.constant 0 : index
      %459 = vector.load %arg18[%c56_133, %c0_134] : memref<64x128xf32, #tpu.memory_space<vmem>>, vector<8x128xf32>
      tpu.vector_store %arg18[%c56_133, %c0_134], %458 {strides = array<i32>} : memref<64x128xf32, #tpu.memory_space<vmem>>, vector<8x128xf32>,
      %460 = vector.broadcast %38 : vector<1x128xf32> to vector<8x128xf32>
      %461 = arith.mulf %458, %460 : vector<8x128xf32>
      %cst_135 = arith.constant dense<0.000000e+00> : vector<8xf32>
      %462 = vector.multi_reduction <add>, %461, %cst_135 [1] : vector<8x128xf32> to vector<8xf32>
      %463 = vector.shape_cast %462 : vector<8xf32> to vector<8x1xf32>
      %464 = vector.broadcast %39 : vector<1x1xf32> to vector<8x1xf32>
      %465 = arith.addf %463, %464 : vector<8x1xf32>
      %c56_136 = arith.constant 56 : index
      %c0_137 = arith.constant 0 : index
      %466 = vector.load %arg3[%c56_136, %c0_137] : memref<64x1xf32, #tpu.memory_space<vmem>>, vector<8x1xf32>
      %467 = arith.addf %465, %466 : vector<8x1xf32>
      %468 = arith.maximumf %413, %467 : vector<8x1xf32>
      %469 = arith.subf %413, %468 : vector<8x1xf32>
      %470 = math.exp %469 : vector<8x1xf32>
      %471 = arith.subf %467, %468 : vector<8x1xf32>
      %472 = math.exp %471 : vector<8x1xf32>
      %473 = arith.mulf %419, %470 : vector<8x1xf32>
      %474 = arith.addf %473, %472 : vector<8x1xf32>
      %475 = vector.broadcast %470 : vector<8x1xf32> to vector<8x128xf32>
      %476 = arith.mulf %424, %475 : vector<8x128xf32>
      %477 = vector.broadcast %472 : vector<8x1xf32> to vector<8x128xf32>
      %478 = arith.mulf %477, %458 : vector<8x128xf32>
      %479 = arith.addf %476, %478 : vector<8x128xf32>
      %480 = tpu.reciprocal %474 {approx = true} : vector<8x1xf32> -> vector<8x1xf32>
      %481 = vector.broadcast %480 : vector<8x1xf32> to vector<8x128xf32>
      %482 = arith.mulf %479, %481 : vector<8x128xf32>
      %c56_138 = arith.constant 56 : index
      %c0_139 = arith.constant 0 : index
      %483 = vector.load %arg19[%c56_138, %c0_139] : memref<64x128xf32, #tpu.memory_space<vmem>>, vector<8x128xf32>
      tpu.vector_store %arg19[%c56_138, %c0_139], %482 {strides = array<i32>} : memref<64x128xf32, #tpu.memory_space<vmem>>, vector<8x128xf32>,
      %c0_140 = arith.constant 0 : index
      %c0_141 = arith.constant 0 : index
      %484 = vector.load %arg3[%c0_140, %c0_141] : memref<64x1xf32, #tpu.memory_space<vmem>>, vector<64x1xf32>
      %cst_142 = arith.constant -1.000000e+00 : f32
      %485 = vector.broadcast %cst_142 : f32 to vector<64x1xf32>
      %486 = arith.cmpf ogt, %484, %485 : vector<64x1xf32>
      %487 = arith.extui %486 : vector<64x1xi1> to vector<64x1xi32>
      %488 = arith.sitofp %487 : vector<64x1xi32> to vector<64x1xf32>
      %c0_143 = arith.constant 0 : index
      %c0_144 = arith.constant 0 : index
      %489 = vector.load %arg18[%c0_143, %c0_144] : memref<64x128xf32, #tpu.memory_space<vmem>>, vector<64x128xf32>
      %490 = vector.broadcast %488 : vector<64x1xf32> to vector<64x128xf32>
      %491 = arith.mulf %489, %490 : vector<64x128xf32>
      %c0_145 = arith.constant 0 : index
      %c0_146 = arith.constant 0 : index
      %492 = vector.load %arg18[%c0_145, %c0_146] : memref<64x128xf32, #tpu.memory_space<vmem>>, vector<64x128xf32>
      tpu.vector_store %arg18[%c0_145, %c0_146], %491 {strides = array<i32>} : memref<64x128xf32, #tpu.memory_space<vmem>>, vector<64x128xf32>,
    } else {
    }
    %c0 = arith.constant 0 : index
    %c0_1 = arith.constant 0 : index
    %3 = vector.load %arg18[%c0, %c0_1] : memref<64x128xf32, #tpu.memory_space<vmem>>, vector<64x128xf32>
    %c0_2 = arith.constant 0 : index
    %c0_3 = arith.constant 0 : index
    %4 = vector.load %arg13[%c0_2, %c0_3] : memref<128x128xf32, #tpu.memory_space<vmem>>, vector<128x128xf32>
    %cst = arith.constant dense<0.000000e+00> : vector<64x128xf32>
    %5 = tpu.matmul %3, %4, %cst {dimension_numbers = #tpu.dot_dimension_numbers<[1], [0], [0], [1], [0, 0, 1, 1], [], []>} : vector<64x128xf32>, vector<128x128xf32>, vector<64x128xf32> -> vector<64x128xf32>
    %c0_4 = arith.constant 0 : index
    %c0_5 = arith.constant 0 : index
    %6 = vector.load %arg19[%c0_4, %c0_5] : memref<64x128xf32, #tpu.memory_space<vmem>>, vector<64x128xf32>
    %c0_6 = arith.constant 0 : index
    %c0_7 = arith.constant 0 : index
    %7 = vector.load %arg14[%c0_6, %c0_7] : memref<128x128xf32, #tpu.memory_space<vmem>>, vector<128x128xf32>
    %cst_8 = arith.constant dense<0.000000e+00> : vector<64x128xf32>
    %8 = tpu.matmul %6, %7, %cst_8 {dimension_numbers = #tpu.dot_dimension_numbers<[1], [0], [0], [1], [0, 0, 1, 1], [], []>} : vector<64x128xf32>, vector<128x128xf32>, vector<64x128xf32> -> vector<64x128xf32>
    %9 = arith.addf %5, %8 : vector<64x128xf32>
    %c0_9 = arith.constant 0 : index
    %c0_10 = arith.constant 0 : index
    %10 = vector.load %arg4[%c0_9, %c0_10] : memref<64x1xf32, #tpu.memory_space<vmem>>, vector<64x1xf32>
    %11 = vector.broadcast %10 : vector<64x1xf32> to vector<64x128xf32>
    %12 = arith.mulf %9, %11 : vector<64x128xf32>
    %c0_11 = arith.constant 0 : index
    %c0_12 = arith.constant 0 : index
    %13 = vector.load %arg15[%c0_11, %c0_12] : memref<1x128xf32, #tpu.memory_space<vmem>>, vector<1x128xf32>
    %14 = vector.broadcast %13 : vector<1x128xf32> to vector<64x128xf32>
    %15 = arith.addf %12, %14 : vector<64x128xf32>
    %16 = arith.negf %15 : vector<64x128xf32>
    %17 = math.exp %16 : vector<64x128xf32>
    %cst_13 = arith.constant 1.000000e+00 : f32
    %18 = vector.broadcast %cst_13 : f32 to vector<64x128xf32>
    %19 = arith.addf %18, %17 : vector<64x128xf32>
    %20 = arith.divf %18, %19 : vector<64x128xf32>
    %c0_14 = arith.constant 0 : index
    %c0_15 = arith.constant 0 : index
    %21 = vector.load %arg16[%c0_14, %c0_15] : memref<64x128xf32, #tpu.memory_space<vmem>>, vector<64x128xf32>
    tpu.vector_store %arg16[%c0_14, %c0_15], %20 {strides = array<i32>} : memref<64x128xf32, #tpu.memory_space<vmem>>, vector<64x128xf32>,
    return
  }
  func.func @transform_0(%arg0: i32, %arg1: i32) -> (i32, i32) {
    %c0_i32 = arith.constant 0 : i32
    %c0_i32_0 = arith.constant 0 : i32
    return %arg0, %c0_i32 : i32, i32
  }
  func.func @transform_1(%arg0: i32, %arg1: i32) -> (i32, i32) {
    %c0_i32 = arith.constant 0 : i32
    %c0_i32_0 = arith.constant 0 : i32
    return %arg0, %c0_i32 : i32, i32
  }
  func.func @transform_2(%arg0: i32, %arg1: i32) -> (i32, i32) {
    %c0_i32 = arith.constant 0 : i32
    %c0_i32_0 = arith.constant 0 : i32
    %c0_i32_1 = arith.constant 0 : i32
    return %c0_i32, %c0_i32_0 : i32, i32
  }
  func.func @transform_3(%arg0: i32, %arg1: i32) -> (i32, i32) {
    %c0_i32 = arith.constant 0 : i32
    %c0_i32_0 = arith.constant 0 : i32
    %c0_i32_1 = arith.constant 0 : i32
    return %c0_i32, %c0_i32_0 : i32, i32
  }
  func.func @transform_4(%arg0: i32, %arg1: i32) -> (i32, i32) {
    %c0_i32 = arith.constant 0 : i32
    %c0_i32_0 = arith.constant 0 : i32
    %c0_i32_1 = arith.constant 0 : i32
    return %c0_i32, %c0_i32_0 : i32, i32
  }
  func.func @transform_5(%arg0: i32, %arg1: i32) -> (i32, i32) {
    %c0_i32 = arith.constant 0 : i32
    %c0_i32_0 = arith.constant 0 : i32
    %c0_i32_1 = arith.constant 0 : i32
    return %c0_i32, %c0_i32_0 : i32, i32
  }
  func.func @transform_6(%arg0: i32, %arg1: i32) -> (i32, i32) {
    %c0_i32 = arith.constant 0 : i32
    %c0_i32_0 = arith.constant 0 : i32
    %c0_i32_1 = arith.constant 0 : i32
    return %c0_i32, %c0_i32_0 : i32, i32
  }
  func.func @transform_7(%arg0: i32, %arg1: i32) -> (i32, i32) {
    %c0_i32 = arith.constant 0 : i32
    %c0_i32_0 = arith.constant 0 : i32
    %c0_i32_1 = arith.constant 0 : i32
    return %c0_i32, %c0_i32_0 : i32, i32
  }
  func.func @transform_8(%arg0: i32, %arg1: i32) -> (i32, i32) {
    %c0_i32 = arith.constant 0 : i32
    %c0_i32_0 = arith.constant 0 : i32
    %c0_i32_1 = arith.constant 0 : i32
    return %c0_i32, %c0_i32_0 : i32, i32
  }
  func.func @transform_9(%arg0: i32, %arg1: i32) -> (i32, i32) {
    %c0_i32 = arith.constant 0 : i32
    %c0_i32_0 = arith.constant 0 : i32
    %c0_i32_1 = arith.constant 0 : i32
    return %c0_i32, %c0_i32_0 : i32, i32
  }
  func.func @transform_10(%arg0: i32, %arg1: i32) -> (i32, i32) {
    %c0_i32 = arith.constant 0 : i32
    %c0_i32_0 = arith.constant 0 : i32
    %c0_i32_1 = arith.constant 0 : i32
    return %c0_i32, %c0_i32_0 : i32, i32
  }
  func.func @transform_11(%arg0: i32, %arg1: i32) -> (i32, i32) {
    %c0_i32 = arith.constant 0 : i32
    %c0_i32_0 = arith.constant 0 : i32
    return %c0_i32, %arg1 : i32, i32
  }
  func.func @transform_12(%arg0: i32, %arg1: i32) -> (i32, i32) {
    %c0_i32 = arith.constant 0 : i32
    %c0_i32_0 = arith.constant 0 : i32
    return %c0_i32, %arg1 : i32, i32
  }
  func.func @transform_13(%arg0: i32, %arg1: i32) -> (i32, i32) {
    %c0_i32 = arith.constant 0 : i32
    %c0_i32_0 = arith.constant 0 : i32
    return %c0_i32, %arg1 : i32, i32
  }
  func.func @transform_14(%arg0: i32, %arg1: i32) -> (i32, i32) {
    %c0_i32 = arith.constant 0 : i32
    return %arg0, %arg1 : i32, i32
  }
}

</mosaic_0001>

<llo_original>
// kernel: tpu_custom_call.1
$region0: #{tpu_custom_call.1}
  #allocation0 [shape = 'u32[]', space=smem, size = 0x4, offset = 0x4, fixed_abs, tag = 'smem constant byte address 0x4 - core index']
  #allocation1 [shape = 'u32[72,128]{1,0:T(1,128)}', space=vmem, size = 0x9000, scoped, tag = 'internal scratch']
  #allocation2 [shape = 'f32[64,384]{1,0:T(8,128)}', space=vmem, size = 0x18000, scoped, tag = 'scratch operand']
  #allocation3 [shape = 'f32[64,128]{1,0:T(8,128)}', space=vmem, size = 0x8000, scoped, tag = 'scratch operand']
  #allocation4 [shape = 'f32[64,128]{1,0:T(8,128)}', space=vmem, size = 0x8000, scoped, tag = 'scratch operand']
  #allocation5 [shape = 'f32[1,1]{1,0:T(1,128)S(1)}', space=vmem, size = 0x200, scoped, tag = 'scoped memory for tpu_custom_call.1']
  %s0 = inlined_call_operand.hbm [shape: f32[64,128], index: 0, kind: input, shape index: {}]
  %s1 = inlined_call_operand.vmem [shape: f32[64,1], index: 1, kind: input, shape index: {}]
  %s2 = inlined_call_operand.vmem [shape: f32[64,1], index: 2, kind: input, shape index: {}]
  %s3 = inlined_call_operand.vmem [shape: f32[128,128], index: 3, kind: input, shape index: {}]
  %s4 = inlined_call_operand.vmem [shape: f32[1,128], index: 4, kind: input, shape index: {}]
  %s5 = inlined_call_operand.hbm [shape: f32[128,384], index: 5, kind: input, shape index: {}]
  %s6 = inlined_call_operand.vmem [shape: f32[1,384], index: 6, kind: input, shape index: {}]
  %s7 = inlined_call_operand.hbm [shape: f32[128,384], index: 7, kind: input, shape index: {}]
  %s8 = inlined_call_operand.vmem [shape: f32[1,384], index: 8, kind: input, shape index: {}]
  %s9 = inlined_call_operand.vmem [shape: f32[1,128], index: 9, kind: input, shape index: {}]
  %s10 = inlined_call_operand.<no memory space> [shape: f32[1,1], index: 10, kind: input, shape index: {}]
  %s11 = inlined_call_operand.hbm [shape: f32[128,128], index: 11, kind: input, shape index: {}]
  %s12 = inlined_call_operand.hbm [shape: f32[128,128], index: 12, kind: input, shape index: {}]
  %s13 = inlined_call_operand.vmem [shape: f32[1,128], index: 13, kind: input, shape index: {}]
  %s14 = inlined_call_operand.hbm [shape: f32[64,128], index: 14, kind: output, shape index: {}]
  %s15 = sld [smem:[#allocation0]]
  $region90: #{tpu_custom_call.1} parent=0
    _
  %s17 = ssub.s32 1, %s15
  %s18 = scalar_select 0, %s17, %s15
  %v19 = vstv %s10
  %20 = vst [vmem:[#allocation5] sm:$0x1] %v19
  $region1: #{tpu_custom_call.1} parent=0
    #allocation6 [shape = 'u8[32768]{0}', space=vmem, size = 0x8000, scoped, tag = 'input window, operand 0, single buffered']
    #allocation7 [shape = 's32[1]{0}', space=sflag, size = 0x4, scoped, tag = 'scoped memory for tpu_custom_call.1']
    #allocation8 [shape = 's32[1]{0}', space=sflag, size = 0x4, scoped, tag = 'scoped memory for tpu_custom_call.1']
    #allocation9 [shape = 'u8[196608]{0}', space=vmem, size = 0x30000, scoped, tag = 'input window, operand 5, single buffered']
    #allocation10 [shape = 's32[1]{0}', space=sflag, size = 0x4, scoped, tag = 'scoped memory for tpu_custom_call.1']
    #allocation11 [shape = 'u8[196608]{0}', space=vmem, size = 0x30000, scoped, tag = 'input window, operand 7, single buffered']
    #allocation12 [shape = 'u8[65536]{0}', space=vmem, size = 0x10000, scoped, tag = 'input window, operand 11, single buffered']
    #allocation13 [shape = 's32[1]{0}', space=sflag, size = 0x4, scoped, tag = 'scoped memory for tpu_custom_call.1']
    #allocation14 [shape = 'u8[65536]{0}', space=vmem, size = 0x10000, scoped, tag = 'input window, operand 12, single buffered']
    #allocation15 [shape = 'u8[32768]{0}', space=vmem, size = 0x8000, scoped, tag = 'output window, operand 0, single buffered']
    %21 = vsyncpa [#allocation7], 0
    %22 = vsyncpa [#allocation10], 0
    %23 = vsyncpa [#allocation13], 0
    %24 = vsyncpa [#allocation8], 0
    // Predicated region
    $region2: #{tpu_custom_call.1} parent=1 // pred_check
      _
    $region3: #{tpu_custom_call.1} parent=1 // pred_check_branch
      %26 = sbr.rel (0) target = $region5
    $region4: #{tpu_custom_call.1} parent=1 // pred_region
      %28 = vsyncadd [#allocation7], 0
      %s29 = sshll.u32 %s0, 4
      %s30 = int_to_ptr.hbm [resolvable:$true] %s29
      %s31 = sshll.u32 [#allocation6], 4
      %s32 = int_to_ptr.vmem [resolvable:$true] %s31
      %37 = dma.hbm_to_vmem [thread:$0]  %s30, 1024, %s32, [#allocation7], 128, 128, 8
    $region5: #{tpu_custom_call.1} parent=1 // pred_fallthru
      _
    // Predicated region
    $region6: #{tpu_custom_call.1} parent=1 // pred_check
      _
    $region7: #{tpu_custom_call.1} parent=1 // pred_check_branch
      %39 = sbr.rel (0) target = $region9
    $region8: #{tpu_custom_call.1} parent=1 // pred_region
      _
    $region9: #{tpu_custom_call.1} parent=1 // pred_fallthru
      _
    // Predicated region
    $region10: #{tpu_custom_call.1} parent=1 // pred_check
      _
    $region11: #{tpu_custom_call.1} parent=1 // pred_check_branch
      %41 = sbr.rel (0) target = $region13
    $region12: #{tpu_custom_call.1} parent=1 // pred_region
      _
    $region13: #{tpu_custom_call.1} parent=1 // pred_fallthru
      _
    // Predicated region
    $region14: #{tpu_custom_call.1} parent=1 // pred_check
      _
    $region15: #{tpu_custom_call.1} parent=1 // pred_check_branch
      %43 = sbr.rel (0) target = $region17
    $region16: #{tpu_custom_call.1} parent=1 // pred_region
      _
    $region17: #{tpu_custom_call.1} parent=1 // pred_fallthru
      _
    // Predicated region
    $region18: #{tpu_custom_call.1} parent=1 // pred_check
      _
    $region19: #{tpu_custom_call.1} parent=1 // pred_check_branch
      %45 = sbr.rel (0) target = $region21
    $region20: #{tpu_custom_call.1} parent=1 // pred_region
      _
    $region21: #{tpu_custom_call.1} parent=1 // pred_fallthru
      _
    // Predicated region
    $region22: #{tpu_custom_call.1} parent=1 // pred_check
      _
    $region23: #{tpu_custom_call.1} parent=1 // pred_check_branch
      %47 = sbr.rel (0) target = $region25
    $region24: #{tpu_custom_call.1} parent=1 // pred_region
      %49 = vsyncadd [#allocation10], 0
      %s50 = sshll.u32 %s5, 4
      %s51 = int_to_ptr.hbm [resolvable:$true] %s50
      %s52 = sshll.u32 [#allocation9], 4
      %s53 = int_to_ptr.vmem [resolvable:$true] %s52
      %58 = dma.hbm_to_vmem [thread:$0]  %s51, 6144, %s53, [#allocation10], 384, 384, 24
    $region25: #{tpu_custom_call.1} parent=1 // pred_fallthru
      _
    // Predicated region
    $region26: #{tpu_custom_call.1} parent=1 // pred_check
      _
    $region27: #{tpu_custom_call.1} parent=1 // pred_check_branch
      %60 = sbr.rel (0) target = $region29
    $region28: #{tpu_custom_call.1} parent=1 // pred_region
      _
    $region29: #{tpu_custom_call.1} parent=1 // pred_fallthru
      _
    // Predicated region
    $region30: #{tpu_custom_call.1} parent=1 // pred_check
      _
    $region31: #{tpu_custom_call.1} parent=1 // pred_check_branch
      %62 = sbr.rel (0) target = $region33
    $region32: #{tpu_custom_call.1} parent=1 // pred_region
      %64 = vsyncadd [#allocation10], 0
      %s65 = sshll.u32 %s7, 4
      %s66 = int_to_ptr.hbm [resolvable:$true] %s65
      %s67 = sshll.u32 [#allocation11], 4
      %s68 = int_to_ptr.vmem [resolvable:$true] %s67
      %73 = dma.hbm_to_vmem [thread:$0]  %s66, 6144, %s68, [#allocation10], 384, 384, 24
    $region33: #{tpu_custom_call.1} parent=1 // pred_fallthru
      _
    // Predicated region
    $region34: #{tpu_custom_call.1} parent=1 // pred_check
      _
    $region35: #{tpu_custom_call.1} parent=1 // pred_check_branch
      %75 = sbr.rel (0) target = $region37
    $region36: #{tpu_custom_call.1} parent=1 // pred_region
      _
    $region37: #{tpu_custom_call.1} parent=1 // pred_fallthru
      _
    // Predicated region
    $region38: #{tpu_custom_call.1} parent=1 // pred_check
      _
    $region39: #{tpu_custom_call.1} parent=1 // pred_check_branch
      %77 = sbr.rel (0) target = $region41
    $region40: #{tpu_custom_call.1} parent=1 // pred_region
      _
    $region41: #{tpu_custom_call.1} parent=1 // pred_fallthru
      _
    // Predicated region
    $region42: #{tpu_custom_call.1} parent=1 // pred_check
      _
    $region43: #{tpu_custom_call.1} parent=1 // pred_check_branch
      %79 = sbr.rel (0) target = $region45
    $region44: #{tpu_custom_call.1} parent=1 // pred_region
      _
    $region45: #{tpu_custom_call.1} parent=1 // pred_fallthru
      _
    // Predicated region
    $region46: #{tpu_custom_call.1} parent=1 // pred_check
      _
    $region47: #{tpu_custom_call.1} parent=1 // pred_check_branch
      %81 = sbr.rel (0) target = $region49
    $region48: #{tpu_custom_call.1} parent=1 // pred_region
      %83 = vsyncadd [#allocation13], 0
      %s84 = sshll.u32 %s11, 4
      %s85 = int_to_ptr.hbm [resolvable:$true] %s84
      %s86 = sshll.u32 [#allocation12], 4
      %s87 = int_to_ptr.vmem [resolvable:$true] %s86
      %92 = dma.hbm_to_vmem [thread:$0]  %s85, 2048, %s87, [#allocation13], 128, 128, 8
    $region49: #{tpu_custom_call.1} parent=1 // pred_fallthru
      _
    // Predicated region
    $region50: #{tpu_custom_call.1} parent=1 // pred_check
      _
    $region51: #{tpu_custom_call.1} parent=1 // pred_check_branch
      %94 = sbr.rel (0) target = $region53
    $region52: #{tpu_custom_call.1} parent=1 // pred_region
      %96 = vsyncadd [#allocation13], 0
      %s97 = sshll.u32 %s12, 4
      %s98 = int_to_ptr.hbm [resolvable:$true] %s97
      %s99 = sshll.u32 [#allocation14], 4
      %s100 = int_to_ptr.vmem [resolvable:$true] %s99
      %105 = dma.hbm_to_vmem [thread:$0]  %s98, 2048, %s100, [#allocation13], 128, 128, 8
    $region53: #{tpu_custom_call.1} parent=1 // pred_fallthru
      _
    // Predicated region
    $region54: #{tpu_custom_call.1} parent=1 // pred_check
      _
    $region55: #{tpu_custom_call.1} parent=1 // pred_check_branch
      %107 = sbr.rel (0) target = $region57
    $region56: #{tpu_custom_call.1} parent=1 // pred_region
      _
    $region57: #{tpu_custom_call.1} parent=1 // pred_fallthru
      _
    // Predicated region
    $region58: #{tpu_custom_call.1} parent=1 // pred_check
      _
    $region59: #{tpu_custom_call.1} parent=1 // pred_check_branch
      %109 = sbr.rel (0) target = $region61
    $region60: #{tpu_custom_call.1} parent=1 // pred_region
      %111 = dma.done [#allocation7], 1024
    $region61: #{tpu_custom_call.1} parent=1 // pred_fallthru
      _
    // Predicated region
    $region62: #{tpu_custom_call.1} parent=1 // pred_check
      _
    $region63: #{tpu_custom_call.1} parent=1 // pred_check_branch
      %113 = sbr.rel (0) target = $region65
    $region64: #{tpu_custom_call.1} parent=1 // pred_region
      %115 = dma.done [#allocation10], 6144
    $region65: #{tpu_custom_call.1} parent=1 // pred_fallthru
      _
    // Predicated region
    $region66: #{tpu_custom_call.1} parent=1 // pred_check
      _
    $region67: #{tpu_custom_call.1} parent=1 // pred_check_branch
      %117 = sbr.rel (0) target = $region69
    $region68: #{tpu_custom_call.1} parent=1 // pred_region
      %119 = dma.done [#allocation10], 6144
    $region69: #{tpu_custom_call.1} parent=1 // pred_fallthru
      _
    // Predicated region
    $region70: #{tpu_custom_call.1} parent=1 // pred_check
      _
    $region71: #{tpu_custom_call.1} parent=1 // pred_check_branch
      %121 = sbr.rel (0) target = $region73
    $region72: #{tpu_custom_call.1} parent=1 // pred_region
      %123 = dma.done [#allocation13], 2048
    $region73: #{tpu_custom_call.1} parent=1 // pred_fallthru
      _
    // Predicated region
    $region74: #{tpu_custom_call.1} parent=1 // pred_check
      _
    $region75: #{tpu_custom_call.1} parent=1 // pred_check_branch
      %125 = sbr.rel (0) target = $region77
    $region76: #{tpu_custom_call.1} parent=1 // pred_region
      %127 = dma.done [#allocation13], 2048
    $region77: #{tpu_custom_call.1} parent=1 // pred_fallthru
      _
    %p128 = scmp.eq.s32.totalorder 0, 0
    // Predicated region
    $region78: #{tpu_custom_call.1} parent=1 // pred_check
      %p129 = pneg %p128
    $region79: #{tpu_custom_call.1} parent=1 // pred_check_branch
      %131 = sbr.rel (%p129) target = $region81
    $region80: #{tpu_custom_call.1} parent=1 // pred_region
      %v132 = vld [vmem:[#allocation6] sm:$0xff]
      %v133 = vld [vmem:[#allocation6 + $0x8] sm:$0xff]
      %v134 = vld [vmem:[#allocation6 + $0x10] sm:$0xff]
      %v135 = vld [vmem:[#allocation6 + $0x18] sm:$0xff]
      %v136 = vld [vmem:[#allocation6 + $0x20] sm:$0xff]
      %v137 = vld [vmem:[#allocation6 + $0x28] sm:$0xff]
      %v138 = vld [vmem:[#allocation6 + $0x30] sm:$0xff]
      %v139 = vld [vmem:[#allocation6 + $0x38] sm:$0xff]
      %v140 = vld [vmem:[%s3] sm:$0xff]
      %v141 = vld [vmem:[%s3 + $0x8] sm:$0xff]
      %v142 = vld [vmem:[%s3 + $0x10] sm:$0xff]
      %v143 = vld [vmem:[%s3 + $0x18] sm:$0xff]
      %v144 = vld [vmem:[%s3 + $0x20] sm:$0xff]
      %v145 = vld [vmem:[%s3 + $0x28] sm:$0xff]
      %v146 = vld [vmem:[%s3 + $0x30] sm:$0xff]
      %v147 = vld [vmem:[%s3 + $0x38] sm:$0xff]
      %v148 = vld [vmem:[%s3 + $0x40] sm:$0xff]
      %v149 = vld [vmem:[%s3 + $0x48] sm:$0xff]
      %v150 = vld [vmem:[%s3 + $0x50] sm:$0xff]
      %v151 = vld [vmem:[%s3 + $0x58] sm:$0xff]
      %v152 = vld [vmem:[%s3 + $0x60] sm:$0xff]
      %v153 = vld [vmem:[%s3 + $0x68] sm:$0xff]
      %v154 = vld [vmem:[%s3 + $0x70] sm:$0xff]
      %v155 = vld [vmem:[%s3 + $0x78] sm:$0xff]
      %v156 = vld [vmem:[%s4] sm:$0x1]
      %v158 = vperm.slane %v156, 0
      %160 = vmatpush.msra.mxu0 %v155
      %161 = vmatpush.msra.mxu0 %v154
      %162 = vmatpush.msra.mxu0 %v153
      %163 = vmatpush.msra.mxu0 %v152
      %164 = vmatpush.msra.mxu0 %v151
      %165 = vmatpush.msra.mxu0 %v150
      %166 = vmatpush.msra.mxu0 %v149
      %167 = vmatpush.msra.mxu0 %v148
      %168 = vmatpush.msra.mxu0 %v147
      %169 = vmatpush.msra.mxu0 %v146
      %170 = vmatpush.msra.mxu0 %v145
      %171 = vmatpush.msra.mxu0 %v144
      %172 = vmatpush.msra.mxu0 %v143
      %173 = vmatpush.msra.mxu0 %v142
      %174 = vmatpush.msra.mxu0 %v141
      %175 = vmatpush.msra.mxu0 %v140
      %176 = vmatmul.f32.gmra.mxu0 %v132
      %v177 = vpop.f32.mrf.mxu0
      %v178 = vadd.f32 %v158, %v177
      %179 = vmatmul.f32.gmra.mxu0 %v133
      %v180 = vpop.f32.mrf.mxu0
      %v181 = vadd.f32 %v158, %v180
      %182 = vmatmul.f32.gmra.mxu0 %v134
      %v183 = vpop.f32.mrf.mxu0
      %v184 = vadd.f32 %v158, %v183
      %185 = vmatmul.f32.gmra.mxu0 %v135
      %v186 = vpop.f32.mrf.mxu0
      %v187 = vadd.f32 %v158, %v186
      %188 = vmatmul.f32.gmra.mxu0 %v136
      %v189 = vpop.f32.mrf.mxu0
      %v190 = vadd.f32 %v158, %v189
      %191 = vmatmul.f32.gmra.mxu0 %v137
      %v192 = vpop.f32.mrf.mxu0
      %v193 = vadd.f32 %v158, %v192
      %194 = vmatmul.f32.gmra.mxu0 %v138
      %v195 = vpop.f32.mrf.mxu0
      %v196 = vadd.f32 %v158, %v195
      %197 = vmatmul.f32.gmra.mxu0 %v139
      %v198 = vpop.f32.mrf.mxu0
      %v199 = vadd.f32 %v158, %v198
      %200 = vdwg.mxu0
      %v201 = vmax.f32 %v178, 0.0
      %v202 = vmax.f32 %v181, 0.0
      %v203 = vmax.f32 %v184, 0.0
      %v204 = vmax.f32 %v187, 0.0
      %v205 = vmax.f32 %v190, 0.0
      %v206 = vmax.f32 %v193, 0.0
      %v207 = vmax.f32 %v196, 0.0
      %v208 = vmax.f32 %v199, 0.0
      %v209 = vld [vmem:[#allocation9] sm:$0xff]
      %v210 = vld [vmem:[#allocation9 + $0x8] sm:$0xff]
      %v211 = vld [vmem:[#allocation9 + $0x10] sm:$0xff]
      %v212 = vld [vmem:[#allocation9 + $0x18] sm:$0xff]
      %v213 = vld [vmem:[#allocation9 + $0x20] sm:$0xff]
      %v214 = vld [vmem:[#allocation9 + $0x28] sm:$0xff]
      %v215 = vld [vmem:[#allocation9 + $0x30] sm:$0xff]
      %v216 = vld [vmem:[#allocation9 + $0x38] sm:$0xff]
      %v217 = vld [vmem:[#allocation9 + $0x40] sm:$0xff]
      %v218 = vld [vmem:[#allocation9 + $0x48] sm:$0xff]
      %v219 = vld [vmem:[#allocation9 + $0x50] sm:$0xff]
      %v220 = vld [vmem:[#allocation9 + $0x58] sm:$0xff]
      %v221 = vld [vmem:[#allocation9 + $0x60] sm:$0xff]
      %v222 = vld [vmem:[#allocation9 + $0x68] sm:$0xff]
      %v223 = vld [vmem:[#allocation9 + $0x70] sm:$0xff]
      %v224 = vld [vmem:[#allocation9 + $0x78] sm:$0xff]
      %v225 = vld [vmem:[#allocation9 + $0x80] sm:$0xff]
      %v226 = vld [vmem:[#allocation9 + $0x88] sm:$0xff]
      %v227 = vld [vmem:[#allocation9 + $0x90] sm:$0xff]
      %v228 = vld [vmem:[#allocation9 + $0x98] sm:$0xff]
      %v229 = vld [vmem:[#allocation9 + $0xa0] sm:$0xff]
      %v230 = vld [vmem:[#allocation9 + $0xa8] sm:$0xff]
      %v231 = vld [vmem:[#allocation9 + $0xb0] sm:$0xff]
      %v232 = vld [vmem:[#allocation9 + $0xb8] sm:$0xff]
      %v233 = vld [vmem:[#allocation9 + $0xc0] sm:$0xff]
      %v234 = vld [vmem:[#allocation9 + $0xc8] sm:$0xff]
      %v235 = vld [vmem:[#allocation9 + $0xd0] sm:$0xff]
      %v236 = vld [vmem:[#allocation9 + $0xd8] sm:$0xff]
      %v237 = vld [vmem:[#allocation9 + $0xe0] sm:$0xff]
      %v238 = vld [vmem:[#allocation9 + $0xe8] sm:$0xff]
      %v239 = vld [vmem:[#allocation9 + $0xf0] sm:$0xff]
      %v240 = vld [vmem:[#allocation9 + $0xf8] sm:$0xff]
      %v241 = vld [vmem:[#allocation9 + $0x100] sm:$0xff]
      %v242 = vld [vmem:[#allocation9 + $0x108] sm:$0xff]
      %v243 = vld [vmem:[#allocation9 + $0x110] sm:$0xff]
      %v244 = vld [vmem:[#allocation9 + $0x118] sm:$0xff]
      %v245 = vld [vmem:[#allocation9 + $0x120] sm:$0xff]
      %v246 = vld [vmem:[#allocation9 + $0x128] sm:$0xff]
      %v247 = vld [vmem:[#allocation9 + $0x130] sm:$0xff]
      %v248 = vld [vmem:[#allocation9 + $0x138] sm:$0xff]
      %v249 = vld [vmem:[#allocation9 + $0x140] sm:$0xff]
      %v250 = vld [vmem:[#allocation9 + $0x148] sm:$0xff]
      %v251 = vld [vmem:[#allocation9 + $0x150] sm:$0xff]
      %v252 = vld [vmem:[#allocation9 + $0x158] sm:$0xff]
      %v253 = vld [vmem:[#allocation9 + $0x160] sm:$0xff]
      %v254 = vld [vmem:[#allocation9 + $0x168] sm:$0xff]
      %v255 = vld [vmem:[#allocation9 + $0x170] sm:$0xff]
      %v256 = vld [vmem:[#allocation9 + $0x178] sm:$0xff]
      %v257 = vld [vmem:[%s6] sm:$0x7]
      %v259 = vperm.slane %v257, 0
      %v260 = vperm.slane %v257, 1
      %v261 = vperm.slane %v257, 2
      %265 = vmatpush.msra.mxu0 %v254
      %266 = vmatpush.msra.mxu0 %v251
      %267 = vmatpush.msra.mxu0 %v248
      %268 = vmatpush.msra.mxu0 %v245
      %269 = vmatpush.msra.mxu0 %v242
      %270 = vmatpush.msra.mxu0 %v239
      %271 = vmatpush.msra.mxu0 %v236
      %272 = vmatpush.msra.mxu0 %v233
      %273 = vmatpush.msra.mxu0 %v230
      %274 = vmatpush.msra.mxu0 %v227
      %275 = vmatpush.msra.mxu0 %v224
      %276 = vmatpush.msra.mxu0 %v221
      %277 = vmatpush.msra.mxu0 %v218
      %278 = vmatpush.msra.mxu0 %v215
      %279 = vmatpush.msra.mxu0 %v212
      %280 = vmatpush.msra.mxu0 %v209
      %281 = vmatmul.f32.gmra.mxu0 %v201
      %v282 = vpop.f32.mrf.mxu0
      %v283 = vadd.f32 %v259, %v282
      %284 = vmatmul.f32.gmra.mxu0 %v202
      %v285 = vpop.f32.mrf.mxu0
      %v286 = vadd.f32 %v259, %v285
      %287 = vmatmul.f32.gmra.mxu0 %v203
      %v288 = vpop.f32.mrf.mxu0
      %v289 = vadd.f32 %v259, %v288
      %290 = vmatmul.f32.gmra.mxu0 %v204
      %v291 = vpop.f32.mrf.mxu0
      %v292 = vadd.f32 %v259, %v291
      %293 = vmatmul.f32.gmra.mxu0 %v205
      %v294 = vpop.f32.mrf.mxu0
      %v295 = vadd.f32 %v259, %v294
      %296 = vmatmul.f32.gmra.mxu0 %v206
      %v297 = vpop.f32.mrf.mxu0
      %v298 = vadd.f32 %v259, %v297
      %299 = vmatmul.f32.gmra.mxu0 %v207
      %v300 = vpop.f32.mrf.mxu0
      %v301 = vadd.f32 %v259, %v300
      %302 = vmatmul.f32.gmra.mxu0 %v208
      %v303 = vpop.f32.mrf.mxu0
      %v304 = vadd.f32 %v259, %v303
      %305 = vdwg.mxu0
      %306 = vmatpush.msra.mxu0 %v255
      %307 = vmatpush.msra.mxu0 %v252
      %308 = vmatpush.msra.mxu0 %v249
      %309 = vmatpush.msra.mxu0 %v246
      %310 = vmatpush.msra.mxu0 %v243
      %311 = vmatpush.msra.mxu0 %v240
      %312 = vmatpush.msra.mxu0 %v237
      %313 = vmatpush.msra.mxu0 %v234
      %314 = vmatpush.msra.mxu0 %v231
      %315 = vmatpush.msra.mxu0 %v228
      %316 = vmatpush.msra.mxu0 %v225
      %317 = vmatpush.msra.mxu0 %v222
      %318 = vmatpush.msra.mxu0 %v219
      %319 = vmatpush.msra.mxu0 %v216
      %320 = vmatpush.msra.mxu0 %v213
      %321 = vmatpush.msra.mxu0 %v210
      %322 = vmatmul.f32.gmra.mxu0 %v201
      %v323 = vpop.f32.mrf.mxu0
      %v324 = vadd.f32 %v260, %v323
      %325 = vmatmul.f32.gmra.mxu0 %v202
      %v326 = vpop.f32.mrf.mxu0
      %v327 = vadd.f32 %v260, %v326
      %328 = vmatmul.f32.gmra.mxu0 %v203
      %v329 = vpop.f32.mrf.mxu0
      %v330 = vadd.f32 %v260, %v329
      %331 = vmatmul.f32.gmra.mxu0 %v204
      %v332 = vpop.f32.mrf.mxu0
      %v333 = vadd.f32 %v260, %v332
      %334 = vmatmul.f32.gmra.mxu0 %v205
      %v335 = vpop.f32.mrf.mxu0
      %v336 = vadd.f32 %v260, %v335
      %337 = vmatmul.f32.gmra.mxu0 %v206
      %v338 = vpop.f32.mrf.mxu0
      %v339 = vadd.f32 %v260, %v338
      %340 = vmatmul.f32.gmra.mxu0 %v207
      %v341 = vpop.f32.mrf.mxu0
      %v342 = vadd.f32 %v260, %v341
      %343 = vmatmul.f32.gmra.mxu0 %v208
      %v344 = vpop.f32.mrf.mxu0
      %v345 = vadd.f32 %v260, %v344
      %346 = vdwg.mxu0
      %347 = vmatpush.msra.mxu0 %v256
      %348 = vmatpush.msra.mxu0 %v253
      %349 = vmatpush.msra.mxu0 %v250
      %350 = vmatpush.msra.mxu0 %v247
      %351 = vmatpush.msra.mxu0 %v244
      %352 = vmatpush.msra.mxu0 %v241
      %353 = vmatpush.msra.mxu0 %v238
      %354 = vmatpush.msra.mxu0 %v235
      %355 = vmatpush.msra.mxu0 %v232
      %356 = vmatpush.msra.mxu0 %v229
      %357 = vmatpush.msra.mxu0 %v226
      %358 = vmatpush.msra.mxu0 %v223
      %359 = vmatpush.msra.mxu0 %v220
      %360 = vmatpush.msra.mxu0 %v217
      %361 = vmatpush.msra.mxu0 %v214
      %362 = vmatpush.msra.mxu0 %v211
      %363 = vmatmul.f32.gmra.mxu0 %v201
      %v364 = vpop.f32.mrf.mxu0
      %v365 = vadd.f32 %v261, %v364
      %366 = vmatmul.f32.gmra.mxu0 %v202
      %v367 = vpop.f32.mrf.mxu0
      %v368 = vadd.f32 %v261, %v367
      %369 = vmatmul.f32.gmra.mxu0 %v203
      %v370 = vpop.f32.mrf.mxu0
      %v371 = vadd.f32 %v261, %v370
      %372 = vmatmul.f32.gmra.mxu0 %v204
      %v373 = vpop.f32.mrf.mxu0
      %v374 = vadd.f32 %v261, %v373
      %375 = vmatmul.f32.gmra.mxu0 %v205
      %v376 = vpop.f32.mrf.mxu0
      %v377 = vadd.f32 %v261, %v376
      %378 = vmatmul.f32.gmra.mxu0 %v206
      %v379 = vpop.f32.mrf.mxu0
      %v380 = vadd.f32 %v261, %v379
      %381 = vmatmul.f32.gmra.mxu0 %v207
      %v382 = vpop.f32.mrf.mxu0
      %v383 = vadd.f32 %v261, %v382
      %384 = vmatmul.f32.gmra.mxu0 %v208
      %v385 = vpop.f32.mrf.mxu0
      %v386 = vadd.f32 %v261, %v385
      %387 = vdwg.mxu0
      %388 = vst [vmem:[#allocation2] sm:$0xff] %v283
      %389 = vst [vmem:[#allocation2 + $0x8] sm:$0xff] %v324
      %390 = vst [vmem:[#allocation2 + $0x10] sm:$0xff] %v365
      %391 = vst [vmem:[#allocation2 + $0x18] sm:$0xff] %v286
      %392 = vst [vmem:[#allocation2 + $0x20] sm:$0xff] %v327
      %393 = vst [vmem:[#allocation2 + $0x28] sm:$0xff] %v368
      %394 = vst [vmem:[#allocation2 + $0x30] sm:$0xff] %v289
      %395 = vst [vmem:[#allocation2 + $0x38] sm:$0xff] %v330
      %396 = vst [vmem:[#allocation2 + $0x40] sm:$0xff] %v371
      %397 = vst [vmem:[#allocation2 + $0x48] sm:$0xff] %v292
      %398 = vst [vmem:[#allocation2 + $0x50] sm:$0xff] %v333
      %399 = vst [vmem:[#allocation2 + $0x58] sm:$0xff] %v374
      %400 = vst [vmem:[#allocation2 + $0x60] sm:$0xff] %v295
      %401 = vst [vmem:[#allocation2 + $0x68] sm:$0xff] %v336
      %402 = vst [vmem:[#allocation2 + $0x70] sm:$0xff] %v377
      %403 = vst [vmem:[#allocation2 + $0x78] sm:$0xff] %v298
      %404 = vst [vmem:[#allocation2 + $0x80] sm:$0xff] %v339
      %405 = vst [vmem:[#allocation2 + $0x88] sm:$0xff] %v380
      %406 = vst [vmem:[#allocation2 + $0x90] sm:$0xff] %v301
      %407 = vst [vmem:[#allocation2 + $0x98] sm:$0xff] %v342
      %408 = vst [vmem:[#allocation2 + $0xa0] sm:$0xff] %v383
      %409 = vst [vmem:[#allocation2 + $0xa8] sm:$0xff] %v304
      %410 = vst [vmem:[#allocation2 + $0xb0] sm:$0xff] %v345
      %411 = vst [vmem:[#allocation2 + $0xb8] sm:$0xff] %v386
      %v412 = vld [vmem:[#allocation11] sm:$0xff]
      %v413 = vld [vmem:[#allocation11 + $0x8] sm:$0xff]
      %v414 = vld [vmem:[#allocation11 + $0x10] sm:$0xff]
      %v415 = vld [vmem:[#allocation11 + $0x18] sm:$0xff]
      %v416 = vld [vmem:[#allocation11 + $0x20] sm:$0xff]
      %v417 = vld [vmem:[#allocation11 + $0x28] sm:$0xff]
      %v418 = vld [vmem:[#allocation11 + $0x30] sm:$0xff]
      %v419 = vld [vmem:[#allocation11 + $0x38] sm:$0xff]
      %v420 = vld [vmem:[#allocation11 + $0x40] sm:$0xff]
      %v421 = vld [vmem:[#allocation11 + $0x48] sm:$0xff]
      %v422 = vld [vmem:[#allocation11 + $0x50] sm:$0xff]
      %v423 = vld [vmem:[#allocation11 + $0x58] sm:$0xff]
      %v424 = vld [vmem:[#allocation11 + $0x60] sm:$0xff]
      %v425 = vld [vmem:[#allocation11 + $0x68] sm:$0xff]
      %v426 = vld [vmem:[#allocation11 + $0x70] sm:$0xff]
      %v427 = vld [vmem:[#allocation11 + $0x78] sm:$0xff]
      %v428 = vld [vmem:[#allocation11 + $0x80] sm:$0xff]
      %v429 = vld [vmem:[#allocation11 + $0x88] sm:$0xff]
      %v430 = vld [vmem:[#allocation11 + $0x90] sm:$0xff]
      %v431 = vld [vmem:[#allocation11 + $0x98] sm:$0xff]
      %v432 = vld [vmem:[#allocation11 + $0xa0] sm:$0xff]
      %v433 = vld [vmem:[#allocation11 + $0xa8] sm:$0xff]
      %v434 = vld [vmem:[#allocation11 + $0xb0] sm:$0xff]
      %v435 = vld [vmem:[#allocation11 + $0xb8] sm:$0xff]
      %v436 = vld [vmem:[#allocation11 + $0xc0] sm:$0xff]
      %v437 = vld [vmem:[#allocation11 + $0xc8] sm:$0xff]
      %v438 = vld [vmem:[#allocation11 + $0xd0] sm:$0xff]
      %v439 = vld [vmem:[#allocation11 + $0xd8] sm:$0xff]
      %v440 = vld [vmem:[#allocation11 + $0xe0] sm:$0xff]
      %v441 = vld [vmem:[#allocation11 + $0xe8] sm:$0xff]
      %v442 = vld [vmem:[#allocation11 + $0xf0] sm:$0xff]
      %v443 = vld [vmem:[#allocation11 + $0xf8] sm:$0xff]
      %v444 = vld [vmem:[#allocation11 + $0x100] sm:$0xff]
      %v445 = vld [vmem:[#allocation11 + $0x108] sm:$0xff]
      %v446 = vld [vmem:[#allocation11 + $0x110] sm:$0xff]
      %v447 = vld [vmem:[#allocation11 + $0x118] sm:$0xff]
      %v448 = vld [vmem:[#allocation11 + $0x120] sm:$0xff]
      %v449 = vld [vmem:[#allocation11 + $0x128] sm:$0xff]
      %v450 = vld [vmem:[#allocation11 + $0x130] sm:$0xff]
      %v451 = vld [vmem:[#allocation11 + $0x138] sm:$0xff]
      %v452 = vld [vmem:[#allocation11 + $0x140] sm:$0xff]
      %v453 = vld [vmem:[#allocation11 + $0x148] sm:$0xff]
      %v454 = vld [vmem:[#allocation11 + $0x150] sm:$0xff]
      %v455 = vld [vmem:[#allocation11 + $0x158] sm:$0xff]
      %v456 = vld [vmem:[#allocation11 + $0x160] sm:$0xff]
      %v457 = vld [vmem:[#allocation11 + $0x168] sm:$0xff]
      %v458 = vld [vmem:[#allocation11 + $0x170] sm:$0xff]
      %v459 = vld [vmem:[#allocation11 + $0x178] sm:$0xff]
      %v460 = vld [vmem:[%s8] sm:$0x7]
      %v461 = vld [vmem:[%s9] sm:$0x1]
      %v462 = vld [vmem:[#allocation5] sm:$0x1]
      %v464 = vperm.slane %v460, 0
      %v465 = vperm.slane %v460, 1
      %v466 = vperm.slane %v460, 2
      %470 = vmatpush.msra.mxu0 %v457
      %471 = vmatpush.msra.mxu0 %v454
      %472 = vmatpush.msra.mxu0 %v451
      %473 = vmatpush.msra.mxu0 %v448
      %474 = vmatpush.msra.mxu0 %v445
      %475 = vmatpush.msra.mxu0 %v442
      %476 = vmatpush.msra.mxu0 %v439
      %477 = vmatpush.msra.mxu0 %v436
      %478 = vmatpush.msra.mxu0 %v433
      %479 = vmatpush.msra.mxu0 %v430
      %480 = vmatpush.msra.mxu0 %v427
      %481 = vmatpush.msra.mxu0 %v424
      %482 = vmatpush.msra.mxu0 %v421
      %483 = vmatpush.msra.mxu0 %v418
      %484 = vmatpush.msra.mxu0 %v415
      %485 = vmatpush.msra.mxu0 %v412
      %486 = vmatmul.f32.gmra.mxu0 0.0
      %v487 = vpop.f32.mrf.mxu0
      %v488 = vadd.f32 %v464, %v487
      %489 = vdwg.mxu0
      %490 = vmatpush.msra.mxu0 %v458
      %491 = vmatpush.msra.mxu0 %v455
      %492 = vmatpush.msra.mxu0 %v452
      %493 = vmatpush.msra.mxu0 %v449
      %494 = vmatpush.msra.mxu0 %v446
      %495 = vmatpush.msra.mxu0 %v443
      %496 = vmatpush.msra.mxu0 %v440
      %497 = vmatpush.msra.mxu0 %v437
      %498 = vmatpush.msra.mxu0 %v434
      %499 = vmatpush.msra.mxu0 %v431
      %500 = vmatpush.msra.mxu0 %v428
      %501 = vmatpush.msra.mxu0 %v425
      %502 = vmatpush.msra.mxu0 %v422
      %503 = vmatpush.msra.mxu0 %v419
      %504 = vmatpush.msra.mxu0 %v416
      %505 = vmatpush.msra.mxu0 %v413
      %506 = vmatmul.f32.gmra.mxu0 0.0
      %v507 = vpop.f32.mrf.mxu0
      %v508 = vadd.f32 %v465, %v507
      %509 = vdwg.mxu0
      %510 = vmatpush.msra.mxu0 %v459
      %511 = vmatpush.msra.mxu0 %v456
      %512 = vmatpush.msra.mxu0 %v453
      %513 = vmatpush.msra.mxu0 %v450
      %514 = vmatpush.msra.mxu0 %v447
      %515 = vmatpush.msra.mxu0 %v444
      %516 = vmatpush.msra.mxu0 %v441
      %517 = vmatpush.msra.mxu0 %v438
      %518 = vmatpush.msra.mxu0 %v435
      %519 = vmatpush.msra.mxu0 %v432
      %520 = vmatpush.msra.mxu0 %v429
      %521 = vmatpush.msra.mxu0 %v426
      %522 = vmatpush.msra.mxu0 %v423
      %523 = vmatpush.msra.mxu0 %v420
      %524 = vmatpush.msra.mxu0 %v417
      %525 = vmatpush.msra.mxu0 %v414
      %526 = vmatmul.f32.gmra.mxu0 0.0
      %v527 = vpop.f32.mrf.mxu0
      %v528 = vadd.f32 %v466, %v527
      %529 = vdwg.mxu0
      %v530 = vld [vmem:[#allocation2] sm:$0xff]
      %v531 = vld [vmem:[#allocation2 + $0x8] sm:$0xff]
      %v532 = vld [vmem:[#allocation2 + $0x10] sm:$0xff]
      %v533 = vadd.f32 %v530, %v488
      %v534 = vxor.u32 %v533, 2147483648
      %v535 = vmul.f32 %v534, 1.442695
      %v536 = vpow.pop %v535
      %v537 = vadd.f32 %v536, 1.0
      %v538 = vrcp.pop %v537
      %v539 = vmul.f32 %v537, %v538
      %v540 = vsub.f32 1.0, %v539
      %v541 = vmul.f32 %v538, %v540
      %v542 = vadd.f32 %v538, %v541
      %vm543 = vweird.f32 %v537
      %vm544 = vweird.f32 %v538
      %vm545 = vmor %vm543, %vm544
      %v546 = vsel %vm545, %v538, %v542
      %v547 = vand.u32 2147483647, %v537
      %vm548 = vcmp.eq.f32.partialorder %v547, 8.507059e+37
      %v549 = vand.u32 %v537, 2147483648
      %v550 = vor.u32 1.1754944e-38, %v549
      %v551 = vsel %vm548, %v550, %v546
      %v552 = vmul.f32 1.0, %v551
      %v553 = vadd.f32 %v531, %v508
      %v554 = vxor.u32 %v553, 2147483648
      %v555 = vmul.f32 %v554, 1.442695
      %v556 = vpow.pop %v555
      %v557 = vadd.f32 %v556, 1.0
      %v558 = vrcp.pop %v557
      %v559 = vmul.f32 %v557, %v558
      %v560 = vsub.f32 1.0, %v559
      %v561 = vmul.f32 %v558, %v560
      %v562 = vadd.f32 %v558, %v561
      %vm563 = vweird.f32 %v557
      %vm564 = vweird.f32 %v558
      %vm565 = vmor %vm563, %vm564
      %v566 = vsel %vm565, %v558, %v562
      %v567 = vand.u32 2147483647, %v557
      %vm568 = vcmp.eq.f32.partialorder %v567, 8.507059e+37
      %v569 = vand.u32 %v557, 2147483648
      %v570 = vor.u32 1.1754944e-38, %v569
      %v571 = vsel %vm568, %v570, %v566
      %v572 = vmul.f32 1.0, %v571
      %v573 = vmul.f32 %v552, %v528
      %v574 = vadd.f32 %v532, %v573
      %v575 = vtanh.pop %v574
      %v576 = vsub.f32 1.0, %v572
      %v577 = vmul.f32 %v576, %v575
      %v578 = vmul.f32 %v572, 0.0
      %v579 = vadd.f32 %v577, %v578
      %580 = vst [vmem:[#allocation3] sm:$0xff] %v579
      %v582 = vperm.slane %v461, 0
      %v584 = vmul.f32 %v579, %v582
      %585 = vadd.xlane.f32.xlu0 %v584
      %v586 = vpop.xlane.xlu0 %585
      %v588 = vperm.slane %v462, 0
      %v590 = vadd.f32 %v586, %v588
      %v591 = vld [vmem:[%s1] sm:$0xff]
      %v592 = vadd.f32 %v590, %v591
      %v593 = vmax.f32 %v592, -1e+30
      %v594 = vsub.f32 -1e+30, %v593
      %v595 = vmul.f32 %v594, 1.442695
      %v596 = vpow.pop %v595
      %v597 = vsub.f32 %v592, %v593
      %v598 = vmul.f32 %v597, 1.442695
      %v599 = vpow.pop %v598
      %v600 = vmul.f32 %v596, 0.0
      %v601 = vadd.f32 %v600, %v599
      %603 = vset.pattern.permute.xlu0 0
      %604 = vperm.xlu0 %603, %v596
      %v605 = vpop.permute.xlu0 %604
      %v607 = vmul.f32 %v605, 0.0
      %609 = vset.pattern.permute.xlu0 0
      %610 = vperm.xlu0 %609, %v599
      %v611 = vpop.permute.xlu0 %610
      %v613 = vmul.f32 %v611, %v579
      %v614 = vadd.f32 %v607, %v613
      %v615 = vrcp.pop %v601
      %617 = vset.pattern.permute.xlu0 0
      %618 = vperm.xlu0 %617, %v615
      %v619 = vpop.permute.xlu0 %618
      %v621 = vmul.f32 %v614, %v619
      %622 = vst [vmem:[#allocation4] sm:$0xff] %v621
      %623 = vmatpush.msra.mxu0 %v457
      %624 = vmatpush.msra.mxu0 %v454
      %625 = vmatpush.msra.mxu0 %v451
      %626 = vmatpush.msra.mxu0 %v448
      %627 = vmatpush.msra.mxu0 %v445
      %628 = vmatpush.msra.mxu0 %v442
      %629 = vmatpush.msra.mxu0 %v439
      %630 = vmatpush.msra.mxu0 %v436
      %631 = vmatpush.msra.mxu0 %v433
      %632 = vmatpush.msra.mxu0 %v430
      %633 = vmatpush.msra.mxu0 %v427
      %634 = vmatpush.msra.mxu0 %v424
      %635 = vmatpush.msra.mxu0 %v421
      %636 = vmatpush.msra.mxu0 %v418
      %637 = vmatpush.msra.mxu0 %v415
      %638 = vmatpush.msra.mxu0 %v412
      %639 = vmatmul.f32.gmra.mxu0 %v579
      %v640 = vpop.f32.mrf.mxu0
      %v641 = vadd.f32 %v464, %v640
      %642 = vdwg.mxu0
      %643 = vmatpush.msra.mxu0 %v458
      %644 = vmatpush.msra.mxu0 %v455
      %645 = vmatpush.msra.mxu0 %v452
      %646 = vmatpush.msra.mxu0 %v449
      %647 = vmatpush.msra.mxu0 %v446
      %648 = vmatpush.msra.mxu0 %v443
      %649 = vmatpush.msra.mxu0 %v440
      %650 = vmatpush.msra.mxu0 %v437
      %651 = vmatpush.msra.mxu0 %v434
      %652 = vmatpush.msra.mxu0 %v431
      %653 = vmatpush.msra.mxu0 %v428
      %654 = vmatpush.msra.mxu0 %v425
      %655 = vmatpush.msra.mxu0 %v422
      %656 = vmatpush.msra.mxu0 %v419
      %657 = vmatpush.msra.mxu0 %v416
      %658 = vmatpush.msra.mxu0 %v413
      %659 = vmatmul.f32.gmra.mxu0 %v579
      %v660 = vpop.f32.mrf.mxu0
      %v661 = vadd.f32 %v465, %v660
      %662 = vdwg.mxu0
      %663 = vmatpush.msra.mxu0 %v459
      %664 = vmatpush.msra.mxu0 %v456
      %665 = vmatpush.msra.mxu0 %v453
      %666 = vmatpush.msra.mxu0 %v450
      %667 = vmatpush.msra.mxu0 %v447
      %668 = vmatpush.msra.mxu0 %v444
      %669 = vmatpush.msra.mxu0 %v441
      %670 = vmatpush.msra.mxu0 %v438
      %671 = vmatpush.msra.mxu0 %v435
      %672 = vmatpush.msra.mxu0 %v432
      %673 = vmatpush.msra.mxu0 %v429
      %674 = vmatpush.msra.mxu0 %v426
      %675 = vmatpush.msra.mxu0 %v423
      %676 = vmatpush.msra.mxu0 %v420
      %677 = vmatpush.msra.mxu0 %v417
      %678 = vmatpush.msra.mxu0 %v414
      %679 = vmatmul.f32.gmra.mxu0 %v579
      %v680 = vpop.f32.mrf.mxu0
      %v681 = vadd.f32 %v466, %v680
      %682 = vdwg.mxu0
      %v683 = vld [vmem:[#allocation2 + $0x18] sm:$0xff]
      %v684 = vld [vmem:[#allocation2 + $0x20] sm:$0xff]
      %v685 = vld [vmem:[#allocation2 + $0x28] sm:$0xff]
      %v686 = vadd.f32 %v683, %v641
      %v687 = vxor.u32 %v686, 2147483648
      %v688 = vmul.f32 %v687, 1.442695
      %v689 = vpow.pop %v688
      %v690 = vadd.f32 %v689, 1.0
      %v691 = vrcp.pop %v690
      %v692 = vmul.f32 %v690, %v691
      %v693 = vsub.f32 1.0, %v692
      %v694 = vmul.f32 %v691, %v693
      %v695 = vadd.f32 %v691, %v694
      %vm696 = vweird.f32 %v690
      %vm697 = vweird.f32 %v691
      %vm698 = vmor %vm696, %vm697
      %v699 = vsel %vm698, %v691, %v695
      %v700 = vand.u32 2147483647, %v690
      %vm701 = vcmp.eq.f32.partialorder %v700, 8.507059e+37
      %v702 = vand.u32 %v690, 2147483648
      %v703 = vor.u32 1.1754944e-38, %v702
      %v704 = vsel %vm701, %v703, %v699
      %v705 = vmul.f32 1.0, %v704
      %v706 = vadd.f32 %v684, %v661
      %v707 = vxor.u32 %v706, 2147483648
      %v708 = vmul.f32 %v707, 1.442695
      %v709 = vpow.pop %v708
      %v710 = vadd.f32 %v709, 1.0
      %v711 = vrcp.pop %v710
      %v712 = vmul.f32 %v710, %v711
      %v713 = vsub.f32 1.0, %v712
      %v714 = vmul.f32 %v711, %v713
      %v715 = vadd.f32 %v711, %v714
      %vm716 = vweird.f32 %v710
      %vm717 = vweird.f32 %v711
      %vm718 = vmor %vm716, %vm717
      %v719 = vsel %vm718, %v711, %v715
      %v720 = vand.u32 2147483647, %v710
      %vm721 = vcmp.eq.f32.partialorder %v720, 8.507059e+37
      %v722 = vand.u32 %v710, 2147483648
      %v723 = vor.u32 1.1754944e-38, %v722
      %v724 = vsel %vm721, %v723, %v719
      %v725 = vmul.f32 1.0, %v724
      %v726 = vmul.f32 %v705, %v681
      %v727 = vadd.f32 %v685, %v726
      %v728 = vtanh.pop %v727
      %v729 = vsub.f32 1.0, %v725
      %v730 = vmul.f32 %v729, %v728
      %v731 = vmul.f32 %v725, %v579
      %v732 = vadd.f32 %v730, %v731
      %733 = vst [vmem:[#allocation3 + $0x8] sm:$0xff] %v732
      %v734 = vmul.f32 %v732, %v582
      %735 = vadd.xlane.f32.xlu0 %v734
      %v736 = vpop.xlane.xlu0 %735
      %v737 = vadd.f32 %v736, %v588
      %v738 = vld [vmem:[%s1 + $0x8] sm:$0xff]
      %v739 = vadd.f32 %v737, %v738
      %v740 = vmax.f32 %v593, %v739
      %v741 = vsub.f32 %v593, %v740
      %v742 = vmul.f32 %v741, 1.442695
      %v743 = vpow.pop %v742
      %v744 = vsub.f32 %v739, %v740
      %v745 = vmul.f32 %v744, 1.442695
      %v746 = vpow.pop %v745
      %v747 = vmul.f32 %v601, %v743
      %v748 = vadd.f32 %v747, %v746
      %750 = vset.pattern.permute.xlu0 0
      %751 = vperm.xlu0 %750, %v743
      %v752 = vpop.permute.xlu0 %751
      %v754 = vmul.f32 %v614, %v752
      %756 = vset.pattern.permute.xlu0 0
      %757 = vperm.xlu0 %756, %v746
      %v758 = vpop.permute.xlu0 %757
      %v760 = vmul.f32 %v758, %v732
      %v761 = vadd.f32 %v754, %v760
      %v762 = vrcp.pop %v748
      %764 = vset.pattern.permute.xlu0 0
      %765 = vperm.xlu0 %764, %v762
      %v766 = vpop.permute.xlu0 %765
      %v768 = vmul.f32 %v761, %v766
      %769 = vst [vmem:[#allocation4 + $0x8] sm:$0xff] %v768
      %770 = vmatpush.msra.mxu0 %v457
      %771 = vmatpush.msra.mxu0 %v454
      %772 = vmatpush.msra.mxu0 %v451
      %773 = vmatpush.msra.mxu0 %v448
      %774 = vmatpush.msra.mxu0 %v445
      %775 = vmatpush.msra.mxu0 %v442
      %776 = vmatpush.msra.mxu0 %v439
      %777 = vmatpush.msra.mxu0 %v436
      %778 = vmatpush.msra.mxu0 %v433
      %779 = vmatpush.msra.mxu0 %v430
      %780 = vmatpush.msra.mxu0 %v427
      %781 = vmatpush.msra.mxu0 %v424
      %782 = vmatpush.msra.mxu0 %v421
      %783 = vmatpush.msra.mxu0 %v418
      %784 = vmatpush.msra.mxu0 %v415
      %785 = vmatpush.msra.mxu0 %v412
      %786 = vmatmul.f32.gmra.mxu0 %v732
      %v787 = vpop.f32.mrf.mxu0
      %v788 = vadd.f32 %v464, %v787
      %789 = vdwg.mxu0
      %790 = vmatpush.msra.mxu0 %v458
      %791 = vmatpush.msra.mxu0 %v455
      %792 = vmatpush.msra.mxu0 %v452
      %793 = vmatpush.msra.mxu0 %v449
      %794 = vmatpush.msra.mxu0 %v446
      %795 = vmatpush.msra.mxu0 %v443
      %796 = vmatpush.msra.mxu0 %v440
      %797 = vmatpush.msra.mxu0 %v437
      %798 = vmatpush.msra.mxu0 %v434
      %799 = vmatpush.msra.mxu0 %v431
      %800 = vmatpush.msra.mxu0 %v428
      %801 = vmatpush.msra.mxu0 %v425
      %802 = vmatpush.msra.mxu0 %v422
      %803 = vmatpush.msra.mxu0 %v419
      %804 = vmatpush.msra.mxu0 %v416
      %805 = vmatpush.msra.mxu0 %v413
      %806 = vmatmul.f32.gmra.mxu0 %v732
      %v807 = vpop.f32.mrf.mxu0
      %v808 = vadd.f32 %v465, %v807
      %809 = vdwg.mxu0
      %810 = vmatpush.msra.mxu0 %v459
      %811 = vmatpush.msra.mxu0 %v456
      %812 = vmatpush.msra.mxu0 %v453
      %813 = vmatpush.msra.mxu0 %v450
      %814 = vmatpush.msra.mxu0 %v447
      %815 = vmatpush.msra.mxu0 %v444
      %816 = vmatpush.msra.mxu0 %v441
      %817 = vmatpush.msra.mxu0 %v438
      %818 = vmatpush.msra.mxu0 %v435
      %819 = vmatpush.msra.mxu0 %v432
      %820 = vmatpush.msra.mxu0 %v429
      %821 = vmatpush.msra.mxu0 %v426
      %822 = vmatpush.msra.mxu0 %v423
      %823 = vmatpush.msra.mxu0 %v420
      %824 = vmatpush.msra.mxu0 %v417
      %825 = vmatpush.msra.mxu0 %v414
      %826 = vmatmul.f32.gmra.mxu0 %v732
      %v827 = vpop.f32.mrf.mxu0
      %v828 = vadd.f32 %v466, %v827
      %829 = vdwg.mxu0
      %v830 = vld [vmem:[#allocation2 + $0x30] sm:$0xff]
      %v831 = vld [vmem:[#allocation2 + $0x38] sm:$0xff]
      %v832 = vld [vmem:[#allocation2 + $0x40] sm:$0xff]
      %v833 = vadd.f32 %v830, %v788
      %v834 = vxor.u32 %v833, 2147483648
      %v835 = vmul.f32 %v834, 1.442695
      %v836 = vpow.pop %v835
      %v837 = vadd.f32 %v836, 1.0
      %v838 = vrcp.pop %v837
      %v839 = vmul.f32 %v837, %v838
      %v840 = vsub.f32 1.0, %v839
      %v841 = vmul.f32 %v838, %v840
      %v842 = vadd.f32 %v838, %v841
      %vm843 = vweird.f32 %v837
      %vm844 = vweird.f32 %v838
      %vm845 = vmor %vm843, %vm844
      %v846 = vsel %vm845, %v838, %v842
      %v847 = vand.u32 2147483647, %v837
      %vm848 = vcmp.eq.f32.partialorder %v847, 8.507059e+37
      %v849 = vand.u32 %v837, 2147483648
      %v850 = vor.u32 1.1754944e-38, %v849
      %v851 = vsel %vm848, %v850, %v846
      %v852 = vmul.f32 1.0, %v851
      %v853 = vadd.f32 %v831, %v808
      %v854 = vxor.u32 %v853, 2147483648
      %v855 = vmul.f32 %v854, 1.442695
      %v856 = vpow.pop %v855
      %v857 = vadd.f32 %v856, 1.0
      %v858 = vrcp.pop %v857
      %v859 = vmul.f32 %v857, %v858
      %v860 = vsub.f32 1.0, %v859
      %v861 = vmul.f32 %v858, %v860
      %v862 = vadd.f32 %v858, %v861
      %vm863 = vweird.f32 %v857
      %vm864 = vweird.f32 %v858
      %vm865 = vmor %vm863, %vm864
      %v866 = vsel %vm865, %v858, %v862
      %v867 = vand.u32 2147483647, %v857
      %vm868 = vcmp.eq.f32.partialorder %v867, 8.507059e+37
      %v869 = vand.u32 %v857, 2147483648
      %v870 = vor.u32 1.1754944e-38, %v869
      %v871 = vsel %vm868, %v870, %v866
      %v872 = vmul.f32 1.0, %v871
      %v873 = vmul.f32 %v852, %v828
      %v874 = vadd.f32 %v832, %v873
      %v875 = vtanh.pop %v874
      %v876 = vsub.f32 1.0, %v872
      %v877 = vmul.f32 %v876, %v875
      %v878 = vmul.f32 %v872, %v732
      %v879 = vadd.f32 %v877, %v878
      %880 = vst [vmem:[#allocation3 + $0x10] sm:$0xff] %v879
      %v881 = vmul.f32 %v879, %v582
      %882 = vadd.xlane.f32.xlu0 %v881
      %v883 = vpop.xlane.xlu0 %882
      %v884 = vadd.f32 %v883, %v588
      %v885 = vld [vmem:[%s1 + $0x10] sm:$0xff]
      %v886 = vadd.f32 %v884, %v885
      %v887 = vmax.f32 %v740, %v886
      %v888 = vsub.f32 %v740, %v887
      %v889 = vmul.f32 %v888, 1.442695
      %v890 = vpow.pop %v889
      %v891 = vsub.f32 %v886, %v887
      %v892 = vmul.f32 %v891, 1.442695
      %v893 = vpow.pop %v892
      %v894 = vmul.f32 %v748, %v890
      %v895 = vadd.f32 %v894, %v893
      %897 = vset.pattern.permute.xlu0 0
      %898 = vperm.xlu0 %897, %v890
      %v899 = vpop.permute.xlu0 %898
      %v901 = vmul.f32 %v761, %v899
      %903 = vset.pattern.permute.xlu0 0
      %904 = vperm.xlu0 %903, %v893
      %v905 = vpop.permute.xlu0 %904
      %v907 = vmul.f32 %v905, %v879
      %v908 = vadd.f32 %v901, %v907
      %v909 = vrcp.pop %v895
      %911 = vset.pattern.permute.xlu0 0
      %912 = vperm.xlu0 %911, %v909
      %v913 = vpop.permute.xlu0 %912
      %v915 = vmul.f32 %v908, %v913
      %916 = vst [vmem:[#allocation4 + $0x10] sm:$0xff] %v915
      %917 = vmatpush.msra.mxu0 %v457
      %918 = vmatpush.msra.mxu0 %v454
      %919 = vmatpush.msra.mxu0 %v451
      %920 = vmatpush.msra.mxu0 %v448
      %921 = vmatpush.msra.mxu0 %v445
      %922 = vmatpush.msra.mxu0 %v442
      %923 = vmatpush.msra.mxu0 %v439
      %924 = vmatpush.msra.mxu0 %v436
      %925 = vmatpush.msra.mxu0 %v433
      %926 = vmatpush.msra.mxu0 %v430
      %927 = vmatpush.msra.mxu0 %v427
      %928 = vmatpush.msra.mxu0 %v424
      %929 = vmatpush.msra.mxu0 %v421
      %930 = vmatpush.msra.mxu0 %v418
      %931 = vmatpush.msra.mxu0 %v415
      %932 = vmatpush.msra.mxu0 %v412
      %933 = vmatmul.f32.gmra.mxu0 %v879
      %v934 = vpop.f32.mrf.mxu0
      %v935 = vadd.f32 %v464, %v934
      %936 = vdwg.mxu0
      %937 = vmatpush.msra.mxu0 %v458
      %938 = vmatpush.msra.mxu0 %v455
      %939 = vmatpush.msra.mxu0 %v452
      %940 = vmatpush.msra.mxu0 %v449
      %941 = vmatpush.msra.mxu0 %v446
      %942 = vmatpush.msra.mxu0 %v443
      %943 = vmatpush.msra.mxu0 %v440
      %944 = vmatpush.msra.mxu0 %v437
      %945 = vmatpush.msra.mxu0 %v434
      %946 = vmatpush.msra.mxu0 %v431
      %947 = vmatpush.msra.mxu0 %v428
      %948 = vmatpush.msra.mxu0 %v425
      %949 = vmatpush.msra.mxu0 %v422
      %950 = vmatpush.msra.mxu0 %v419
      %951 = vmatpush.msra.mxu0 %v416
      %952 = vmatpush.msra.mxu0 %v413
      %953 = vmatmul.f32.gmra.mxu0 %v879
      %v954 = vpop.f32.mrf.mxu0
      %v955 = vadd.f32 %v465, %v954
      %956 = vdwg.mxu0
      %957 = vmatpush.msra.mxu0 %v459
      %958 = vmatpush.msra.mxu0 %v456
      %959 = vmatpush.msra.mxu0 %v453
      %960 = vmatpush.msra.mxu0 %v450
      %961 = vmatpush.msra.mxu0 %v447
      %962 = vmatpush.msra.mxu0 %v444
      %963 = vmatpush.msra.mxu0 %v441
      %964 = vmatpush.msra.mxu0 %v438
      %965 = vmatpush.msra.mxu0 %v435
      %966 = vmatpush.msra.mxu0 %v432
      %967 = vmatpush.msra.mxu0 %v429
      %968 = vmatpush.msra.mxu0 %v426
      %969 = vmatpush.msra.mxu0 %v423
      %970 = vmatpush.msra.mxu0 %v420
      %971 = vmatpush.msra.mxu0 %v417
      %972 = vmatpush.msra.mxu0 %v414
      %973 = vmatmul.f32.gmra.mxu0 %v879
      %v974 = vpop.f32.mrf.mxu0
      %v975 = vadd.f32 %v466, %v974
      %976 = vdwg.mxu0
      %v977 = vld [vmem:[#allocation2 + $0x48] sm:$0xff]
      %v978 = vld [vmem:[#allocation2 + $0x50] sm:$0xff]
      %v979 = vld [vmem:[#allocation2 + $0x58] sm:$0xff]
      %v980 = vadd.f32 %v977, %v935
      %v981 = vxor.u32 %v980, 2147483648
      %v982 = vmul.f32 %v981, 1.442695
      %v983 = vpow.pop %v982
      %v984 = vadd.f32 %v983, 1.0
      %v985 = vrcp.pop %v984
      %v986 = vmul.f32 %v984, %v985
      %v987 = vsub.f32 1.0, %v986
      %v988 = vmul.f32 %v985, %v987
      %v989 = vadd.f32 %v985, %v988
      %vm990 = vweird.f32 %v984
      %vm991 = vweird.f32 %v985
      %vm992 = vmor %vm990, %vm991
      %v993 = vsel %vm992, %v985, %v989
      %v994 = vand.u32 2147483647, %v984
      %vm995 = vcmp.eq.f32.partialorder %v994, 8.507059e+37
      %v996 = vand.u32 %v984, 2147483648
      %v997 = vor.u32 1.1754944e-38, %v996
      %v998 = vsel %vm995, %v997, %v993
      %v999 = vmul.f32 1.0, %v998
      %v1000 = vadd.f32 %v978, %v955
      %v1001 = vxor.u32 %v1000, 2147483648
      %v1002 = vmul.f32 %v1001, 1.442695
      %v1003 = vpow.pop %v1002
      %v1004 = vadd.f32 %v1003, 1.0
      %v1005 = vrcp.pop %v1004
      %v1006 = vmul.f32 %v1004, %v1005
      %v1007 = vsub.f32 1.0, %v1006
      %v1008 = vmul.f32 %v1005, %v1007
      %v1009 = vadd.f32 %v1005, %v1008
      %vm1010 = vweird.f32 %v1004
      %vm1011 = vweird.f32 %v1005
      %vm1012 = vmor %vm1010, %vm1011
      %v1013 = vsel %vm1012, %v1005, %v1009
      %v1014 = vand.u32 2147483647, %v1004
      %vm1015 = vcmp.eq.f32.partialorder %v1014, 8.507059e+37
      %v1016 = vand.u32 %v1004, 2147483648
      %v1017 = vor.u32 1.1754944e-38, %v1016
      %v1018 = vsel %vm1015, %v1017, %v1013
      %v1019 = vmul.f32 1.0, %v1018
      %v1020 = vmul.f32 %v999, %v975
      %v1021 = vadd.f32 %v979, %v1020
      %v1022 = vtanh.pop %v1021
      %v1023 = vsub.f32 1.0, %v1019
      %v1024 = vmul.f32 %v1023, %v1022
      %v1025 = vmul.f32 %v1019, %v879
      %v1026 = vadd.f32 %v1024, %v1025
      %1027 = vst [vmem:[#allocation3 + $0x18] sm:$0xff] %v1026
      %v1028 = vmul.f32 %v1026, %v582
      %1029 = vadd.xlane.f32.xlu0 %v1028
      %v1030 = vpop.xlane.xlu0 %1029
      %v1031 = vadd.f32 %v1030, %v588
      %v1032 = vld [vmem:[%s1 + $0x18] sm:$0xff]
      %v1033 = vadd.f32 %v1031, %v1032
      %v1034 = vmax.f32 %v887, %v1033
      %v1035 = vsub.f32 %v887, %v1034
      %v1036 = vmul.f32 %v1035, 1.442695
      %v1037 = vpow.pop %v1036
      %v1038 = vsub.f32 %v1033, %v1034
      %v1039 = vmul.f32 %v1038, 1.442695
      %v1040 = vpow.pop %v1039
      %v1041 = vmul.f32 %v895, %v1037
      %v1042 = vadd.f32 %v1041, %v1040
      %1044 = vset.pattern.permute.xlu0 0
      %1045 = vperm.xlu0 %1044, %v1037
      %v1046 = vpop.permute.xlu0 %1045
      %v1048 = vmul.f32 %v908, %v1046
      %1050 = vset.pattern.permute.xlu0 0
      %1051 = vperm.xlu0 %1050, %v1040
      %v1052 = vpop.permute.xlu0 %1051
      %v1054 = vmul.f32 %v1052, %v1026
      %v1055 = vadd.f32 %v1048, %v1054
      %v1056 = vrcp.pop %v1042
      %1058 = vset.pattern.permute.xlu0 0
      %1059 = vperm.xlu0 %1058, %v1056
      %v1060 = vpop.permute.xlu0 %1059
      %v1062 = vmul.f32 %v1055, %v1060
      %1063 = vst [vmem:[#allocation4 + $0x18] sm:$0xff] %v1062
      %1064 = vmatpush.msra.mxu0 %v457
      %1065 = vmatpush.msra.mxu0 %v454
      %1066 = vmatpush.msra.mxu0 %v451
      %1067 = vmatpush.msra.mxu0 %v448
      %1068 = vmatpush.msra.mxu0 %v445
      %1069 = vmatpush.msra.mxu0 %v442
      %1070 = vmatpush.msra.mxu0 %v439
      %1071 = vmatpush.msra.mxu0 %v436
      %1072 = vmatpush.msra.mxu0 %v433
      %1073 = vmatpush.msra.mxu0 %v430
      %1074 = vmatpush.msra.mxu0 %v427
      %1075 = vmatpush.msra.mxu0 %v424
      %1076 = vmatpush.msra.mxu0 %v421
      %1077 = vmatpush.msra.mxu0 %v418
      %1078 = vmatpush.msra.mxu0 %v415
      %1079 = vmatpush.msra.mxu0 %v412
      %1080 = vmatmul.f32.gmra.mxu0 %v1026
      %v1081 = vpop.f32.mrf.mxu0
      %v1082 = vadd.f32 %v464, %v1081
      %1083 = vdwg.mxu0
      %1084 = vmatpush.msra.mxu0 %v458
      %1085 = vmatpush.msra.mxu0 %v455
      %1086 = vmatpush.msra.mxu0 %v452
      %1087 = vmatpush.msra.mxu0 %v449
      %1088 = vmatpush.msra.mxu0 %v446
      %1089 = vmatpush.msra.mxu0 %v443
      %1090 = vmatpush.msra.mxu0 %v440
      %1091 = vmatpush.msra.mxu0 %v437
      %1092 = vmatpush.msra.mxu0 %v434
      %1093 = vmatpush.msra.mxu0 %v431
      %1094 = vmatpush.msra.mxu0 %v428
      %1095 = vmatpush.msra.mxu0 %v425
      %1096 = vmatpush.msra.mxu0 %v422
      %1097 = vmatpush.msra.mxu0 %v419
      %1098 = vmatpush.msra.mxu0 %v416
      %1099 = vmatpush.msra.mxu0 %v413
      %1100 = vmatmul.f32.gmra.mxu0 %v1026
      %v1101 = vpop.f32.mrf.mxu0
      %v1102 = vadd.f32 %v465, %v1101
      %1103 = vdwg.mxu0
      %1104 = vmatpush.msra.mxu0 %v459
      %1105 = vmatpush.msra.mxu0 %v456
      %1106 = vmatpush.msra.mxu0 %v453
      %1107 = vmatpush.msra.mxu0 %v450
      %1108 = vmatpush.msra.mxu0 %v447
      %1109 = vmatpush.msra.mxu0 %v444
      %1110 = vmatpush.msra.mxu0 %v441
      %1111 = vmatpush.msra.mxu0 %v438
      %1112 = vmatpush.msra.mxu0 %v435
      %1113 = vmatpush.msra.mxu0 %v432
      %1114 = vmatpush.msra.mxu0 %v429
      %1115 = vmatpush.msra.mxu0 %v426
      %1116 = vmatpush.msra.mxu0 %v423
      %1117 = vmatpush.msra.mxu0 %v420
      %1118 = vmatpush.msra.mxu0 %v417
      %1119 = vmatpush.msra.mxu0 %v414
      %1120 = vmatmul.f32.gmra.mxu0 %v1026
      %v1121 = vpop.f32.mrf.mxu0
      %v1122 = vadd.f32 %v466, %v1121
      %1123 = vdwg.mxu0
      %v1124 = vld [vmem:[#allocation2 + $0x60] sm:$0xff]
      %v1125 = vld [vmem:[#allocation2 + $0x68] sm:$0xff]
      %v1126 = vld [vmem:[#allocation2 + $0x70] sm:$0xff]
      %v1127 = vadd.f32 %v1124, %v1082
      %v1128 = vxor.u32 %v1127, 2147483648
      %v1129 = vmul.f32 %v1128, 1.442695
      %v1130 = vpow.pop %v1129
      %v1131 = vadd.f32 %v1130, 1.0
      %v1132 = vrcp.pop %v1131
      %v1133 = vmul.f32 %v1131, %v1132
      %v1134 = vsub.f32 1.0, %v1133
      %v1135 = vmul.f32 %v1132, %v1134
      %v1136 = vadd.f32 %v1132, %v1135
      %vm1137 = vweird.f32 %v1131
      %vm1138 = vweird.f32 %v1132
      %vm1139 = vmor %vm1137, %vm1138
      %v1140 = vsel %vm1139, %v1132, %v1136
      %v1141 = vand.u32 2147483647, %v1131
      %vm1142 = vcmp.eq.f32.partialorder %v1141, 8.507059e+37
      %v1143 = vand.u32 %v1131, 2147483648
      %v1144 = vor.u32 1.1754944e-38, %v1143
      %v1145 = vsel %vm1142, %v1144, %v1140
      %v1146 = vmul.f32 1.0, %v1145
      %v1147 = vadd.f32 %v1125, %v1102
      %v1148 = vxor.u32 %v1147, 2147483648
      %v1149 = vmul.f32 %v1148, 1.442695
      %v1150 = vpow.pop %v1149
      %v1151 = vadd.f32 %v1150, 1.0
      %v1152 = vrcp.pop %v1151
      %v1153 = vmul.f32 %v1151, %v1152
      %v1154 = vsub.f32 1.0, %v1153
      %v1155 = vmul.f32 %v1152, %v1154
      %v1156 = vadd.f32 %v1152, %v1155
      %vm1157 = vweird.f32 %v1151
      %vm1158 = vweird.f32 %v1152
      %vm1159 = vmor %vm1157, %vm1158
      %v1160 = vsel %vm1159, %v1152, %v1156
      %v1161 = vand.u32 2147483647, %v1151
      %vm1162 = vcmp.eq.f32.partialorder %v1161, 8.507059e+37
      %v1163 = vand.u32 %v1151, 2147483648
      %v1164 = vor.u32 1.1754944e-38, %v1163
      %v1165 = vsel %vm1162, %v1164, %v1160
      %v1166 = vmul.f32 1.0, %v1165
      %v1167 = vmul.f32 %v1146, %v1122
      %v1168 = vadd.f32 %v1126, %v1167
      %v1169 = vtanh.pop %v1168
      %v1170 = vsub.f32 1.0, %v1166
      %v1171 = vmul.f32 %v1170, %v1169
      %v1172 = vmul.f32 %v1166, %v1026
      %v1173 = vadd.f32 %v1171, %v1172
      %1174 = vst [vmem:[#allocation3 + $0x20] sm:$0xff] %v1173
      %v1175 = vmul.f32 %v1173, %v582
      %1176 = vadd.xlane.f32.xlu0 %v1175
      %v1177 = vpop.xlane.xlu0 %1176
      %v1178 = vadd.f32 %v1177, %v588
      %v1179 = vld [vmem:[%s1 + $0x20] sm:$0xff]
      %v1180 = vadd.f32 %v1178, %v1179
      %v1181 = vmax.f32 %v1034, %v1180
      %v1182 = vsub.f32 %v1034, %v1181
      %v1183 = vmul.f32 %v1182, 1.442695
      %v1184 = vpow.pop %v1183
      %v1185 = vsub.f32 %v1180, %v1181
      %v1186 = vmul.f32 %v1185, 1.442695
      %v1187 = vpow.pop %v1186
      %v1188 = vmul.f32 %v1042, %v1184
      %v1189 = vadd.f32 %v1188, %v1187
      %1191 = vset.pattern.permute.xlu0 0
      %1192 = vperm.xlu0 %1191, %v1184
      %v1193 = vpop.permute.xlu0 %1192
      %v1195 = vmul.f32 %v1055, %v1193
      %1197 = vset.pattern.permute.xlu0 0
      %1198 = vperm.xlu0 %1197, %v1187
      %v1199 = vpop.permute.xlu0 %1198
      %v1201 = vmul.f32 %v1199, %v1173
      %v1202 = vadd.f32 %v1195, %v1201
      %v1203 = vrcp.pop %v1189
      %1205 = vset.pattern.permute.xlu0 0
      %1206 = vperm.xlu0 %1205, %v1203
      %v1207 = vpop.permute.xlu0 %1206
      %v1209 = vmul.f32 %v1202, %v1207
      %1210 = vst [vmem:[#allocation4 + $0x20] sm:$0xff] %v1209
      %1211 = vmatpush.msra.mxu0 %v457
      %1212 = vmatpush.msra.mxu0 %v454
      %1213 = vmatpush.msra.mxu0 %v451
      %1214 = vmatpush.msra.mxu0 %v448
      %1215 = vmatpush.msra.mxu0 %v445
      %1216 = vmatpush.msra.mxu0 %v442
      %1217 = vmatpush.msra.mxu0 %v439
      %1218 = vmatpush.msra.mxu0 %v436
      %1219 = vmatpush.msra.mxu0 %v433
      %1220 = vmatpush.msra.mxu0 %v430
      %1221 = vmatpush.msra.mxu0 %v427
      %1222 = vmatpush.msra.mxu0 %v424
      %1223 = vmatpush.msra.mxu0 %v421
      %1224 = vmatpush.msra.mxu0 %v418
      %1225 = vmatpush.msra.mxu0 %v415
      %1226 = vmatpush.msra.mxu0 %v412
      %1227 = vmatmul.f32.gmra.mxu0 %v1173
      %v1228 = vpop.f32.mrf.mxu0
      %v1229 = vadd.f32 %v464, %v1228
      %1230 = vdwg.mxu0
      %1231 = vmatpush.msra.mxu0 %v458
      %1232 = vmatpush.msra.mxu0 %v455
      %1233 = vmatpush.msra.mxu0 %v452
      %1234 = vmatpush.msra.mxu0 %v449
      %1235 = vmatpush.msra.mxu0 %v446
      %1236 = vmatpush.msra.mxu0 %v443
      %1237 = vmatpush.msra.mxu0 %v440
      %1238 = vmatpush.msra.mxu0 %v437
      %1239 = vmatpush.msra.mxu0 %v434
      %1240 = vmatpush.msra.mxu0 %v431
      %1241 = vmatpush.msra.mxu0 %v428
      %1242 = vmatpush.msra.mxu0 %v425
      %1243 = vmatpush.msra.mxu0 %v422
      %1244 = vmatpush.msra.mxu0 %v419
      %1245 = vmatpush.msra.mxu0 %v416
      %1246 = vmatpush.msra.mxu0 %v413
      %1247 = vmatmul.f32.gmra.mxu0 %v1173
      %v1248 = vpop.f32.mrf.mxu0
      %v1249 = vadd.f32 %v465, %v1248
      %1250 = vdwg.mxu0
      %1251 = vmatpush.msra.mxu0 %v459
      %1252 = vmatpush.msra.mxu0 %v456
      %1253 = vmatpush.msra.mxu0 %v453
      %1254 = vmatpush.msra.mxu0 %v450
      %1255 = vmatpush.msra.mxu0 %v447
      %1256 = vmatpush.msra.mxu0 %v444
      %1257 = vmatpush.msra.mxu0 %v441
      %1258 = vmatpush.msra.mxu0 %v438
      %1259 = vmatpush.msra.mxu0 %v435
      %1260 = vmatpush.msra.mxu0 %v432
      %1261 = vmatpush.msra.mxu0 %v429
      %1262 = vmatpush.msra.mxu0 %v426
      %1263 = vmatpush.msra.mxu0 %v423
      %1264 = vmatpush.msra.mxu0 %v420
      %1265 = vmatpush.msra.mxu0 %v417
      %1266 = vmatpush.msra.mxu0 %v414
      %1267 = vmatmul.f32.gmra.mxu0 %v1173
      %v1268 = vpop.f32.mrf.mxu0
      %v1269 = vadd.f32 %v466, %v1268
      %1270 = vdwg.mxu0
      %v1271 = vld [vmem:[#allocation2 + $0x78] sm:$0xff]
      %v1272 = vld [vmem:[#allocation2 + $0x80] sm:$0xff]
      %v1273 = vld [vmem:[#allocation2 + $0x88] sm:$0xff]
      %v1274 = vadd.f32 %v1271, %v1229
      %v1275 = vxor.u32 %v1274, 2147483648
      %v1276 = vmul.f32 %v1275, 1.442695
      %v1277 = vpow.pop %v1276
      %v1278 = vadd.f32 %v1277, 1.0
      %v1279 = vrcp.pop %v1278
      %v1280 = vmul.f32 %v1278, %v1279
      %v1281 = vsub.f32 1.0, %v1280
      %v1282 = vmul.f32 %v1279, %v1281
      %v1283 = vadd.f32 %v1279, %v1282
      %vm1284 = vweird.f32 %v1278
      %vm1285 = vweird.f32 %v1279
      %vm1286 = vmor %vm1284, %vm1285
      %v1287 = vsel %vm1286, %v1279, %v1283
      %v1288 = vand.u32 2147483647, %v1278
      %vm1289 = vcmp.eq.f32.partialorder %v1288, 8.507059e+37
      %v1290 = vand.u32 %v1278, 2147483648
      %v1291 = vor.u32 1.1754944e-38, %v1290
      %v1292 = vsel %vm1289, %v1291, %v1287
      %v1293 = vmul.f32 1.0, %v1292
      %v1294 = vadd.f32 %v1272, %v1249
      %v1295 = vxor.u32 %v1294, 2147483648
      %v1296 = vmul.f32 %v1295, 1.442695
      %v1297 = vpow.pop %v1296
      %v1298 = vadd.f32 %v1297, 1.0
      %v1299 = vrcp.pop %v1298
      %v1300 = vmul.f32 %v1298, %v1299
      %v1301 = vsub.f32 1.0, %v1300
      %v1302 = vmul.f32 %v1299, %v1301
      %v1303 = vadd.f32 %v1299, %v1302
      %vm1304 = vweird.f32 %v1298
      %vm1305 = vweird.f32 %v1299
      %vm1306 = vmor %vm1304, %vm1305
      %v1307 = vsel %vm1306, %v1299, %v1303
      %v1308 = vand.u32 2147483647, %v1298
      %vm1309 = vcmp.eq.f32.partialorder %v1308, 8.507059e+37
      %v1310 = vand.u32 %v1298, 2147483648
      %v1311 = vor.u32 1.1754944e-38, %v1310
      %v1312 = vsel %vm1309, %v1311, %v1307
      %v1313 = vmul.f32 1.0, %v1312
      %v1314 = vmul.f32 %v1293, %v1269
      %v1315 = vadd.f32 %v1273, %v1314
      %v1316 = vtanh.pop %v1315
      %v1317 = vsub.f32 1.0, %v1313
      %v1318 = vmul.f32 %v1317, %v1316
      %v1319 = vmul.f32 %v1313, %v1173
      %v1320 = vadd.f32 %v1318, %v1319
      %1321 = vst [vmem:[#allocation3 + $0x28] sm:$0xff] %v1320
      %v1322 = vmul.f32 %v1320, %v582
      %1323 = vadd.xlane.f32.xlu0 %v1322
      %v1324 = vpop.xlane.xlu0 %1323
      %v1325 = vadd.f32 %v1324, %v588
      %v1326 = vld [vmem:[%s1 + $0x28] sm:$0xff]
      %v1327 = vadd.f32 %v1325, %v1326
      %v1328 = vmax.f32 %v1181, %v1327
      %v1329 = vsub.f32 %v1181, %v1328
      %v1330 = vmul.f32 %v1329, 1.442695
      %v1331 = vpow.pop %v1330
      %v1332 = vsub.f32 %v1327, %v1328
      %v1333 = vmul.f32 %v1332, 1.442695
      %v1334 = vpow.pop %v1333
      %v1335 = vmul.f32 %v1189, %v1331
      %v1336 = vadd.f32 %v1335, %v1334
      %1338 = vset.pattern.permute.xlu0 0
      %1339 = vperm.xlu0 %1338, %v1331
      %v1340 = vpop.permute.xlu0 %1339
      %v1342 = vmul.f32 %v1202, %v1340
      %1344 = vset.pattern.permute.xlu0 0
      %1345 = vperm.xlu0 %1344, %v1334
      %v1346 = vpop.permute.xlu0 %1345
      %v1348 = vmul.f32 %v1346, %v1320
      %v1349 = vadd.f32 %v1342, %v1348
      %v1350 = vrcp.pop %v1336
      %1352 = vset.pattern.permute.xlu0 0
      %1353 = vperm.xlu0 %1352, %v1350
      %v1354 = vpop.permute.xlu0 %1353
      %v1356 = vmul.f32 %v1349, %v1354
      %1357 = vst [vmem:[#allocation4 + $0x28] sm:$0xff] %v1356
      %1358 = vmatpush.msra.mxu0 %v457
      %1359 = vmatpush.msra.mxu0 %v454
      %1360 = vmatpush.msra.mxu0 %v451
      %1361 = vmatpush.msra.mxu0 %v448
      %1362 = vmatpush.msra.mxu0 %v445
      %1363 = vmatpush.msra.mxu0 %v442
      %1364 = vmatpush.msra.mxu0 %v439
      %1365 = vmatpush.msra.mxu0 %v436
      %1366 = vmatpush.msra.mxu0 %v433
      %1367 = vmatpush.msra.mxu0 %v430
      %1368 = vmatpush.msra.mxu0 %v427
      %1369 = vmatpush.msra.mxu0 %v424
      %1370 = vmatpush.msra.mxu0 %v421
      %1371 = vmatpush.msra.mxu0 %v418
      %1372 = vmatpush.msra.mxu0 %v415
      %1373 = vmatpush.msra.mxu0 %v412
      %1374 = vmatmul.f32.gmra.mxu0 %v1320
      %v1375 = vpop.f32.mrf.mxu0
      %v1376 = vadd.f32 %v464, %v1375
      %1377 = vdwg.mxu0
      %1378 = vmatpush.msra.mxu0 %v458
      %1379 = vmatpush.msra.mxu0 %v455
      %1380 = vmatpush.msra.mxu0 %v452
      %1381 = vmatpush.msra.mxu0 %v449
      %1382 = vmatpush.msra.mxu0 %v446
      %1383 = vmatpush.msra.mxu0 %v443
      %1384 = vmatpush.msra.mxu0 %v440
      %1385 = vmatpush.msra.mxu0 %v437
      %1386 = vmatpush.msra.mxu0 %v434
      %1387 = vmatpush.msra.mxu0 %v431
      %1388 = vmatpush.msra.mxu0 %v428
      %1389 = vmatpush.msra.mxu0 %v425
      %1390 = vmatpush.msra.mxu0 %v422
      %1391 = vmatpush.msra.mxu0 %v419
      %1392 = vmatpush.msra.mxu0 %v416
      %1393 = vmatpush.msra.mxu0 %v413
      %1394 = vmatmul.f32.gmra.mxu0 %v1320
      %v1395 = vpop.f32.mrf.mxu0
      %v1396 = vadd.f32 %v465, %v1395
      %1397 = vdwg.mxu0
      %1398 = vmatpush.msra.mxu0 %v459
      %1399 = vmatpush.msra.mxu0 %v456
      %1400 = vmatpush.msra.mxu0 %v453
      %1401 = vmatpush.msra.mxu0 %v450
      %1402 = vmatpush.msra.mxu0 %v447
      %1403 = vmatpush.msra.mxu0 %v444
      %1404 = vmatpush.msra.mxu0 %v441
      %1405 = vmatpush.msra.mxu0 %v438
      %1406 = vmatpush.msra.mxu0 %v435
      %1407 = vmatpush.msra.mxu0 %v432
      %1408 = vmatpush.msra.mxu0 %v429
      %1409 = vmatpush.msra.mxu0 %v426
      %1410 = vmatpush.msra.mxu0 %v423
      %1411 = vmatpush.msra.mxu0 %v420
      %1412 = vmatpush.msra.mxu0 %v417
      %1413 = vmatpush.msra.mxu0 %v414
      %1414 = vmatmul.f32.gmra.mxu0 %v1320
      %v1415 = vpop.f32.mrf.mxu0
      %v1416 = vadd.f32 %v466, %v1415
      %1417 = vdwg.mxu0
      %v1418 = vld [vmem:[#allocation2 + $0x90] sm:$0xff]
      %v1419 = vld [vmem:[#allocation2 + $0x98] sm:$0xff]
      %v1420 = vld [vmem:[#allocation2 + $0xa0] sm:$0xff]
      %v1421 = vadd.f32 %v1418, %v1376
      %v1422 = vxor.u32 %v1421, 2147483648
      %v1423 = vmul.f32 %v1422, 1.442695
      %v1424 = vpow.pop %v1423
      %v1425 = vadd.f32 %v1424, 1.0
      %v1426 = vrcp.pop %v1425
      %v1427 = vmul.f32 %v1425, %v1426
      %v1428 = vsub.f32 1.0, %v1427
      %v1429 = vmul.f32 %v1426, %v1428
      %v1430 = vadd.f32 %v1426, %v1429
      %vm1431 = vweird.f32 %v1425
      %vm1432 = vweird.f32 %v1426
      %vm1433 = vmor %vm1431, %vm1432
      %v1434 = vsel %vm1433, %v1426, %v1430
      %v1435 = vand.u32 2147483647, %v1425
      %vm1436 = vcmp.eq.f32.partialorder %v1435, 8.507059e+37
      %v1437 = vand.u32 %v1425, 2147483648
      %v1438 = vor.u32 1.1754944e-38, %v1437
      %v1439 = vsel %vm1436, %v1438, %v1434
      %v1440 = vmul.f32 1.0, %v1439
      %v1441 = vadd.f32 %v1419, %v1396
      %v1442 = vxor.u32 %v1441, 2147483648
      %v1443 = vmul.f32 %v1442, 1.442695
      %v1444 = vpow.pop %v1443
      %v1445 = vadd.f32 %v1444, 1.0
      %v1446 = vrcp.pop %v1445
      %v1447 = vmul.f32 %v1445, %v1446
      %v1448 = vsub.f32 1.0, %v1447
      %v1449 = vmul.f32 %v1446, %v1448
      %v1450 = vadd.f32 %v1446, %v1449
      %vm1451 = vweird.f32 %v1445
      %vm1452 = vweird.f32 %v1446
      %vm1453 = vmor %vm1451, %vm1452
      %v1454 = vsel %vm1453, %v1446, %v1450
      %v1455 = vand.u32 2147483647, %v1445
      %vm1456 = vcmp.eq.f32.partialorder %v1455, 8.507059e+37
      %v1457 = vand.u32 %v1445, 2147483648
      %v1458 = vor.u32 1.1754944e-38, %v1457
      %v1459 = vsel %vm1456, %v1458, %v1454
      %v1460 = vmul.f32 1.0, %v1459
      %v1461 = vmul.f32 %v1440, %v1416
      %v1462 = vadd.f32 %v1420, %v1461
      %v1463 = vtanh.pop %v1462
      %v1464 = vsub.f32 1.0, %v1460
      %v1465 = vmul.f32 %v1464, %v1463
      %v1466 = vmul.f32 %v1460, %v1320
      %v1467 = vadd.f32 %v1465, %v1466
      %1468 = vst [vmem:[#allocation3 + $0x30] sm:$0xff] %v1467
      %v1469 = vmul.f32 %v1467, %v582
      %1470 = vadd.xlane.f32.xlu0 %v1469
      %v1471 = vpop.xlane.xlu0 %1470
      %v1472 = vadd.f32 %v1471, %v588
      %v1473 = vld [vmem:[%s1 + $0x30] sm:$0xff]
      %v1474 = vadd.f32 %v1472, %v1473
      %v1475 = vmax.f32 %v1328, %v1474
      %v1476 = vsub.f32 %v1328, %v1475
      %v1477 = vmul.f32 %v1476, 1.442695
      %v1478 = vpow.pop %v1477
      %v1479 = vsub.f32 %v1474, %v1475
      %v1480 = vmul.f32 %v1479, 1.442695
      %v1481 = vpow.pop %v1480
      %v1482 = vmul.f32 %v1336, %v1478
      %v1483 = vadd.f32 %v1482, %v1481
      %1485 = vset.pattern.permute.xlu0 0
      %1486 = vperm.xlu0 %1485, %v1478
      %v1487 = vpop.permute.xlu0 %1486
      %v1489 = vmul.f32 %v1349, %v1487
      %1491 = vset.pattern.permute.xlu0 0
      %1492 = vperm.xlu0 %1491, %v1481
      %v1493 = vpop.permute.xlu0 %1492
      %v1495 = vmul.f32 %v1493, %v1467
      %v1496 = vadd.f32 %v1489, %v1495
      %v1497 = vrcp.pop %v1483
      %1499 = vset.pattern.permute.xlu0 0
      %1500 = vperm.xlu0 %1499, %v1497
      %v1501 = vpop.permute.xlu0 %1500
      %v1503 = vmul.f32 %v1496, %v1501
      %1504 = vst [vmem:[#allocation4 + $0x30] sm:$0xff] %v1503
      %1505 = vmatpush.msra.mxu0 %v457
      %1506 = vmatpush.msra.mxu0 %v454
      %1507 = vmatpush.msra.mxu0 %v451
      %1508 = vmatpush.msra.mxu0 %v448
      %1509 = vmatpush.msra.mxu0 %v445
      %1510 = vmatpush.msra.mxu0 %v442
      %1511 = vmatpush.msra.mxu0 %v439
      %1512 = vmatpush.msra.mxu0 %v436
      %1513 = vmatpush.msra.mxu0 %v433
      %1514 = vmatpush.msra.mxu0 %v430
      %1515 = vmatpush.msra.mxu0 %v427
      %1516 = vmatpush.msra.mxu0 %v424
      %1517 = vmatpush.msra.mxu0 %v421
      %1518 = vmatpush.msra.mxu0 %v418
      %1519 = vmatpush.msra.mxu0 %v415
      %1520 = vmatpush.msra.mxu0 %v412
      %1521 = vmatmul.f32.gmra.mxu0 %v1467
      %v1522 = vpop.f32.mrf.mxu0
      %v1523 = vadd.f32 %v464, %v1522
      %1524 = vdwg.mxu0
      %1525 = vmatpush.msra.mxu0 %v458
      %1526 = vmatpush.msra.mxu0 %v455
      %1527 = vmatpush.msra.mxu0 %v452
      %1528 = vmatpush.msra.mxu0 %v449
      %1529 = vmatpush.msra.mxu0 %v446
      %1530 = vmatpush.msra.mxu0 %v443
      %1531 = vmatpush.msra.mxu0 %v440
      %1532 = vmatpush.msra.mxu0 %v437
      %1533 = vmatpush.msra.mxu0 %v434
      %1534 = vmatpush.msra.mxu0 %v431
      %1535 = vmatpush.msra.mxu0 %v428
      %1536 = vmatpush.msra.mxu0 %v425
      %1537 = vmatpush.msra.mxu0 %v422
      %1538 = vmatpush.msra.mxu0 %v419
      %1539 = vmatpush.msra.mxu0 %v416
      %1540 = vmatpush.msra.mxu0 %v413
      %1541 = vmatmul.f32.gmra.mxu0 %v1467
      %v1542 = vpop.f32.mrf.mxu0
      %v1543 = vadd.f32 %v465, %v1542
      %1544 = vdwg.mxu0
      %1545 = vmatpush.msra.mxu0 %v459
      %1546 = vmatpush.msra.mxu0 %v456
      %1547 = vmatpush.msra.mxu0 %v453
      %1548 = vmatpush.msra.mxu0 %v450
      %1549 = vmatpush.msra.mxu0 %v447
      %1550 = vmatpush.msra.mxu0 %v444
      %1551 = vmatpush.msra.mxu0 %v441
      %1552 = vmatpush.msra.mxu0 %v438
      %1553 = vmatpush.msra.mxu0 %v435
      %1554 = vmatpush.msra.mxu0 %v432
      %1555 = vmatpush.msra.mxu0 %v429
      %1556 = vmatpush.msra.mxu0 %v426
      %1557 = vmatpush.msra.mxu0 %v423
      %1558 = vmatpush.msra.mxu0 %v420
      %1559 = vmatpush.msra.mxu0 %v417
      %1560 = vmatpush.msra.mxu0 %v414
      %1561 = vmatmul.f32.gmra.mxu0 %v1467
      %v1562 = vpop.f32.mrf.mxu0
      %v1563 = vadd.f32 %v466, %v1562
      %1564 = vdwg.mxu0
      %v1565 = vld [vmem:[#allocation2 + $0xa8] sm:$0xff]
      %v1566 = vld [vmem:[#allocation2 + $0xb0] sm:$0xff]
      %v1567 = vld [vmem:[#allocation2 + $0xb8] sm:$0xff]
      %v1568 = vadd.f32 %v1565, %v1523
      %v1569 = vxor.u32 %v1568, 2147483648
      %v1570 = vmul.f32 %v1569, 1.442695
      %v1571 = vpow.pop %v1570
      %v1572 = vadd.f32 %v1571, 1.0
      %v1573 = vrcp.pop %v1572
      %v1574 = vmul.f32 %v1572, %v1573
      %v1575 = vsub.f32 1.0, %v1574
      %v1576 = vmul.f32 %v1573, %v1575
      %v1577 = vadd.f32 %v1573, %v1576
      %vm1578 = vweird.f32 %v1572
      %vm1579 = vweird.f32 %v1573
      %vm1580 = vmor %vm1578, %vm1579
      %v1581 = vsel %vm1580, %v1573, %v1577
      %v1582 = vand.u32 2147483647, %v1572
      %vm1583 = vcmp.eq.f32.partialorder %v1582, 8.507059e+37
      %v1584 = vand.u32 %v1572, 2147483648
      %v1585 = vor.u32 1.1754944e-38, %v1584
      %v1586 = vsel %vm1583, %v1585, %v1581
      %v1587 = vmul.f32 1.0, %v1586
      %v1588 = vadd.f32 %v1566, %v1543
      %v1589 = vxor.u32 %v1588, 2147483648
      %v1590 = vmul.f32 %v1589, 1.442695
      %v1591 = vpow.pop %v1590
      %v1592 = vadd.f32 %v1591, 1.0
      %v1593 = vrcp.pop %v1592
      %v1594 = vmul.f32 %v1592, %v1593
      %v1595 = vsub.f32 1.0, %v1594
      %v1596 = vmul.f32 %v1593, %v1595
      %v1597 = vadd.f32 %v1593, %v1596
      %vm1598 = vweird.f32 %v1592
      %vm1599 = vweird.f32 %v1593
      %vm1600 = vmor %vm1598, %vm1599
      %v1601 = vsel %vm1600, %v1593, %v1597
      %v1602 = vand.u32 2147483647, %v1592
      %vm1603 = vcmp.eq.f32.partialorder %v1602, 8.507059e+37
      %v1604 = vand.u32 %v1592, 2147483648
      %v1605 = vor.u32 1.1754944e-38, %v1604
      %v1606 = vsel %vm1603, %v1605, %v1601
      %v1607 = vmul.f32 1.0, %v1606
      %v1608 = vmul.f32 %v1587, %v1563
      %v1609 = vadd.f32 %v1567, %v1608
      %v1610 = vtanh.pop %v1609
      %v1611 = vsub.f32 1.0, %v1607
      %v1612 = vmul.f32 %v1611, %v1610
      %v1613 = vmul.f32 %v1607, %v1467
      %v1614 = vadd.f32 %v1612, %v1613
      %1615 = vst [vmem:[#allocation3 + $0x38] sm:$0xff] %v1614
      %v1616 = vmul.f32 %v1614, %v582
      %1617 = vadd.xlane.f32.xlu0 %v1616
      %v1618 = vpop.xlane.xlu0 %1617
      %v1619 = vadd.f32 %v1618, %v588
      %v1620 = vld [vmem:[%s1 + $0x38] sm:$0xff]
      %v1621 = vadd.f32 %v1619, %v1620
      %v1622 = vmax.f32 %v1475, %v1621
      %v1623 = vsub.f32 %v1475, %v1622
      %v1624 = vmul.f32 %v1623, 1.442695
      %v1625 = vpow.pop %v1624
      %v1626 = vsub.f32 %v1621, %v1622
      %v1627 = vmul.f32 %v1626, 1.442695
      %v1628 = vpow.pop %v1627
      %v1629 = vmul.f32 %v1483, %v1625
      %v1630 = vadd.f32 %v1629, %v1628
      %1632 = vset.pattern.permute.xlu0 0
      %1633 = vperm.xlu0 %1632, %v1625
      %v1634 = vpop.permute.xlu0 %1633
      %v1636 = vmul.f32 %v1496, %v1634
      %1638 = vset.pattern.permute.xlu0 0
      %1639 = vperm.xlu0 %1638, %v1628
      %v1640 = vpop.permute.xlu0 %1639
      %v1642 = vmul.f32 %v1640, %v1614
      %v1643 = vadd.f32 %v1636, %v1642
      %v1644 = vrcp.pop %v1630
      %1646 = vset.pattern.permute.xlu0 0
      %1647 = vperm.xlu0 %1646, %v1644
      %v1648 = vpop.permute.xlu0 %1647
      %v1650 = vmul.f32 %v1643, %v1648
      %1651 = vst [vmem:[#allocation4 + $0x38] sm:$0xff] %v1650
      %v1652 = vld [vmem:[%s1] sm:$0xff]
      %v1653 = vld [vmem:[%s1 + $0x8] sm:$0xff]
      %v1654 = vld [vmem:[%s1 + $0x10] sm:$0xff]
      %v1655 = vld [vmem:[%s1 + $0x18] sm:$0xff]
      %v1656 = vld [vmem:[%s1 + $0x20] sm:$0xff]
      %v1657 = vld [vmem:[%s1 + $0x28] sm:$0xff]
      %v1658 = vld [vmem:[%s1 + $0x30] sm:$0xff]
      %v1659 = vld [vmem:[%s1 + $0x38] sm:$0xff]
      %vm1660 = vcmp.gt.f32.partialorder %v1652, -1.0
      %vm1661 = vcmp.gt.f32.partialorder %v1653, -1.0
      %vm1662 = vcmp.gt.f32.partialorder %v1654, -1.0
      %vm1663 = vcmp.gt.f32.partialorder %v1655, -1.0
      %vm1664 = vcmp.gt.f32.partialorder %v1656, -1.0
      %vm1665 = vcmp.gt.f32.partialorder %v1657, -1.0
      %vm1666 = vcmp.gt.f32.partialorder %v1658, -1.0
      %vm1667 = vcmp.gt.f32.partialorder %v1659, -1.0
      %v1668 = vsel %vm1660, 1, 0
      %v1669 = vsel %vm1661, 1, 0
      %v1670 = vsel %vm1662, 1, 0
      %v1671 = vsel %vm1663, 1, 0
      %v1672 = vsel %vm1664, 1, 0
      %v1673 = vsel %vm1665, 1, 0
      %v1674 = vsel %vm1666, 1, 0
      %v1675 = vsel %vm1667, 1, 0
      %v1676 = vcvt.s32.f32 %v1668
      %v1677 = vcvt.s32.f32 %v1669
      %v1678 = vcvt.s32.f32 %v1670
      %v1679 = vcvt.s32.f32 %v1671
      %v1680 = vcvt.s32.f32 %v1672
      %v1681 = vcvt.s32.f32 %v1673
      %v1682 = vcvt.s32.f32 %v1674
      %v1683 = vcvt.s32.f32 %v1675
      %v1684 = vld [vmem:[#allocation3] sm:$0xff]
      %v1685 = vld [vmem:[#allocation3 + $0x8] sm:$0xff]
      %v1686 = vld [vmem:[#allocation3 + $0x10] sm:$0xff]
      %v1687 = vld [vmem:[#allocation3 + $0x18] sm:$0xff]
      %v1688 = vld [vmem:[#allocation3 + $0x20] sm:$0xff]
      %v1689 = vld [vmem:[#allocation3 + $0x28] sm:$0xff]
      %v1690 = vld [vmem:[#allocation3 + $0x30] sm:$0xff]
      %v1691 = vld [vmem:[#allocation3 + $0x38] sm:$0xff]
      %1693 = vset.pattern.permute.xlu0 0
      %1694 = vperm.xlu0 %1693, %v1676
      %v1695 = vpop.permute.xlu0 %1694
      %1698 = vset.pattern.permute.xlu0 0
      %1699 = vperm.xlu0 %1698, %v1677
      %v1700 = vpop.permute.xlu0 %1699
      %1703 = vset.pattern.permute.xlu0 0
      %1704 = vperm.xlu0 %1703, %v1678
      %v1705 = vpop.permute.xlu0 %1704
      %1708 = vset.pattern.permute.xlu0 0
      %1709 = vperm.xlu0 %1708, %v1679
      %v1710 = vpop.permute.xlu0 %1709
      %1713 = vset.pattern.permute.xlu0 0
      %1714 = vperm.xlu0 %1713, %v1680
      %v1715 = vpop.permute.xlu0 %1714
      %1718 = vset.pattern.permute.xlu0 0
      %1719 = vperm.xlu0 %1718, %v1681
      %v1720 = vpop.permute.xlu0 %1719
      %1723 = vset.pattern.permute.xlu0 0
      %1724 = vperm.xlu0 %1723, %v1682
      %v1725 = vpop.permute.xlu0 %1724
      %1728 = vset.pattern.permute.xlu0 0
      %1729 = vperm.xlu0 %1728, %v1683
      %v1730 = vpop.permute.xlu0 %1729
      %v1732 = vmul.f32 %v1684, %v1695
      %v1733 = vmul.f32 %v1685, %v1700
      %v1734 = vmul.f32 %v1686, %v1705
      %v1735 = vmul.f32 %v1687, %v1710
      %v1736 = vmul.f32 %v1688, %v1715
      %v1737 = vmul.f32 %v1689, %v1720
      %v1738 = vmul.f32 %v1690, %v1725
      %v1739 = vmul.f32 %v1691, %v1730
      %1740 = vst [vmem:[#allocation3] sm:$0xff] %v1732
      %1741 = vst [vmem:[#allocation3 + $0x8] sm:$0xff] %v1733
      %1742 = vst [vmem:[#allocation3 + $0x10] sm:$0xff] %v1734
      %1743 = vst [vmem:[#allocation3 + $0x18] sm:$0xff] %v1735
      %1744 = vst [vmem:[#allocation3 + $0x20] sm:$0xff] %v1736
      %1745 = vst [vmem:[#allocation3 + $0x28] sm:$0xff] %v1737
      %1746 = vst [vmem:[#allocation3 + $0x30] sm:$0xff] %v1738
      %1747 = vst [vmem:[#allocation3 + $0x38] sm:$0xff] %v1739
    $region81: #{tpu_custom_call.1} parent=1 // pred_fallthru
      _
    %v1748 = vld [vmem:[#allocation3] sm:$0xff]
    %v1749 = vld [vmem:[#allocation3 + $0x8] sm:$0xff]
    %v1750 = vld [vmem:[#allocation3 + $0x10] sm:$0xff]
    %v1751 = vld [vmem:[#allocation3 + $0x18] sm:$0xff]
    %v1752 = vld [vmem:[#allocation3 + $0x20] sm:$0xff]
    %v1753 = vld [vmem:[#allocation3 + $0x28] sm:$0xff]
    %v1754 = vld [vmem:[#allocation3 + $0x30] sm:$0xff]
    %v1755 = vld [vmem:[#allocation3 + $0x38] sm:$0xff]
    %v1756 = vld [vmem:[#allocation12] sm:$0xff]
    %v1757 = vld [vmem:[#allocation12 + $0x8] sm:$0xff]
    %v1758 = vld [vmem:[#allocation12 + $0x10] sm:$0xff]
    %v1759 = vld [vmem:[#allocation12 + $0x18] sm:$0xff]
    %v1760 = vld [vmem:[#allocation12 + $0x20] sm:$0xff]
    %v1761 = vld [vmem:[#allocation12 + $0x28] sm:$0xff]
    %v1762 = vld [vmem:[#allocation12 + $0x30] sm:$0xff]
    %v1763 = vld [vmem:[#allocation12 + $0x38] sm:$0xff]
    %v1764 = vld [vmem:[#allocation12 + $0x40] sm:$0xff]
    %v1765 = vld [vmem:[#allocation12 + $0x48] sm:$0xff]
    %v1766 = vld [vmem:[#allocation12 + $0x50] sm:$0xff]
    %v1767 = vld [vmem:[#allocation12 + $0x58] sm:$0xff]
    %v1768 = vld [vmem:[#allocation12 + $0x60] sm:$0xff]
    %v1769 = vld [vmem:[#allocation12 + $0x68] sm:$0xff]
    %v1770 = vld [vmem:[#allocation12 + $0x70] sm:$0xff]
    %v1771 = vld [vmem:[#allocation12 + $0x78] sm:$0xff]
    %v1772 = vld [vmem:[#allocation4] sm:$0xff]
    %v1773 = vld [vmem:[#allocation4 + $0x8] sm:$0xff]
    %v1774 = vld [vmem:[#allocation4 + $0x10] sm:$0xff]
    %v1775 = vld [vmem:[#allocation4 + $0x18] sm:$0xff]
    %v1776 = vld [vmem:[#allocation4 + $0x20] sm:$0xff]
    %v1777 = vld [vmem:[#allocation4 + $0x28] sm:$0xff]
    %v1778 = vld [vmem:[#allocation4 + $0x30] sm:$0xff]
    %v1779 = vld [vmem:[#allocation4 + $0x38] sm:$0xff]
    %v1780 = vld [vmem:[#allocation14] sm:$0xff]
    %v1781 = vld [vmem:[#allocation14 + $0x8] sm:$0xff]
    %v1782 = vld [vmem:[#allocation14 + $0x10] sm:$0xff]
    %v1783 = vld [vmem:[#allocation14 + $0x18] sm:$0xff]
    %v1784 = vld [vmem:[#allocation14 + $0x20] sm:$0xff]
    %v1785 = vld [vmem:[#allocation14 + $0x28] sm:$0xff]
    %v1786 = vld [vmem:[#allocation14 + $0x30] sm:$0xff]
    %v1787 = vld [vmem:[#allocation14 + $0x38] sm:$0xff]
    %v1788 = vld [vmem:[#allocation14 + $0x40] sm:$0xff]
    %v1789 = vld [vmem:[#allocation14 + $0x48] sm:$0xff]
    %v1790 = vld [vmem:[#allocation14 + $0x50] sm:$0xff]
    %v1791 = vld [vmem:[#allocation14 + $0x58] sm:$0xff]
    %v1792 = vld [vmem:[#allocation14 + $0x60] sm:$0xff]
    %v1793 = vld [vmem:[#allocation14 + $0x68] sm:$0xff]
    %v1794 = vld [vmem:[#allocation14 + $0x70] sm:$0xff]
    %v1795 = vld [vmem:[#allocation14 + $0x78] sm:$0xff]
    %1796 = vmatpush.msra.mxu0 %v1795
    %1797 = vmatpush.msra.mxu0 %v1794
    %1798 = vmatpush.msra.mxu0 %v1793
    %1799 = vmatpush.msra.mxu0 %v1792
    %1800 = vmatpush.msra.mxu0 %v1791
    %1801 = vmatpush.msra.mxu0 %v1790
    %1802 = vmatpush.msra.mxu0 %v1789
    %1803 = vmatpush.msra.mxu0 %v1788
    %1804 = vmatpush.msra.mxu0 %v1787
    %1805 = vmatpush.msra.mxu0 %v1786
    %1806 = vmatpush.msra.mxu0 %v1785
    %1807 = vmatpush.msra.mxu0 %v1784
    %1808 = vmatpush.msra.mxu0 %v1783
    %1809 = vmatpush.msra.mxu0 %v1782
    %1810 = vmatpush.msra.mxu0 %v1781
    %1811 = vmatpush.msra.mxu0 %v1780
    %1812 = vmatmul.f32.gmra.mxu0 %v1772
    %v1813 = vpop.f32.mrf.mxu0
    %v1814 = vadd.f32 0.0, %v1813
    %1815 = vmatmul.f32.gmra.mxu0 %v1773
    %v1816 = vpop.f32.mrf.mxu0
    %v1817 = vadd.f32 0.0, %v1816
    %1818 = vmatmul.f32.gmra.mxu0 %v1774
    %v1819 = vpop.f32.mrf.mxu0
    %v1820 = vadd.f32 0.0, %v1819
    %1821 = vmatmul.f32.gmra.mxu0 %v1775
    %v1822 = vpop.f32.mrf.mxu0
    %v1823 = vadd.f32 0.0, %v1822
    %1824 = vmatmul.f32.gmra.mxu0 %v1776
    %v1825 = vpop.f32.mrf.mxu0
    %v1826 = vadd.f32 0.0, %v1825
    %1827 = vmatmul.f32.gmra.mxu0 %v1777
    %v1828 = vpop.f32.mrf.mxu0
    %v1829 = vadd.f32 0.0, %v1828
    %1830 = vmatmul.f32.gmra.mxu0 %v1778
    %v1831 = vpop.f32.mrf.mxu0
    %v1832 = vadd.f32 0.0, %v1831
    %1833 = vmatmul.f32.gmra.mxu0 %v1779
    %v1834 = vpop.f32.mrf.mxu0
    %v1835 = vadd.f32 0.0, %v1834
    %1836 = vdwg.mxu0
    %1837 = vmatpush.msra.mxu0 %v1771
    %1838 = vmatpush.msra.mxu0 %v1770
    %1839 = vmatpush.msra.mxu0 %v1769
    %1840 = vmatpush.msra.mxu0 %v1768
    %1841 = vmatpush.msra.mxu0 %v1767
    %1842 = vmatpush.msra.mxu0 %v1766
    %1843 = vmatpush.msra.mxu0 %v1765
    %1844 = vmatpush.msra.mxu0 %v1764
    %1845 = vmatpush.msra.mxu0 %v1763
    %1846 = vmatpush.msra.mxu0 %v1762
    %1847 = vmatpush.msra.mxu0 %v1761
    %1848 = vmatpush.msra.mxu0 %v1760
    %1849 = vmatpush.msra.mxu0 %v1759
    %1850 = vmatpush.msra.mxu0 %v1758
    %1851 = vmatpush.msra.mxu0 %v1757
    %1852 = vmatpush.msra.mxu0 %v1756
    %1853 = vmatmul.f32.gmra.mxu0 %v1748
    %v1854 = vpop.f32.mrf.mxu0
    %v1855 = vadd.f32 %v1814, %v1854
    %1856 = vmatmul.f32.gmra.mxu0 %v1749
    %v1857 = vpop.f32.mrf.mxu0
    %v1858 = vadd.f32 %v1817, %v1857
    %1859 = vmatmul.f32.gmra.mxu0 %v1750
    %v1860 = vpop.f32.mrf.mxu0
    %v1861 = vadd.f32 %v1820, %v1860
    %1862 = vmatmul.f32.gmra.mxu0 %v1751
    %v1863 = vpop.f32.mrf.mxu0
    %v1864 = vadd.f32 %v1823, %v1863
    %1865 = vmatmul.f32.gmra.mxu0 %v1752
    %v1866 = vpop.f32.mrf.mxu0
    %v1867 = vadd.f32 %v1826, %v1866
    %1868 = vmatmul.f32.gmra.mxu0 %v1753
    %v1869 = vpop.f32.mrf.mxu0
    %v1870 = vadd.f32 %v1829, %v1869
    %1871 = vmatmul.f32.gmra.mxu0 %v1754
    %v1872 = vpop.f32.mrf.mxu0
    %v1873 = vadd.f32 %v1832, %v1872
    %1874 = vmatmul.f32.gmra.mxu0 %v1755
    %v1875 = vpop.f32.mrf.mxu0
    %v1876 = vadd.f32 %v1835, %v1875
    %1877 = vdwg.mxu0
    %v1878 = vld [vmem:[%s2] sm:$0xff]
    %v1879 = vld [vmem:[%s2 + $0x8] sm:$0xff]
    %v1880 = vld [vmem:[%s2 + $0x10] sm:$0xff]
    %v1881 = vld [vmem:[%s2 + $0x18] sm:$0xff]
    %v1882 = vld [vmem:[%s2 + $0x20] sm:$0xff]
    %v1883 = vld [vmem:[%s2 + $0x28] sm:$0xff]
    %v1884 = vld [vmem:[%s2 + $0x30] sm:$0xff]
    %v1885 = vld [vmem:[%s2 + $0x38] sm:$0xff]
    %1887 = vset.pattern.permute.xlu0 0
    %1888 = vperm.xlu0 %1887, %v1878
    %v1889 = vpop.permute.xlu0 %1888
    %1892 = vset.pattern.permute.xlu0 0
    %1893 = vperm.xlu0 %1892, %v1879
    %v1894 = vpop.permute.xlu0 %1893
    %1897 = vset.pattern.permute.xlu0 0
    %1898 = vperm.xlu0 %1897, %v1880
    %v1899 = vpop.permute.xlu0 %1898
    %1902 = vset.pattern.permute.xlu0 0
    %1903 = vperm.xlu0 %1902, %v1881
    %v1904 = vpop.permute.xlu0 %1903
    %1907 = vset.pattern.permute.xlu0 0
    %1908 = vperm.xlu0 %1907, %v1882
    %v1909 = vpop.permute.xlu0 %1908
    %1912 = vset.pattern.permute.xlu0 0
    %1913 = vperm.xlu0 %1912, %v1883
    %v1914 = vpop.permute.xlu0 %1913
    %1917 = vset.pattern.permute.xlu0 0
    %1918 = vperm.xlu0 %1917, %v1884
    %v1919 = vpop.permute.xlu0 %1918
    %1922 = vset.pattern.permute.xlu0 0
    %1923 = vperm.xlu0 %1922, %v1885
    %v1924 = vpop.permute.xlu0 %1923
    %v1926 = vmul.f32 %v1855, %v1889
    %v1927 = vmul.f32 %v1858, %v1894
    %v1928 = vmul.f32 %v1861, %v1899
    %v1929 = vmul.f32 %v1864, %v1904
    %v1930 = vmul.f32 %v1867, %v1909
    %v1931 = vmul.f32 %v1870, %v1914
    %v1932 = vmul.f32 %v1873, %v1919
    %v1933 = vmul.f32 %v1876, %v1924
    %v1934 = vld [vmem:[%s13] sm:$0x1]
    %v1936 = vperm.slane %v1934, 0
    %v1938 = vadd.f32 %v1926, %v1936
    %v1939 = vadd.f32 %v1927, %v1936
    %v1940 = vadd.f32 %v1928, %v1936
    %v1941 = vadd.f32 %v1929, %v1936
    %v1942 = vadd.f32 %v1930, %v1936
    %v1943 = vadd.f32 %v1931, %v1936
    %v1944 = vadd.f32 %v1932, %v1936
    %v1945 = vadd.f32 %v1933, %v1936
    %v1946 = vxor.u32 %v1938, 2147483648
    %v1947 = vxor.u32 %v1939, 2147483648
    %v1948 = vxor.u32 %v1940, 2147483648
    %v1949 = vxor.u32 %v1941, 2147483648
    %v1950 = vxor.u32 %v1942, 2147483648
    %v1951 = vxor.u32 %v1943, 2147483648
    %v1952 = vxor.u32 %v1944, 2147483648
    %v1953 = vxor.u32 %v1945, 2147483648
    %v1954 = vmul.f32 %v1946, 1.442695
    %v1955 = vpow.pop %v1954
    %v1956 = vmul.f32 %v1947, 1.442695
    %v1957 = vpow.pop %v1956
    %v1958 = vmul.f32 %v1948, 1.442695
    %v1959 = vpow.pop %v1958
    %v1960 = vmul.f32 %v1949, 1.442695
    %v1961 = vpow.pop %v1960
    %v1962 = vmul.f32 %v1950, 1.442695
    %v1963 = vpow.pop %v1962
    %v1964 = vmul.f32 %v1951, 1.442695
    %v1965 = vpow.pop %v1964
    %v1966 = vmul.f32 %v1952, 1.442695
    %v1967 = vpow.pop %v1966
    %v1968 = vmul.f32 %v1953, 1.442695
    %v1969 = vpow.pop %v1968
    %v1970 = vadd.f32 %v1955, 1.0
    %v1971 = vadd.f32 %v1957, 1.0
    %v1972 = vadd.f32 %v1959, 1.0
    %v1973 = vadd.f32 %v1961, 1.0
    %v1974 = vadd.f32 %v1963, 1.0
    %v1975 = vadd.f32 %v1965, 1.0
    %v1976 = vadd.f32 %v1967, 1.0
    %v1977 = vadd.f32 %v1969, 1.0
    %v1978 = vrcp.pop %v1970
    %v1979 = vmul.f32 %v1970, %v1978
    %v1980 = vsub.f32 1.0, %v1979
    %v1981 = vmul.f32 %v1978, %v1980
    %v1982 = vadd.f32 %v1978, %v1981
    %vm1983 = vweird.f32 %v1970
    %vm1984 = vweird.f32 %v1978
    %vm1985 = vmor %vm1983, %vm1984
    %v1986 = vsel %vm1985, %v1978, %v1982
    %v1987 = vand.u32 2147483647, %v1970
    %vm1988 = vcmp.eq.f32.partialorder %v1987, 8.507059e+37
    %v1989 = vand.u32 %v1970, 2147483648
    %v1990 = vor.u32 1.1754944e-38, %v1989
    %v1991 = vsel %vm1988, %v1990, %v1986
    %v1992 = vmul.f32 1.0, %v1991
    %v1993 = vrcp.pop %v1971
    %v1994 = vmul.f32 %v1971, %v1993
    %v1995 = vsub.f32 1.0, %v1994
    %v1996 = vmul.f32 %v1993, %v1995
    %v1997 = vadd.f32 %v1993, %v1996
    %vm1998 = vweird.f32 %v1971
    %vm1999 = vweird.f32 %v1993
    %vm2000 = vmor %vm1998, %vm1999
    %v2001 = vsel %vm2000, %v1993, %v1997
    %v2002 = vand.u32 2147483647, %v1971
    %vm2003 = vcmp.eq.f32.partialorder %v2002, 8.507059e+37
    %v2004 = vand.u32 %v1971, 2147483648
    %v2005 = vor.u32 1.1754944e-38, %v2004
    %v2006 = vsel %vm2003, %v2005, %v2001
    %v2007 = vmul.f32 1.0, %v2006
    %v2008 = vrcp.pop %v1972
    %v2009 = vmul.f32 %v1972, %v2008
    %v2010 = vsub.f32 1.0, %v2009
    %v2011 = vmul.f32 %v2008, %v2010
    %v2012 = vadd.f32 %v2008, %v2011
    %vm2013 = vweird.f32 %v1972
    %vm2014 = vweird.f32 %v2008
    %vm2015 = vmor %vm2013, %vm2014
    %v2016 = vsel %vm2015, %v2008, %v2012
    %v2017 = vand.u32 2147483647, %v1972
    %vm2018 = vcmp.eq.f32.partialorder %v2017, 8.507059e+37
    %v2019 = vand.u32 %v1972, 2147483648
    %v2020 = vor.u32 1.1754944e-38, %v2019
    %v2021 = vsel %vm2018, %v2020, %v2016
    %v2022 = vmul.f32 1.0, %v2021
    %v2023 = vrcp.pop %v1973
    %v2024 = vmul.f32 %v1973, %v2023
    %v2025 = vsub.f32 1.0, %v2024
    %v2026 = vmul.f32 %v2023, %v2025
    %v2027 = vadd.f32 %v2023, %v2026
    %vm2028 = vweird.f32 %v1973
    %vm2029 = vweird.f32 %v2023
    %vm2030 = vmor %vm2028, %vm2029
    %v2031 = vsel %vm2030, %v2023, %v2027
    %v2032 = vand.u32 2147483647, %v1973
    %vm2033 = vcmp.eq.f32.partialorder %v2032, 8.507059e+37
    %v2034 = vand.u32 %v1973, 2147483648
    %v2035 = vor.u32 1.1754944e-38, %v2034
    %v2036 = vsel %vm2033, %v2035, %v2031
    %v2037 = vmul.f32 1.0, %v2036
    %v2038 = vrcp.pop %v1974
    %v2039 = vmul.f32 %v1974, %v2038
    %v2040 = vsub.f32 1.0, %v2039
    %v2041 = vmul.f32 %v2038, %v2040
    %v2042 = vadd.f32 %v2038, %v2041
    %vm2043 = vweird.f32 %v1974
    %vm2044 = vweird.f32 %v2038
    %vm2045 = vmor %vm2043, %vm2044
    %v2046 = vsel %vm2045, %v2038, %v2042
    %v2047 = vand.u32 2147483647, %v1974
    %vm2048 = vcmp.eq.f32.partialorder %v2047, 8.507059e+37
    %v2049 = vand.u32 %v1974, 2147483648
    %v2050 = vor.u32 1.1754944e-38, %v2049
    %v2051 = vsel %vm2048, %v2050, %v2046
    %v2052 = vmul.f32 1.0, %v2051
    %v2053 = vrcp.pop %v1975
    %v2054 = vmul.f32 %v1975, %v2053
    %v2055 = vsub.f32 1.0, %v2054
    %v2056 = vmul.f32 %v2053, %v2055
    %v2057 = vadd.f32 %v2053, %v2056
    %vm2058 = vweird.f32 %v1975
    %vm2059 = vweird.f32 %v2053
    %vm2060 = vmor %vm2058, %vm2059
    %v2061 = vsel %vm2060, %v2053, %v2057
    %v2062 = vand.u32 2147483647, %v1975
    %vm2063 = vcmp.eq.f32.partialorder %v2062, 8.507059e+37
    %v2064 = vand.u32 %v1975, 2147483648
    %v2065 = vor.u32 1.1754944e-38, %v2064
    %v2066 = vsel %vm2063, %v2065, %v2061
    %v2067 = vmul.f32 1.0, %v2066
    %v2068 = vrcp.pop %v1976
    %v2069 = vmul.f32 %v1976, %v2068
    %v2070 = vsub.f32 1.0, %v2069
    %v2071 = vmul.f32 %v2068, %v2070
    %v2072 = vadd.f32 %v2068, %v2071
    %vm2073 = vweird.f32 %v1976
    %vm2074 = vweird.f32 %v2068
    %vm2075 = vmor %vm2073, %vm2074
    %v2076 = vsel %vm2075, %v2068, %v2072
    %v2077 = vand.u32 2147483647, %v1976
    %vm2078 = vcmp.eq.f32.partialorder %v2077, 8.507059e+37
    %v2079 = vand.u32 %v1976, 2147483648
    %v2080 = vor.u32 1.1754944e-38, %v2079
    %v2081 = vsel %vm2078, %v2080, %v2076
    %v2082 = vmul.f32 1.0, %v2081
    %v2083 = vrcp.pop %v1977
    %v2084 = vmul.f32 %v1977, %v2083
    %v2085 = vsub.f32 1.0, %v2084
    %v2086 = vmul.f32 %v2083, %v2085
    %v2087 = vadd.f32 %v2083, %v2086
    %vm2088 = vweird.f32 %v1977
    %vm2089 = vweird.f32 %v2083
    %vm2090 = vmor %vm2088, %vm2089
    %v2091 = vsel %vm2090, %v2083, %v2087
    %v2092 = vand.u32 2147483647, %v1977
    %vm2093 = vcmp.eq.f32.partialorder %v2092, 8.507059e+37
    %v2094 = vand.u32 %v1977, 2147483648
    %v2095 = vor.u32 1.1754944e-38, %v2094
    %v2096 = vsel %vm2093, %v2095, %v2091
    %v2097 = vmul.f32 1.0, %v2096
    %2098 = vst [vmem:[#allocation15] sm:$0xff] %v1992
    %2099 = vst [vmem:[#allocation15 + $0x8] sm:$0xff] %v2007
    %2100 = vst [vmem:[#allocation15 + $0x10] sm:$0xff] %v2022
    %2101 = vst [vmem:[#allocation15 + $0x18] sm:$0xff] %v2037
    %2102 = vst [vmem:[#allocation15 + $0x20] sm:$0xff] %v2052
    %2103 = vst [vmem:[#allocation15 + $0x28] sm:$0xff] %v2067
    %2104 = vst [vmem:[#allocation15 + $0x30] sm:$0xff] %v2082
    %2105 = vst [vmem:[#allocation15 + $0x38] sm:$0xff] %v2097
    // Predicated region
    $region82: #{tpu_custom_call.1} parent=1 // pred_check
      _
    $region83: #{tpu_custom_call.1} parent=1 // pred_check_branch
      %2107 = sbr.rel (0) target = $region85
    $region84: #{tpu_custom_call.1} parent=1 // pred_region
      %2109 = vsyncadd [#allocation8], 0
      %s2110 = sshll.u32 [#allocation15], 4
      %s2111 = int_to_ptr.vmem [resolvable:$true] %s2110
      %s2112 = sshll.u32 %s14, 4
      %s2113 = int_to_ptr.hbm [resolvable:$true] %s2112
      %2118 = dma.vmem_to_hbm [thread:$0]  %s2111, 1024, %s2113, [#allocation8], 128, 128, 8
    $region85: #{tpu_custom_call.1} parent=1 // pred_fallthru
      _
    // Predicated region
    $region86: #{tpu_custom_call.1} parent=1 // pred_check
      _
    $region87: #{tpu_custom_call.1} parent=1 // pred_check_branch
      %2120 = sbr.rel (0) target = $region89
    $region88: #{tpu_custom_call.1} parent=1 // pred_region
      %2122 = dma.done [#allocation8], 1024
    $region89: #{tpu_custom_call.1} parent=1 // pred_fallthru
      _
    %2123 = vsyncpa [#allocation7], 1
    %2124 = vsyncpa [#allocation10], 1
    %2125 = vsyncpa [#allocation13], 1
    %2126 = vsyncpa [#allocation8], 1

// kernel: tpu_custom_call.1
$region0: #{tpu_custom_call.1}
  #allocation0 [shape = 'u32[]', space=smem, size = 0x4, offset = 0x4, fixed_abs, tag = 'smem constant byte address 0x4 - core index']
  #allocation1 [shape = 'u32[72,128]{1,0:T(1,128)}', space=vmem, size = 0x9000, scoped, tag = 'internal scratch']
  #allocation2 [shape = 'f32[64,384]{1,0:T(8,128)}', space=vmem, size = 0x18000, scoped, tag = 'scratch operand']
  #allocation3 [shape = 'f32[64,128]{1,0:T(8,128)}', space=vmem, size = 0x8000, scoped, tag = 'scratch operand']
  #allocation4 [shape = 'f32[64,128]{1,0:T(8,128)}', space=vmem, size = 0x8000, scoped, tag = 'scratch operand']
  #allocation5 [shape = 'f32[1,1]{1,0:T(1,128)S(1)}', space=vmem, size = 0x200, scoped, tag = 'scoped memory for tpu_custom_call.1']
  %s0 = inlined_call_operand.hbm [shape: f32[64,128], index: 0, kind: input, shape index: {}]
  %s1 = inlined_call_operand.vmem [shape: f32[64,1], index: 1, kind: input, shape index: {}]
  %s2 = inlined_call_operand.vmem [shape: f32[64,1], index: 2, kind: input, shape index: {}]
  %s3 = inlined_call_operand.vmem [shape: f32[128,128], index: 3, kind: input, shape index: {}]
  %s4 = inlined_call_operand.vmem [shape: f32[1,128], index: 4, kind: input, shape index: {}]
  %s5 = inlined_call_operand.hbm [shape: f32[128,384], index: 5, kind: input, shape index: {}]
  %s6 = inlined_call_operand.vmem [shape: f32[1,384], index: 6, kind: input, shape index: {}]
  %s7 = inlined_call_operand.hbm [shape: f32[128,384], index: 7, kind: input, shape index: {}]
  %s8 = inlined_call_operand.vmem [shape: f32[1,384], index: 8, kind: input, shape index: {}]
  %s9 = inlined_call_operand.vmem [shape: f32[1,128], index: 9, kind: input, shape index: {}]
  %s10 = inlined_call_operand.<no memory space> [shape: f32[1,1], index: 10, kind: input, shape index: {}]
  %s11 = inlined_call_operand.hbm [shape: f32[128,128], index: 11, kind: input, shape index: {}]
  %s12 = inlined_call_operand.hbm [shape: f32[128,128], index: 12, kind: input, shape index: {}]
  %s13 = inlined_call_operand.vmem [shape: f32[1,128], index: 13, kind: input, shape index: {}]
  %s14 = inlined_call_operand.hbm [shape: f32[64,128], index: 14, kind: output, shape index: {}]
  %s15 = sld [smem:[#allocation0]]
  $region90: #{tpu_custom_call.1} parent=0
    _
  %s17 = ssub.s32 1, %s15
  %s18 = scalar_select 0, %s17, %s15
  %v19 = vstv %s10
  %20 = vst [vmem:[#allocation5] sm:$0x1] %v19
  $region1: #{tpu_custom_call.1} parent=0
    #allocation6 [shape = 'u8[32768]{0}', space=vmem, size = 0x8000, scoped, tag = 'input window, operand 0, single buffered']
    #allocation7 [shape = 's32[1]{0}', space=sflag, size = 0x4, scoped, tag = 'scoped memory for tpu_custom_call.1']
    #allocation8 [shape = 's32[1]{0}', space=sflag, size = 0x4, scoped, tag = 'scoped memory for tpu_custom_call.1']
    #allocation9 [shape = 'u8[196608]{0}', space=vmem, size = 0x30000, scoped, tag = 'input window, operand 5, single buffered']
    #allocation10 [shape = 's32[1]{0}', space=sflag, size = 0x4, scoped, tag = 'scoped memory for tpu_custom_call.1']
    #allocation11 [shape = 'u8[196608]{0}', space=vmem, size = 0x30000, scoped, tag = 'input window, operand 7, single buffered']
    #allocation12 [shape = 'u8[65536]{0}', space=vmem, size = 0x10000, scoped, tag = 'input window, operand 11, single buffered']
    #allocation13 [shape = 's32[1]{0}', space=sflag, size = 0x4, scoped, tag = 'scoped memory for tpu_custom_call.1']
    #allocation14 [shape = 'u8[65536]{0}', space=vmem, size = 0x10000, scoped, tag = 'input window, operand 12, single buffered']
    #allocation15 [shape = 'u8[32768]{0}', space=vmem, size = 0x8000, scoped, tag = 'output window, operand 0, single buffered']
    %21 = vsyncpa [#allocation7], 0
    %22 = vsyncpa [#allocation10], 0
    %23 = vsyncpa [#allocation13], 0
    %24 = vsyncpa [#allocation8], 0
    // Predicated region
    $region2: #{tpu_custom_call.1} parent=1 // pred_check
      _
    $region3: #{tpu_custom_call.1} parent=1 // pred_check_branch
      %26 = sbr.rel (0) target = $region5
    $region4: #{tpu_custom_call.1} parent=1 // pred_region
      %28 = vsyncadd [#allocation7], 0
      %s29 = sshll.u32 %s0, 4
      %s30 = int_to_ptr.hbm [resolvable:$true] %s29
      %s31 = sshll.u32 [#allocation6], 4
      %s32 = int_to_ptr.vmem [resolvable:$true] %s31
      %37 = dma.hbm_to_vmem [thread:$0]  %s30, 1024, %s32, [#allocation7], 128, 128, 8
    $region5: #{tpu_custom_call.1} parent=1 // pred_fallthru
      _
    // Predicated region
    $region6: #{tpu_custom_call.1} parent=1 // pred_check
      _
    $region7: #{tpu_custom_call.1} parent=1 // pred_check_branch
      %39 = sbr.rel (0) target = $region9
    $region8: #{tpu_custom_call.1} parent=1 // pred_region
      _
    $region9: #{tpu_custom_call.1} parent=1 // pred_fallthru
      _
    // Predicated region
    $region10: #{tpu_custom_call.1} parent=1 // pred_check
      _
    $region11: #{tpu_custom_call.1} parent=1 // pred_check_branch
      %41 = sbr.rel (0) target = $region13
    $region12: #{tpu_custom_call.1} parent=1 // pred_region
      _
    $region13: #{tpu_custom_call.1} parent=1 // pred_fallthru
      _
    // Predicated region
    $region14: #{tpu_custom_call.1} parent=1 // pred_check
      _
    $region15: #{tpu_custom_call.1} parent=1 // pred_check_branch
      %43 = sbr.rel (0) target = $region17
    $region16: #{tpu_custom_call.1} parent=1 // pred_region
      _
    $region17: #{tpu_custom_call.1} parent=1 // pred_fallthru
      _
    // Predicated region
    $region18: #{tpu_custom_call.1} parent=1 // pred_check
      _
    $region19: #{tpu_custom_call.1} parent=1 // pred_check_branch
      %45 = sbr.rel (0) target = $region21
    $region20: #{tpu_custom_call.1} parent=1 // pred_region
      _
    $region21: #{tpu_custom_call.1} parent=1 // pred_fallthru
      _
    // Predicated region
    $region22: #{tpu_custom_call.1} parent=1 // pred_check
      _
    $region23: #{tpu_custom_call.1} parent=1 // pred_check_branch
      %47 = sbr.rel (0) target = $region25
    $region24: #{tpu_custom_call.1} parent=1 // pred_region
      %49 = vsyncadd [#allocation10], 0
      %s50 = sshll.u32 %s5, 4
      %s51 = int_to_ptr.hbm [resolvable:$true] %s50
      %s52 = sshll.u32 [#allocation9], 4
      %s53 = int_to_ptr.vmem [resolvable:$true] %s52
      %58 = dma.hbm_to_vmem [thread:$0]  %s51, 6144, %s53, [#allocation10], 384, 384, 24
    $region25: #{tpu_custom_call.1} parent=1 // pred_fallthru
      _
    // Predicated region
    $region26: #{tpu_custom_call.1} parent=1 // pred_check
      _
    $region27: #{tpu_custom_call.1} parent=1 // pred_check_branch
      %60 = sbr.rel (0) target = $region29
    $region28: #{tpu_custom_call.1} parent=1 // pred_region
      _
    $region29: #{tpu_custom_call.1} parent=1 // pred_fallthru
      _
    // Predicated region
    $region30: #{tpu_custom_call.1} parent=1 // pred_check
      _
    $region31: #{tpu_custom_call.1} parent=1 // pred_check_branch
      %62 = sbr.rel (0) target = $region33
    $region32: #{tpu_custom_call.1} parent=1 // pred_region
      %64 = vsyncadd [#allocation10], 0
      %s65 = sshll.u32 %s7, 4
      %s66 = int_to_ptr.hbm [resolvable:$true] %s65
      %s67 = sshll.u32 [#allocation11], 4
      %s68 = int_to_ptr.vmem [resolvable:$true] %s67
      %73 = dma.hbm_to_vmem [thread:$0]  %s66, 6144, %s68, [#allocation10], 384, 384, 24
    $region33: #{tpu_custom_call.1} parent=1 // pred_fallthru
      _
    // Predicated region
    $region34: #{tpu_custom_call.1} parent=1 // pred_check
      _
    $region35: #{tpu_custom_call.1} parent=1 // pred_check_branch
      %75 = sbr.rel (0) target = $region37
    $region36: #{tpu_custom_call.1} parent=1 // pred_region
      _
    $region37: #{tpu_custom_call.1} parent=1 // pred_fallthru
      _
    // Predicated region
    $region38: #{tpu_custom_call.1} parent=1 // pred_check
      _
    $region39: #{tpu_custom_call.1} parent=1 // pred_check_branch
      %77 = sbr.rel (0) target = $region41
    $region40: #{tpu_custom_call.1} parent=1 // pred_region
      _
    $region41: #{tpu_custom_call.1} parent=1 // pred_fallthru
      _
    // Predicated region
    $region42: #{tpu_custom_call.1} parent=1 // pred_check
      _
    $region43: #{tpu_custom_call.1} parent=1 // pred_check_branch
      %79 = sbr.rel (0) target = $region45
    $region44: #{tpu_custom_call.1} parent=1 // pred_region
      _
    $region45: #{tpu_custom_call.1} parent=1 // pred_fallthru
      _
    // Predicated region
    $region46: #{tpu_custom_call.1} parent=1 // pred_check
      _
    $region47: #{tpu_custom_call.1} parent=1 // pred_check_branch
      %81 = sbr.rel (0) target = $region49
    $region48: #{tpu_custom_call.1} parent=1 // pred_region
      %83 = vsyncadd [#allocation13], 0
      %s84 = sshll.u32 %s11, 4
      %s85 = int_to_ptr.hbm [resolvable:$true] %s84
      %s86 = sshll.u32 [#allocation12], 4
      %s87 = int_to_ptr.vmem [resolvable:$true] %s86
      %92 = dma.hbm_to_vmem [thread:$0]  %s85, 2048, %s87, [#allocation13], 128, 128, 8
    $region49: #{tpu_custom_call.1} parent=1 // pred_fallthru
      _
    // Predicated region
    $region50: #{tpu_custom_call.1} parent=1 // pred_check
      _
    $region51: #{tpu_custom_call.1} parent=1 // pred_check_branch
      %94 = sbr.rel (0) target = $region53
    $region52: #{tpu_custom_call.1} parent=1 // pred_region
      %96 = vsyncadd [#allocation13], 0
      %s97 = sshll.u32 %s12, 4
      %s98 = int_to_ptr.hbm [resolvable:$true] %s97
      %s99 = sshll.u32 [#allocation14], 4
      %s100 = int_to_ptr.vmem [resolvable:$true] %s99
      %105 = dma.hbm_to_vmem [thread:$0]  %s98, 2048, %s100, [#allocation13], 128, 128, 8
    $region53: #{tpu_custom_call.1} parent=1 // pred_fallthru
      _
    // Predicated region
    $region54: #{tpu_custom_call.1} parent=1 // pred_check
      _
    $region55: #{tpu_custom_call.1} parent=1 // pred_check_branch
      %107 = sbr.rel (0) target = $region57
    $region56: #{tpu_custom_call.1} parent=1 // pred_region
      _
    $region57: #{tpu_custom_call.1} parent=1 // pred_fallthru
      _
    // Predicated region
    $region58: #{tpu_custom_call.1} parent=1 // pred_check
      _
    $region59: #{tpu_custom_call.1} parent=1 // pred_check_branch
      %109 = sbr.rel (0) target = $region61
    $region60: #{tpu_custom_call.1} parent=1 // pred_region
      %111 = dma.done [#allocation7], 1024
    $region61: #{tpu_custom_call.1} parent=1 // pred_fallthru
      _
    // Predicated region
    $region62: #{tpu_custom_call.1} parent=1 // pred_check
      _
    $region63: #{tpu_custom_call.1} parent=1 // pred_check_branch
      %113 = sbr.rel (0) target = $region65
    $region64: #{tpu_custom_call.1} parent=1 // pred_region
      %115 = dma.done [#allocation10], 6144
    $region65: #{tpu_custom_call.1} parent=1 // pred_fallthru
      _
    // Predicated region
    $region66: #{tpu_custom_call.1} parent=1 // pred_check
      _
    $region67: #{tpu_custom_call.1} parent=1 // pred_check_branch
      %117 = sbr.rel (0) target = $region69
    $region68: #{tpu_custom_call.1} parent=1 // pred_region
      %119 = dma.done [#allocation10], 6144
    $region69: #{tpu_custom_call.1} parent=1 // pred_fallthru
      _
    // Predicated region
    $region70: #{tpu_custom_call.1} parent=1 // pred_check
      _
    $region71: #{tpu_custom_call.1} parent=1 // pred_check_branch
      %121 = sbr.rel (0) target = $region73
    $region72: #{tpu_custom_call.1} parent=1 // pred_region
      %123 = dma.done [#allocation13], 2048
    $region73: #{tpu_custom_call.1} parent=1 // pred_fallthru
      _
    // Predicated region
    $region74: #{tpu_custom_call.1} parent=1 // pred_check
      _
    $region75: #{tpu_custom_call.1} parent=1 // pred_check_branch
      %125 = sbr.rel (0) target = $region77
    $region76: #{tpu_custom_call.1} parent=1 // pred_region
      %127 = dma.done [#allocation13], 2048
    $region77: #{tpu_custom_call.1} parent=1 // pred_fallthru
      _
    %p128 = scmp.eq.s32.totalorder 0, 0
    // Predicated region
    $region78: #{tpu_custom_call.1} parent=1 // pred_check
      %p129 = pneg %p128
    $region79: #{tpu_custom_call.1} parent=1 // pred_check_branch
      %131 = sbr.rel (%p129) target = $region81
    $region80: #{tpu_custom_call.1} parent=1 // pred_region
      %v132 = vld [vmem:[#allocation6] sm:$0xff]
      %v133 = vld [vmem:[#allocation6 + $0x8] sm:$0xff]
      %v134 = vld [vmem:[#allocation6 + $0x10] sm:$0xff]
      %v135 = vld [vmem:[#allocation6 + $0x18] sm:$0xff]
      %v136 = vld [vmem:[#allocation6 + $0x20] sm:$0xff]
      %v137 = vld [vmem:[#allocation6 + $0x28] sm:$0xff]
      %v138 = vld [vmem:[#allocation6 + $0x30] sm:$0xff]
      %v139 = vld [vmem:[#allocation6 + $0x38] sm:$0xff]
      %v140 = vld [vmem:[%s3] sm:$0xff]
      %v141 = vld [vmem:[%s3 + $0x8] sm:$0xff]
      %v142 = vld [vmem:[%s3 + $0x10] sm:$0xff]
      %v143 = vld [vmem:[%s3 + $0x18] sm:$0xff]
      %v144 = vld [vmem:[%s3 + $0x20] sm:$0xff]
      %v145 = vld [vmem:[%s3 + $0x28] sm:$0xff]
      %v146 = vld [vmem:[%s3 + $0x30] sm:$0xff]
      %v147 = vld [vmem:[%s3 + $0x38] sm:$0xff]
      %v148 = vld [vmem:[%s3 + $0x40] sm:$0xff]
      %v149 = vld [vmem:[%s3 + $0x48] sm:$0xff]
      %v150 = vld [vmem:[%s3 + $0x50] sm:$0xff]
      %v151 = vld [vmem:[%s3 + $0x58] sm:$0xff]
      %v152 = vld [vmem:[%s3 + $0x60] sm:$0xff]
      %v153 = vld [vmem:[%s3 + $0x68] sm:$0xff]
      %v154 = vld [vmem:[%s3 + $0x70] sm:$0xff]
      %v155 = vld [vmem:[%s3 + $0x78] sm:$0xff]
      %v156 = vld [vmem:[%s4] sm:$0x1]
      %v158 = vperm.slane %v156, 0
      %160 = vmatpush.msra.mxu0 %v155
      %161 = vmatpush.msra.mxu0 %v154
      %162 = vmatpush.msra.mxu0 %v153
      %163 = vmatpush.msra.mxu0 %v152
      %164 = vmatpush.msra.mxu0 %v151
      %165 = vmatpush.msra.mxu0 %v150
      %166 = vmatpush.msra.mxu0 %v149
      %167 = vmatpush.msra.mxu0 %v148
      %168 = vmatpush.msra.mxu0 %v147
      %169 = vmatpush.msra.mxu0 %v146
      %170 = vmatpush.msra.mxu0 %v145
      %171 = vmatpush.msra.mxu0 %v144
      %172 = vmatpush.msra.mxu0 %v143
      %173 = vmatpush.msra.mxu0 %v142
      %174 = vmatpush.msra.mxu0 %v141
      %175 = vmatpush.msra.mxu0 %v140
      %176 = vmatmul.f32.gmra.mxu0 %v132
      %v177 = vpop.f32.mrf.mxu0
      %v178 = vadd.f32 %v158, %v177
      %179 = vmatmul.f32.gmra.mxu0 %v133
      %v180 = vpop.f32.mrf.mxu0
      %v181 = vadd.f32 %v158, %v180
      %182 = vmatmul.f32.gmra.mxu0 %v134
      %v183 = vpop.f32.mrf.mxu0
      %v184 = vadd.f32 %v158, %v183
      %185 = vmatmul.f32.gmra.mxu0 %v135
      %v186 = vpop.f32.mrf.mxu0
      %v187 = vadd.f32 %v158, %v186
      %188 = vmatmul.f32.gmra.mxu0 %v136
      %v189 = vpop.f32.mrf.mxu0
      %v190 = vadd.f32 %v158, %v189
      %191 = vmatmul.f32.gmra.mxu0 %v137
      %v192 = vpop.f32.mrf.mxu0
      %v193 = vadd.f32 %v158, %v192
      %194 = vmatmul.f32.gmra.mxu0 %v138
      %v195 = vpop.f32.mrf.mxu0
      %v196 = vadd.f32 %v158, %v195
      %197 = vmatmul.f32.gmra.mxu0 %v139
      %v198 = vpop.f32.mrf.mxu0
      %v199 = vadd.f32 %v158, %v198
      %200 = vdwg.mxu0
      %v201 = vmax.f32 %v178, 0.0
      %v202 = vmax.f32 %v181, 0.0
      %v203 = vmax.f32 %v184, 0.0
      %v204 = vmax.f32 %v187, 0.0
      %v205 = vmax.f32 %v190, 0.0
      %v206 = vmax.f32 %v193, 0.0
      %v207 = vmax.f32 %v196, 0.0
      %v208 = vmax.f32 %v199, 0.0
      %v209 = vld [vmem:[#allocation9] sm:$0xff]
      %v210 = vld [vmem:[#allocation9 + $0x8] sm:$0xff]
      %v211 = vld [vmem:[#allocation9 + $0x10] sm:$0xff]
      %v212 = vld [vmem:[#allocation9 + $0x18] sm:$0xff]
      %v213 = vld [vmem:[#allocation9 + $0x20] sm:$0xff]
      %v214 = vld [vmem:[#allocation9 + $0x28] sm:$0xff]
      %v215 = vld [vmem:[#allocation9 + $0x30] sm:$0xff]
      %v216 = vld [vmem:[#allocation9 + $0x38] sm:$0xff]
      %v217 = vld [vmem:[#allocation9 + $0x40] sm:$0xff]
      %v218 = vld [vmem:[#allocation9 + $0x48] sm:$0xff]
      %v219 = vld [vmem:[#allocation9 + $0x50] sm:$0xff]
      %v220 = vld [vmem:[#allocation9 + $0x58] sm:$0xff]
      %v221 = vld [vmem:[#allocation9 + $0x60] sm:$0xff]
      %v222 = vld [vmem:[#allocation9 + $0x68] sm:$0xff]
      %v223 = vld [vmem:[#allocation9 + $0x70] sm:$0xff]
      %v224 = vld [vmem:[#allocation9 + $0x78] sm:$0xff]
      %v225 = vld [vmem:[#allocation9 + $0x80] sm:$0xff]
      %v226 = vld [vmem:[#allocation9 + $0x88] sm:$0xff]
      %v227 = vld [vmem:[#allocation9 + $0x90] sm:$0xff]
      %v228 = vld [vmem:[#allocation9 + $0x98] sm:$0xff]
      %v229 = vld [vmem:[#allocation9 + $0xa0] sm:$0xff]
      %v230 = vld [vmem:[#allocation9 + $0xa8] sm:$0xff]
      %v231 = vld [vmem:[#allocation9 + $0xb0] sm:$0xff]
      %v232 = vld [vmem:[#allocation9 + $0xb8] sm:$0xff]
      %v233 = vld [vmem:[#allocation9 + $0xc0] sm:$0xff]
      %v234 = vld [vmem:[#allocation9 + $0xc8] sm:$0xff]
      %v235 = vld [vmem:[#allocation9 + $0xd0] sm:$0xff]
      %v236 = vld [vmem:[#allocation9 + $0xd8] sm:$0xff]
      %v237 = vld [vmem:[#allocation9 + $0xe0] sm:$0xff]
      %v238 = vld [vmem:[#allocation9 + $0xe8] sm:$0xff]
      %v239 = vld [vmem:[#allocation9 + $0xf0] sm:$0xff]
      %v240 = vld [vmem:[#allocation9 + $0xf8] sm:$0xff]
      %v241 = vld [vmem:[#allocation9 + $0x100] sm:$0xff]
      %v242 = vld [vmem:[#allocation9 + $0x108] sm:$0xff]
      %v243 = vld [vmem:[#allocation9 + $0x110] sm:$0xff]
      %v244 = vld [vmem:[#allocation9 + $0x118] sm:$0xff]
      %v245 = vld [vmem:[#allocation9 + $0x120] sm:$0xff]
      %v246 = vld [vmem:[#allocation9 + $0x128] sm:$0xff]
      %v247 = vld [vmem:[#allocation9 + $0x130] sm:$0xff]
      %v248 = vld [vmem:[#allocation9 + $0x138] sm:$0xff]
      %v249 = vld [vmem:[#allocation9 + $0x140] sm:$0xff]
      %v250 = vld [vmem:[#allocation9 + $0x148] sm:$0xff]
      %v251 = vld [vmem:[#allocation9 + $0x150] sm:$0xff]
      %v252 = vld [vmem:[#allocation9 + $0x158] sm:$0xff]
      %v253 = vld [vmem:[#allocation9 + $0x160] sm:$0xff]
      %v254 = vld [vmem:[#allocation9 + $0x168] sm:$0xff]
      %v255 = vld [vmem:[#allocation9 + $0x170] sm:$0xff]
      %v256 = vld [vmem:[#allocation9 + $0x178] sm:$0xff]
      %v257 = vld [vmem:[%s6] sm:$0x7]
      %v259 = vperm.slane %v257, 0
      %v260 = vperm.slane %v257, 1
      %v261 = vperm.slane %v257, 2
      %265 = vmatpush.msra.mxu0 %v254
      %266 = vmatpush.msra.mxu0 %v251
      %267 = vmatpush.msra.mxu0 %v248
      %268 = vmatpush.msra.mxu0 %v245
      %269 = vmatpush.msra.mxu0 %v242
      %270 = vmatpush.msra.mxu0 %v239
      %271 = vmatpush.msra.mxu0 %v236
      %272 = vmatpush.msra.mxu0 %v233
      %273 = vmatpush.msra.mxu0 %v230
      %274 = vmatpush.msra.mxu0 %v227
      %275 = vmatpush.msra.mxu0 %v224
      %276 = vmatpush.msra.mxu0 %v221
      %277 = vmatpush.msra.mxu0 %v218
      %278 = vmatpush.msra.mxu0 %v215
      %279 = vmatpush.msra.mxu0 %v212
      %280 = vmatpush.msra.mxu0 %v209
      %281 = vmatmul.f32.gmra.mxu0 %v201
      %v282 = vpop.f32.mrf.mxu0
      %v283 = vadd.f32 %v259, %v282
      %284 = vmatmul.f32.gmra.mxu0 %v202
      %v285 = vpop.f32.mrf.mxu0
      %v286 = vadd.f32 %v259, %v285
      %287 = vmatmul.f32.gmra.mxu0 %v203
      %v288 = vpop.f32.mrf.mxu0
      %v289 = vadd.f32 %v259, %v288
      %290 = vmatmul.f32.gmra.mxu0 %v204
      %v291 = vpop.f32.mrf.mxu0
      %v292 = vadd.f32 %v259, %v291
      %293 = vmatmul.f32.gmra.mxu0 %v205
      %v294 = vpop.f32.mrf.mxu0
      %v295 = vadd.f32 %v259, %v294
      %296 = vmatmul.f32.gmra.mxu0 %v206
      %v297 = vpop.f32.mrf.mxu0
      %v298 = vadd.f32 %v259, %v297
      %299 = vmatmul.f32.gmra.mxu0 %v207
      %v300 = vpop.f32.mrf.mxu0
      %v301 = vadd.f32 %v259, %v300
      %302 = vmatmul.f32.gmra.mxu0 %v208
      %v303 = vpop.f32.mrf.mxu0
      %v304 = vadd.f32 %v259, %v303
      %305 = vdwg.mxu0
      %306 = vmatpush.msra.mxu0 %v255
      %307 = vmatpush.msra.mxu0 %v252
      %308 = vmatpush.msra.mxu0 %v249
      %309 = vmatpush.msra.mxu0 %v246
      %310 = vmatpush.msra.mxu0 %v243
      %311 = vmatpush.msra.mxu0 %v240
      %312 = vmatpush.msra.mxu0 %v237
      %313 = vmatpush.msra.mxu0 %v234
      %314 = vmatpush.msra.mxu0 %v231
      %315 = vmatpush.msra.mxu0 %v228
      %316 = vmatpush.msra.mxu0 %v225
      %317 = vmatpush.msra.mxu0 %v222
      %318 = vmatpush.msra.mxu0 %v219
      %319 = vmatpush.msra.mxu0 %v216
      %320 = vmatpush.msra.mxu0 %v213
      %321 = vmatpush.msra.mxu0 %v210
      %322 = vmatmul.f32.gmra.mxu0 %v201
      %v323 = vpop.f32.mrf.mxu0
      %v324 = vadd.f32 %v260, %v323
      %325 = vmatmul.f32.gmra.mxu0 %v202
      %v326 = vpop.f32.mrf.mxu0
      %v327 = vadd.f32 %v260, %v326
      %328 = vmatmul.f32.gmra.mxu0 %v203
      %v329 = vpop.f32.mrf.mxu0
      %v330 = vadd.f32 %v260, %v329
      %331 = vmatmul.f32.gmra.mxu0 %v204
      %v332 = vpop.f32.mrf.mxu0
      %v333 = vadd.f32 %v260, %v332
      %334 = vmatmul.f32.gmra.mxu0 %v205
      %v335 = vpop.f32.mrf.mxu0
      %v336 = vadd.f32 %v260, %v335
      %337 = vmatmul.f32.gmra.mxu0 %v206
      %v338 = vpop.f32.mrf.mxu0
      %v339 = vadd.f32 %v260, %v338
      %340 = vmatmul.f32.gmra.mxu0 %v207
      %v341 = vpop.f32.mrf.mxu0
      %v342 = vadd.f32 %v260, %v341
      %343 = vmatmul.f32.gmra.mxu0 %v208
      %v344 = vpop.f32.mrf.mxu0
      %v345 = vadd.f32 %v260, %v344
      %346 = vdwg.mxu0
      %347 = vmatpush.msra.mxu0 %v256
      %348 = vmatpush.msra.mxu0 %v253
      %349 = vmatpush.msra.mxu0 %v250
      %350 = vmatpush.msra.mxu0 %v247
      %351 = vmatpush.msra.mxu0 %v244
      %352 = vmatpush.msra.mxu0 %v241
      %353 = vmatpush.msra.mxu0 %v238
      %354 = vmatpush.msra.mxu0 %v235
      %355 = vmatpush.msra.mxu0 %v232
      %356 = vmatpush.msra.mxu0 %v229
      %357 = vmatpush.msra.mxu0 %v226
      %358 = vmatpush.msra.mxu0 %v223
      %359 = vmatpush.msra.mxu0 %v220
      %360 = vmatpush.msra.mxu0 %v217
      %361 = vmatpush.msra.mxu0 %v214
      %362 = vmatpush.msra.mxu0 %v211
      %363 = vmatmul.f32.gmra.mxu0 %v201
      %v364 = vpop.f32.mrf.mxu0
      %v365 = vadd.f32 %v261, %v364
      %366 = vmatmul.f32.gmra.mxu0 %v202
      %v367 = vpop.f32.mrf.mxu0
      %v368 = vadd.f32 %v261, %v367
      %369 = vmatmul.f32.gmra.mxu0 %v203
      %v370 = vpop.f32.mrf.mxu0
      %v371 = vadd.f32 %v261, %v370
      %372 = vmatmul.f32.gmra.mxu0 %v204
      %v373 = vpop.f32.mrf.mxu0
      %v374 = vadd.f32 %v261, %v373
      %375 = vmatmul.f32.gmra.mxu0 %v205
      %v376 = vpop.f32.mrf.mxu0
      %v377 = vadd.f32 %v261, %v376
      %378 = vmatmul.f32.gmra.mxu0 %v206
      %v379 = vpop.f32.mrf.mxu0
      %v380 = vadd.f32 %v261, %v379
      %381 = vmatmul.f32.gmra.mxu0 %v207
      %v382 = vpop.f32.mrf.mxu0
      %v383 = vadd.f32 %v261, %v382
      %384 = vmatmul.f32.gmra.mxu0 %v208
      %v385 = vpop.f32.mrf.mxu0
      %v386 = vadd.f32 %v261, %v385
      %387 = vdwg.mxu0
      %388 = vst [vmem:[#allocation2] sm:$0xff] %v283
      %389 = vst [vmem:[#allocation2 + $0x8] sm:$0xff] %v324
      %390 = vst [vmem:[#allocation2 + $0x10] sm:$0xff] %v365
      %391 = vst [vmem:[#allocation2 + $0x18] sm:$0xff] %v286
      %392 = vst [vmem:[#allocation2 + $0x20] sm:$0xff] %v327
      %393 = vst [vmem:[#allocation2 + $0x28] sm:$0xff] %v368
      %394 = vst [vmem:[#allocation2 + $0x30] sm:$0xff] %v289
      %395 = vst [vmem:[#allocation2 + $0x38] sm:$0xff] %v330
      %396 = vst [vmem:[#allocation2 + $0x40] sm:$0xff] %v371
      %397 = vst [vmem:[#allocation2 + $0x48] sm:$0xff] %v292
      %398 = vst [vmem:[#allocation2 + $0x50] sm:$0xff] %v333
      %399 = vst [vmem:[#allocation2 + $0x58] sm:$0xff] %v374
      %400 = vst [vmem:[#allocation2 + $0x60] sm:$0xff] %v295
      %401 = vst [vmem:[#allocation2 + $0x68] sm:$0xff] %v336
      %402 = vst [vmem:[#allocation2 + $0x70] sm:$0xff] %v377
      %403 = vst [vmem:[#allocation2 + $0x78] sm:$0xff] %v298
      %404 = vst [vmem:[#allocation2 + $0x80] sm:$0xff] %v339
      %405 = vst [vmem:[#allocation2 + $0x88] sm:$0xff] %v380
      %406 = vst [vmem:[#allocation2 + $0x90] sm:$0xff] %v301
      %407 = vst [vmem:[#allocation2 + $0x98] sm:$0xff] %v342
      %408 = vst [vmem:[#allocation2 + $0xa0] sm:$0xff] %v383
      %409 = vst [vmem:[#allocation2 + $0xa8] sm:$0xff] %v304
      %410 = vst [vmem:[#allocation2 + $0xb0] sm:$0xff] %v345
      %411 = vst [vmem:[#allocation2 + $0xb8] sm:$0xff] %v386
      %v412 = vld [vmem:[#allocation11] sm:$0xff]
      %v413 = vld [vmem:[#allocation11 + $0x8] sm:$0xff]
      %v414 = vld [vmem:[#allocation11 + $0x10] sm:$0xff]
      %v415 = vld [vmem:[#allocation11 + $0x18] sm:$0xff]
      %v416 = vld [vmem:[#allocation11 + $0x20] sm:$0xff]
      %v417 = vld [vmem:[#allocation11 + $0x28] sm:$0xff]
      %v418 = vld [vmem:[#allocation11 + $0x30] sm:$0xff]
      %v419 = vld [vmem:[#allocation11 + $0x38] sm:$0xff]
      %v420 = vld [vmem:[#allocation11 + $0x40] sm:$0xff]
      %v421 = vld [vmem:[#allocation11 + $0x48] sm:$0xff]
      %v422 = vld [vmem:[#allocation11 + $0x50] sm:$0xff]
      %v423 = vld [vmem:[#allocation11 + $0x58] sm:$0xff]
      %v424 = vld [vmem:[#allocation11 + $0x60] sm:$0xff]
      %v425 = vld [vmem:[#allocation11 + $0x68] sm:$0xff]
      %v426 = vld [vmem:[#allocation11 + $0x70] sm:$0xff]
      %v427 = vld [vmem:[#allocation11 + $0x78] sm:$0xff]
      %v428 = vld [vmem:[#allocation11 + $0x80] sm:$0xff]
      %v429 = vld [vmem:[#allocation11 + $0x88] sm:$0xff]
      %v430 = vld [vmem:[#allocation11 + $0x90] sm:$0xff]
      %v431 = vld [vmem:[#allocation11 + $0x98] sm:$0xff]
      %v432 = vld [vmem:[#allocation11 + $0xa0] sm:$0xff]
      %v433 = vld [vmem:[#allocation11 + $0xa8] sm:$0xff]
      %v434 = vld [vmem:[#allocation11 + $0xb0] sm:$0xff]
      %v435 = vld [vmem:[#allocation11 + $0xb8] sm:$0xff]
      %v436 = vld [vmem:[#allocation11 + $0xc0] sm:$0xff]
      %v437 = vld [vmem:[#allocation11 + $0xc8] sm:$0xff]
      %v438 = vld [vmem:[#allocation11 + $0xd0] sm:$0xff]
      %v439 = vld [vmem:[#allocation11 + $0xd8] sm:$0xff]
      %v440 = vld [vmem:[#allocation11 + $0xe0] sm:$0xff]
      %v441 = vld [vmem:[#allocation11 + $0xe8] sm:$0xff]
      %v442 = vld [vmem:[#allocation11 + $0xf0] sm:$0xff]
      %v443 = vld [vmem:[#allocation11 + $0xf8] sm:$0xff]
      %v444 = vld [vmem:[#allocation11 + $0x100] sm:$0xff]
      %v445 = vld [vmem:[#allocation11 + $0x108] sm:$0xff]
      %v446 = vld [vmem:[#allocation11 + $0x110] sm:$0xff]
      %v447 = vld [vmem:[#allocation11 + $0x118] sm:$0xff]
      %v448 = vld [vmem:[#allocation11 + $0x120] sm:$0xff]
      %v449 = vld [vmem:[#allocation11 + $0x128] sm:$0xff]
      %v450 = vld [vmem:[#allocation11 + $0x130] sm:$0xff]
      %v451 = vld [vmem:[#allocation11 + $0x138] sm:$0xff]
      %v452 = vld [vmem:[#allocation11 + $0x140] sm:$0xff]
      %v453 = vld [vmem:[#allocation11 + $0x148] sm:$0xff]
      %v454 = vld [vmem:[#allocation11 + $0x150] sm:$0xff]
      %v455 = vld [vmem:[#allocation11 + $0x158] sm:$0xff]
      %v456 = vld [vmem:[#allocation11 + $0x160] sm:$0xff]
      %v457 = vld [vmem:[#allocation11 + $0x168] sm:$0xff]
      %v458 = vld [vmem:[#allocation11 + $0x170] sm:$0xff]
      %v459 = vld [vmem:[#allocation11 + $0x178] sm:$0xff]
      %v460 = vld [vmem:[%s8] sm:$0x7]
      %v461 = vld [vmem:[%s9] sm:$0x1]
      %v462 = vld [vmem:[#allocation5] sm:$0x1]
      %v464 = vperm.slane %v460, 0
      %v465 = vperm.slane %v460, 1
      %v466 = vperm.slane %v460, 2
      %470 = vmatpush.msra.mxu0 %v457
      %471 = vmatpush.msra.mxu0 %v454
      %472 = vmatpush.msra.mxu0 %v451
      %473 = vmatpush.msra.mxu0 %v448
      %474 = vmatpush.msra.mxu0 %v445
      %475 = vmatpush.msra.mxu0 %v442
      %476 = vmatpush.msra.mxu0 %v439
      %477 = vmatpush.msra.mxu0 %v436
      %478 = vmatpush.msra.mxu0 %v433
      %479 = vmatpush.msra.mxu0 %v430
      %480 = vmatpush.msra.mxu0 %v427
      %481 = vmatpush.msra.mxu0 %v424
      %482 = vmatpush.msra.mxu0 %v421
      %483 = vmatpush.msra.mxu0 %v418
      %484 = vmatpush.msra.mxu0 %v415
      %485 = vmatpush.msra.mxu0 %v412
      %486 = vmatmul.f32.gmra.mxu0 0.0
      %v487 = vpop.f32.mrf.mxu0
      %v488 = vadd.f32 %v464, %v487
      %489 = vdwg.mxu0
      %490 = vmatpush.msra.mxu0 %v458
      %491 = vmatpush.msra.mxu0 %v455
      %492 = vmatpush.msra.mxu0 %v452
      %493 = vmatpush.msra.mxu0 %v449
      %494 = vmatpush.msra.mxu0 %v446
      %495 = vmatpush.msra.mxu0 %v443
      %496 = vmatpush.msra.mxu0 %v440
      %497 = vmatpush.msra.mxu0 %v437
      %498 = vmatpush.msra.mxu0 %v434
      %499 = vmatpush.msra.mxu0 %v431
      %500 = vmatpush.msra.mxu0 %v428
      %501 = vmatpush.msra.mxu0 %v425
      %502 = vmatpush.msra.mxu0 %v422
      %503 = vmatpush.msra.mxu0 %v419
      %504 = vmatpush.msra.mxu0 %v416
      %505 = vmatpush.msra.mxu0 %v413
      %506 = vmatmul.f32.gmra.mxu0 0.0
      %v507 = vpop.f32.mrf.mxu0
      %v508 = vadd.f32 %v465, %v507
      %509 = vdwg.mxu0
      %510 = vmatpush.msra.mxu0 %v459
      %511 = vmatpush.msra.mxu0 %v456
      %512 = vmatpush.msra.mxu0 %v453
      %513 = vmatpush.msra.mxu0 %v450
      %514 = vmatpush.msra.mxu0 %v447
      %515 = vmatpush.msra.mxu0 %v444
      %516 = vmatpush.msra.mxu0 %v441
      %517 = vmatpush.msra.mxu0 %v438
      %518 = vmatpush.msra.mxu0 %v435
      %519 = vmatpush.msra.mxu0 %v432
      %520 = vmatpush.msra.mxu0 %v429
      %521 = vmatpush.msra.mxu0 %v426
      %522 = vmatpush.msra.mxu0 %v423
      %523 = vmatpush.msra.mxu0 %v420
      %524 = vmatpush.msra.mxu0 %v417
      %525 = vmatpush.msra.mxu0 %v414
      %526 = vmatmul.f32.gmra.mxu0 0.0
      %v527 = vpop.f32.mrf.mxu0
      %v528 = vadd.f32 %v466, %v527
      %529 = vdwg.mxu0
      %v530 = vld [vmem:[#allocation2] sm:$0xff]
      %v531 = vld [vmem:[#allocation2 + $0x8] sm:$0xff]
      %v532 = vld [vmem:[#allocation2 + $0x10] sm:$0xff]
      %v533 = vadd.f32 %v530, %v488
      %v534 = vxor.u32 %v533, 2147483648
      %v535 = vmul.f32 %v534, 1.442695
      %v536 = vpow.pop %v535
      %v537 = vadd.f32 %v536, 1.0
      %v538 = vrcp.pop %v537
      %v539 = vmul.f32 %v537, %v538
      %v540 = vsub.f32 1.0, %v539
      %v541 = vmul.f32 %v538, %v540
      %v542 = vadd.f32 %v538, %v541
      %vm543 = vweird.f32 %v537
      %vm544 = vweird.f32 %v538
      %vm545 = vmor %vm543, %vm544
      %v546 = vsel %vm545, %v538, %v542
      %v547 = vand.u32 2147483647, %v537
      %vm548 = vcmp.eq.f32.partialorder %v547, 8.507059e+37
      %v549 = vand.u32 %v537, 2147483648
      %v550 = vor.u32 1.1754944e-38, %v549
      %v551 = vsel %vm548, %v550, %v546
      %v552 = vmul.f32 1.0, %v551
      %v553 = vadd.f32 %v531, %v508
      %v554 = vxor.u32 %v553, 2147483648
      %v555 = vmul.f32 %v554, 1.442695
      %v556 = vpow.pop %v555
      %v557 = vadd.f32 %v556, 1.0
      %v558 = vrcp.pop %v557
      %v559 = vmul.f32 %v557, %v558
      %v560 = vsub.f32 1.0, %v559
      %v561 = vmul.f32 %v558, %v560
      %v562 = vadd.f32 %v558, %v561
      %vm563 = vweird.f32 %v557
      %vm564 = vweird.f32 %v558
      %vm565 = vmor %vm563, %vm564
      %v566 = vsel %vm565, %v558, %v562
      %v567 = vand.u32 2147483647, %v557
      %vm568 = vcmp.eq.f32.partialorder %v567, 8.507059e+37
      %v569 = vand.u32 %v557, 2147483648
      %v570 = vor.u32 1.1754944e-38, %v569
      %v571 = vsel %vm568, %v570, %v566
      %v572 = vmul.f32 1.0, %v571
      %v573 = vmul.f32 %v552, %v528
      %v574 = vadd.f32 %v532, %v573
      %v575 = vtanh.pop %v574
      %v576 = vsub.f32 1.0, %v572
      %v577 = vmul.f32 %v576, %v575
      %v578 = vmul.f32 %v572, 0.0
      %v579 = vadd.f32 %v577, %v578
      %580 = vst [vmem:[#allocation3] sm:$0xff] %v579
      %v582 = vperm.slane %v461, 0
      %v584 = vmul.f32 %v579, %v582
      %585 = vadd.xlane.f32.xlu0 %v584
      %v586 = vpop.xlane.xlu0 %585
      %v588 = vperm.slane %v462, 0
      %v590 = vadd.f32 %v586, %v588
      %v591 = vld [vmem:[%s1] sm:$0xff]
      %v592 = vadd.f32 %v590, %v591
      %v593 = vmax.f32 %v592, -1e+30
      %v594 = vsub.f32 -1e+30, %v593
      %v595 = vmul.f32 %v594, 1.442695
      %v596 = vpow.pop %v595
      %v597 = vsub.f32 %v592, %v593
      %v598 = vmul.f32 %v597, 1.442695
      %v599 = vpow.pop %v598
      %v600 = vmul.f32 %v596, 0.0
      %v601 = vadd.f32 %v600, %v599
      %603 = vset.pattern.permute.xlu0 0
      %604 = vperm.xlu0 %603, %v596
      %v605 = vpop.permute.xlu0 %604
      %v607 = vmul.f32 %v605, 0.0
      %609 = vset.pattern.permute.xlu0 0
      %610 = vperm.xlu0 %609, %v599
      %v611 = vpop.permute.xlu0 %610
      %v613 = vmul.f32 %v611, %v579
      %v614 = vadd.f32 %v607, %v613
      %v615 = vrcp.pop %v601
      %617 = vset.pattern.permute.xlu0 0
      %618 = vperm.xlu0 %617, %v615
      %v619 = vpop.permute.xlu0 %618
      %v621 = vmul.f32 %v614, %v619
      %622 = vst [vmem:[#allocation4] sm:$0xff] %v621
      %623 = vmatpush.msra.mxu0 %v457
      %624 = vmatpush.msra.mxu0 %v454
      %625 = vmatpush.msra.mxu0 %v451
      %626 = vmatpush.msra.mxu0 %v448
      %627 = vmatpush.msra.mxu0 %v445
      %628 = vmatpush.msra.mxu0 %v442
      %629 = vmatpush.msra.mxu0 %v439
      %630 = vmatpush.msra.mxu0 %v436
      %631 = vmatpush.msra.mxu0 %v433
      %632 = vmatpush.msra.mxu0 %v430
      %633 = vmatpush.msra.mxu0 %v427
      %634 = vmatpush.msra.mxu0 %v424
      %635 = vmatpush.msra.mxu0 %v421
      %636 = vmatpush.msra.mxu0 %v418
      %637 = vmatpush.msra.mxu0 %v415
      %638 = vmatpush.msra.mxu0 %v412
      %639 = vmatmul.f32.gmra.mxu0 %v579
      %v640 = vpop.f32.mrf.mxu0
      %v641 = vadd.f32 %v464, %v640
      %642 = vdwg.mxu0
      %643 = vmatpush.msra.mxu0 %v458
      %644 = vmatpush.msra.mxu0 %v455
      %645 = vmatpush.msra.mxu0 %v452
      %646 = vmatpush.msra.mxu0 %v449
      %647 = vmatpush.msra.mxu0 %v446
      %648 = vmatpush.msra.mxu0 %v443
      %649 = vmatpush.msra.mxu0 %v440
      %650 = vmatpush.msra.mxu0 %v437
      %651 = vmatpush.msra.mxu0 %v434
      %652 = vmatpush.msra.mxu0 %v431
      %653 = vmatpush.msra.mxu0 %v428
      %654 = vmatpush.msra.mxu0 %v425
      %655 = vmatpush.msra.mxu0 %v422
      %656 = vmatpush.msra.mxu0 %v419
      %657 = vmatpush.msra.mxu0 %v416
      %658 = vmatpush.msra.mxu0 %v413
      %659 = vmatmul.f32.gmra.mxu0 %v579
      %v660 = vpop.f32.mrf.mxu0
      %v661 = vadd.f32 %v465, %v660
      %662 = vdwg.mxu0
      %663 = vmatpush.msra.mxu0 %v459
      %664 = vmatpush.msra.mxu0 %v456
      %665 = vmatpush.msra.mxu0 %v453
      %666 = vmatpush.msra.mxu0 %v450
      %667 = vmatpush.msra.mxu0 %v447
      %668 = vmatpush.msra.mxu0 %v444
      %669 = vmatpush.msra.mxu0 %v441
      %670 = vmatpush.msra.mxu0 %v438
      %671 = vmatpush.msra.mxu0 %v435
      %672 = vmatpush.msra.mxu0 %v432
      %673 = vmatpush.msra.mxu0 %v429
      %674 = vmatpush.msra.mxu0 %v426
      %675 = vmatpush.msra.mxu0 %v423
      %676 = vmatpush.msra.mxu0 %v420
      %677 = vmatpush.msra.mxu0 %v417
      %678 = vmatpush.msra.mxu0 %v414
      %679 = vmatmul.f32.gmra.mxu0 %v579
      %v680 = vpop.f32.mrf.mxu0
      %v681 = vadd.f32 %v466, %v680
      %682 = vdwg.mxu0
      %v683 = vld [vmem:[#allocation2 + $0x18] sm:$0xff]
      %v684 = vld [vmem:[#allocation2 + $0x20] sm:$0xff]
      %v685 = vld [vmem:[#allocation2 + $0x28] sm:$0xff]
      %v686 = vadd.f32 %v683, %v641
      %v687 = vxor.u32 %v686, 2147483648
      %v688 = vmul.f32 %v687, 1.442695
      %v689 = vpow.pop %v688
      %v690 = vadd.f32 %v689, 1.0
      %v691 = vrcp.pop %v690
      %v692 = vmul.f32 %v690, %v691
      %v693 = vsub.f32 1.0, %v692
      %v694 = vmul.f32 %v691, %v693
      %v695 = vadd.f32 %v691, %v694
      %vm696 = vweird.f32 %v690
      %vm697 = vweird.f32 %v691
      %vm698 = vmor %vm696, %vm697
      %v699 = vsel %vm698, %v691, %v695
      %v700 = vand.u32 2147483647, %v690
      %vm701 = vcmp.eq.f32.partialorder %v700, 8.507059e+37
      %v702 = vand.u32 %v690, 2147483648
      %v703 = vor.u32 1.1754944e-38, %v702
      %v704 = vsel %vm701, %v703, %v699
      %v705 = vmul.f32 1.0, %v704
      %v706 = vadd.f32 %v684, %v661
      %v707 = vxor.u32 %v706, 2147483648
      %v708 = vmul.f32 %v707, 1.442695
      %v709 = vpow.pop %v708
      %v710 = vadd.f32 %v709, 1.0
      %v711 = vrcp.pop %v710
      %v712 = vmul.f32 %v710, %v711
      %v713 = vsub.f32 1.0, %v712
      %v714 = vmul.f32 %v711, %v713
      %v715 = vadd.f32 %v711, %v714
      %vm716 = vweird.f32 %v710
      %vm717 = vweird.f32 %v711
      %vm718 = vmor %vm716, %vm717
      %v719 = vsel %vm718, %v711, %v715
      %v720 = vand.u32 2147483647, %v710
      %vm721 = vcmp.eq.f32.partialorder %v720, 8.507059e+37
      %v722 = vand.u32 %v710, 2147483648
      %v723 = vor.u32 1.1754944e-38, %v722
      %v724 = vsel %vm721, %v723, %v719
      %v725 = vmul.f32 1.0, %v724
      %v726 = vmul.f32 %v705, %v681
      %v727 = vadd.f32 %v685, %v726
      %v728 = vtanh.pop %v727
      %v729 = vsub.f32 1.0, %v725
      %v730 = vmul.f32 %v729, %v728
      %v731 = vmul.f32 %v725, %v579
      %v732 = vadd.f32 %v730, %v731
      %733 = vst [vmem:[#allocation3 + $0x8] sm:$0xff] %v732
      %v734 = vmul.f32 %v732, %v582
      %735 = vadd.xlane.f32.xlu0 %v734
      %v736 = vpop.xlane.xlu0 %735
      %v737 = vadd.f32 %v736, %v588
      %v738 = vld [vmem:[%s1 + $0x8] sm:$0xff]
      %v739 = vadd.f32 %v737, %v738
      %v740 = vmax.f32 %v593, %v739
      %v741 = vsub.f32 %v593, %v740
      %v742 = vmul.f32 %v741, 1.442695
      %v743 = vpow.pop %v742
      %v744 = vsub.f32 %v739, %v740
      %v745 = vmul.f32 %v744, 1.442695
      %v746 = vpow.pop %v745
      %v747 = vmul.f32 %v601, %v743
      %v748 = vadd.f32 %v747, %v746
      %750 = vset.pattern.permute.xlu0 0
      %751 = vperm.xlu0 %750, %v743
      %v752 = vpop.permute.xlu0 %751
      %v754 = vmul.f32 %v614, %v752
      %756 = vset.pattern.permute.xlu0 0
      %757 = vperm.xlu0 %756, %v746
      %v758 = vpop.permute.xlu0 %757
      %v760 = vmul.f32 %v758, %v732
      %v761 = vadd.f32 %v754, %v760
      %v762 = vrcp.pop %v748
      %764 = vset.pattern.permute.xlu0 0
      %765 = vperm.xlu0 %764, %v762
      %v766 = vpop.permute.xlu0 %765
      %v768 = vmul.f32 %v761, %v766
      %769 = vst [vmem:[#allocation4 + $0x8] sm:$0xff] %v768
      %770 = vmatpush.msra.mxu0 %v457
      %771 = vmatpush.msra.mxu0 %v454
      %772 = vmatpush.msra.mxu0 %v451
      %773 = vmatpush.msra.mxu0 %v448
      %774 = vmatpush.msra.mxu0 %v445
      %775 = vmatpush.msra.mxu0 %v442
      %776 = vmatpush.msra.mxu0 %v439
      %777 = vmatpush.msra.mxu0 %v436
      %778 = vmatpush.msra.mxu0 %v433
      %779 = vmatpush.msra.mxu0 %v430
      %780 = vmatpush.msra.mxu0 %v427
      %781 = vmatpush.msra.mxu0 %v424
      %782 = vmatpush.msra.mxu0 %v421
      %783 = vmatpush.msra.mxu0 %v418
      %784 = vmatpush.msra.mxu0 %v415
      %785 = vmatpush.msra.mxu0 %v412
      %786 = vmatmul.f32.gmra.mxu0 %v732
      %v787 = vpop.f32.mrf.mxu0
      %v788 = vadd.f32 %v464, %v787
      %789 = vdwg.mxu0
      %790 = vmatpush.msra.mxu0 %v458
      %791 = vmatpush.msra.mxu0 %v455
      %792 = vmatpush.msra.mxu0 %v452
      %793 = vmatpush.msra.mxu0 %v449
      %794 = vmatpush.msra.mxu0 %v446
      %795 = vmatpush.msra.mxu0 %v443
      %796 = vmatpush.msra.mxu0 %v440
      %797 = vmatpush.msra.mxu0 %v437
      %798 = vmatpush.msra.mxu0 %v434
      %799 = vmatpush.msra.mxu0 %v431
      %800 = vmatpush.msra.mxu0 %v428
      %801 = vmatpush.msra.mxu0 %v425
      %802 = vmatpush.msra.mxu0 %v422
      %803 = vmatpush.msra.mxu0 %v419
      %804 = vmatpush.msra.mxu0 %v416
      %805 = vmatpush.msra.mxu0 %v413
      %806 = vmatmul.f32.gmra.mxu0 %v732
      %v807 = vpop.f32.mrf.mxu0
      %v808 = vadd.f32 %v465, %v807
      %809 = vdwg.mxu0
      %810 = vmatpush.msra.mxu0 %v459
      %811 = vmatpush.msra.mxu0 %v456
      %812 = vmatpush.msra.mxu0 %v453
      %813 = vmatpush.msra.mxu0 %v450
      %814 = vmatpush.msra.mxu0 %v447
      %815 = vmatpush.msra.mxu0 %v444
      %816 = vmatpush.msra.mxu0 %v441
      %817 = vmatpush.msra.mxu0 %v438
      %818 = vmatpush.msra.mxu0 %v435
      %819 = vmatpush.msra.mxu0 %v432
      %820 = vmatpush.msra.mxu0 %v429
      %821 = vmatpush.msra.mxu0 %v426
      %822 = vmatpush.msra.mxu0 %v423
      %823 = vmatpush.msra.mxu0 %v420
      %824 = vmatpush.msra.mxu0 %v417
      %825 = vmatpush.msra.mxu0 %v414
      %826 = vmatmul.f32.gmra.mxu0 %v732
      %v827 = vpop.f32.mrf.mxu0
      %v828 = vadd.f32 %v466, %v827
      %829 = vdwg.mxu0
      %v830 = vld [vmem:[#allocation2 + $0x30] sm:$0xff]
      %v831 = vld [vmem:[#allocation2 + $0x38] sm:$0xff]
      %v832 = vld [vmem:[#allocation2 + $0x40] sm:$0xff]
      %v833 = vadd.f32 %v830, %v788
      %v834 = vxor.u32 %v833, 2147483648
      %v835 = vmul.f32 %v834, 1.442695
      %v836 = vpow.pop %v835
      %v837 = vadd.f32 %v836, 1.0
      %v838 = vrcp.pop %v837
      %v839 = vmul.f32 %v837, %v838
      %v840 = vsub.f32 1.0, %v839
      %v841 = vmul.f32 %v838, %v840
      %v842 = vadd.f32 %v838, %v841
      %vm843 = vweird.f32 %v837
      %vm844 = vweird.f32 %v838
      %vm845 = vmor %vm843, %vm844
      %v846 = vsel %vm845, %v838, %v842
      %v847 = vand.u32 2147483647, %v837
      %vm848 = vcmp.eq.f32.partialorder %v847, 8.507059e+37
      %v849 = vand.u32 %v837, 2147483648
      %v850 = vor.u32 1.1754944e-38, %v849
      %v851 = vsel %vm848, %v850, %v846
      %v852 = vmul.f32 1.0, %v851
      %v853 = vadd.f32 %v831, %v808
      %v854 = vxor.u32 %v853, 2147483648
      %v855 = vmul.f32 %v854, 1.442695
      %v856 = vpow.pop %v855
      %v857 = vadd.f32 %v856, 1.0
      %v858 = vrcp.pop %v857
      %v859 = vmul.f32 %v857, %v858
      %v860 = vsub.f32 1.0, %v859
      %v861 = vmul.f32 %v858, %v860
      %v862 = vadd.f32 %v858, %v861
      %vm863 = vweird.f32 %v857
      %vm864 = vweird.f32 %v858
      %vm865 = vmor %vm863, %vm864
      %v866 = vsel %vm865, %v858, %v862
      %v867 = vand.u32 2147483647, %v857
      %vm868 = vcmp.eq.f32.partialorder %v867, 8.507059e+37
      %v869 = vand.u32 %v857, 2147483648
      %v870 = vor.u32 1.1754944e-38, %v869
      %v871 = vsel %vm868, %v870, %v866
      %v872 = vmul.f32 1.0, %v871
      %v873 = vmul.f32 %v852, %v828
      %v874 = vadd.f32 %v832, %v873
      %v875 = vtanh.pop %v874
      %v876 = vsub.f32 1.0, %v872
      %v877 = vmul.f32 %v876, %v875
      %v878 = vmul.f32 %v872, %v732
      %v879 = vadd.f32 %v877, %v878
      %880 = vst [vmem:[#allocation3 + $0x10] sm:$0xff] %v879
      %v881 = vmul.f32 %v879, %v582
      %882 = vadd.xlane.f32.xlu0 %v881
      %v883 = vpop.xlane.xlu0 %882
      %v884 = vadd.f32 %v883, %v588
      %v885 = vld [vmem:[%s1 + $0x10] sm:$0xff]
      %v886 = vadd.f32 %v884, %v885
      %v887 = vmax.f32 %v740, %v886
      %v888 = vsub.f32 %v740, %v887
      %v889 = vmul.f32 %v888, 1.442695
      %v890 = vpow.pop %v889
      %v891 = vsub.f32 %v886, %v887
      %v892 = vmul.f32 %v891, 1.442695
      %v893 = vpow.pop %v892
      %v894 = vmul.f32 %v748, %v890
      %v895 = vadd.f32 %v894, %v893
      %897 = vset.pattern.permute.xlu0 0
      %898 = vperm.xlu0 %897, %v890
      %v899 = vpop.permute.xlu0 %898
      %v901 = vmul.f32 %v761, %v899
      %903 = vset.pattern.permute.xlu0 0
      %904 = vperm.xlu0 %903, %v893
      %v905 = vpop.permute.xlu0 %904
      %v907 = vmul.f32 %v905, %v879
      %v908 = vadd.f32 %v901, %v907
      %v909 = vrcp.pop %v895
      %911 = vset.pattern.permute.xlu0 0
      %912 = vperm.xlu0 %911, %v909
      %v913 = vpop.permute.xlu0 %912
      %v915 = vmul.f32 %v908, %v913
      %916 = vst [vmem:[#allocation4 + $0x10] sm:$0xff] %v915
      %917 = vmatpush.msra.mxu0 %v457
      %918 = vmatpush.msra.mxu0 %v454
      %919 = vmatpush.msra.mxu0 %v451
      %920 = vmatpush.msra.mxu0 %v448
      %921 = vmatpush.msra.mxu0 %v445
      %922 = vmatpush.msra.mxu0 %v442
      %923 = vmatpush.msra.mxu0 %v439
      %924 = vmatpush.msra.mxu0 %v436
      %925 = vmatpush.msra.mxu0 %v433
      %926 = vmatpush.msra.mxu0 %v430
      %927 = vmatpush.msra.mxu0 %v427
      %928 = vmatpush.msra.mxu0 %v424
      %929 = vmatpush.msra.mxu0 %v421
      %930 = vmatpush.msra.mxu0 %v418
      %931 = vmatpush.msra.mxu0 %v415
      %932 = vmatpush.msra.mxu0 %v412
      %933 = vmatmul.f32.gmra.mxu0 %v879
      %v934 = vpop.f32.mrf.mxu0
      %v935 = vadd.f32 %v464, %v934
      %936 = vdwg.mxu0
      %937 = vmatpush.msra.mxu0 %v458
      %938 = vmatpush.msra.mxu0 %v455
      %939 = vmatpush.msra.mxu0 %v452
      %940 = vmatpush.msra.mxu0 %v449
      %941 = vmatpush.msra.mxu0 %v446
      %942 = vmatpush.msra.mxu0 %v443
      %943 = vmatpush.msra.mxu0 %v440
      %944 = vmatpush.msra.mxu0 %v437
      %945 = vmatpush.msra.mxu0 %v434
      %946 = vmatpush.msra.mxu0 %v431
      %947 = vmatpush.msra.mxu0 %v428
      %948 = vmatpush.msra.mxu0 %v425
      %949 = vmatpush.msra.mxu0 %v422
      %950 = vmatpush.msra.mxu0 %v419
      %951 = vmatpush.msra.mxu0 %v416
      %952 = vmatpush.msra.mxu0 %v413
      %953 = vmatmul.f32.gmra.mxu0 %v879
      %v954 = vpop.f32.mrf.mxu0
      %v955 = vadd.f32 %v465, %v954
      %956 = vdwg.mxu0
      %957 = vmatpush.msra.mxu0 %v459
      %958 = vmatpush.msra.mxu0 %v456
      %959 = vmatpush.msra.mxu0 %v453
      %960 = vmatpush.msra.mxu0 %v450
      %961 = vmatpush.msra.mxu0 %v447
      %962 = vmatpush.msra.mxu0 %v444
      %963 = vmatpush.msra.mxu0 %v441
      %964 = vmatpush.msra.mxu0 %v438
      %965 = vmatpush.msra.mxu0 %v435
      %966 = vmatpush.msra.mxu0 %v432
      %967 = vmatpush.msra.mxu0 %v429
      %968 = vmatpush.msra.mxu0 %v426
      %969 = vmatpush.msra.mxu0 %v423
      %970 = vmatpush.msra.mxu0 %v420
      %971 = vmatpush.msra.mxu0 %v417
      %972 = vmatpush.msra.mxu0 %v414
      %973 = vmatmul.f32.gmra.mxu0 %v879
      %v974 = vpop.f32.mrf.mxu0
      %v975 = vadd.f32 %v466, %v974
      %976 = vdwg.mxu0
      %v977 = vld [vmem:[#allocation2 + $0x48] sm:$0xff]
      %v978 = vld [vmem:[#allocation2 + $0x50] sm:$0xff]
      %v979 = vld [vmem:[#allocation2 + $0x58] sm:$0xff]
      %v980 = vadd.f32 %v977, %v935
      %v981 = vxor.u32 %v980, 2147483648
      %v982 = vmul.f32 %v981, 1.442695
      %v983 = vpow.pop %v982
      %v984 = vadd.f32 %v983, 1.0
      %v985 = vrcp.pop %v984
      %v986 = vmul.f32 %v984, %v985
      %v987 = vsub.f32 1.0, %v986
      %v988 = vmul.f32 %v985, %v987
      %v989 = vadd.f32 %v985, %v988
      %vm990 = vweird.f32 %v984
      %vm991 = vweird.f32 %v985
      %vm992 = vmor %vm990, %vm991
      %v993 = vsel %vm992, %v985, %v989
      %v994 = vand.u32 2147483647, %v984
      %vm995 = vcmp.eq.f32.partialorder %v994, 8.507059e+37
      %v996 = vand.u32 %v984, 2147483648
      %v997 = vor.u32 1.1754944e-38, %v996
      %v998 = vsel %vm995, %v997, %v993
      %v999 = vmul.f32 1.0, %v998
      %v1000 = vadd.f32 %v978, %v955
      %v1001 = vxor.u32 %v1000, 2147483648
      %v1002 = vmul.f32 %v1001, 1.442695
      %v1003 = vpow.pop %v1002
      %v1004 = vadd.f32 %v1003, 1.0
      %v1005 = vrcp.pop %v1004
      %v1006 = vmul.f32 %v1004, %v1005
      %v1007 = vsub.f32 1.0, %v1006
      %v1008 = vmul.f32 %v1005, %v1007
      %v1009 = vadd.f32 %v1005, %v1008
      %vm1010 = vweird.f32 %v1004
      %vm1011 = vweird.f32 %v1005
      %vm1012 = vmor %vm1010, %vm1011
      %v1013 = vsel %vm1012, %v1005, %v1009
      %v1014 = vand.u32 2147483647, %v1004
      %vm1015 = vcmp.eq.f32.partialorder %v1014, 8.507059e+37
      %v1016 = vand.u32 %v1004, 2147483648
      %v1017 = vor.u32 1.1754944e-38, %v1016
      %v1018 = vsel %vm1015, %v1017, %v1013
      %v1019 = vmul.f32 1.0, %v1018
      %v1020 = vmul.f32 %v999, %v975
      %v1021 = vadd.f32 %v979, %v1020
      %v1022 = vtanh.pop %v1021
      %v1023 = vsub.f32 1.0, %v1019
      %v1024 = vmul.f32 %v1023, %v1022
      %v1025 = vmul.f32 %v1019, %v879
      %v1026 = vadd.f32 %v1024, %v1025
      %1027 = vst [vmem:[#allocation3 + $0x18] sm:$0xff] %v1026
      %v1028 = vmul.f32 %v1026, %v582
      %1029 = vadd.xlane.f32.xlu0 %v1028
      %v1030 = vpop.xlane.xlu0 %1029
      %v1031 = vadd.f32 %v1030, %v588
      %v1032 = vld [vmem:[%s1 + $0x18] sm:$0xff]
      %v1033 = vadd.f32 %v1031, %v1032
      %v1034 = vmax.f32 %v887, %v1033
      %v1035 = vsub.f32 %v887, %v1034
      %v1036 = vmul.f32 %v1035, 1.442695
      %v1037 = vpow.pop %v1036
      %v1038 = vsub.f32 %v1033, %v1034
      %v1039 = vmul.f32 %v1038, 1.442695
      %v1040 = vpow.pop %v1039
      %v1041 = vmul.f32 %v895, %v1037
      %v1042 = vadd.f32 %v1041, %v1040
      %1044 = vset.pattern.permute.xlu0 0
      %1045 = vperm.xlu0 %1044, %v1037
      %v1046 = vpop.permute.xlu0 %1045
      %v1048 = vmul.f32 %v908, %v1046
      %1050 = vset.pattern.permute.xlu0 0
      %1051 = vperm.xlu0 %1050, %v1040
      %v1052 = vpop.permute.xlu0 %1051
      %v1054 = vmul.f32 %v1052, %v1026
      %v1055 = vadd.f32 %v1048, %v1054
      %v1056 = vrcp.pop %v1042
      %1058 = vset.pattern.permute.xlu0 0
      %1059 = vperm.xlu0 %1058, %v1056
      %v1060 = vpop.permute.xlu0 %1059
      %v1062 = vmul.f32 %v1055, %v1060
      %1063 = vst [vmem:[#allocation4 + $0x18] sm:$0xff] %v1062
      %1064 = vmatpush.msra.mxu0 %v457
      %1065 = vmatpush.msra.mxu0 %v454
      %1066 = vmatpush.msra.mxu0 %v451
      %1067 = vmatpush.msra.mxu0 %v448
      %1068 = vmatpush.msra.mxu0 %v445
      %1069 = vmatpush.msra.mxu0 %v442
      %1070 = vmatpush.msra.mxu0 %v439
      %1071 = vmatpush.msra.mxu0 %v436
      %1072 = vmatpush.msra.mxu0 %v433
      %1073 = vmatpush.msra.mxu0 %v430
      %1074 = vmatpush.msra.mxu0 %v427
      %1075 = vmatpush.msra.mxu0 %v424
      %1076 = vmatpush.msra.mxu0 %v421
      %1077 = vmatpush.msra.mxu0 %v418
      %1078 = vmatpush.msra.mxu0 %v415
      %1079 = vmatpush.msra.mxu0 %v412
      %1080 = vmatmul.f32.gmra.mxu0 %v1026
      %v1081 = vpop.f32.mrf.mxu0
      %v1082 = vadd.f32 %v464, %v1081
      %1083 = vdwg.mxu0
      %1084 = vmatpush.msra.mxu0 %v458
      %1085 = vmatpush.msra.mxu0 %v455
      %1086 = vmatpush.msra.mxu0 %v452
      %1087 = vmatpush.msra.mxu0 %v449
      %1088 = vmatpush.msra.mxu0 %v446
      %1089 = vmatpush.msra.mxu0 %v443
      %1090 = vmatpush.msra.mxu0 %v440
      %1091 = vmatpush.msra.mxu0 %v437
      %1092 = vmatpush.msra.mxu0 %v434
      %1093 = vmatpush.msra.mxu0 %v431
      %1094 = vmatpush.msra.mxu0 %v428
      %1095 = vmatpush.msra.mxu0 %v425
      %1096 = vmatpush.msra.mxu0 %v422
      %1097 = vmatpush.msra.mxu0 %v419
      %1098 = vmatpush.msra.mxu0 %v416
      %1099 = vmatpush.msra.mxu0 %v413
      %1100 = vmatmul.f32.gmra.mxu0 %v1026
      %v1101 = vpop.f32.mrf.mxu0
      %v1102 = vadd.f32 %v465, %v1101
      %1103 = vdwg.mxu0
      %1104 = vmatpush.msra.mxu0 %v459
      %1105 = vmatpush.msra.mxu0 %v456
      %1106 = vmatpush.msra.mxu0 %v453
      %1107 = vmatpush.msra.mxu0 %v450
      %1108 = vmatpush.msra.mxu0 %v447
      %1109 = vmatpush.msra.mxu0 %v444
      %1110 = vmatpush.msra.mxu0 %v441
      %1111 = vmatpush.msra.mxu0 %v438
      %1112 = vmatpush.msra.mxu0 %v435
      %1113 = vmatpush.msra.mxu0 %v432
      %1114 = vmatpush.msra.mxu0 %v429
      %1115 = vmatpush.msra.mxu0 %v426
      %1116 = vmatpush.msra.mxu0 %v423
      %1117 = vmatpush.msra.mxu0 %v420
      %1118 = vmatpush.msra.mxu0 %v417
      %1119 = vmatpush.msra.mxu0 %v414
      %1120 = vmatmul.f32.gmra.mxu0 %v1026
      %v1121 = vpop.f32.mrf.mxu0
      %v1122 = vadd.f32 %v466, %v1121
      %1123 = vdwg.mxu0
      %v1124 = vld [vmem:[#allocation2 + $0x60] sm:$0xff]
      %v1125 = vld [vmem:[#allocation2 + $0x68] sm:$0xff]
      %v1126 = vld [vmem:[#allocation2 + $0x70] sm:$0xff]
      %v1127 = vadd.f32 %v1124, %v1082
      %v1128 = vxor.u32 %v1127, 2147483648
      %v1129 = vmul.f32 %v1128, 1.442695
      %v1130 = vpow.pop %v1129
      %v1131 = vadd.f32 %v1130, 1.0
      %v1132 = vrcp.pop %v1131
      %v1133 = vmul.f32 %v1131, %v1132
      %v1134 = vsub.f32 1.0, %v1133
      %v1135 = vmul.f32 %v1132, %v1134
      %v1136 = vadd.f32 %v1132, %v1135
      %vm1137 = vweird.f32 %v1131
      %vm1138 = vweird.f32 %v1132
      %vm1139 = vmor %vm1137, %vm1138
      %v1140 = vsel %vm1139, %v1132, %v1136
      %v1141 = vand.u32 2147483647, %v1131
      %vm1142 = vcmp.eq.f32.partialorder %v1141, 8.507059e+37
      %v1143 = vand.u32 %v1131, 2147483648
      %v1144 = vor.u32 1.1754944e-38, %v1143
      %v1145 = vsel %vm1142, %v1144, %v1140
      %v1146 = vmul.f32 1.0, %v1145
      %v1147 = vadd.f32 %v1125, %v1102
      %v1148 = vxor.u32 %v1147, 2147483648
      %v1149 = vmul.f32 %v1148, 1.442695
      %v1150 = vpow.pop %v1149
      %v1151 = vadd.f32 %v1150, 1.0
      %v1152 = vrcp.pop %v1151
      %v1153 = vmul.f32 %v1151, %v1152
      %v1154 = vsub.f32 1.0, %v1153
      %v1155 = vmul.f32 %v1152, %v1154
      %v1156 = vadd.f32 %v1152, %v1155
      %vm1157 = vweird.f32 %v1151
      %vm1158 = vweird.f32 %v1152
      %vm1159 = vmor %vm1157, %vm1158
      %v1160 = vsel %vm1159, %v1152, %v1156
      %v1161 = vand.u32 2147483647, %v1151
      %vm1162 = vcmp.eq.f32.partialorder %v1161, 8.507059e+37
      %v1163 = vand.u32 %v1151, 2147483648
      %v1164 = vor.u32 1.1754944e-38, %v1163
      %v1165 = vsel %vm1162, %v1164, %v1160
      %v1166 = vmul.f32 1.0, %v1165
      %v1167 = vmul.f32 %v1146, %v1122
      %v1168 = vadd.f32 %v1126, %v1167
      %v1169 = vtanh.pop %v1168
      %v1170 = vsub.f32 1.0, %v1166
      %v1171 = vmul.f32 %v1170, %v1169
      %v1172 = vmul.f32 %v1166, %v1026
      %v1173 = vadd.f32 %v1171, %v1172
      %1174 = vst [vmem:[#allocation3 + $0x20] sm:$0xff] %v1173
      %v1175 = vmul.f32 %v1173, %v582
      %1176 = vadd.xlane.f32.xlu0 %v1175
      %v1177 = vpop.xlane.xlu0 %1176
      %v1178 = vadd.f32 %v1177, %v588
      %v1179 = vld [vmem:[%s1 + $0x20] sm:$0xff]
      %v1180 = vadd.f32 %v1178, %v1179
      %v1181 = vmax.f32 %v1034, %v1180
      %v1182 = vsub.f32 %v1034, %v1181
      %v1183 = vmul.f32 %v1182, 1.442695
      %v1184 = vpow.pop %v1183
      %v1185 = vsub.f32 %v1180, %v1181
      %v1186 = vmul.f32 %v1185, 1.442695
      %v1187 = vpow.pop %v1186
      %v1188 = vmul.f32 %v1042, %v1184
      %v1189 = vadd.f32 %v1188, %v1187
      %1191 = vset.pattern.permute.xlu0 0
      %1192 = vperm.xlu0 %1191, %v1184
      %v1193 = vpop.permute.xlu0 %1192
      %v1195 = vmul.f32 %v1055, %v1193
      %1197 = vset.pattern.permute.xlu0 0
      %1198 = vperm.xlu0 %1197, %v1187
      %v1199 = vpop.permute.xlu0 %1198
      %v1201 = vmul.f32 %v1199, %v1173
      %v1202 = vadd.f32 %v1195, %v1201
      %v1203 = vrcp.pop %v1189
      %1205 = vset.pattern.permute.xlu0 0
      %1206 = vperm.xlu0 %1205, %v1203
      %v1207 = vpop.permute.xlu0 %1206
      %v1209 = vmul.f32 %v1202, %v1207
      %1210 = vst [vmem:[#allocation4 + $0x20] sm:$0xff] %v1209
      %1211 = vmatpush.msra.mxu0 %v457
      %1212 = vmatpush.msra.mxu0 %v454
      %1213 = vmatpush.msra.mxu0 %v451
      %1214 = vmatpush.msra.mxu0 %v448
      %1215 = vmatpush.msra.mxu0 %v445
      %1216 = vmatpush.msra.mxu0 %v442
      %1217 = vmatpush.msra.mxu0 %v439
      %1218 = vmatpush.msra.mxu0 %v436
      %1219 = vmatpush.msra.mxu0 %v433
      %1220 = vmatpush.msra.mxu0 %v430
      %1221 = vmatpush.msra.mxu0 %v427
      %1222 = vmatpush.msra.mxu0 %v424
      %1223 = vmatpush.msra.mxu0 %v421
      %1224 = vmatpush.msra.mxu0 %v418
      %1225 = vmatpush.msra.mxu0 %v415
      %1226 = vmatpush.msra.mxu0 %v412
      %1227 = vmatmul.f32.gmra.mxu0 %v1173
      %v1228 = vpop.f32.mrf.mxu0
      %v1229 = vadd.f32 %v464, %v1228
      %1230 = vdwg.mxu0
      %1231 = vmatpush.msra.mxu0 %v458
      %1232 = vmatpush.msra.mxu0 %v455
      %1233 = vmatpush.msra.mxu0 %v452
      %1234 = vmatpush.msra.mxu0 %v449
      %1235 = vmatpush.msra.mxu0 %v446
      %1236 = vmatpush.msra.mxu0 %v443
      %1237 = vmatpush.msra.mxu0 %v440
      %1238 = vmatpush.msra.mxu0 %v437
      %1239 = vmatpush.msra.mxu0 %v434
      %1240 = vmatpush.msra.mxu0 %v431
      %1241 = vmatpush.msra.mxu0 %v428
      %1242 = vmatpush.msra.mxu0 %v425
      %1243 = vmatpush.msra.mxu0 %v422
      %1244 = vmatpush.msra.mxu0 %v419
      %1245 = vmatpush.msra.mxu0 %v416
      %1246 = vmatpush.msra.mxu0 %v413
      %1247 = vmatmul.f32.gmra.mxu0 %v1173
      %v1248 = vpop.f32.mrf.mxu0
      %v1249 = vadd.f32 %v465, %v1248
      %1250 = vdwg.mxu0
      %1251 = vmatpush.msra.mxu0 %v459
      %1252 = vmatpush.msra.mxu0 %v456
      %1253 = vmatpush.msra.mxu0 %v453
      %1254 = vmatpush.msra.mxu0 %v450
      %1255 = vmatpush.msra.mxu0 %v447
      %1256 = vmatpush.msra.mxu0 %v444
      %1257 = vmatpush.msra.mxu0 %v441
      %1258 = vmatpush.msra.mxu0 %v438
      %1259 = vmatpush.msra.mxu0 %v435
      %1260 = vmatpush.msra.mxu0 %v432
      %1261 = vmatpush.msra.mxu0 %v429
      %1262 = vmatpush.msra.mxu0 %v426
      %1263 = vmatpush.msra.mxu0 %v423
      %1264 = vmatpush.msra.mxu0 %v420
      %1265 = vmatpush.msra.mxu0 %v417
      %1266 = vmatpush.msra.mxu0 %v414
      %1267 = vmatmul.f32.gmra.mxu0 %v1173
      %v1268 = vpop.f32.mrf.mxu0
      %v1269 = vadd.f32 %v466, %v1268
      %1270 = vdwg.mxu0
      %v1271 = vld [vmem:[#allocation2 + $0x78] sm:$0xff]
      %v1272 = vld [vmem:[#allocation2 + $0x80] sm:$0xff]
      %v1273 = vld [vmem:[#allocation2 + $0x88] sm:$0xff]
      %v1274 = vadd.f32 %v1271, %v1229
      %v1275 = vxor.u32 %v1274, 2147483648
      %v1276 = vmul.f32 %v1275, 1.442695
      %v1277 = vpow.pop %v1276
      %v1278 = vadd.f32 %v1277, 1.0
      %v1279 = vrcp.pop %v1278
      %v1280 = vmul.f32 %v1278, %v1279
      %v1281 = vsub.f32 1.0, %v1280
      %v1282 = vmul.f32 %v1279, %v1281
      %v1283 = vadd.f32 %v1279, %v1282
      %vm1284 = vweird.f32 %v1278
      %vm1285 = vweird.f32 %v1279
      %vm1286 = vmor %vm1284, %vm1285
      %v1287 = vsel %vm1286, %v1279, %v1283
      %v1288 = vand.u32 2147483647, %v1278
      %vm1289 = vcmp.eq.f32.partialorder %v1288, 8.507059e+37
      %v1290 = vand.u32 %v1278, 2147483648
      %v1291 = vor.u32 1.1754944e-38, %v1290
      %v1292 = vsel %vm1289, %v1291, %v1287
      %v1293 = vmul.f32 1.0, %v1292
      %v1294 = vadd.f32 %v1272, %v1249
      %v1295 = vxor.u32 %v1294, 2147483648
      %v1296 = vmul.f32 %v1295, 1.442695
      %v1297 = vpow.pop %v1296
      %v1298 = vadd.f32 %v1297, 1.0
      %v1299 = vrcp.pop %v1298
      %v1300 = vmul.f32 %v1298, %v1299
      %v1301 = vsub.f32 1.0, %v1300
      %v1302 = vmul.f32 %v1299, %v1301
      %v1303 = vadd.f32 %v1299, %v1302
      %vm1304 = vweird.f32 %v1298
      %vm1305 = vweird.f32 %v1299
      %vm1306 = vmor %vm1304, %vm1305
      %v1307 = vsel %vm1306, %v1299, %v1303
      %v1308 = vand.u32 2147483647, %v1298
      %vm1309 = vcmp.eq.f32.partialorder %v1308, 8.507059e+37
      %v1310 = vand.u32 %v1298, 2147483648
      %v1311 = vor.u32 1.1754944e-38, %v1310
      %v1312 = vsel %vm1309, %v1311, %v1307
      %v1313 = vmul.f32 1.0, %v1312
      %v1314 = vmul.f32 %v1293, %v1269
      %v1315 = vadd.f32 %v1273, %v1314
      %v1316 = vtanh.pop %v1315
      %v1317 = vsub.f32 1.0, %v1313
      %v1318 = vmul.f32 %v1317, %v1316
      %v1319 = vmul.f32 %v1313, %v1173
      %v1320 = vadd.f32 %v1318, %v1319
      %1321 = vst [vmem:[#allocation3 + $0x28] sm:$0xff] %v1320
      %v1322 = vmul.f32 %v1320, %v582
      %1323 = vadd.xlane.f32.xlu0 %v1322
      %v1324 = vpop.xlane.xlu0 %1323
      %v1325 = vadd.f32 %v1324, %v588
      %v1326 = vld [vmem:[%s1 + $0x28] sm:$0xff]
      %v1327 = vadd.f32 %v1325, %v1326
      %v1328 = vmax.f32 %v1181, %v1327
      %v1329 = vsub.f32 %v1181, %v1328
      %v1330 = vmul.f32 %v1329, 1.442695
      %v1331 = vpow.pop %v1330
      %v1332 = vsub.f32 %v1327, %v1328
      %v1333 = vmul.f32 %v1332, 1.442695
      %v1334 = vpow.pop %v1333
      %v1335 = vmul.f32 %v1189, %v1331
      %v1336 = vadd.f32 %v1335, %v1334
      %1338 = vset.pattern.permute.xlu0 0
      %1339 = vperm.xlu0 %1338, %v1331
      %v1340 = vpop.permute.xlu0 %1339
      %v1342 = vmul.f32 %v1202, %v1340
      %1344 = vset.pattern.permute.xlu0 0
      %1345 = vperm.xlu0 %1344, %v1334
      %v1346 = vpop.permute.xlu0 %1345
      %v1348 = vmul.f32 %v1346, %v1320
      %v1349 = vadd.f32 %v1342, %v1348
      %v1350 = vrcp.pop %v1336
      %1352 = vset.pattern.permute.xlu0 0
      %1353 = vperm.xlu0 %1352, %v1350
      %v1354 = vpop.permute.xlu0 %1353
      %v1356 = vmul.f32 %v1349, %v1354
      %1357 = vst [vmem:[#allocation4 + $0x28] sm:$0xff] %v1356
      %1358 = vmatpush.msra.mxu0 %v457
      %1359 = vmatpush.msra.mxu0 %v454
      %1360 = vmatpush.msra.mxu0 %v451
      %1361 = vmatpush.msra.mxu0 %v448
      %1362 = vmatpush.msra.mxu0 %v445
      %1363 = vmatpush.msra.mxu0 %v442
      %1364 = vmatpush.msra.mxu0 %v439
      %1365 = vmatpush.msra.mxu0 %v436
      %1366 = vmatpush.msra.mxu0 %v433
      %1367 = vmatpush.msra.mxu0 %v430
      %1368 = vmatpush.msra.mxu0 %v427
      %1369 = vmatpush.msra.mxu0 %v424
      %1370 = vmatpush.msra.mxu0 %v421
      %1371 = vmatpush.msra.mxu0 %v418
      %1372 = vmatpush.msra.mxu0 %v415
      %1373 = vmatpush.msra.mxu0 %v412
      %1374 = vmatmul.f32.gmra.mxu0 %v1320
      %v1375 = vpop.f32.mrf.mxu0
      %v1376 = vadd.f32 %v464, %v1375
      %1377 = vdwg.mxu0
      %1378 = vmatpush.msra.mxu0 %v458
      %1379 = vmatpush.msra.mxu0 %v455
      %1380 = vmatpush.msra.mxu0 %v452
      %1381 = vmatpush.msra.mxu0 %v449
      %1382 = vmatpush.msra.mxu0 %v446
      %1383 = vmatpush.msra.mxu0 %v443
      %1384 = vmatpush.msra.mxu0 %v440
      %1385 = vmatpush.msra.mxu0 %v437
      %1386 = vmatpush.msra.mxu0 %v434
      %1387 = vmatpush.msra.mxu0 %v431
      %1388 = vmatpush.msra.mxu0 %v428
      %1389 = vmatpush.msra.mxu0 %v425
      %1390 = vmatpush.msra.mxu0 %v422
      %1391 = vmatpush.msra.mxu0 %v419
      %1392 = vmatpush.msra.mxu0 %v416
      %1393 = vmatpush.msra.mxu0 %v413
      %1394 = vmatmul.f32.gmra.mxu0 %v1320
      %v1395 = vpop.f32.mrf.mxu0
      %v1396 = vadd.f32 %v465, %v1395
      %1397 = vdwg.mxu0
      %1398 = vmatpush.msra.mxu0 %v459
      %1399 = vmatpush.msra.mxu0 %v456
      %1400 = vmatpush.msra.mxu0 %v453
      %1401 = vmatpush.msra.mxu0 %v450
      %1402 = vmatpush.msra.mxu0 %v447
      %1403 = vmatpush.msra.mxu0 %v444
      %1404 = vmatpush.msra.mxu0 %v441
      %1405 = vmatpush.msra.mxu0 %v438
      %1406 = vmatpush.msra.mxu0 %v435
      %1407 = vmatpush.msra.mxu0 %v432
      %1408 = vmatpush.msra.mxu0 %v429
      %1409 = vmatpush.msra.mxu0 %v426
      %1410 = vmatpush.msra.mxu0 %v423
      %1411 = vmatpush.msra.mxu0 %v420
      %1412 = vmatpush.msra.mxu0 %v417
      %1413 = vmatpush.msra.mxu0 %v414
      %1414 = vmatmul.f32.gmra.mxu0 %v1320
      %v1415 = vpop.f32.mrf.mxu0
      %v1416 = vadd.f32 %v466, %v1415
      %1417 = vdwg.mxu0
      %v1418 = vld [vmem:[#allocation2 + $0x90] sm:$0xff]
      %v1419 = vld [vmem:[#allocation2 + $0x98] sm:$0xff]
      %v1420 = vld [vmem:[#allocation2 + $0xa0] sm:$0xff]
      %v1421 = vadd.f32 %v1418, %v1376
      %v1422 = vxor.u32 %v1421, 2147483648
      %v1423 = vmul.f32 %v1422, 1.442695
      %v1424 = vpow.pop %v1423
      %v1425 = vadd.f32 %v1424, 1.0
      %v1426 = vrcp.pop %v1425
      %v1427 = vmul.f32 %v1425, %v1426
      %v1428 = vsub.f32 1.0, %v1427
      %v1429 = vmul.f32 %v1426, %v1428
      %v1430 = vadd.f32 %v1426, %v1429
      %vm1431 = vweird.f32 %v1425
      %vm1432 = vweird.f32 %v1426
      %vm1433 = vmor %vm1431, %vm1432
      %v1434 = vsel %vm1433, %v1426, %v1430
      %v1435 = vand.u32 2147483647, %v1425
      %vm1436 = vcmp.eq.f32.partialorder %v1435, 8.507059e+37
      %v1437 = vand.u32 %v1425, 2147483648
      %v1438 = vor.u32 1.1754944e-38, %v1437
      %v1439 = vsel %vm1436, %v1438, %v1434
      %v1440 = vmul.f32 1.0, %v1439
      %v1441 = vadd.f32 %v1419, %v1396
      %v1442 = vxor.u32 %v1441, 2147483648
      %v1443 = vmul.f32 %v1442, 1.442695
      %v1444 = vpow.pop %v1443
      %v1445 = vadd.f32 %v1444, 1.0
      %v1446 = vrcp.pop %v1445
      %v1447 = vmul.f32 %v1445, %v1446
      %v1448 = vsub.f32 1.0, %v1447
      %v1449 = vmul.f32 %v1446, %v1448
      %v1450 = vadd.f32 %v1446, %v1449
      %vm1451 = vweird.f32 %v1445
      %vm1452 = vweird.f32 %v1446
      %vm1453 = vmor %vm1451, %vm1452
      %v1454 = vsel %vm1453, %v1446, %v1450
      %v1455 = vand.u32 2147483647, %v1445
      %vm1456 = vcmp.eq.f32.partialorder %v1455, 8.507059e+37
      %v1457 = vand.u32 %v1445, 2147483648
      %v1458 = vor.u32 1.1754944e-38, %v1457
      %v1459 = vsel %vm1456, %v1458, %v1454
      %v1460 = vmul.f32 1.0, %v1459
      %v1461 = vmul.f32 %v1440, %v1416
      %v1462 = vadd.f32 %v1420, %v1461
      %v1463 = vtanh.pop %v1462
      %v1464 = vsub.f32 1.0, %v1460
      %v1465 = vmul.f32 %v1464, %v1463
      %v1466 = vmul.f32 %v1460, %v1320
      %v1467 = vadd.f32 %v1465, %v1466
      %1468 = vst [vmem:[#allocation3 + $0x30] sm:$0xff] %v1467
      %v1469 = vmul.f32 %v1467, %v582
      %1470 = vadd.xlane.f32.xlu0 %v1469
      %v1471 = vpop.xlane.xlu0 %1470
      %v1472 = vadd.f32 %v1471, %v588
      %v1473 = vld [vmem:[%s1 + $0x30] sm:$0xff]
      %v1474 = vadd.f32 %v1472, %v1473
      %v1475 = vmax.f32 %v1328, %v1474
      %v1476 = vsub.f32 %v1328, %v1475
      %v1477 = vmul.f32 %v1476, 1.442695
      %v1478 = vpow.pop %v1477
      %v1479 = vsub.f32 %v1474, %v1475
      %v1480 = vmul.f32 %v1479, 1.442695
      %v1481 = vpow.pop %v1480
      %v1482 = vmul.f32 %v1336, %v1478
      %v1483 = vadd.f32 %v1482, %v1481
      %1485 = vset.pattern.permute.xlu0 0
      %1486 = vperm.xlu0 %1485, %v1478
      %v1487 = vpop.permute.xlu0 %1486
      %v1489 = vmul.f32 %v1349, %v1487
      %1491 = vset.pattern.permute.xlu0 0
      %1492 = vperm.xlu0 %1491, %v1481
      %v1493 = vpop.permute.xlu0 %1492
      %v1495 = vmul.f32 %v1493, %v1467
      %v1496 = vadd.f32 %v1489, %v1495
      %v1497 = vrcp.pop %v1483
      %1499 = vset.pattern.permute.xlu0 0
      %1500 = vperm.xlu0 %1499, %v1497
      %v1501 = vpop.permute.xlu0 %1500
      %v1503 = vmul.f32 %v1496, %v1501
      %1504 = vst [vmem:[#allocation4 + $0x30] sm:$0xff] %v1503
      %1505 = vmatpush.msra.mxu0 %v457
      %1506 = vmatpush.msra.mxu0 %v454
      %1507 = vmatpush.msra.mxu0 %v451
      %1508 = vmatpush.msra.mxu0 %v448
      %1509 = vmatpush.msra.mxu0 %v445
      %1510 = vmatpush.msra.mxu0 %v442
      %1511 = vmatpush.msra.mxu0 %v439
      %1512 = vmatpush.msra.mxu0 %v436
      %1513 = vmatpush.msra.mxu0 %v433
      %1514 = vmatpush.msra.mxu0 %v430
      %1515 = vmatpush.msra.mxu0 %v427
      %1516 = vmatpush.msra.mxu0 %v424
      %1517 = vmatpush.msra.mxu0 %v421
      %1518 = vmatpush.msra.mxu0 %v418
      %1519 = vmatpush.msra.mxu0 %v415
      %1520 = vmatpush.msra.mxu0 %v412
      %1521 = vmatmul.f32.gmra.mxu0 %v1467
      %v1522 = vpop.f32.mrf.mxu0
      %v1523 = vadd.f32 %v464, %v1522
      %1524 = vdwg.mxu0
      %1525 = vmatpush.msra.mxu0 %v458
      %1526 = vmatpush.msra.mxu0 %v455
      %1527 = vmatpush.msra.mxu0 %v452
      %1528 = vmatpush.msra.mxu0 %v449
      %1529 = vmatpush.msra.mxu0 %v446
      %1530 = vmatpush.msra.mxu0 %v443
      %1531 = vmatpush.msra.mxu0 %v440
      %1532 = vmatpush.msra.mxu0 %v437
      %1533 = vmatpush.msra.mxu0 %v434
      %1534 = vmatpush.msra.mxu0 %v431
      %1535 = vmatpush.msra.mxu0 %v428
      %1536 = vmatpush.msra.mxu0 %v425
      %1537 = vmatpush.msra.mxu0 %v422
      %1538 = vmatpush.msra.mxu0 %v419
      %1539 = vmatpush.msra.mxu0 %v416
      %1540 = vmatpush.msra.mxu0 %v413
      %1541 = vmatmul.f32.gmra.mxu0 %v1467
      %v1542 = vpop.f32.mrf.mxu0
      %v1543 = vadd.f32 %v465, %v1542
      %1544 = vdwg.mxu0
      %1545 = vmatpush.msra.mxu0 %v459
      %1546 = vmatpush.msra.mxu0 %v456
      %1547 = vmatpush.msra.mxu0 %v453
      %1548 = vmatpush.msra.mxu0 %v450
      %1549 = vmatpush.msra.mxu0 %v447
      %1550 = vmatpush.msra.mxu0 %v444
      %1551 = vmatpush.msra.mxu0 %v441
      %1552 = vmatpush.msra.mxu0 %v438
      %1553 = vmatpush.msra.mxu0 %v435
      %1554 = vmatpush.msra.mxu0 %v432
      %1555 = vmatpush.msra.mxu0 %v429
      %1556 = vmatpush.msra.mxu0 %v426
      %1557 = vmatpush.msra.mxu0 %v423
      %1558 = vmatpush.msra.mxu0 %v420
      %1559 = vmatpush.msra.mxu0 %v417
      %1560 = vmatpush.msra.mxu0 %v414
      %1561 = vmatmul.f32.gmra.mxu0 %v1467
      %v1562 = vpop.f32.mrf.mxu0
      %v1563 = vadd.f32 %v466, %v1562
      %1564 = vdwg.mxu0
      %v1565 = vld [vmem:[#allocation2 + $0xa8] sm:$0xff]
      %v1566 = vld [vmem:[#allocation2 + $0xb0] sm:$0xff]
      %v1567 = vld [vmem:[#allocation2 + $0xb8] sm:$0xff]
      %v1568 = vadd.f32 %v1565, %v1523
      %v1569 = vxor.u32 %v1568, 2147483648
      %v1570 = vmul.f32 %v1569, 1.442695
      %v1571 = vpow.pop %v1570
      %v1572 = vadd.f32 %v1571, 1.0
      %v1573 = vrcp.pop %v1572
      %v1574 = vmul.f32 %v1572, %v1573
      %v1575 = vsub.f32 1.0, %v1574
      %v1576 = vmul.f32 %v1573, %v1575
      %v1577 = vadd.f32 %v1573, %v1576
      %vm1578 = vweird.f32 %v1572
      %vm1579 = vweird.f32 %v1573
      %vm1580 = vmor %vm1578, %vm1579
      %v1581 = vsel %vm1580, %v1573, %v1577
      %v1582 = vand.u32 2147483647, %v1572
      %vm1583 = vcmp.eq.f32.partialorder %v1582, 8.507059e+37
      %v1584 = vand.u32 %v1572, 2147483648
      %v1585 = vor.u32 1.1754944e-38, %v1584
      %v1586 = vsel %vm1583, %v1585, %v1581
      %v1587 = vmul.f32 1.0, %v1586
      %v1588 = vadd.f32 %v1566, %v1543
      %v1589 = vxor.u32 %v1588, 2147483648
      %v1590 = vmul.f32 %v1589, 1.442695
      %v1591 = vpow.pop %v1590
      %v1592 = vadd.f32 %v1591, 1.0
      %v1593 = vrcp.pop %v1592
      %v1594 = vmul.f32 %v1592, %v1593
      %v1595 = vsub.f32 1.0, %v1594
      %v1596 = vmul.f32 %v1593, %v1595
      %v1597 = vadd.f32 %v1593, %v1596
      %vm1598 = vweird.f32 %v1592
      %vm1599 = vweird.f32 %v1593
      %vm1600 = vmor %vm1598, %vm1599
      %v1601 = vsel %vm1600, %v1593, %v1597
      %v1602 = vand.u32 2147483647, %v1592
      %vm1603 = vcmp.eq.f32.partialorder %v1602, 8.507059e+37
      %v1604 = vand.u32 %v1592, 2147483648
      %v1605 = vor.u32 1.1754944e-38, %v1604
      %v1606 = vsel %vm1603, %v1605, %v1601
      %v1607 = vmul.f32 1.0, %v1606
      %v1608 = vmul.f32 %v1587, %v1563
      %v1609 = vadd.f32 %v1567, %v1608
      %v1610 = vtanh.pop %v1609
      %v1611 = vsub.f32 1.0, %v1607
      %v1612 = vmul.f32 %v1611, %v1610
      %v1613 = vmul.f32 %v1607, %v1467
      %v1614 = vadd.f32 %v1612, %v1613
      %1615 = vst [vmem:[#allocation3 + $0x38] sm:$0xff] %v1614
      %v1616 = vmul.f32 %v1614, %v582
      %1617 = vadd.xlane.f32.xlu0 %v1616
      %v1618 = vpop.xlane.xlu0 %1617
      %v1619 = vadd.f32 %v1618, %v588
      %v1620 = vld [vmem:[%s1 + $0x38] sm:$0xff]
      %v1621 = vadd.f32 %v1619, %v1620
      %v1622 = vmax.f32 %v1475, %v1621
      %v1623 = vsub.f32 %v1475, %v1622
      %v1624 = vmul.f32 %v1623, 1.442695
      %v1625 = vpow.pop %v1624
      %v1626 = vsub.f32 %v1621, %v1622
      %v1627 = vmul.f32 %v1626, 1.442695
      %v1628 = vpow.pop %v1627
      %v1629 = vmul.f32 %v1483, %v1625
      %v1630 = vadd.f32 %v1629, %v1628
      %1632 = vset.pattern.permute.xlu0 0
      %1633 = vperm.xlu0 %1632, %v1625
      %v1634 = vpop.permute.xlu0 %1633
      %v1636 = vmul.f32 %v1496, %v1634
      %1638 = vset.pattern.permute.xlu0 0
      %1639 = vperm.xlu0 %1638, %v1628
      %v1640 = vpop.permute.xlu0 %1639
      %v1642 = vmul.f32 %v1640, %v1614
      %v1643 = vadd.f32 %v1636, %v1642
      %v1644 = vrcp.pop %v1630
      %1646 = vset.pattern.permute.xlu0 0
      %1647 = vperm.xlu0 %1646, %v1644
      %v1648 = vpop.permute.xlu0 %1647
      %v1650 = vmul.f32 %v1643, %v1648
      %1651 = vst [vmem:[#allocation4 + $0x38] sm:$0xff] %v1650
      %v1652 = vld [vmem:[%s1] sm:$0xff]
      %v1653 = vld [vmem:[%s1 + $0x8] sm:$0xff]
      %v1654 = vld [vmem:[%s1 + $0x10] sm:$0xff]
      %v1655 = vld [vmem:[%s1 + $0x18] sm:$0xff]
      %v1656 = vld [vmem:[%s1 + $0x20] sm:$0xff]
      %v1657 = vld [vmem:[%s1 + $0x28] sm:$0xff]
      %v1658 = vld [vmem:[%s1 + $0x30] sm:$0xff]
      %v1659 = vld [vmem:[%s1 + $0x38] sm:$0xff]
      %vm1660 = vcmp.gt.f32.partialorder %v1652, -1.0
      %vm1661 = vcmp.gt.f32.partialorder %v1653, -1.0
      %vm1662 = vcmp.gt.f32.partialorder %v1654, -1.0
      %vm1663 = vcmp.gt.f32.partialorder %v1655, -1.0
      %vm1664 = vcmp.gt.f32.partialorder %v1656, -1.0
      %vm1665 = vcmp.gt.f32.partialorder %v1657, -1.0
      %vm1666 = vcmp.gt.f32.partialorder %v1658, -1.0
      %vm1667 = vcmp.gt.f32.partialorder %v1659, -1.0
      %v1668 = vsel %vm1660, 1, 0
      %v1669 = vsel %vm1661, 1, 0
      %v1670 = vsel %vm1662, 1, 0
      %v1671 = vsel %vm1663, 1, 0
      %v1672 = vsel %vm1664, 1, 0
      %v1673 = vsel %vm1665, 1, 0
      %v1674 = vsel %vm1666, 1, 0
      %v1675 = vsel %vm1667, 1, 0
      %v1676 = vcvt.s32.f32 %v1668
      %v1677 = vcvt.s32.f32 %v1669
      %v1678 = vcvt.s32.f32 %v1670
      %v1679 = vcvt.s32.f32 %v1671
      %v1680 = vcvt.s32.f32 %v1672
      %v1681 = vcvt.s32.f32 %v1673
      %v1682 = vcvt.s32.f32 %v1674
      %v1683 = vcvt.s32.f32 %v1675
      %v1684 = vld [vmem:[#allocation3] sm:$0xff]
      %v1685 = vld [vmem:[#allocation3 + $0x8] sm:$0xff]
      %v1686 = vld [vmem:[#allocation3 + $0x10] sm:$0xff]
      %v1687 = vld [vmem:[#allocation3 + $0x18] sm:$0xff]
      %v1688 = vld [vmem:[#allocation3 + $0x20] sm:$0xff]
      %v1689 = vld [vmem:[#allocation3 + $0x28] sm:$0xff]
      %v1690 = vld [vmem:[#allocation3 + $0x30] sm:$0xff]
      %v1691 = vld [vmem:[#allocation3 + $0x38] sm:$0xff]
      %1693 = vset.pattern.permute.xlu0 0
      %1694 = vperm.xlu0 %1693, %v1676
      %v1695 = vpop.permute.xlu0 %1694
      %1698 = vset.pattern.permute.xlu0 0
      %1699 = vperm.xlu0 %1698, %v1677
      %v1700 = vpop.permute.xlu0 %1699
      %1703 = vset.pattern.permute.xlu0 0
      %1704 = vperm.xlu0 %1703, %v1678
      %v1705 = vpop.permute.xlu0 %1704
      %1708 = vset.pattern.permute.xlu0 0
      %1709 = vperm.xlu0 %1708, %v1679
      %v1710 = vpop.permute.xlu0 %1709
      %1713 = vset.pattern.permute.xlu0 0
      %1714 = vperm.xlu0 %1713, %v1680
      %v1715 = vpop.permute.xlu0 %1714
      %1718 = vset.pattern.permute.xlu0 0
      %1719 = vperm.xlu0 %1718, %v1681
      %v1720 = vpop.permute.xlu0 %1719
      %1723 = vset.pattern.permute.xlu0 0
      %1724 = vperm.xlu0 %1723, %v1682
      %v1725 = vpop.permute.xlu0 %1724
      %1728 = vset.pattern.permute.xlu0 0
      %1729 = vperm.xlu0 %1728, %v1683
      %v1730 = vpop.permute.xlu0 %1729
      %v1732 = vmul.f32 %v1684, %v1695
      %v1733 = vmul.f32 %v1685, %v1700
      %v1734 = vmul.f32 %v1686, %v1705
      %v1735 = vmul.f32 %v1687, %v1710
      %v1736 = vmul.f32 %v1688, %v1715
      %v1737 = vmul.f32 %v1689, %v1720
      %v1738 = vmul.f32 %v1690, %v1725
      %v1739 = vmul.f32 %v1691, %v1730
      %1740 = vst [vmem:[#allocation3] sm:$0xff] %v1732
      %1741 = vst [vmem:[#allocation3 + $0x8] sm:$0xff] %v1733
      %1742 = vst [vmem:[#allocation3 + $0x10] sm:$0xff] %v1734
      %1743 = vst [vmem:[#allocation3 + $0x18] sm:$0xff] %v1735
      %1744 = vst [vmem:[#allocation3 + $0x20] sm:$0xff] %v1736
      %1745 = vst [vmem:[#allocation3 + $0x28] sm:$0xff] %v1737
      %1746 = vst [vmem:[#allocation3 + $0x30] sm:$0xff] %v1738
      %1747 = vst [vmem:[#allocation3 + $0x38] sm:$0xff] %v1739
    $region81: #{tpu_custom_call.1} parent=1 // pred_fallthru
      _
    %v1748 = vld [vmem:[#allocation3] sm:$0xff]
    %v1749 = vld [vmem:[#allocation3 + $0x8] sm:$0xff]
    %v1750 = vld [vmem:[#allocation3 + $0x10] sm:$0xff]
    %v1751 = vld [vmem:[#allocation3 + $0x18] sm:$0xff]
    %v1752 = vld [vmem:[#allocation3 + $0x20] sm:$0xff]
    %v1753 = vld [vmem:[#allocation3 + $0x28] sm:$0xff]
    %v1754 = vld [vmem:[#allocation3 + $0x30] sm:$0xff]
    %v1755 = vld [vmem:[#allocation3 + $0x38] sm:$0xff]
    %v1756 = vld [vmem:[#allocation12] sm:$0xff]
    %v1757 = vld [vmem:[#allocation12 + $0x8] sm:$0xff]
    %v1758 = vld [vmem:[#allocation12 + $0x10] sm:$0xff]
    %v1759 = vld [vmem:[#allocation12 + $0x18] sm:$0xff]
    %v1760 = vld [vmem:[#allocation12 + $0x20] sm:$0xff]
    %v1761 = vld [vmem:[#allocation12 + $0x28] sm:$0xff]
    %v1762 = vld [vmem:[#allocation12 + $0x30] sm:$0xff]
    %v1763 = vld [vmem:[#allocation12 + $0x38] sm:$0xff]
    %v1764 = vld [vmem:[#allocation12 + $0x40] sm:$0xff]
    %v1765 = vld [vmem:[#allocation12 + $0x48] sm:$0xff]
    %v1766 = vld [vmem:[#allocation12 + $0x50] sm:$0xff]
    %v1767 = vld [vmem:[#allocation12 + $0x58] sm:$0xff]
    %v1768 = vld [vmem:[#allocation12 + $0x60] sm:$0xff]
    %v1769 = vld [vmem:[#allocation12 + $0x68] sm:$0xff]
    %v1770 = vld [vmem:[#allocation12 + $0x70] sm:$0xff]
    %v1771 = vld [vmem:[#allocation12 + $0x78] sm:$0xff]
    %v1772 = vld [vmem:[#allocation4] sm:$0xff]
    %v1773 = vld [vmem:[#allocation4 + $0x8] sm:$0xff]
    %v1774 = vld [vmem:[#allocation4 + $0x10] sm:$0xff]
    %v1775 = vld [vmem:[#allocation4 + $0x18] sm:$0xff]
    %v1776 = vld [vmem:[#allocation4 + $0x20] sm:$0xff]
    %v1777 = vld [vmem:[#allocation4 + $0x28] sm:$0xff]
    %v1778 = vld [vmem:[#allocation4 + $0x30] sm:$0xff]
    %v1779 = vld [vmem:[#allocation4 + $0x38] sm:$0xff]
    %v1780 = vld [vmem:[#allocation14] sm:$0xff]
    %v1781 = vld [vmem:[#allocation14 + $0x8] sm:$0xff]
    %v1782 = vld [vmem:[#allocation14 + $0x10] sm:$0xff]
    %v1783 = vld [vmem:[#allocation14 + $0x18] sm:$0xff]
    %v1784 = vld [vmem:[#allocation14 + $0x20] sm:$0xff]
    %v1785 = vld [vmem:[#allocation14 + $0x28] sm:$0xff]
    %v1786 = vld [vmem:[#allocation14 + $0x30] sm:$0xff]
    %v1787 = vld [vmem:[#allocation14 + $0x38] sm:$0xff]
    %v1788 = vld [vmem:[#allocation14 + $0x40] sm:$0xff]
    %v1789 = vld [vmem:[#allocation14 + $0x48] sm:$0xff]
    %v1790 = vld [vmem:[#allocation14 + $0x50] sm:$0xff]
    %v1791 = vld [vmem:[#allocation14 + $0x58] sm:$0xff]
    %v1792 = vld [vmem:[#allocation14 + $0x60] sm:$0xff]
    %v1793 = vld [vmem:[#allocation14 + $0x68] sm:$0xff]
    %v1794 = vld [vmem:[#allocation14 + $0x70] sm:$0xff]
    %v1795 = vld [vmem:[#allocation14 + $0x78] sm:$0xff]
    %1796 = vmatpush.msra.mxu0 %v1795
    %1797 = vmatpush.msra.mxu0 %v1794
    %1798 = vmatpush.msra.mxu0 %v1793
    %1799 = vmatpush.msra.mxu0 %v1792
    %1800 = vmatpush.msra.mxu0 %v1791
    %1801 = vmatpush.msra.mxu0 %v1790
    %1802 = vmatpush.msra.mxu0 %v1789
    %1803 = vmatpush.msra.mxu0 %v1788
    %1804 = vmatpush.msra.mxu0 %v1787
    %1805 = vmatpush.msra.mxu0 %v1786
    %1806 = vmatpush.msra.mxu0 %v1785
    %1807 = vmatpush.msra.mxu0 %v1784
    %1808 = vmatpush.msra.mxu0 %v1783
    %1809 = vmatpush.msra.mxu0 %v1782
    %1810 = vmatpush.msra.mxu0 %v1781
    %1811 = vmatpush.msra.mxu0 %v1780
    %1812 = vmatmul.f32.gmra.mxu0 %v1772
    %v1813 = vpop.f32.mrf.mxu0
    %v1814 = vadd.f32 0.0, %v1813
    %1815 = vmatmul.f32.gmra.mxu0 %v1773
    %v1816 = vpop.f32.mrf.mxu0
    %v1817 = vadd.f32 0.0, %v1816
    %1818 = vmatmul.f32.gmra.mxu0 %v1774
    %v1819 = vpop.f32.mrf.mxu0
    %v1820 = vadd.f32 0.0, %v1819
    %1821 = vmatmul.f32.gmra.mxu0 %v1775
    %v1822 = vpop.f32.mrf.mxu0
    %v1823 = vadd.f32 0.0, %v1822
    %1824 = vmatmul.f32.gmra.mxu0 %v1776
    %v1825 = vpop.f32.mrf.mxu0
    %v1826 = vadd.f32 0.0, %v1825
    %1827 = vmatmul.f32.gmra.mxu0 %v1777
    %v1828 = vpop.f32.mrf.mxu0
    %v1829 = vadd.f32 0.0, %v1828
    %1830 = vmatmul.f32.gmra.mxu0 %v1778
    %v1831 = vpop.f32.mrf.mxu0
    %v1832 = vadd.f32 0.0, %v1831
    %1833 = vmatmul.f32.gmra.mxu0 %v1779
    %v1834 = vpop.f32.mrf.mxu0
    %v1835 = vadd.f32 0.0, %v1834
    %1836 = vdwg.mxu0
    %1837 = vmatpush.msra.mxu0 %v1771
    %1838 = vmatpush.msra.mxu0 %v1770
    %1839 = vmatpush.msra.mxu0 %v1769
    %1840 = vmatpush.msra.mxu0 %v1768
    %1841 = vmatpush.msra.mxu0 %v1767
    %1842 = vmatpush.msra.mxu0 %v1766
    %1843 = vmatpush.msra.mxu0 %v1765
    %1844 = vmatpush.msra.mxu0 %v1764
    %1845 = vmatpush.msra.mxu0 %v1763
    %1846 = vmatpush.msra.mxu0 %v1762
    %1847 = vmatpush.msra.mxu0 %v1761
    %1848 = vmatpush.msra.mxu0 %v1760
    %1849 = vmatpush.msra.mxu0 %v1759
    %1850 = vmatpush.msra.mxu0 %v1758
    %1851 = vmatpush.msra.mxu0 %v1757
    %1852 = vmatpush.msra.mxu0 %v1756
    %1853 = vmatmul.f32.gmra.mxu0 %v1748
    %v1854 = vpop.f32.mrf.mxu0
    %v1855 = vadd.f32 %v1814, %v1854
    %1856 = vmatmul.f32.gmra.mxu0 %v1749
    %v1857 = vpop.f32.mrf.mxu0
    %v1858 = vadd.f32 %v1817, %v1857
    %1859 = vmatmul.f32.gmra.mxu0 %v1750
    %v1860 = vpop.f32.mrf.mxu0
    %v1861 = vadd.f32 %v1820, %v1860
    %1862 = vmatmul.f32.gmra.mxu0 %v1751
    %v1863 = vpop.f32.mrf.mxu0
    %v1864 = vadd.f32 %v1823, %v1863
    %1865 = vmatmul.f32.gmra.mxu0 %v1752
    %v1866 = vpop.f32.mrf.mxu0
    %v1867 = vadd.f32 %v1826, %v1866
    %1868 = vmatmul.f32.gmra.mxu0 %v1753
    %v1869 = vpop.f32.mrf.mxu0
    %v1870 = vadd.f32 %v1829, %v1869
    %1871 = vmatmul.f32.gmra.mxu0 %v1754
    %v1872 = vpop.f32.mrf.mxu0
    %v1873 = vadd.f32 %v1832, %v1872
    %1874 = vmatmul.f32.gmra.mxu0 %v1755
    %v1875 = vpop.f32.mrf.mxu0
    %v1876 = vadd.f32 %v1835, %v1875
    %1877 = vdwg.mxu0
    %v1878 = vld [vmem:[%s2] sm:$0xff]
    %v1879 = vld [vmem:[%s2 + $0x8] sm:$0xff]
    %v1880 = vld [vmem:[%s2 + $0x10] sm:$0xff]
    %v1881 = vld [vmem:[%s2 + $0x18] sm:$0xff]
    %v1882 = vld [vmem:[%s2 + $0x20] sm:$0xff]
    %v1883 = vld [vmem:[%s2 + $0x28] sm:$0xff]
    %v1884 = vld [vmem:[%s2 + $0x30] sm:$0xff]
    %v1885 = vld [vmem:[%s2 + $0x38] sm:$0xff]
    %1887 = vset.pattern.permute.xlu0 0
    %1888 = vperm.xlu0 %1887, %v1878
    %v1889 = vpop.permute.xlu0 %1888
    %1892 = vset.pattern.permute.xlu0 0
    %1893 = vperm.xlu0 %1892, %v1879
    %v1894 = vpop.permute.xlu0 %1893
    %1897 = vset.pattern.permute.xlu0 0
    %1898 = vperm.xlu0 %1897, %v1880
    %v1899 = vpop.permute.xlu0 %1898
    %1902 = vset.pattern.permute.xlu0 0
    %1903 = vperm.xlu0 %1902, %v1881
    %v1904 = vpop.permute.xlu0 %1903
    %1907 = vset.pattern.permute.xlu0 0
    %1908 = vperm.xlu0 %1907, %v1882
    %v1909 = vpop.permute.xlu0 %1908
    %1912 = vset.pattern.permute.xlu0 0
    %1913 = vperm.xlu0 %1912, %v1883
    %v1914 = vpop.permute.xlu0 %1913
    %1917 = vset.pattern.permute.xlu0 0
    %1918 = vperm.xlu0 %1917, %v1884
    %v1919 = vpop.permute.xlu0 %1918
    %1922 = vset.pattern.permute.xlu0 0
    %1923 = vperm.xlu0 %1922, %v1885
    %v1924 = vpop.permute.xlu0 %1923
    %v1926 = vmul.f32 %v1855, %v1889
    %v1927 = vmul.f32 %v1858, %v1894
    %v1928 = vmul.f32 %v1861, %v1899
    %v1929 = vmul.f32 %v1864, %v1904
    %v1930 = vmul.f32 %v1867, %v1909
    %v1931 = vmul.f32 %v1870, %v1914
    %v1932 = vmul.f32 %v1873, %v1919
    %v1933 = vmul.f32 %v1876, %v1924
    %v1934 = vld [vmem:[%s13] sm:$0x1]
    %v1936 = vperm.slane %v1934, 0
    %v1938 = vadd.f32 %v1926, %v1936
    %v1939 = vadd.f32 %v1927, %v1936
    %v1940 = vadd.f32 %v1928, %v1936
    %v1941 = vadd.f32 %v1929, %v1936
    %v1942 = vadd.f32 %v1930, %v1936
    %v1943 = vadd.f32 %v1931, %v1936
    %v1944 = vadd.f32 %v1932, %v1936
    %v1945 = vadd.f32 %v1933, %v1936
    %v1946 = vxor.u32 %v1938, 2147483648
    %v1947 = vxor.u32 %v1939, 2147483648
    %v1948 = vxor.u32 %v1940, 2147483648
    %v1949 = vxor.u32 %v1941, 2147483648
    %v1950 = vxor.u32 %v1942, 2147483648
    %v1951 = vxor.u32 %v1943, 2147483648
    %v1952 = vxor.u32 %v1944, 2147483648
    %v1953 = vxor.u32 %v1945, 2147483648
    %v1954 = vmul.f32 %v1946, 1.442695
    %v1955 = vpow.pop %v1954
    %v1956 = vmul.f32 %v1947, 1.442695
    %v1957 = vpow.pop %v1956
    %v1958 = vmul.f32 %v1948, 1.442695
    %v1959 = vpow.pop %v1958
    %v1960 = vmul.f32 %v1949, 1.442695
    %v1961 = vpow.pop %v1960
    %v1962 = vmul.f32 %v1950, 1.442695
    %v1963 = vpow.pop %v1962
    %v1964 = vmul.f32 %v1951, 1.442695
    %v1965 = vpow.pop %v1964
    %v1966 = vmul.f32 %v1952, 1.442695
    %v1967 = vpow.pop %v1966
    %v1968 = vmul.f32 %v1953, 1.442695
    %v1969 = vpow.pop %v1968
    %v1970 = vadd.f32 %v1955, 1.0
    %v1971 = vadd.f32 %v1957, 1.0
    %v1972 = vadd.f32 %v1959, 1.0
    %v1973 = vadd.f32 %v1961, 1.0
    %v1974 = vadd.f32 %v1963, 1.0
    %v1975 = vadd.f32 %v1965, 1.0
    %v1976 = vadd.f32 %v1967, 1.0
    %v1977 = vadd.f32 %v1969, 1.0
    %v1978 = vrcp.pop %v1970
    %v1979 = vmul.f32 %v1970, %v1978
    %v1980 = vsub.f32 1.0, %v1979
    %v1981 = vmul.f32 %v1978, %v1980
    %v1982 = vadd.f32 %v1978, %v1981
    %vm1983 = vweird.f32 %v1970
    %vm1984 = vweird.f32 %v1978
    %vm1985 = vmor %vm1983, %vm1984
    %v1986 = vsel %vm1985, %v1978, %v1982
    %v1987 = vand.u32 2147483647, %v1970
    %vm1988 = vcmp.eq.f32.partialorder %v1987, 8.507059e+37
    %v1989 = vand.u32 %v1970, 2147483648
    %v1990 = vor.u32 1.1754944e-38, %v1989
    %v1991 = vsel %vm1988, %v1990, %v1986
    %v1992 = vmul.f32 1.0, %v1991
    %v1993 = vrcp.pop %v1971
    %v1994 = vmul.f32 %v1971, %v1993
    %v1995 = vsub.f32 1.0, %v1994
    %v1996 = vmul.f32 %v1993, %v1995
    %v1997 = vadd.f32 %v1993, %v1996
    %vm1998 = vweird.f32 %v1971
    %vm1999 = vweird.f32 %v1993
    %vm2000 = vmor %vm1998, %vm1999
    %v2001 = vsel %vm2000, %v1993, %v1997
    %v2002 = vand.u32 2147483647, %v1971
    %vm2003 = vcmp.eq.f32.partialorder %v2002, 8.507059e+37
    %v2004 = vand.u32 %v1971, 2147483648
    %v2005 = vor.u32 1.1754944e-38, %v2004
    %v2006 = vsel %vm2003, %v2005, %v2001
    %v2007 = vmul.f32 1.0, %v2006
    %v2008 = vrcp.pop %v1972
    %v2009 = vmul.f32 %v1972, %v2008
    %v2010 = vsub.f32 1.0, %v2009
    %v2011 = vmul.f32 %v2008, %v2010
    %v2012 = vadd.f32 %v2008, %v2011
    %vm2013 = vweird.f32 %v1972
    %vm2014 = vweird.f32 %v2008
    %vm2015 = vmor %vm2013, %vm2014
    %v2016 = vsel %vm2015, %v2008, %v2012
    %v2017 = vand.u32 2147483647, %v1972
    %vm2018 = vcmp.eq.f32.partialorder %v2017, 8.507059e+37
    %v2019 = vand.u32 %v1972, 2147483648
    %v2020 = vor.u32 1.1754944e-38, %v2019
    %v2021 = vsel %vm2018, %v2020, %v2016
    %v2022 = vmul.f32 1.0, %v2021
    %v2023 = vrcp.pop %v1973
    %v2024 = vmul.f32 %v1973, %v2023
    %v2025 = vsub.f32 1.0, %v2024
    %v2026 = vmul.f32 %v2023, %v2025
    %v2027 = vadd.f32 %v2023, %v2026
    %vm2028 = vweird.f32 %v1973
    %vm2029 = vweird.f32 %v2023
    %vm2030 = vmor %vm2028, %vm2029
    %v2031 = vsel %vm2030, %v2023, %v2027
    %v2032 = vand.u32 2147483647, %v1973
    %vm2033 = vcmp.eq.f32.partialorder %v2032, 8.507059e+37
    %v2034 = vand.u32 %v1973, 2147483648
    %v2035 = vor.u32 1.1754944e-38, %v2034
    %v2036 = vsel %vm2033, %v2035, %v2031
    %v2037 = vmul.f32 1.0, %v2036
    %v2038 = vrcp.pop %v1974
    %v2039 = vmul.f32 %v1974, %v2038
    %v2040 = vsub.f32 1.0, %v2039
    %v2041 = vmul.f32 %v2038, %v2040
    %v2042 = vadd.f32 %v2038, %v2041
    %vm2043 = vweird.f32 %v1974
    %vm2044 = vweird.f32 %v2038
    %vm2045 = vmor %vm2043, %vm2044
    %v2046 = vsel %vm2045, %v2038, %v2042
    %v2047 = vand.u32 2147483647, %v1974
    %vm2048 = vcmp.eq.f32.partialorder %v2047, 8.507059e+37
    %v2049 = vand.u32 %v1974, 2147483648
    %v2050 = vor.u32 1.1754944e-38, %v2049
    %v2051 = vsel %vm2048, %v2050, %v2046
    %v2052 = vmul.f32 1.0, %v2051
    %v2053 = vrcp.pop %v1975
    %v2054 = vmul.f32 %v1975, %v2053
    %v2055 = vsub.f32 1.0, %v2054
    %v2056 = vmul.f32 %v2053, %v2055
    %v2057 = vadd.f32 %v2053, %v2056
    %vm2058 = vweird.f32 %v1975
    %vm2059 = vweird.f32 %v2053
    %vm2060 = vmor %vm2058, %vm2059
    %v2061 = vsel %vm2060, %v2053, %v2057
    %v2062 = vand.u32 2147483647, %v1975
    %vm2063 = vcmp.eq.f32.partialorder %v2062, 8.507059e+37
    %v2064 = vand.u32 %v1975, 2147483648
    %v2065 = vor.u32 1.1754944e-38, %v2064
    %v2066 = vsel %vm2063, %v2065, %v2061
    %v2067 = vmul.f32 1.0, %v2066
    %v2068 = vrcp.pop %v1976
    %v2069 = vmul.f32 %v1976, %v2068
    %v2070 = vsub.f32 1.0, %v2069
    %v2071 = vmul.f32 %v2068, %v2070
    %v2072 = vadd.f32 %v2068, %v2071
    %vm2073 = vweird.f32 %v1976
    %vm2074 = vweird.f32 %v2068
    %vm2075 = vmor %vm2073, %vm2074
    %v2076 = vsel %vm2075, %v2068, %v2072
    %v2077 = vand.u32 2147483647, %v1976
    %vm2078 = vcmp.eq.f32.partialorder %v2077, 8.507059e+37
    %v2079 = vand.u32 %v1976, 2147483648
    %v2080 = vor.u32 1.1754944e-38, %v2079
    %v2081 = vsel %vm2078, %v2080, %v2076
    %v2082 = vmul.f32 1.0, %v2081
    %v2083 = vrcp.pop %v1977
    %v2084 = vmul.f32 %v1977, %v2083
    %v2085 = vsub.f32 1.0, %v2084
    %v2086 = vmul.f32 %v2083, %v2085
    %v2087 = vadd.f32 %v2083, %v2086
    %vm2088 = vweird.f32 %v1977
    %vm2089 = vweird.f32 %v2083
    %vm2090 = vmor %vm2088, %vm2089
    %v2091 = vsel %vm2090, %v2083, %v2087
    %v2092 = vand.u32 2147483647, %v1977
    %vm2093 = vcmp.eq.f32.partialorder %v2092, 8.507059e+37
    %v2094 = vand.u32 %v1977, 2147483648
    %v2095 = vor.u32 1.1754944e-38, %v2094
    %v2096 = vsel %vm2093, %v2095, %v2091
    %v2097 = vmul.f32 1.0, %v2096
    %2098 = vst [vmem:[#allocation15] sm:$0xff] %v1992
    %2099 = vst [vmem:[#allocation15 + $0x8] sm:$0xff] %v2007
    %2100 = vst [vmem:[#allocation15 + $0x10] sm:$0xff] %v2022
    %2101 = vst [vmem:[#allocation15 + $0x18] sm:$0xff] %v2037
    %2102 = vst [vmem:[#allocation15 + $0x20] sm:$0xff] %v2052
    %2103 = vst [vmem:[#allocation15 + $0x28] sm:$0xff] %v2067
    %2104 = vst [vmem:[#allocation15 + $0x30] sm:$0xff] %v2082
    %2105 = vst [vmem:[#allocation15 + $0x38] sm:$0xff] %v2097
    // Predicated region
    $region82: #{tpu_custom_call.1} parent=1 // pred_check
      _
    $region83: #{tpu_custom_call.1} parent=1 // pred_check_branch
      %2107 = sbr.rel (0) target = $region85
    $region84: #{tpu_custom_call.1} parent=1 // pred_region
      %2109 = vsyncadd [#allocation8], 0
      %s2110 = sshll.u32 [#allocation15], 4
      %s2111 = int_to_ptr.vmem [resolvable:$true] %s2110
      %s2112 = sshll.u32 %s14, 4
      %s2113 = int_to_ptr.hbm [resolvable:$true] %s2112
      %2118 = dma.vmem_to_hbm [thread:$0]  %s2111, 1024, %s2113, [#allocation8], 128, 128, 8
    $region85: #{tpu_custom_call.1} parent=1 // pred_fallthru
      _
    // Predicated region
    $region86: #{tpu_custom_call.1} parent=1 // pred_check
      _
    $region87: #{tpu_custom_call.1} parent=1 // pred_check_branch
      %2120 = sbr.rel (0) target = $region89
    $region88: #{tpu_custom_call.1} parent=1 // pred_region
      %2122 = dma.done [#allocation8], 1024
    $region89: #{tpu_custom_call.1} parent=1 // pred_fallthru
      _
    %2123 = vsyncpa [#allocation7], 1
    %2124 = vsyncpa [#allocation10], 1
    %2125 = vsyncpa [#allocation13], 1
    %2126 = vsyncpa [#allocation8], 1

</llo_original>
